<compile_context>
chip_gen: v7x
topology: tpu7x:2x2x1
jax: 0.10.0
libtpu: 0.0.40
codegen_flags: <defaults>
</compile_context>

<pallas_src>
import functools
import math

import jax
import jax.numpy as jnp
from jax import lax
from jax.experimental import pallas as pl
from jax.experimental.pallas import tpu as pltpu

EPS = 1e-6
NEG_INF = -1e9


def _layer_norm(x, alpha, bias):
    # Matches PyTorch LayerNormalization: mean over last dim, *unbiased* std
    # (divide by D-1 like torch.std default), and (std + eps) in the denominator.
    d = x.shape[-1]
    mean = jnp.mean(x, axis=-1, keepdims=True)
    var = jnp.sum((x - mean) ** 2, axis=-1, keepdims=True) * (1.0 / (d - 1))
    inv = pl.reciprocal(jnp.sqrt(var) + EPS)   # one reciprocal per row
    return alpha * (x - mean) * inv + bias


def decoder_block_kernel(
    # activations / masks
    x_ref, enc_ref, tgt_mask_ref, src_mask_ref,
    # self-attention params (QKV fused along columns)
    sa_wqkv_ref, sa_bqkv_ref, sa_wo_ref, sa_bo_ref,
    # cross-attention params (KV fused along columns)
    ca_wq_ref, ca_bq_ref, ca_wkv_ref, ca_bkv_ref, ca_wo_ref, ca_bo_ref,
    # feed-forward params
    ff_w1_ref, ff_b1_ref, ff_w2_ref, ff_b2_ref,
    # layer-norm scalars in SMEM: (3, 2) -> [layer, (alpha, bias)]
    ln_ref,
    # output
    o_ref,
    # per-batch persistent VMEM scratch
    sa_q_sc,      # (S_t, D)   hoisted self-attn Q  = LN(x) @ Wq + bq
    sa_kv_sc,     # (S_t, 2D)  hoisted self-attn [K | V]
    ca_kv_sc,     # (S_s, 2D)  hoisted cross-attn [K | V] (from raw encoder output)
    *, h, tq, approx_recip,
):
    D = o_ref.shape[-1]
    d_k = D // h
    scale = 1.0 / math.sqrt(d_k)
    cd = sa_wqkv_ref.dtype            # matmul-input / scratch dtype (f32 or bf16)
    q_idx = pl.program_id(1)

    # ---------------- per-batch hoisted projections (run once, at q == 0) -----------
    @pl.when(q_idx == 0)
    def _():
        xn = _layer_norm(x_ref[0].astype(jnp.float32), ln_ref[0, 0], ln_ref[0, 1])
        # Fused QKV: single wide matmul, N = 3*D keeps the MXU filled.
        qkv = jnp.dot(xn.astype(cd), sa_wqkv_ref[...],
                      preferred_element_type=jnp.float32) + sa_bqkv_ref[...]
        sa_q_sc[...] = qkv[:, :D].astype(cd)
        sa_kv_sc[...] = qkv[:, D:].astype(cd)
        # Cross-attn K/V from the (un-normed) encoder output, fused (D, 2D) matmul.
        kv = jnp.dot(enc_ref[0].astype(cd), ca_wkv_ref[...],
                     preferred_element_type=jnp.float32) + ca_bkv_ref[...]
        ca_kv_sc[...] = kv.astype(cd)

    # ---------------- per-tile attention helper -------------------------------------
    def _attend(q_proj, kv_sc, neg_mask, wo_ref, bo_ref):
        """q_proj: (TQ, D) projected queries; kv_sc: (S_k, 2D) [K|V] scratch;
        neg_mask: (TQ, S_k) bool, True => masked."""
        outs = []
        for i in range(h):                               # static unroll over heads
            q_h = (q_proj[:, i * d_k:(i + 1) * d_k] * scale).astype(cd)
            k_h = kv_sc[:, i * d_k:(i + 1) * d_k]
            v_h = kv_sc[:, D + i * d_k:D + (i + 1) * d_k]
            # scores: (TQ, S_k) = q_h @ k_h^T (contract d_k), f32 accumulation
            s = lax.dot_general(q_h, k_h, (((1,), (1,)), ((), ())),
                                preferred_element_type=jnp.float32)
            s = jnp.where(neg_mask, NEG_INF, s)          # masked_fill_(mask == 0, -1e9)
            s = s - jnp.max(s, axis=-1, keepdims=True)
            p = jnp.exp(s)
            p = p * pl.reciprocal(jnp.sum(p, axis=-1, keepdims=True),
                                  approx=approx_recip)
            outs.append(jnp.dot(p.astype(cd), v_h, preferred_element_type=jnp.float32))
        # Merge heads along lanes and project with a single full-width matmul
        # (same summation order as the reference (S, D) @ (D, D)).
        merged = jnp.concatenate(outs, axis=-1)          # (TQ, D) f32
        return jnp.dot(merged.astype(cd), wo_ref[...],
                       preferred_element_type=jnp.float32) + bo_ref[...]

    # ---------------- per-tile decoder block ----------------------------------------
    qstart = pl.multiple_of(q_idx * tq, tq)
    x_t = x_ref[0, pl.ds(qstart, tq), :].astype(jnp.float32)       # raw residual input

    # Residual 1: x + SelfAttn(LN(x)); Q rows are a slice of the hoisted projection.
    q_self = sa_q_sc[pl.ds(qstart, tq), :]
    x_t = x_t + _attend(q_self, sa_kv_sc, tgt_mask_ref[...] == 0.0,
                        sa_wo_ref, sa_bo_ref)

    # Residual 2: x + CrossAttn(LN(x), enc, enc); per-tile Q projection (full width).
    xn = _layer_norm(x_t, ln_ref[1, 0], ln_ref[1, 1])
    q_cross = jnp.dot(xn.astype(cd), ca_wq_ref[...],
                      preferred_element_type=jnp.float32) + ca_bq_ref[...]
    x_t = x_t + _attend(q_cross, ca_kv_sc, src_mask_ref[...] == 0.0,
                        ca_wo_ref, ca_bo_ref)

    # Residual 3: x + FeedForward(LN(x)).
    xn = _layer_norm(x_t, ln_ref[2, 0], ln_ref[2, 1])
    hid = jnp.maximum(
        jnp.dot(xn.astype(cd), ff_w1_ref[...],
                preferred_element_type=jnp.float32) + ff_b1_ref[...], 0.0)
    x_t = x_t + jnp.dot(hid.astype(cd), ff_w2_ref[...],
                        preferred_element_type=jnp.float32) + ff_b2_ref[...]

    o_ref[0] = x_t.astype(o_ref.dtype)


def _vmem_limit_bytes():
    # Generation-aware scoped-VMEM budget: ~100 MiB on 128-MiB parts (v5e/v6e),
    # 3/4 of physical on 64-MiB parts (v7x).
    try:
        cap = pltpu.get_tpu_info().vmem_capacity_bytes
    except Exception:
        cap = 64 * 1024 * 1024
    if cap >= 96 * 1024 * 1024:
        return 100 * 1024 * 1024
    return int((cap * 3) // 4)


def decoder_block(x, enc, tgt_mask, src_mask, params, *, h, q_tile=128,
                  compute_dtype=jnp.float32):
    B, S_t, D = x.shape
    S_s = enc.shape[1]
    assert D % h == 0, "d_model must be divisible by h"
    cd = compute_dtype
    f32 = jnp.float32

    # Query tile + padding: never collapse to a single full-sequence tile.
    TQ = min(q_tile, S_t)
    n_qt = pl.cdiv(S_t, TQ)
    S_pad = n_qt * TQ
    if S_pad != S_t:
        pad = S_pad - S_t
        x_p = jnp.pad(x, ((0, 0), (0, pad), (0, 0)))
        tgt_mask_p = jnp.pad(tgt_mask, ((0, pad), (0, pad)))   # padded keys masked (0)
        src_mask_p = jnp.pad(src_mask, ((0, pad), (0, 0)))
    else:
        x_p, tgt_mask_p, src_mask_p = x, tgt_mask, src_mask

    # Fused weight slabs (one-off XLA prep), stored in the kernel compute dtype.
    sa_wqkv = jnp.concatenate(
        [params["sa_wq"], params["sa_wk"], params["sa_wv"]], axis=1).astype(cd)
    sa_bqkv = jnp.concatenate(
        [params["sa_bq"], params["sa_bk"], params["sa_bv"]], axis=1).astype(f32)
    ca_wkv = jnp.concatenate([params["ca_wk"], params["ca_wv"]], axis=1).astype(cd)
    ca_bkv = jnp.concatenate([params["ca_bk"], params["ca_bv"]], axis=1).astype(f32)

    weights = [
        sa_wqkv, sa_bqkv, params["sa_wo"].astype(cd), params["sa_bo"].astype(f32),
        params["ca_wq"].astype(cd), params["ca_bq"].astype(f32),
        ca_wkv, ca_bkv, params["ca_wo"].astype(cd), params["ca_bo"].astype(f32),
        params["ff_w1"].astype(cd), params["ff_b1"].astype(f32),
        params["ff_w2"].astype(cd), params["ff_b2"].astype(f32),
    ]

    kernel = functools.partial(decoder_block_kernel, h=h, tq=TQ,
                               approx_recip=(cd != jnp.float32))

    def _call(single_buffer_weights):
        pm = pl.Buffered(1) if single_buffer_weights else None

        def wspec(arr):
            shape = tuple(arr.shape)
            nd = len(shape)
            if pm is None:
                return pl.BlockSpec(shape, lambda b, q: (0,) * nd)
            # Constant-index weight blocks: single-buffered to halve resident VMEM.
            return pl.BlockSpec(shape, lambda b, q: (0,) * nd, pipeline_mode=pm)

        in_specs = [
            pl.BlockSpec((1, S_pad, D), lambda b, q: (b, 0, 0)),   # full target seq
            pl.BlockSpec((1, S_s, D), lambda b, q: (b, 0, 0)),     # encoder output
            pl.BlockSpec((TQ, S_pad), lambda b, q: (q, 0)),        # tgt mask rows
            pl.BlockSpec((TQ, S_s), lambda b, q: (q, 0)),          # src mask rows
        ] + [wspec(w) for w in weights] + [
            pl.BlockSpec(memory_space=pltpu.MemorySpace.SMEM),     # layer-norm scalars
        ]

        return pl.pallas_call(
            kernel,
            out_shape=jax.ShapeDtypeStruct((B, S_pad, D), x.dtype),
            grid=(B, n_qt),
            in_specs=in_specs,
            out_specs=pl.BlockSpec((1, TQ, D), lambda b, q: (b, q, 0)),
            scratch_shapes=[
                pltpu.VMEM((S_pad, D), cd),       # self-attn Q (hoisted)
                pltpu.VMEM((S_pad, 2 * D), cd),   # self-attn [K | V] (hoisted)
                pltpu.VMEM((S_s, 2 * D), cd),     # cross-attn [K | V] (hoisted)
            ],
            compiler_params=pltpu.CompilerParams(
                # q axis must be sequential ("arbitrary"): scratch carries across tiles.
                dimension_semantics=("parallel", "arbitrary"),
                vmem_limit_bytes=_vmem_limit_bytes(),
            ),
        )(x_p, enc, tgt_mask_p, src_mask_p, *weights, params["ln"].astype(f32))

    try:
        out = _call(True)
    except Exception:
        # Older Pallas without BlockSpec pipeline_mode / Buffered(1): double-buffered.
        out = _call(False)

    return out if S_pad == S_t else out[:, :S_t]


# ---------------------- pure-JAX reference (mirrors PyTorch) ----------------------
def _ref_ln(x, a, b):
    d = x.shape[-1]
    mean = jnp.mean(x, axis=-1, keepdims=True)
    std = jnp.sqrt(jnp.sum((x - mean) ** 2, axis=-1, keepdims=True) / (d - 1))
    return a * (x - mean) / (std + EPS) + b


def _ref_mha(q_in, kv_in, mask, wq, bq, wk, bk, wv, bv, wo, bo, h):
    B, Sq, D = q_in.shape
    Sk = kv_in.shape[1]
    d_k = D // h
    q = (q_in @ wq + bq).reshape(B, Sq, h, d_k).transpose(0, 2, 1, 3)
    k = (kv_in @ wk + bk).reshape(B, Sk, h, d_k).transpose(0, 2, 1, 3)
    v = (kv_in @ wv + bv).reshape(B, Sk, h, d_k).transpose(0, 2, 1, 3)
    s = jnp.einsum("bhqd,bhkd->bhqk", q, k) / math.sqrt(d_k)
    s = jnp.where(mask[None, None] == 0.0, -1e9, s)
    p = jax.nn.softmax(s, axis=-1)
    o = jnp.einsum("bhqk,bhkd->bhqd", p, v).transpose(0, 2, 1, 3).reshape(B, Sq, D)
    return o @ wo + bo


def decoder_block_ref(x, enc, tgt_mask, src_mask, p, *, h):
    xn = _ref_ln(x, p["ln"][0, 0], p["ln"][0, 1])
    x = x + _ref_mha(xn, xn, tgt_mask, p["sa_wq"], p["sa_bq"], p["sa_wk"], p["sa_bk"],
                     p["sa_wv"], p["sa_bv"], p["sa_wo"], p["sa_bo"], h)
    xn = _ref_ln(x, p["ln"][1, 0], p["ln"][1, 1])
    x = x + _ref_mha(xn, enc, src_mask, p["ca_wq"], p["ca_bq"], p["ca_wk"], p["ca_bk"],
                     p["ca_wv"], p["ca_bv"], p["ca_wo"], p["ca_bo"], h)
    xn = _ref_ln(x, p["ln"][2, 0], p["ln"][2, 1])
    ff = jnp.maximum(xn @ p["ff_w1"] + p["ff_b1"], 0.0) @ p["ff_w2"] + p["ff_b2"]
    return x + ff
# -----------------------------------------------------------------------------------


if __name__ == "__main__":
    B, S_T, S_S, D, H, D_FF = 2, 8, 16, 32, 4, 64

    key = jax.random.PRNGKey(0)
    keys = jax.random.split(key, 16)
    ki = iter(keys)

    def lin(k, d_in, d_out):
        kw, kb = jax.random.split(k)
        # weight stored already transposed to (in, out); bias as (1, out)
        w = jax.random.normal(kw, (d_in, d_out), jnp.float32) * 0.05
        b = jax.random.normal(kb, (1, d_out), jnp.float32) * 0.05
        return w, b

    params = {}
    for pref in ("sa", "ca"):
        for name in ("wq", "wk", "wv", "wo"):
            w, b = lin(next(ki), D, D)
            params[f"{pref}_{name}"] = w
            params[f"{pref}_{name.replace('w', 'b')}"] = b
    params["ff_w1"], params["ff_b1"] = lin(next(ki), D, D_FF)
    params["ff_w2"], params["ff_b2"] = lin(next(ki), D_FF, D)
    # LayerNormalization init: alpha = 1, bias = 0 for each of the 3 residual norms.
    params["ln"] = jnp.stack([jnp.array([1.0, 0.0], jnp.float32)] * 3, axis=0)  # (3, 2)

    x = jax.random.normal(next(ki), (B, S_T, D), jnp.float32)
    enc = jax.random.normal(next(ki), (B, S_S, D), jnp.float32)
    tgt_mask = jnp.tril(jnp.ones((S_T, S_T), jnp.float32))   # causal
    src_mask = jnp.ones((S_T, S_S), jnp.float32)             # all visible

    # --- single-tile configuration ---
    out = decoder_block(x, enc, tgt_mask, src_mask, params, h=H)
    out = jax.block_until_ready(out)
    ref = decoder_block_ref(x, enc, tgt_mask, src_mask, params, h=H)
    assert out.shape == (B, S_T, D)
    assert jnp.allclose(out, ref, atol=3e-4, rtol=3e-4), "mismatch vs. reference (1)"

    # --- multi-tile configuration: exercises the hoisted per-batch K/V scratch,
    #     query tiling, and target-length padding (20 -> 24 with TQ = 8). ---
    S_T2 = 20
    x2 = jax.random.normal(next(ki), (B, S_T2, D), jnp.float32)
    tgt_mask2 = jnp.tril(jnp.ones((S_T2, S_T2), jnp.float32))
    src_mask2 = jnp.ones((S_T2, S_S), jnp.float32)
    out2 = decoder_block(x2, enc, tgt_mask2, src_mask2, params, h=H, q_tile=8)
    out2 = jax.block_until_ready(out2)
    ref2 = decoder_block_ref(x2, enc, tgt_mask2, src_mask2, params, h=H)
    assert out2.shape == (B, S_T2, D)
    assert jnp.allclose(out2, ref2, atol=3e-4, rtol=3e-4), "mismatch vs. reference (2)"

    print("KERNEL_OK")
</pallas_src>

<mosaic_0001>
module attributes {stable_mosaic.version = 11 : i64} {
  func.func @decoder_block_kernel(%arg0: i32, %arg1: i32, %arg2: memref<1x8x32xf32, #tpu.memory_space<vmem>>, %arg3: memref<1x16x32xf32, #tpu.memory_space<vmem>>, %arg4: memref<8x8xf32, #tpu.memory_space<vmem>>, %arg5: memref<8x16xf32, #tpu.memory_space<vmem>>, %arg6: memref<32x96xf32, #tpu.memory_space<vmem>>, %arg7: memref<1x96xf32, #tpu.memory_space<vmem>>, %arg8: memref<32x32xf32, #tpu.memory_space<vmem>>, %arg9: memref<1x32xf32, #tpu.memory_space<vmem>>, %arg10: memref<32x32xf32, #tpu.memory_space<vmem>>, %arg11: memref<1x32xf32, #tpu.memory_space<vmem>>, %arg12: memref<32x64xf32, #tpu.memory_space<vmem>>, %arg13: memref<1x64xf32, #tpu.memory_space<vmem>>, %arg14: memref<32x32xf32, #tpu.memory_space<vmem>>, %arg15: memref<1x32xf32, #tpu.memory_space<vmem>>, %arg16: memref<32x64xf32, #tpu.memory_space<vmem>>, %arg17: memref<1x64xf32, #tpu.memory_space<vmem>>, %arg18: memref<64x32xf32, #tpu.memory_space<vmem>>, %arg19: memref<1x32xf32, #tpu.memory_space<vmem>>, %arg20: memref<3x2xf32, #tpu.memory_space<smem>>, %arg21: memref<1x8x32xf32, #tpu.memory_space<vmem>>, %arg22: memref<8x32xf32, #tpu.memory_space<vmem>>, %arg23: memref<8x64xf32, #tpu.memory_space<vmem>>, %arg24: memref<16x64xf32, #tpu.memory_space<vmem>>) attributes {dimension_semantics = [#tpu.dimension_semantics<parallel>, #tpu.dimension_semantics<arbitrary>], iteration_bounds = array<i64: 2, 1>, scalar_prefetch = 0 : i64, scratch_operands = 3 : i64, tpu.core_type = #tpu.core_type<tc>, window_params = [{transform_indices = @transform_0, window_bounds = array<i64: 1, 8, 32>}, {transform_indices = @transform_1, window_bounds = array<i64: 1, 16, 32>}, {transform_indices = @transform_2, window_bounds = array<i64: 8, 8>}, {transform_indices = @transform_3, window_bounds = array<i64: 8, 16>}, {pipeline_mode = #tpu.pipeline_mode<synchronous>, transform_indices = @transform_4, window_bounds = array<i64: 32, 96>}, {pipeline_mode = #tpu.pipeline_mode<synchronous>, transform_indices = @transform_5, window_bounds = array<i64: 1, 96>}, {pipeline_mode = #tpu.pipeline_mode<synchronous>, transform_indices = @transform_6, window_bounds = array<i64: 32, 32>}, {pipeline_mode = #tpu.pipeline_mode<synchronous>, transform_indices = @transform_7, window_bounds = array<i64: 1, 32>}, {pipeline_mode = #tpu.pipeline_mode<synchronous>, transform_indices = @transform_8, window_bounds = array<i64: 32, 32>}, {pipeline_mode = #tpu.pipeline_mode<synchronous>, transform_indices = @transform_9, window_bounds = array<i64: 1, 32>}, {pipeline_mode = #tpu.pipeline_mode<synchronous>, transform_indices = @transform_10, window_bounds = array<i64: 32, 64>}, {pipeline_mode = #tpu.pipeline_mode<synchronous>, transform_indices = @transform_11, window_bounds = array<i64: 1, 64>}, {pipeline_mode = #tpu.pipeline_mode<synchronous>, transform_indices = @transform_12, window_bounds = array<i64: 32, 32>}, {pipeline_mode = #tpu.pipeline_mode<synchronous>, transform_indices = @transform_13, window_bounds = array<i64: 1, 32>}, {pipeline_mode = #tpu.pipeline_mode<synchronous>, transform_indices = @transform_14, window_bounds = array<i64: 32, 64>}, {pipeline_mode = #tpu.pipeline_mode<synchronous>, transform_indices = @transform_15, window_bounds = array<i64: 1, 64>}, {pipeline_mode = #tpu.pipeline_mode<synchronous>, transform_indices = @transform_16, window_bounds = array<i64: 64, 32>}, {pipeline_mode = #tpu.pipeline_mode<synchronous>, transform_indices = @transform_17, window_bounds = array<i64: 1, 32>}, {transform_indices = @transform_18, window_bounds = array<i64: 3, 2>}, {transform_indices = @transform_19, window_bounds = array<i64: 1, 8, 32>}]} {
    %c0_i32 = arith.constant 0 : i32
    %0 = arith.cmpi eq, %arg1, %c0_i32 : i32
    %1 = arith.extui %0 : i1 to i32
    %c0_i32_0 = arith.constant 0 : i32
    %2 = arith.cmpi ne, %1, %c0_i32_0 : i32
    scf.if %2 {
      %c0_126 = arith.constant 0 : index
      %c0_127 = arith.constant 0 : index
      %c0_128 = arith.constant 0 : index
      %253 = vector.load %arg2[%c0_126, %c0_127, %c0_128] : memref<1x8x32xf32, #tpu.memory_space<vmem>>, vector<1x8x32xf32>
      %254 = vector.shape_cast %253 : vector<1x8x32xf32> to vector<8x32xf32>
      %c0_129 = arith.constant 0 : index
      %c0_130 = arith.constant 0 : index
      %255 = memref.load %arg20[%c0_129, %c0_130] : memref<3x2xf32, #tpu.memory_space<smem>>
      %c0_131 = arith.constant 0 : index
      %c1_132 = arith.constant 1 : index
      %256 = memref.load %arg20[%c0_131, %c1_132] : memref<3x2xf32, #tpu.memory_space<smem>>
      %cst_133 = arith.constant dense<0.000000e+00> : vector<8xf32>
      %257 = vector.multi_reduction <add>, %254, %cst_133 [1] : vector<8x32xf32> to vector<8xf32>
      %258 = vector.shape_cast %257 : vector<8xf32> to vector<8x1xf32>
      %cst_134 = arith.constant 3.200000e+01 : f32
      %259 = vector.broadcast %cst_134 : f32 to vector<8x1xf32>
      %260 = arith.divf %258, %259 : vector<8x1xf32>
      %261 = vector.broadcast %260 : vector<8x1xf32> to vector<8x32xf32>
      %262 = arith.subf %254, %261 : vector<8x32xf32>
      %263 = arith.mulf %262, %262 : vector<8x32xf32>
      %cst_135 = arith.constant dense<0.000000e+00> : vector<8xf32>
      %264 = vector.multi_reduction <add>, %263, %cst_135 [1] : vector<8x32xf32> to vector<8xf32>
      %265 = vector.shape_cast %264 : vector<8xf32> to vector<8x1xf32>
      %cst_136 = arith.constant 0.0322580636 : f32
      %266 = vector.broadcast %cst_136 : f32 to vector<8x1xf32>
      %267 = arith.mulf %265, %266 : vector<8x1xf32>
      %268 = math.sqrt %267 : vector<8x1xf32>
      %cst_137 = arith.constant 9.99999997E-7 : f32
      %269 = vector.broadcast %cst_137 : f32 to vector<8x1xf32>
      %270 = arith.addf %268, %269 : vector<8x1xf32>
      %271 = tpu.reciprocal %270 : vector<8x1xf32> -> vector<8x1xf32>
      %272 = vector.broadcast %260 : vector<8x1xf32> to vector<8x32xf32>
      %273 = arith.subf %254, %272 : vector<8x32xf32>
      %274 = vector.broadcast %255 : f32 to vector<8x32xf32>
      %275 = arith.mulf %274, %273 : vector<8x32xf32>
      %276 = vector.broadcast %271 : vector<8x1xf32> to vector<8x32xf32>
      %277 = arith.mulf %275, %276 : vector<8x32xf32>
      %278 = vector.broadcast %256 : f32 to vector<8x32xf32>
      %279 = arith.addf %277, %278 : vector<8x32xf32>
      %c0_138 = arith.constant 0 : index
      %c0_139 = arith.constant 0 : index
      %280 = vector.load %arg6[%c0_138, %c0_139] : memref<32x96xf32, #tpu.memory_space<vmem>>, vector<32x96xf32>
      %cst_140 = arith.constant dense<0.000000e+00> : vector<8x96xf32>
      %281 = tpu.matmul %279, %280, %cst_140 {dimension_numbers = #tpu.dot_dimension_numbers<[1], [0], [0], [1], [0, 0, 1, 1], [], []>} : vector<8x32xf32>, vector<32x96xf32>, vector<8x96xf32> -> vector<8x96xf32>
      %c0_141 = arith.constant 0 : index
      %c0_142 = arith.constant 0 : index
      %282 = vector.load %arg7[%c0_141, %c0_142] : memref<1x96xf32, #tpu.memory_space<vmem>>, vector<1x96xf32>
      %283 = vector.broadcast %282 : vector<1x96xf32> to vector<8x96xf32>
      %284 = arith.addf %281, %283 : vector<8x96xf32>
      %285 = vector.extract_strided_slice %284 {offsets = [0, 0], sizes = [8, 32], strides = [1, 1]} : vector<8x96xf32> to vector<8x32xf32>
      %c0_143 = arith.constant 0 : index
      %c0_144 = arith.constant 0 : index
      %286 = vector.load %arg22[%c0_143, %c0_144] : memref<8x32xf32, #tpu.memory_space<vmem>>, vector<8x32xf32>
      tpu.vector_store %arg22[%c0_143, %c0_144], %285 {strides = array<i32>} : memref<8x32xf32, #tpu.memory_space<vmem>>, vector<8x32xf32>,
      %287 = vector.extract_strided_slice %284 {offsets = [0, 32], sizes = [8, 64], strides = [1, 1]} : vector<8x96xf32> to vector<8x64xf32>
      %c0_145 = arith.constant 0 : index
      %c0_146 = arith.constant 0 : index
      %288 = vector.load %arg23[%c0_145, %c0_146] : memref<8x64xf32, #tpu.memory_space<vmem>>, vector<8x64xf32>
      tpu.vector_store %arg23[%c0_145, %c0_146], %287 {strides = array<i32>} : memref<8x64xf32, #tpu.memory_space<vmem>>, vector<8x64xf32>,
      %c0_147 = arith.constant 0 : index
      %c0_148 = arith.constant 0 : index
      %c0_149 = arith.constant 0 : index
      %289 = vector.load %arg3[%c0_147, %c0_148, %c0_149] : memref<1x16x32xf32, #tpu.memory_space<vmem>>, vector<1x16x32xf32>
      %290 = vector.shape_cast %289 : vector<1x16x32xf32> to vector<16x32xf32>
      %c0_150 = arith.constant 0 : index
      %c0_151 = arith.constant 0 : index
      %291 = vector.load %arg12[%c0_150, %c0_151] : memref<32x64xf32, #tpu.memory_space<vmem>>, vector<32x64xf32>
      %cst_152 = arith.constant dense<0.000000e+00> : vector<16x64xf32>
      %292 = tpu.matmul %290, %291, %cst_152 {dimension_numbers = #tpu.dot_dimension_numbers<[1], [0], [0], [1], [0, 0, 1, 1], [], []>} : vector<16x32xf32>, vector<32x64xf32>, vector<16x64xf32> -> vector<16x64xf32>
      %c0_153 = arith.constant 0 : index
      %c0_154 = arith.constant 0 : index
      %293 = vector.load %arg13[%c0_153, %c0_154] : memref<1x64xf32, #tpu.memory_space<vmem>>, vector<1x64xf32>
      %294 = vector.broadcast %293 : vector<1x64xf32> to vector<16x64xf32>
      %295 = arith.addf %292, %294 : vector<16x64xf32>
      %c0_155 = arith.constant 0 : index
      %c0_156 = arith.constant 0 : index
      %296 = vector.load %arg24[%c0_155, %c0_156] : memref<16x64xf32, #tpu.memory_space<vmem>>, vector<16x64xf32>
      tpu.vector_store %arg24[%c0_155, %c0_156], %295 {strides = array<i32>} : memref<16x64xf32, #tpu.memory_space<vmem>>, vector<16x64xf32>,
    } else {
    }
    %c8_i32 = arith.constant 8 : i32
    %3 = arith.muli %arg1, %c8_i32 : i32
    %4 = tpu.assume_multiple %3, 8 : i32
    %c0 = arith.constant 0 : index
    %5 = arith.index_cast %4 : i32 to index
    %c0_1 = arith.constant 0 : index
    %6 = vector.load %arg2[%c0, %5, %c0_1] : memref<1x8x32xf32, #tpu.memory_space<vmem>>, vector<1x8x32xf32>
    %7 = vector.shape_cast %6 : vector<1x8x32xf32> to vector<8x32xf32>
    %8 = arith.index_cast %4 : i32 to index
    %c0_2 = arith.constant 0 : index
    %9 = vector.load %arg22[%8, %c0_2] : memref<8x32xf32, #tpu.memory_space<vmem>>, vector<8x32xf32>
    %c0_3 = arith.constant 0 : index
    %c0_4 = arith.constant 0 : index
    %10 = vector.load %arg4[%c0_3, %c0_4] : memref<8x8xf32, #tpu.memory_space<vmem>>, vector<8x8xf32>
    %cst = arith.constant 0.000000e+00 : f32
    %11 = vector.broadcast %cst : f32 to vector<8x8xf32>
    %12 = arith.cmpf oeq, %10, %11 : vector<8x8xf32>
    %13 = vector.extract_strided_slice %9 {offsets = [0, 0], sizes = [8, 8], strides = [1, 1]} : vector<8x32xf32> to vector<8x8xf32>
    %cst_5 = arith.constant 0.353553385 : f32
    %14 = vector.broadcast %cst_5 : f32 to vector<8x8xf32>
    %15 = arith.mulf %13, %14 : vector<8x8xf32>
    %c0_6 = arith.constant 0 : index
    %c0_7 = arith.constant 0 : index
    %16 = vector.load %arg23[%c0_6, %c0_7] : memref<8x64xf32, #tpu.memory_space<vmem>>, vector<8x8xf32>
    %c0_8 = arith.constant 0 : index
    %c32 = arith.constant 32 : index
    %17 = vector.load %arg23[%c0_8, %c32] : memref<8x64xf32, #tpu.memory_space<vmem>>, vector<8x8xf32>
    %cst_9 = arith.constant dense<0.000000e+00> : vector<8x8xf32>
    %18 = tpu.matmul %15, %16, %cst_9 {dimension_numbers = #tpu.dot_dimension_numbers<[1], [1], [0], [0], [0, 0, 1, 0], [], []>} : vector<8x8xf32>, vector<8x8xf32>, vector<8x8xf32> -> vector<8x8xf32>
    %cst_10 = arith.constant -1.000000e+09 : f32
    %19 = vector.broadcast %cst_10 : f32 to vector<8x8xf32>
    %20 = arith.select %12, %19, %18 : vector<8x8xi1>, vector<8x8xf32>
    %cst_11 = arith.constant dense<0xFF800000> : vector<8xf32>
    %21 = vector.multi_reduction <maximumf>, %20, %cst_11 [1] : vector<8x8xf32> to vector<8xf32>
    %22 = vector.shape_cast %21 : vector<8xf32> to vector<8x1xf32>
    %23 = vector.broadcast %22 : vector<8x1xf32> to vector<8x8xf32>
    %24 = arith.subf %20, %23 : vector<8x8xf32>
    %25 = math.exp %24 : vector<8x8xf32>
    %cst_12 = arith.constant dense<0.000000e+00> : vector<8xf32>
    %26 = vector.multi_reduction <add>, %25, %cst_12 [1] : vector<8x8xf32> to vector<8xf32>
    %27 = vector.shape_cast %26 : vector<8xf32> to vector<8x1xf32>
    %28 = tpu.reciprocal %27 : vector<8x1xf32> -> vector<8x1xf32>
    %29 = vector.broadcast %28 : vector<8x1xf32> to vector<8x8xf32>
    %30 = arith.mulf %25, %29 : vector<8x8xf32>
    %cst_13 = arith.constant dense<0.000000e+00> : vector<8x8xf32>
    %31 = tpu.matmul %30, %17, %cst_13 {dimension_numbers = #tpu.dot_dimension_numbers<[1], [0], [0], [1], [0, 0, 1, 1], [], []>} : vector<8x8xf32>, vector<8x8xf32>, vector<8x8xf32> -> vector<8x8xf32>
    %32 = vector.extract_strided_slice %9 {offsets = [0, 8], sizes = [8, 8], strides = [1, 1]} : vector<8x32xf32> to vector<8x8xf32>
    %cst_14 = arith.constant 0.353553385 : f32
    %33 = vector.broadcast %cst_14 : f32 to vector<8x8xf32>
    %34 = arith.mulf %32, %33 : vector<8x8xf32>
    %c0_15 = arith.constant 0 : index
    %c8 = arith.constant 8 : index
    %35 = vector.load %arg23[%c0_15, %c8] : memref<8x64xf32, #tpu.memory_space<vmem>>, vector<8x8xf32>
    %c0_16 = arith.constant 0 : index
    %c40 = arith.constant 40 : index
    %36 = vector.load %arg23[%c0_16, %c40] : memref<8x64xf32, #tpu.memory_space<vmem>>, vector<8x8xf32>
    %cst_17 = arith.constant dense<0.000000e+00> : vector<8x8xf32>
    %37 = tpu.matmul %34, %35, %cst_17 {dimension_numbers = #tpu.dot_dimension_numbers<[1], [1], [0], [0], [0, 0, 1, 0], [], []>} : vector<8x8xf32>, vector<8x8xf32>, vector<8x8xf32> -> vector<8x8xf32>
    %cst_18 = arith.constant -1.000000e+09 : f32
    %38 = vector.broadcast %cst_18 : f32 to vector<8x8xf32>
    %39 = arith.select %12, %38, %37 : vector<8x8xi1>, vector<8x8xf32>
    %cst_19 = arith.constant dense<0xFF800000> : vector<8xf32>
    %40 = vector.multi_reduction <maximumf>, %39, %cst_19 [1] : vector<8x8xf32> to vector<8xf32>
    %41 = vector.shape_cast %40 : vector<8xf32> to vector<8x1xf32>
    %42 = vector.broadcast %41 : vector<8x1xf32> to vector<8x8xf32>
    %43 = arith.subf %39, %42 : vector<8x8xf32>
    %44 = math.exp %43 : vector<8x8xf32>
    %cst_20 = arith.constant dense<0.000000e+00> : vector<8xf32>
    %45 = vector.multi_reduction <add>, %44, %cst_20 [1] : vector<8x8xf32> to vector<8xf32>
    %46 = vector.shape_cast %45 : vector<8xf32> to vector<8x1xf32>
    %47 = tpu.reciprocal %46 : vector<8x1xf32> -> vector<8x1xf32>
    %48 = vector.broadcast %47 : vector<8x1xf32> to vector<8x8xf32>
    %49 = arith.mulf %44, %48 : vector<8x8xf32>
    %cst_21 = arith.constant dense<0.000000e+00> : vector<8x8xf32>
    %50 = tpu.matmul %49, %36, %cst_21 {dimension_numbers = #tpu.dot_dimension_numbers<[1], [0], [0], [1], [0, 0, 1, 1], [], []>} : vector<8x8xf32>, vector<8x8xf32>, vector<8x8xf32> -> vector<8x8xf32>
    %51 = vector.extract_strided_slice %9 {offsets = [0, 16], sizes = [8, 8], strides = [1, 1]} : vector<8x32xf32> to vector<8x8xf32>
    %cst_22 = arith.constant 0.353553385 : f32
    %52 = vector.broadcast %cst_22 : f32 to vector<8x8xf32>
    %53 = arith.mulf %51, %52 : vector<8x8xf32>
    %c0_23 = arith.constant 0 : index
    %c16 = arith.constant 16 : index
    %54 = vector.load %arg23[%c0_23, %c16] : memref<8x64xf32, #tpu.memory_space<vmem>>, vector<8x8xf32>
    %c0_24 = arith.constant 0 : index
    %c48 = arith.constant 48 : index
    %55 = vector.load %arg23[%c0_24, %c48] : memref<8x64xf32, #tpu.memory_space<vmem>>, vector<8x8xf32>
    %cst_25 = arith.constant dense<0.000000e+00> : vector<8x8xf32>
    %56 = tpu.matmul %53, %54, %cst_25 {dimension_numbers = #tpu.dot_dimension_numbers<[1], [1], [0], [0], [0, 0, 1, 0], [], []>} : vector<8x8xf32>, vector<8x8xf32>, vector<8x8xf32> -> vector<8x8xf32>
    %cst_26 = arith.constant -1.000000e+09 : f32
    %57 = vector.broadcast %cst_26 : f32 to vector<8x8xf32>
    %58 = arith.select %12, %57, %56 : vector<8x8xi1>, vector<8x8xf32>
    %cst_27 = arith.constant dense<0xFF800000> : vector<8xf32>
    %59 = vector.multi_reduction <maximumf>, %58, %cst_27 [1] : vector<8x8xf32> to vector<8xf32>
    %60 = vector.shape_cast %59 : vector<8xf32> to vector<8x1xf32>
    %61 = vector.broadcast %60 : vector<8x1xf32> to vector<8x8xf32>
    %62 = arith.subf %58, %61 : vector<8x8xf32>
    %63 = math.exp %62 : vector<8x8xf32>
    %cst_28 = arith.constant dense<0.000000e+00> : vector<8xf32>
    %64 = vector.multi_reduction <add>, %63, %cst_28 [1] : vector<8x8xf32> to vector<8xf32>
    %65 = vector.shape_cast %64 : vector<8xf32> to vector<8x1xf32>
    %66 = tpu.reciprocal %65 : vector<8x1xf32> -> vector<8x1xf32>
    %67 = vector.broadcast %66 : vector<8x1xf32> to vector<8x8xf32>
    %68 = arith.mulf %63, %67 : vector<8x8xf32>
    %cst_29 = arith.constant dense<0.000000e+00> : vector<8x8xf32>
    %69 = tpu.matmul %68, %55, %cst_29 {dimension_numbers = #tpu.dot_dimension_numbers<[1], [0], [0], [1], [0, 0, 1, 1], [], []>} : vector<8x8xf32>, vector<8x8xf32>, vector<8x8xf32> -> vector<8x8xf32>
    %70 = vector.extract_strided_slice %9 {offsets = [0, 24], sizes = [8, 8], strides = [1, 1]} : vector<8x32xf32> to vector<8x8xf32>
    %cst_30 = arith.constant 0.353553385 : f32
    %71 = vector.broadcast %cst_30 : f32 to vector<8x8xf32>
    %72 = arith.mulf %70, %71 : vector<8x8xf32>
    %c0_31 = arith.constant 0 : index
    %c24 = arith.constant 24 : index
    %73 = vector.load %arg23[%c0_31, %c24] : memref<8x64xf32, #tpu.memory_space<vmem>>, vector<8x8xf32>
    %c0_32 = arith.constant 0 : index
    %c56 = arith.constant 56 : index
    %74 = vector.load %arg23[%c0_32, %c56] : memref<8x64xf32, #tpu.memory_space<vmem>>, vector<8x8xf32>
    %cst_33 = arith.constant dense<0.000000e+00> : vector<8x8xf32>
    %75 = tpu.matmul %72, %73, %cst_33 {dimension_numbers = #tpu.dot_dimension_numbers<[1], [1], [0], [0], [0, 0, 1, 0], [], []>} : vector<8x8xf32>, vector<8x8xf32>, vector<8x8xf32> -> vector<8x8xf32>
    %cst_34 = arith.constant -1.000000e+09 : f32
    %76 = vector.broadcast %cst_34 : f32 to vector<8x8xf32>
    %77 = arith.select %12, %76, %75 : vector<8x8xi1>, vector<8x8xf32>
    %cst_35 = arith.constant dense<0xFF800000> : vector<8xf32>
    %78 = vector.multi_reduction <maximumf>, %77, %cst_35 [1] : vector<8x8xf32> to vector<8xf32>
    %79 = vector.shape_cast %78 : vector<8xf32> to vector<8x1xf32>
    %80 = vector.broadcast %79 : vector<8x1xf32> to vector<8x8xf32>
    %81 = arith.subf %77, %80 : vector<8x8xf32>
    %82 = math.exp %81 : vector<8x8xf32>
    %cst_36 = arith.constant dense<0.000000e+00> : vector<8xf32>
    %83 = vector.multi_reduction <add>, %82, %cst_36 [1] : vector<8x8xf32> to vector<8xf32>
    %84 = vector.shape_cast %83 : vector<8xf32> to vector<8x1xf32>
    %85 = tpu.reciprocal %84 : vector<8x1xf32> -> vector<8x1xf32>
    %86 = vector.broadcast %85 : vector<8x1xf32> to vector<8x8xf32>
    %87 = arith.mulf %82, %86 : vector<8x8xf32>
    %cst_37 = arith.constant dense<0.000000e+00> : vector<8x8xf32>
    %88 = tpu.matmul %87, %74, %cst_37 {dimension_numbers = #tpu.dot_dimension_numbers<[1], [0], [0], [1], [0, 0, 1, 1], [], []>} : vector<8x8xf32>, vector<8x8xf32>, vector<8x8xf32> -> vector<8x8xf32>
    %89 = tpu.concatenate %31, %50, %69, %88 in 1 : vector<8x8xf32>, vector<8x8xf32>, vector<8x8xf32>, vector<8x8xf32> -> vector<8x32xf32>
    %c0_38 = arith.constant 0 : index
    %c0_39 = arith.constant 0 : index
    %90 = vector.load %arg8[%c0_38, %c0_39] : memref<32x32xf32, #tpu.memory_space<vmem>>, vector<32x32xf32>
    %cst_40 = arith.constant dense<0.000000e+00> : vector<8x32xf32>
    %91 = tpu.matmul %89, %90, %cst_40 {dimension_numbers = #tpu.dot_dimension_numbers<[1], [0], [0], [1], [0, 0, 1, 1], [], []>} : vector<8x32xf32>, vector<32x32xf32>, vector<8x32xf32> -> vector<8x32xf32>
    %c0_41 = arith.constant 0 : index
    %c0_42 = arith.constant 0 : index
    %92 = vector.load %arg9[%c0_41, %c0_42] : memref<1x32xf32, #tpu.memory_space<vmem>>, vector<1x32xf32>
    %93 = vector.broadcast %92 : vector<1x32xf32> to vector<8x32xf32>
    %94 = arith.addf %91, %93 : vector<8x32xf32>
    %95 = arith.addf %7, %94 : vector<8x32xf32>
    %c1 = arith.constant 1 : index
    %c0_43 = arith.constant 0 : index
    %96 = memref.load %arg20[%c1, %c0_43] : memref<3x2xf32, #tpu.memory_space<smem>>
    %c1_44 = arith.constant 1 : index
    %c1_45 = arith.constant 1 : index
    %97 = memref.load %arg20[%c1_44, %c1_45] : memref<3x2xf32, #tpu.memory_space<smem>>
    %cst_46 = arith.constant dense<0.000000e+00> : vector<8xf32>
    %98 = vector.multi_reduction <add>, %95, %cst_46 [1] : vector<8x32xf32> to vector<8xf32>
    %99 = vector.shape_cast %98 : vector<8xf32> to vector<8x1xf32>
    %cst_47 = arith.constant 3.200000e+01 : f32
    %100 = vector.broadcast %cst_47 : f32 to vector<8x1xf32>
    %101 = arith.divf %99, %100 : vector<8x1xf32>
    %102 = vector.broadcast %101 : vector<8x1xf32> to vector<8x32xf32>
    %103 = arith.subf %95, %102 : vector<8x32xf32>
    %104 = arith.mulf %103, %103 : vector<8x32xf32>
    %cst_48 = arith.constant dense<0.000000e+00> : vector<8xf32>
    %105 = vector.multi_reduction <add>, %104, %cst_48 [1] : vector<8x32xf32> to vector<8xf32>
    %106 = vector.shape_cast %105 : vector<8xf32> to vector<8x1xf32>
    %cst_49 = arith.constant 0.0322580636 : f32
    %107 = vector.broadcast %cst_49 : f32 to vector<8x1xf32>
    %108 = arith.mulf %106, %107 : vector<8x1xf32>
    %109 = math.sqrt %108 : vector<8x1xf32>
    %cst_50 = arith.constant 9.99999997E-7 : f32
    %110 = vector.broadcast %cst_50 : f32 to vector<8x1xf32>
    %111 = arith.addf %109, %110 : vector<8x1xf32>
    %112 = tpu.reciprocal %111 : vector<8x1xf32> -> vector<8x1xf32>
    %113 = vector.broadcast %101 : vector<8x1xf32> to vector<8x32xf32>
    %114 = arith.subf %95, %113 : vector<8x32xf32>
    %115 = vector.broadcast %96 : f32 to vector<8x32xf32>
    %116 = arith.mulf %115, %114 : vector<8x32xf32>
    %117 = vector.broadcast %112 : vector<8x1xf32> to vector<8x32xf32>
    %118 = arith.mulf %116, %117 : vector<8x32xf32>
    %119 = vector.broadcast %97 : f32 to vector<8x32xf32>
    %120 = arith.addf %118, %119 : vector<8x32xf32>
    %c0_51 = arith.constant 0 : index
    %c0_52 = arith.constant 0 : index
    %121 = vector.load %arg10[%c0_51, %c0_52] : memref<32x32xf32, #tpu.memory_space<vmem>>, vector<32x32xf32>
    %cst_53 = arith.constant dense<0.000000e+00> : vector<8x32xf32>
    %122 = tpu.matmul %120, %121, %cst_53 {dimension_numbers = #tpu.dot_dimension_numbers<[1], [0], [0], [1], [0, 0, 1, 1], [], []>} : vector<8x32xf32>, vector<32x32xf32>, vector<8x32xf32> -> vector<8x32xf32>
    %c0_54 = arith.constant 0 : index
    %c0_55 = arith.constant 0 : index
    %123 = vector.load %arg11[%c0_54, %c0_55] : memref<1x32xf32, #tpu.memory_space<vmem>>, vector<1x32xf32>
    %124 = vector.broadcast %123 : vector<1x32xf32> to vector<8x32xf32>
    %125 = arith.addf %122, %124 : vector<8x32xf32>
    %c0_56 = arith.constant 0 : index
    %c0_57 = arith.constant 0 : index
    %126 = vector.load %arg5[%c0_56, %c0_57] : memref<8x16xf32, #tpu.memory_space<vmem>>, vector<8x16xf32>
    %cst_58 = arith.constant 0.000000e+00 : f32
    %127 = vector.broadcast %cst_58 : f32 to vector<8x16xf32>
    %128 = arith.cmpf oeq, %126, %127 : vector<8x16xf32>
    %129 = vector.extract_strided_slice %125 {offsets = [0, 0], sizes = [8, 8], strides = [1, 1]} : vector<8x32xf32> to vector<8x8xf32>
    %cst_59 = arith.constant 0.353553385 : f32
    %130 = vector.broadcast %cst_59 : f32 to vector<8x8xf32>
    %131 = arith.mulf %129, %130 : vector<8x8xf32>
    %c0_60 = arith.constant 0 : index
    %c0_61 = arith.constant 0 : index
    %132 = vector.load %arg24[%c0_60, %c0_61] : memref<16x64xf32, #tpu.memory_space<vmem>>, vector<16x8xf32>
    %c0_62 = arith.constant 0 : index
    %c32_63 = arith.constant 32 : index
    %133 = vector.load %arg24[%c0_62, %c32_63] : memref<16x64xf32, #tpu.memory_space<vmem>>, vector<16x8xf32>
    %cst_64 = arith.constant dense<0.000000e+00> : vector<8x16xf32>
    %134 = tpu.matmul %131, %132, %cst_64 {dimension_numbers = #tpu.dot_dimension_numbers<[1], [1], [0], [0], [0, 0, 1, 0], [], []>} : vector<8x8xf32>, vector<16x8xf32>, vector<8x16xf32> -> vector<8x16xf32>
    %cst_65 = arith.constant -1.000000e+09 : f32
    %135 = vector.broadcast %cst_65 : f32 to vector<8x16xf32>
    %136 = arith.select %128, %135, %134 : vector<8x16xi1>, vector<8x16xf32>
    %cst_66 = arith.constant dense<0xFF800000> : vector<8xf32>
    %137 = vector.multi_reduction <maximumf>, %136, %cst_66 [1] : vector<8x16xf32> to vector<8xf32>
    %138 = vector.shape_cast %137 : vector<8xf32> to vector<8x1xf32>
    %139 = vector.broadcast %138 : vector<8x1xf32> to vector<8x16xf32>
    %140 = arith.subf %136, %139 : vector<8x16xf32>
    %141 = math.exp %140 : vector<8x16xf32>
    %cst_67 = arith.constant dense<0.000000e+00> : vector<8xf32>
    %142 = vector.multi_reduction <add>, %141, %cst_67 [1] : vector<8x16xf32> to vector<8xf32>
    %143 = vector.shape_cast %142 : vector<8xf32> to vector<8x1xf32>
    %144 = tpu.reciprocal %143 : vector<8x1xf32> -> vector<8x1xf32>
    %145 = vector.broadcast %144 : vector<8x1xf32> to vector<8x16xf32>
    %146 = arith.mulf %141, %145 : vector<8x16xf32>
    %cst_68 = arith.constant dense<0.000000e+00> : vector<8x8xf32>
    %147 = tpu.matmul %146, %133, %cst_68 {dimension_numbers = #tpu.dot_dimension_numbers<[1], [0], [0], [1], [0, 0, 1, 1], [], []>} : vector<8x16xf32>, vector<16x8xf32>, vector<8x8xf32> -> vector<8x8xf32>
    %148 = vector.extract_strided_slice %125 {offsets = [0, 8], sizes = [8, 8], strides = [1, 1]} : vector<8x32xf32> to vector<8x8xf32>
    %cst_69 = arith.constant 0.353553385 : f32
    %149 = vector.broadcast %cst_69 : f32 to vector<8x8xf32>
    %150 = arith.mulf %148, %149 : vector<8x8xf32>
    %c0_70 = arith.constant 0 : index
    %c8_71 = arith.constant 8 : index
    %151 = vector.load %arg24[%c0_70, %c8_71] : memref<16x64xf32, #tpu.memory_space<vmem>>, vector<16x8xf32>
    %c0_72 = arith.constant 0 : index
    %c40_73 = arith.constant 40 : index
    %152 = vector.load %arg24[%c0_72, %c40_73] : memref<16x64xf32, #tpu.memory_space<vmem>>, vector<16x8xf32>
    %cst_74 = arith.constant dense<0.000000e+00> : vector<8x16xf32>
    %153 = tpu.matmul %150, %151, %cst_74 {dimension_numbers = #tpu.dot_dimension_numbers<[1], [1], [0], [0], [0, 0, 1, 0], [], []>} : vector<8x8xf32>, vector<16x8xf32>, vector<8x16xf32> -> vector<8x16xf32>
    %cst_75 = arith.constant -1.000000e+09 : f32
    %154 = vector.broadcast %cst_75 : f32 to vector<8x16xf32>
    %155 = arith.select %128, %154, %153 : vector<8x16xi1>, vector<8x16xf32>
    %cst_76 = arith.constant dense<0xFF800000> : vector<8xf32>
    %156 = vector.multi_reduction <maximumf>, %155, %cst_76 [1] : vector<8x16xf32> to vector<8xf32>
    %157 = vector.shape_cast %156 : vector<8xf32> to vector<8x1xf32>
    %158 = vector.broadcast %157 : vector<8x1xf32> to vector<8x16xf32>
    %159 = arith.subf %155, %158 : vector<8x16xf32>
    %160 = math.exp %159 : vector<8x16xf32>
    %cst_77 = arith.constant dense<0.000000e+00> : vector<8xf32>
    %161 = vector.multi_reduction <add>, %160, %cst_77 [1] : vector<8x16xf32> to vector<8xf32>
    %162 = vector.shape_cast %161 : vector<8xf32> to vector<8x1xf32>
    %163 = tpu.reciprocal %162 : vector<8x1xf32> -> vector<8x1xf32>
    %164 = vector.broadcast %163 : vector<8x1xf32> to vector<8x16xf32>
    %165 = arith.mulf %160, %164 : vector<8x16xf32>
    %cst_78 = arith.constant dense<0.000000e+00> : vector<8x8xf32>
    %166 = tpu.matmul %165, %152, %cst_78 {dimension_numbers = #tpu.dot_dimension_numbers<[1], [0], [0], [1], [0, 0, 1, 1], [], []>} : vector<8x16xf32>, vector<16x8xf32>, vector<8x8xf32> -> vector<8x8xf32>
    %167 = vector.extract_strided_slice %125 {offsets = [0, 16], sizes = [8, 8], strides = [1, 1]} : vector<8x32xf32> to vector<8x8xf32>
    %cst_79 = arith.constant 0.353553385 : f32
    %168 = vector.broadcast %cst_79 : f32 to vector<8x8xf32>
    %169 = arith.mulf %167, %168 : vector<8x8xf32>
    %c0_80 = arith.constant 0 : index
    %c16_81 = arith.constant 16 : index
    %170 = vector.load %arg24[%c0_80, %c16_81] : memref<16x64xf32, #tpu.memory_space<vmem>>, vector<16x8xf32>
    %c0_82 = arith.constant 0 : index
    %c48_83 = arith.constant 48 : index
    %171 = vector.load %arg24[%c0_82, %c48_83] : memref<16x64xf32, #tpu.memory_space<vmem>>, vector<16x8xf32>
    %cst_84 = arith.constant dense<0.000000e+00> : vector<8x16xf32>
    %172 = tpu.matmul %169, %170, %cst_84 {dimension_numbers = #tpu.dot_dimension_numbers<[1], [1], [0], [0], [0, 0, 1, 0], [], []>} : vector<8x8xf32>, vector<16x8xf32>, vector<8x16xf32> -> vector<8x16xf32>
    %cst_85 = arith.constant -1.000000e+09 : f32
    %173 = vector.broadcast %cst_85 : f32 to vector<8x16xf32>
    %174 = arith.select %128, %173, %172 : vector<8x16xi1>, vector<8x16xf32>
    %cst_86 = arith.constant dense<0xFF800000> : vector<8xf32>
    %175 = vector.multi_reduction <maximumf>, %174, %cst_86 [1] : vector<8x16xf32> to vector<8xf32>
    %176 = vector.shape_cast %175 : vector<8xf32> to vector<8x1xf32>
    %177 = vector.broadcast %176 : vector<8x1xf32> to vector<8x16xf32>
    %178 = arith.subf %174, %177 : vector<8x16xf32>
    %179 = math.exp %178 : vector<8x16xf32>
    %cst_87 = arith.constant dense<0.000000e+00> : vector<8xf32>
    %180 = vector.multi_reduction <add>, %179, %cst_87 [1] : vector<8x16xf32> to vector<8xf32>
    %181 = vector.shape_cast %180 : vector<8xf32> to vector<8x1xf32>
    %182 = tpu.reciprocal %181 : vector<8x1xf32> -> vector<8x1xf32>
    %183 = vector.broadcast %182 : vector<8x1xf32> to vector<8x16xf32>
    %184 = arith.mulf %179, %183 : vector<8x16xf32>
    %cst_88 = arith.constant dense<0.000000e+00> : vector<8x8xf32>
    %185 = tpu.matmul %184, %171, %cst_88 {dimension_numbers = #tpu.dot_dimension_numbers<[1], [0], [0], [1], [0, 0, 1, 1], [], []>} : vector<8x16xf32>, vector<16x8xf32>, vector<8x8xf32> -> vector<8x8xf32>
    %186 = vector.extract_strided_slice %125 {offsets = [0, 24], sizes = [8, 8], strides = [1, 1]} : vector<8x32xf32> to vector<8x8xf32>
    %cst_89 = arith.constant 0.353553385 : f32
    %187 = vector.broadcast %cst_89 : f32 to vector<8x8xf32>
    %188 = arith.mulf %186, %187 : vector<8x8xf32>
    %c0_90 = arith.constant 0 : index
    %c24_91 = arith.constant 24 : index
    %189 = vector.load %arg24[%c0_90, %c24_91] : memref<16x64xf32, #tpu.memory_space<vmem>>, vector<16x8xf32>
    %c0_92 = arith.constant 0 : index
    %c56_93 = arith.constant 56 : index
    %190 = vector.load %arg24[%c0_92, %c56_93] : memref<16x64xf32, #tpu.memory_space<vmem>>, vector<16x8xf32>
    %cst_94 = arith.constant dense<0.000000e+00> : vector<8x16xf32>
    %191 = tpu.matmul %188, %189, %cst_94 {dimension_numbers = #tpu.dot_dimension_numbers<[1], [1], [0], [0], [0, 0, 1, 0], [], []>} : vector<8x8xf32>, vector<16x8xf32>, vector<8x16xf32> -> vector<8x16xf32>
    %cst_95 = arith.constant -1.000000e+09 : f32
    %192 = vector.broadcast %cst_95 : f32 to vector<8x16xf32>
    %193 = arith.select %128, %192, %191 : vector<8x16xi1>, vector<8x16xf32>
    %cst_96 = arith.constant dense<0xFF800000> : vector<8xf32>
    %194 = vector.multi_reduction <maximumf>, %193, %cst_96 [1] : vector<8x16xf32> to vector<8xf32>
    %195 = vector.shape_cast %194 : vector<8xf32> to vector<8x1xf32>
    %196 = vector.broadcast %195 : vector<8x1xf32> to vector<8x16xf32>
    %197 = arith.subf %193, %196 : vector<8x16xf32>
    %198 = math.exp %197 : vector<8x16xf32>
    %cst_97 = arith.constant dense<0.000000e+00> : vector<8xf32>
    %199 = vector.multi_reduction <add>, %198, %cst_97 [1] : vector<8x16xf32> to vector<8xf32>
    %200 = vector.shape_cast %199 : vector<8xf32> to vector<8x1xf32>
    %201 = tpu.reciprocal %200 : vector<8x1xf32> -> vector<8x1xf32>
    %202 = vector.broadcast %201 : vector<8x1xf32> to vector<8x16xf32>
    %203 = arith.mulf %198, %202 : vector<8x16xf32>
    %cst_98 = arith.constant dense<0.000000e+00> : vector<8x8xf32>
    %204 = tpu.matmul %203, %190, %cst_98 {dimension_numbers = #tpu.dot_dimension_numbers<[1], [0], [0], [1], [0, 0, 1, 1], [], []>} : vector<8x16xf32>, vector<16x8xf32>, vector<8x8xf32> -> vector<8x8xf32>
    %205 = tpu.concatenate %147, %166, %185, %204 in 1 : vector<8x8xf32>, vector<8x8xf32>, vector<8x8xf32>, vector<8x8xf32> -> vector<8x32xf32>
    %c0_99 = arith.constant 0 : index
    %c0_100 = arith.constant 0 : index
    %206 = vector.load %arg14[%c0_99, %c0_100] : memref<32x32xf32, #tpu.memory_space<vmem>>, vector<32x32xf32>
    %cst_101 = arith.constant dense<0.000000e+00> : vector<8x32xf32>
    %207 = tpu.matmul %205, %206, %cst_101 {dimension_numbers = #tpu.dot_dimension_numbers<[1], [0], [0], [1], [0, 0, 1, 1], [], []>} : vector<8x32xf32>, vector<32x32xf32>, vector<8x32xf32> -> vector<8x32xf32>
    %c0_102 = arith.constant 0 : index
    %c0_103 = arith.constant 0 : index
    %208 = vector.load %arg15[%c0_102, %c0_103] : memref<1x32xf32, #tpu.memory_space<vmem>>, vector<1x32xf32>
    %209 = vector.broadcast %208 : vector<1x32xf32> to vector<8x32xf32>
    %210 = arith.addf %207, %209 : vector<8x32xf32>
    %211 = arith.addf %95, %210 : vector<8x32xf32>
    %c2 = arith.constant 2 : index
    %c0_104 = arith.constant 0 : index
    %212 = memref.load %arg20[%c2, %c0_104] : memref<3x2xf32, #tpu.memory_space<smem>>
    %c2_105 = arith.constant 2 : index
    %c1_106 = arith.constant 1 : index
    %213 = memref.load %arg20[%c2_105, %c1_106] : memref<3x2xf32, #tpu.memory_space<smem>>
    %cst_107 = arith.constant dense<0.000000e+00> : vector<8xf32>
    %214 = vector.multi_reduction <add>, %211, %cst_107 [1] : vector<8x32xf32> to vector<8xf32>
    %215 = vector.shape_cast %214 : vector<8xf32> to vector<8x1xf32>
    %cst_108 = arith.constant 3.200000e+01 : f32
    %216 = vector.broadcast %cst_108 : f32 to vector<8x1xf32>
    %217 = arith.divf %215, %216 : vector<8x1xf32>
    %218 = vector.broadcast %217 : vector<8x1xf32> to vector<8x32xf32>
    %219 = arith.subf %211, %218 : vector<8x32xf32>
    %220 = arith.mulf %219, %219 : vector<8x32xf32>
    %cst_109 = arith.constant dense<0.000000e+00> : vector<8xf32>
    %221 = vector.multi_reduction <add>, %220, %cst_109 [1] : vector<8x32xf32> to vector<8xf32>
    %222 = vector.shape_cast %221 : vector<8xf32> to vector<8x1xf32>
    %cst_110 = arith.constant 0.0322580636 : f32
    %223 = vector.broadcast %cst_110 : f32 to vector<8x1xf32>
    %224 = arith.mulf %222, %223 : vector<8x1xf32>
    %225 = math.sqrt %224 : vector<8x1xf32>
    %cst_111 = arith.constant 9.99999997E-7 : f32
    %226 = vector.broadcast %cst_111 : f32 to vector<8x1xf32>
    %227 = arith.addf %225, %226 : vector<8x1xf32>
    %228 = tpu.reciprocal %227 : vector<8x1xf32> -> vector<8x1xf32>
    %229 = vector.broadcast %217 : vector<8x1xf32> to vector<8x32xf32>
    %230 = arith.subf %211, %229 : vector<8x32xf32>
    %231 = vector.broadcast %212 : f32 to vector<8x32xf32>
    %232 = arith.mulf %231, %230 : vector<8x32xf32>
    %233 = vector.broadcast %228 : vector<8x1xf32> to vector<8x32xf32>
    %234 = arith.mulf %232, %233 : vector<8x32xf32>
    %235 = vector.broadcast %213 : f32 to vector<8x32xf32>
    %236 = arith.addf %234, %235 : vector<8x32xf32>
    %c0_112 = arith.constant 0 : index
    %c0_113 = arith.constant 0 : index
    %237 = vector.load %arg16[%c0_112, %c0_113] : memref<32x64xf32, #tpu.memory_space<vmem>>, vector<32x64xf32>
    %cst_114 = arith.constant dense<0.000000e+00> : vector<8x64xf32>
    %238 = tpu.matmul %236, %237, %cst_114 {dimension_numbers = #tpu.dot_dimension_numbers<[1], [0], [0], [1], [0, 0, 1, 1], [], []>} : vector<8x32xf32>, vector<32x64xf32>, vector<8x64xf32> -> vector<8x64xf32>
    %c0_115 = arith.constant 0 : index
    %c0_116 = arith.constant 0 : index
    %239 = vector.load %arg17[%c0_115, %c0_116] : memref<1x64xf32, #tpu.memory_space<vmem>>, vector<1x64xf32>
    %240 = vector.broadcast %239 : vector<1x64xf32> to vector<8x64xf32>
    %241 = arith.addf %238, %240 : vector<8x64xf32>
    %cst_117 = arith.constant 0.000000e+00 : f32
    %242 = vector.broadcast %cst_117 : f32 to vector<8x64xf32>
    %243 = arith.maximumf %241, %242 : vector<8x64xf32>
    %c0_118 = arith.constant 0 : index
    %c0_119 = arith.constant 0 : index
    %244 = vector.load %arg18[%c0_118, %c0_119] : memref<64x32xf32, #tpu.memory_space<vmem>>, vector<64x32xf32>
    %cst_120 = arith.constant dense<0.000000e+00> : vector<8x32xf32>
    %245 = tpu.matmul %243, %244, %cst_120 {dimension_numbers = #tpu.dot_dimension_numbers<[1], [0], [0], [1], [0, 0, 1, 1], [], []>} : vector<8x64xf32>, vector<64x32xf32>, vector<8x32xf32> -> vector<8x32xf32>
    %246 = arith.addf %211, %245 : vector<8x32xf32>
    %c0_121 = arith.constant 0 : index
    %c0_122 = arith.constant 0 : index
    %247 = vector.load %arg19[%c0_121, %c0_122] : memref<1x32xf32, #tpu.memory_space<vmem>>, vector<1x32xf32>
    %248 = vector.broadcast %247 : vector<1x32xf32> to vector<8x32xf32>
    %249 = arith.addf %246, %248 : vector<8x32xf32>
    %c0_123 = arith.constant 0 : index
    %c0_124 = arith.constant 0 : index
    %c0_125 = arith.constant 0 : index
    %250 = vector.load %arg21[%c0_123, %c0_124, %c0_125] : memref<1x8x32xf32, #tpu.memory_space<vmem>>, vector<1x8x32xf32>
    %251 = vector.shape_cast %250 : vector<1x8x32xf32> to vector<8x32xf32>
    %252 = vector.shape_cast %249 : vector<8x32xf32> to vector<1x8x32xf32>
    tpu.vector_store %arg21[%c0_123, %c0_124, %c0_125], %252 {strides = array<i32>} : memref<1x8x32xf32, #tpu.memory_space<vmem>>, vector<1x8x32xf32>,
    return
  }
  func.func @transform_0(%arg0: i32, %arg1: i32) -> (i32, i32, i32) {
    %c0_i32 = arith.constant 0 : i32
    %c0_i32_0 = arith.constant 0 : i32
    %c0_i32_1 = arith.constant 0 : i32
    return %arg0, %c0_i32, %c0_i32_0 : i32, i32, i32
  }
  func.func @transform_1(%arg0: i32, %arg1: i32) -> (i32, i32, i32) {
    %c0_i32 = arith.constant 0 : i32
    %c0_i32_0 = arith.constant 0 : i32
    %c0_i32_1 = arith.constant 0 : i32
    return %arg0, %c0_i32, %c0_i32_0 : i32, i32, i32
  }
  func.func @transform_2(%arg0: i32, %arg1: i32) -> (i32, i32) {
    %c0_i32 = arith.constant 0 : i32
    %c0_i32_0 = arith.constant 0 : i32
    return %arg1, %c0_i32 : i32, i32
  }
  func.func @transform_3(%arg0: i32, %arg1: i32) -> (i32, i32) {
    %c0_i32 = arith.constant 0 : i32
    %c0_i32_0 = arith.constant 0 : i32
    return %arg1, %c0_i32 : i32, i32
  }
  func.func @transform_4(%arg0: i32, %arg1: i32) -> (i32, i32) {
    %c0_i32 = arith.constant 0 : i32
    %c0_i32_0 = arith.constant 0 : i32
    %c0_i32_1 = arith.constant 0 : i32
    return %c0_i32, %c0_i32_0 : i32, i32
  }
  func.func @transform_5(%arg0: i32, %arg1: i32) -> (i32, i32) {
    %c0_i32 = arith.constant 0 : i32
    %c0_i32_0 = arith.constant 0 : i32
    %c0_i32_1 = arith.constant 0 : i32
    return %c0_i32, %c0_i32_0 : i32, i32
  }
  func.func @transform_6(%arg0: i32, %arg1: i32) -> (i32, i32) {
    %c0_i32 = arith.constant 0 : i32
    %c0_i32_0 = arith.constant 0 : i32
    %c0_i32_1 = arith.constant 0 : i32
    return %c0_i32, %c0_i32_0 : i32, i32
  }
  func.func @transform_7(%arg0: i32, %arg1: i32) -> (i32, i32) {
    %c0_i32 = arith.constant 0 : i32
    %c0_i32_0 = arith.constant 0 : i32
    %c0_i32_1 = arith.constant 0 : i32
    return %c0_i32, %c0_i32_0 : i32, i32
  }
  func.func @transform_8(%arg0: i32, %arg1: i32) -> (i32, i32) {
    %c0_i32 = arith.constant 0 : i32
    %c0_i32_0 = arith.constant 0 : i32
    %c0_i32_1 = arith.constant 0 : i32
    return %c0_i32, %c0_i32_0 : i32, i32
  }
  func.func @transform_9(%arg0: i32, %arg1: i32) -> (i32, i32) {
    %c0_i32 = arith.constant 0 : i32
    %c0_i32_0 = arith.constant 0 : i32
    %c0_i32_1 = arith.constant 0 : i32
    return %c0_i32, %c0_i32_0 : i32, i32
  }
  func.func @transform_10(%arg0: i32, %arg1: i32) -> (i32, i32) {
    %c0_i32 = arith.constant 0 : i32
    %c0_i32_0 = arith.constant 0 : i32
    %c0_i32_1 = arith.constant 0 : i32
    return %c0_i32, %c0_i32_0 : i32, i32
  }
  func.func @transform_11(%arg0: i32, %arg1: i32) -> (i32, i32) {
    %c0_i32 = arith.constant 0 : i32
    %c0_i32_0 = arith.constant 0 : i32
    %c0_i32_1 = arith.constant 0 : i32
    return %c0_i32, %c0_i32_0 : i32, i32
  }
  func.func @transform_12(%arg0: i32, %arg1: i32) -> (i32, i32) {
    %c0_i32 = arith.constant 0 : i32
    %c0_i32_0 = arith.constant 0 : i32
    %c0_i32_1 = arith.constant 0 : i32
    return %c0_i32, %c0_i32_0 : i32, i32
  }
  func.func @transform_13(%arg0: i32, %arg1: i32) -> (i32, i32) {
    %c0_i32 = arith.constant 0 : i32
    %c0_i32_0 = arith.constant 0 : i32
    %c0_i32_1 = arith.constant 0 : i32
    return %c0_i32, %c0_i32_0 : i32, i32
  }
  func.func @transform_14(%arg0: i32, %arg1: i32) -> (i32, i32) {
    %c0_i32 = arith.constant 0 : i32
    %c0_i32_0 = arith.constant 0 : i32
    %c0_i32_1 = arith.constant 0 : i32
    return %c0_i32, %c0_i32_0 : i32, i32
  }
  func.func @transform_15(%arg0: i32, %arg1: i32) -> (i32, i32) {
    %c0_i32 = arith.constant 0 : i32
    %c0_i32_0 = arith.constant 0 : i32
    %c0_i32_1 = arith.constant 0 : i32
    return %c0_i32, %c0_i32_0 : i32, i32
  }
  func.func @transform_16(%arg0: i32, %arg1: i32) -> (i32, i32) {
    %c0_i32 = arith.constant 0 : i32
    %c0_i32_0 = arith.constant 0 : i32
    %c0_i32_1 = arith.constant 0 : i32
    return %c0_i32, %c0_i32_0 : i32, i32
  }
  func.func @transform_17(%arg0: i32, %arg1: i32) -> (i32, i32) {
    %c0_i32 = arith.constant 0 : i32
    %c0_i32_0 = arith.constant 0 : i32
    %c0_i32_1 = arith.constant 0 : i32
    return %c0_i32, %c0_i32_0 : i32, i32
  }
  func.func @transform_18(%arg0: i32, %arg1: i32) -> (i32, i32) {
    %c0_i32 = arith.constant 0 : i32
    %c0_i32_0 = arith.constant 0 : i32
    %c0_i32_1 = arith.constant 0 : i32
    return %c0_i32, %c0_i32_0 : i32, i32
  }
  func.func @transform_19(%arg0: i32, %arg1: i32) -> (i32, i32, i32) {
    %c0_i32 = arith.constant 0 : i32
    %c0_i32_0 = arith.constant 0 : i32
    return %arg0, %arg1, %c0_i32 : i32, i32, i32
  }
}

module attributes {stable_mosaic.version = 11 : i64} {
  func.func @decoder_block_kernel(%arg0: i32, %arg1: i32, %arg2: memref<1x8x32xf32, #tpu.memory_space<vmem>>, %arg3: memref<1x16x32xf32, #tpu.memory_space<vmem>>, %arg4: memref<8x8xf32, #tpu.memory_space<vmem>>, %arg5: memref<8x16xf32, #tpu.memory_space<vmem>>, %arg6: memref<32x96xf32, #tpu.memory_space<vmem>>, %arg7: memref<1x96xf32, #tpu.memory_space<vmem>>, %arg8: memref<32x32xf32, #tpu.memory_space<vmem>>, %arg9: memref<1x32xf32, #tpu.memory_space<vmem>>, %arg10: memref<32x32xf32, #tpu.memory_space<vmem>>, %arg11: memref<1x32xf32, #tpu.memory_space<vmem>>, %arg12: memref<32x64xf32, #tpu.memory_space<vmem>>, %arg13: memref<1x64xf32, #tpu.memory_space<vmem>>, %arg14: memref<32x32xf32, #tpu.memory_space<vmem>>, %arg15: memref<1x32xf32, #tpu.memory_space<vmem>>, %arg16: memref<32x64xf32, #tpu.memory_space<vmem>>, %arg17: memref<1x64xf32, #tpu.memory_space<vmem>>, %arg18: memref<64x32xf32, #tpu.memory_space<vmem>>, %arg19: memref<1x32xf32, #tpu.memory_space<vmem>>, %arg20: memref<3x2xf32, #tpu.memory_space<smem>>, %arg21: memref<1x8x32xf32, #tpu.memory_space<vmem>>, %arg22: memref<8x32xf32, #tpu.memory_space<vmem>>, %arg23: memref<8x64xf32, #tpu.memory_space<vmem>>, %arg24: memref<16x64xf32, #tpu.memory_space<vmem>>) attributes {dimension_semantics = [#tpu.dimension_semantics<parallel>, #tpu.dimension_semantics<arbitrary>], iteration_bounds = array<i64: 2, 1>, scalar_prefetch = 0 : i64, scratch_operands = 3 : i64, tpu.core_type = #tpu.core_type<tc>, window_params = [{transform_indices = @transform_0, window_bounds = array<i64: 1, 8, 32>}, {transform_indices = @transform_1, window_bounds = array<i64: 1, 16, 32>}, {transform_indices = @transform_2, window_bounds = array<i64: 8, 8>}, {transform_indices = @transform_3, window_bounds = array<i64: 8, 16>}, {pipeline_mode = #tpu.pipeline_mode<synchronous>, transform_indices = @transform_4, window_bounds = array<i64: 32, 96>}, {pipeline_mode = #tpu.pipeline_mode<synchronous>, transform_indices = @transform_5, window_bounds = array<i64: 1, 96>}, {pipeline_mode = #tpu.pipeline_mode<synchronous>, transform_indices = @transform_6, window_bounds = array<i64: 32, 32>}, {pipeline_mode = #tpu.pipeline_mode<synchronous>, transform_indices = @transform_7, window_bounds = array<i64: 1, 32>}, {pipeline_mode = #tpu.pipeline_mode<synchronous>, transform_indices = @transform_8, window_bounds = array<i64: 32, 32>}, {pipeline_mode = #tpu.pipeline_mode<synchronous>, transform_indices = @transform_9, window_bounds = array<i64: 1, 32>}, {pipeline_mode = #tpu.pipeline_mode<synchronous>, transform_indices = @transform_10, window_bounds = array<i64: 32, 64>}, {pipeline_mode = #tpu.pipeline_mode<synchronous>, transform_indices = @transform_11, window_bounds = array<i64: 1, 64>}, {pipeline_mode = #tpu.pipeline_mode<synchronous>, transform_indices = @transform_12, window_bounds = array<i64: 32, 32>}, {pipeline_mode = #tpu.pipeline_mode<synchronous>, transform_indices = @transform_13, window_bounds = array<i64: 1, 32>}, {pipeline_mode = #tpu.pipeline_mode<synchronous>, transform_indices = @transform_14, window_bounds = array<i64: 32, 64>}, {pipeline_mode = #tpu.pipeline_mode<synchronous>, transform_indices = @transform_15, window_bounds = array<i64: 1, 64>}, {pipeline_mode = #tpu.pipeline_mode<synchronous>, transform_indices = @transform_16, window_bounds = array<i64: 64, 32>}, {pipeline_mode = #tpu.pipeline_mode<synchronous>, transform_indices = @transform_17, window_bounds = array<i64: 1, 32>}, {transform_indices = @transform_18, window_bounds = array<i64: 3, 2>}, {transform_indices = @transform_19, window_bounds = array<i64: 1, 8, 32>}]} {
    %c0_i32 = arith.constant 0 : i32
    %0 = arith.cmpi eq, %arg1, %c0_i32 : i32
    %1 = arith.extui %0 : i1 to i32
    %c0_i32_0 = arith.constant 0 : i32
    %2 = arith.cmpi ne, %1, %c0_i32_0 : i32
    scf.if %2 {
      %c0_126 = arith.constant 0 : index
      %c0_127 = arith.constant 0 : index
      %c0_128 = arith.constant 0 : index
      %253 = vector.load %arg2[%c0_126, %c0_127, %c0_128] : memref<1x8x32xf32, #tpu.memory_space<vmem>>, vector<1x8x32xf32>
      %254 = vector.shape_cast %253 : vector<1x8x32xf32> to vector<8x32xf32>
      %c0_129 = arith.constant 0 : index
      %c0_130 = arith.constant 0 : index
      %255 = memref.load %arg20[%c0_129, %c0_130] : memref<3x2xf32, #tpu.memory_space<smem>>
      %c0_131 = arith.constant 0 : index
      %c1_132 = arith.constant 1 : index
      %256 = memref.load %arg20[%c0_131, %c1_132] : memref<3x2xf32, #tpu.memory_space<smem>>
      %cst_133 = arith.constant dense<0.000000e+00> : vector<8xf32>
      %257 = vector.multi_reduction <add>, %254, %cst_133 [1] : vector<8x32xf32> to vector<8xf32>
      %258 = vector.shape_cast %257 : vector<8xf32> to vector<8x1xf32>
      %cst_134 = arith.constant 3.200000e+01 : f32
      %259 = vector.broadcast %cst_134 : f32 to vector<8x1xf32>
      %260 = arith.divf %258, %259 : vector<8x1xf32>
      %261 = vector.broadcast %260 : vector<8x1xf32> to vector<8x32xf32>
      %262 = arith.subf %254, %261 : vector<8x32xf32>
      %263 = arith.mulf %262, %262 : vector<8x32xf32>
      %cst_135 = arith.constant dense<0.000000e+00> : vector<8xf32>
      %264 = vector.multi_reduction <add>, %263, %cst_135 [1] : vector<8x32xf32> to vector<8xf32>
      %265 = vector.shape_cast %264 : vector<8xf32> to vector<8x1xf32>
      %cst_136 = arith.constant 0.0322580636 : f32
      %266 = vector.broadcast %cst_136 : f32 to vector<8x1xf32>
      %267 = arith.mulf %265, %266 : vector<8x1xf32>
      %268 = math.sqrt %267 : vector<8x1xf32>
      %cst_137 = arith.constant 9.99999997E-7 : f32
      %269 = vector.broadcast %cst_137 : f32 to vector<8x1xf32>
      %270 = arith.addf %268, %269 : vector<8x1xf32>
      %271 = tpu.reciprocal %270 : vector<8x1xf32> -> vector<8x1xf32>
      %272 = vector.broadcast %260 : vector<8x1xf32> to vector<8x32xf32>
      %273 = arith.subf %254, %272 : vector<8x32xf32>
      %274 = vector.broadcast %255 : f32 to vector<8x32xf32>
      %275 = arith.mulf %274, %273 : vector<8x32xf32>
      %276 = vector.broadcast %271 : vector<8x1xf32> to vector<8x32xf32>
      %277 = arith.mulf %275, %276 : vector<8x32xf32>
      %278 = vector.broadcast %256 : f32 to vector<8x32xf32>
      %279 = arith.addf %277, %278 : vector<8x32xf32>
      %c0_138 = arith.constant 0 : index
      %c0_139 = arith.constant 0 : index
      %280 = vector.load %arg6[%c0_138, %c0_139] : memref<32x96xf32, #tpu.memory_space<vmem>>, vector<32x96xf32>
      %cst_140 = arith.constant dense<0.000000e+00> : vector<8x96xf32>
      %281 = tpu.matmul %279, %280, %cst_140 {dimension_numbers = #tpu.dot_dimension_numbers<[1], [0], [0], [1], [0, 0, 1, 1], [], []>} : vector<8x32xf32>, vector<32x96xf32>, vector<8x96xf32> -> vector<8x96xf32>
      %c0_141 = arith.constant 0 : index
      %c0_142 = arith.constant 0 : index
      %282 = vector.load %arg7[%c0_141, %c0_142] : memref<1x96xf32, #tpu.memory_space<vmem>>, vector<1x96xf32>
      %283 = vector.broadcast %282 : vector<1x96xf32> to vector<8x96xf32>
      %284 = arith.addf %281, %283 : vector<8x96xf32>
      %285 = vector.extract_strided_slice %284 {offsets = [0, 0], sizes = [8, 32], strides = [1, 1]} : vector<8x96xf32> to vector<8x32xf32>
      %c0_143 = arith.constant 0 : index
      %c0_144 = arith.constant 0 : index
      %286 = vector.load %arg22[%c0_143, %c0_144] : memref<8x32xf32, #tpu.memory_space<vmem>>, vector<8x32xf32>
      tpu.vector_store %arg22[%c0_143, %c0_144], %285 {strides = array<i32>} : memref<8x32xf32, #tpu.memory_space<vmem>>, vector<8x32xf32>,
      %287 = vector.extract_strided_slice %284 {offsets = [0, 32], sizes = [8, 64], strides = [1, 1]} : vector<8x96xf32> to vector<8x64xf32>
      %c0_145 = arith.constant 0 : index
      %c0_146 = arith.constant 0 : index
      %288 = vector.load %arg23[%c0_145, %c0_146] : memref<8x64xf32, #tpu.memory_space<vmem>>, vector<8x64xf32>
      tpu.vector_store %arg23[%c0_145, %c0_146], %287 {strides = array<i32>} : memref<8x64xf32, #tpu.memory_space<vmem>>, vector<8x64xf32>,
      %c0_147 = arith.constant 0 : index
      %c0_148 = arith.constant 0 : index
      %c0_149 = arith.constant 0 : index
      %289 = vector.load %arg3[%c0_147, %c0_148, %c0_149] : memref<1x16x32xf32, #tpu.memory_space<vmem>>, vector<1x16x32xf32>
      %290 = vector.shape_cast %289 : vector<1x16x32xf32> to vector<16x32xf32>
      %c0_150 = arith.constant 0 : index
      %c0_151 = arith.constant 0 : index
      %291 = vector.load %arg12[%c0_150, %c0_151] : memref<32x64xf32, #tpu.memory_space<vmem>>, vector<32x64xf32>
      %cst_152 = arith.constant dense<0.000000e+00> : vector<16x64xf32>
      %292 = tpu.matmul %290, %291, %cst_152 {dimension_numbers = #tpu.dot_dimension_numbers<[1], [0], [0], [1], [0, 0, 1, 1], [], []>} : vector<16x32xf32>, vector<32x64xf32>, vector<16x64xf32> -> vector<16x64xf32>
      %c0_153 = arith.constant 0 : index
      %c0_154 = arith.constant 0 : index
      %293 = vector.load %arg13[%c0_153, %c0_154] : memref<1x64xf32, #tpu.memory_space<vmem>>, vector<1x64xf32>
      %294 = vector.broadcast %293 : vector<1x64xf32> to vector<16x64xf32>
      %295 = arith.addf %292, %294 : vector<16x64xf32>
      %c0_155 = arith.constant 0 : index
      %c0_156 = arith.constant 0 : index
      %296 = vector.load %arg24[%c0_155, %c0_156] : memref<16x64xf32, #tpu.memory_space<vmem>>, vector<16x64xf32>
      tpu.vector_store %arg24[%c0_155, %c0_156], %295 {strides = array<i32>} : memref<16x64xf32, #tpu.memory_space<vmem>>, vector<16x64xf32>,
    } else {
    }
    %c8_i32 = arith.constant 8 : i32
    %3 = arith.muli %arg1, %c8_i32 : i32
    %4 = tpu.assume_multiple %3, 8 : i32
    %c0 = arith.constant 0 : index
    %5 = arith.index_cast %4 : i32 to index
    %c0_1 = arith.constant 0 : index
    %6 = vector.load %arg2[%c0, %5, %c0_1] : memref<1x8x32xf32, #tpu.memory_space<vmem>>, vector<1x8x32xf32>
    %7 = vector.shape_cast %6 : vector<1x8x32xf32> to vector<8x32xf32>
    %8 = arith.index_cast %4 : i32 to index
    %c0_2 = arith.constant 0 : index
    %9 = vector.load %arg22[%8, %c0_2] : memref<8x32xf32, #tpu.memory_space<vmem>>, vector<8x32xf32>
    %c0_3 = arith.constant 0 : index
    %c0_4 = arith.constant 0 : index
    %10 = vector.load %arg4[%c0_3, %c0_4] : memref<8x8xf32, #tpu.memory_space<vmem>>, vector<8x8xf32>
    %cst = arith.constant 0.000000e+00 : f32
    %11 = vector.broadcast %cst : f32 to vector<8x8xf32>
    %12 = arith.cmpf oeq, %10, %11 : vector<8x8xf32>
    %13 = vector.extract_strided_slice %9 {offsets = [0, 0], sizes = [8, 8], strides = [1, 1]} : vector<8x32xf32> to vector<8x8xf32>
    %cst_5 = arith.constant 0.353553385 : f32
    %14 = vector.broadcast %cst_5 : f32 to vector<8x8xf32>
    %15 = arith.mulf %13, %14 : vector<8x8xf32>
    %c0_6 = arith.constant 0 : index
    %c0_7 = arith.constant 0 : index
    %16 = vector.load %arg23[%c0_6, %c0_7] : memref<8x64xf32, #tpu.memory_space<vmem>>, vector<8x8xf32>
    %c0_8 = arith.constant 0 : index
    %c32 = arith.constant 32 : index
    %17 = vector.load %arg23[%c0_8, %c32] : memref<8x64xf32, #tpu.memory_space<vmem>>, vector<8x8xf32>
    %cst_9 = arith.constant dense<0.000000e+00> : vector<8x8xf32>
    %18 = tpu.matmul %15, %16, %cst_9 {dimension_numbers = #tpu.dot_dimension_numbers<[1], [1], [0], [0], [0, 0, 1, 0], [], []>} : vector<8x8xf32>, vector<8x8xf32>, vector<8x8xf32> -> vector<8x8xf32>
    %cst_10 = arith.constant -1.000000e+09 : f32
    %19 = vector.broadcast %cst_10 : f32 to vector<8x8xf32>
    %20 = arith.select %12, %19, %18 : vector<8x8xi1>, vector<8x8xf32>
    %cst_11 = arith.constant dense<0xFF800000> : vector<8xf32>
    %21 = vector.multi_reduction <maximumf>, %20, %cst_11 [1] : vector<8x8xf32> to vector<8xf32>
    %22 = vector.shape_cast %21 : vector<8xf32> to vector<8x1xf32>
    %23 = vector.broadcast %22 : vector<8x1xf32> to vector<8x8xf32>
    %24 = arith.subf %20, %23 : vector<8x8xf32>
    %25 = math.exp %24 : vector<8x8xf32>
    %cst_12 = arith.constant dense<0.000000e+00> : vector<8xf32>
    %26 = vector.multi_reduction <add>, %25, %cst_12 [1] : vector<8x8xf32> to vector<8xf32>
    %27 = vector.shape_cast %26 : vector<8xf32> to vector<8x1xf32>
    %28 = tpu.reciprocal %27 : vector<8x1xf32> -> vector<8x1xf32>
    %29 = vector.broadcast %28 : vector<8x1xf32> to vector<8x8xf32>
    %30 = arith.mulf %25, %29 : vector<8x8xf32>
    %cst_13 = arith.constant dense<0.000000e+00> : vector<8x8xf32>
    %31 = tpu.matmul %30, %17, %cst_13 {dimension_numbers = #tpu.dot_dimension_numbers<[1], [0], [0], [1], [0, 0, 1, 1], [], []>} : vector<8x8xf32>, vector<8x8xf32>, vector<8x8xf32> -> vector<8x8xf32>
    %32 = vector.extract_strided_slice %9 {offsets = [0, 8], sizes = [8, 8], strides = [1, 1]} : vector<8x32xf32> to vector<8x8xf32>
    %cst_14 = arith.constant 0.353553385 : f32
    %33 = vector.broadcast %cst_14 : f32 to vector<8x8xf32>
    %34 = arith.mulf %32, %33 : vector<8x8xf32>
    %c0_15 = arith.constant 0 : index
    %c8 = arith.constant 8 : index
    %35 = vector.load %arg23[%c0_15, %c8] : memref<8x64xf32, #tpu.memory_space<vmem>>, vector<8x8xf32>
    %c0_16 = arith.constant 0 : index
    %c40 = arith.constant 40 : index
    %36 = vector.load %arg23[%c0_16, %c40] : memref<8x64xf32, #tpu.memory_space<vmem>>, vector<8x8xf32>
    %cst_17 = arith.constant dense<0.000000e+00> : vector<8x8xf32>
    %37 = tpu.matmul %34, %35, %cst_17 {dimension_numbers = #tpu.dot_dimension_numbers<[1], [1], [0], [0], [0, 0, 1, 0], [], []>} : vector<8x8xf32>, vector<8x8xf32>, vector<8x8xf32> -> vector<8x8xf32>
    %cst_18 = arith.constant -1.000000e+09 : f32
    %38 = vector.broadcast %cst_18 : f32 to vector<8x8xf32>
    %39 = arith.select %12, %38, %37 : vector<8x8xi1>, vector<8x8xf32>
    %cst_19 = arith.constant dense<0xFF800000> : vector<8xf32>
    %40 = vector.multi_reduction <maximumf>, %39, %cst_19 [1] : vector<8x8xf32> to vector<8xf32>
    %41 = vector.shape_cast %40 : vector<8xf32> to vector<8x1xf32>
    %42 = vector.broadcast %41 : vector<8x1xf32> to vector<8x8xf32>
    %43 = arith.subf %39, %42 : vector<8x8xf32>
    %44 = math.exp %43 : vector<8x8xf32>
    %cst_20 = arith.constant dense<0.000000e+00> : vector<8xf32>
    %45 = vector.multi_reduction <add>, %44, %cst_20 [1] : vector<8x8xf32> to vector<8xf32>
    %46 = vector.shape_cast %45 : vector<8xf32> to vector<8x1xf32>
    %47 = tpu.reciprocal %46 : vector<8x1xf32> -> vector<8x1xf32>
    %48 = vector.broadcast %47 : vector<8x1xf32> to vector<8x8xf32>
    %49 = arith.mulf %44, %48 : vector<8x8xf32>
    %cst_21 = arith.constant dense<0.000000e+00> : vector<8x8xf32>
    %50 = tpu.matmul %49, %36, %cst_21 {dimension_numbers = #tpu.dot_dimension_numbers<[1], [0], [0], [1], [0, 0, 1, 1], [], []>} : vector<8x8xf32>, vector<8x8xf32>, vector<8x8xf32> -> vector<8x8xf32>
    %51 = vector.extract_strided_slice %9 {offsets = [0, 16], sizes = [8, 8], strides = [1, 1]} : vector<8x32xf32> to vector<8x8xf32>
    %cst_22 = arith.constant 0.353553385 : f32
    %52 = vector.broadcast %cst_22 : f32 to vector<8x8xf32>
    %53 = arith.mulf %51, %52 : vector<8x8xf32>
    %c0_23 = arith.constant 0 : index
    %c16 = arith.constant 16 : index
    %54 = vector.load %arg23[%c0_23, %c16] : memref<8x64xf32, #tpu.memory_space<vmem>>, vector<8x8xf32>
    %c0_24 = arith.constant 0 : index
    %c48 = arith.constant 48 : index
    %55 = vector.load %arg23[%c0_24, %c48] : memref<8x64xf32, #tpu.memory_space<vmem>>, vector<8x8xf32>
    %cst_25 = arith.constant dense<0.000000e+00> : vector<8x8xf32>
    %56 = tpu.matmul %53, %54, %cst_25 {dimension_numbers = #tpu.dot_dimension_numbers<[1], [1], [0], [0], [0, 0, 1, 0], [], []>} : vector<8x8xf32>, vector<8x8xf32>, vector<8x8xf32> -> vector<8x8xf32>
    %cst_26 = arith.constant -1.000000e+09 : f32
    %57 = vector.broadcast %cst_26 : f32 to vector<8x8xf32>
    %58 = arith.select %12, %57, %56 : vector<8x8xi1>, vector<8x8xf32>
    %cst_27 = arith.constant dense<0xFF800000> : vector<8xf32>
    %59 = vector.multi_reduction <maximumf>, %58, %cst_27 [1] : vector<8x8xf32> to vector<8xf32>
    %60 = vector.shape_cast %59 : vector<8xf32> to vector<8x1xf32>
    %61 = vector.broadcast %60 : vector<8x1xf32> to vector<8x8xf32>
    %62 = arith.subf %58, %61 : vector<8x8xf32>
    %63 = math.exp %62 : vector<8x8xf32>
    %cst_28 = arith.constant dense<0.000000e+00> : vector<8xf32>
    %64 = vector.multi_reduction <add>, %63, %cst_28 [1] : vector<8x8xf32> to vector<8xf32>
    %65 = vector.shape_cast %64 : vector<8xf32> to vector<8x1xf32>
    %66 = tpu.reciprocal %65 : vector<8x1xf32> -> vector<8x1xf32>
    %67 = vector.broadcast %66 : vector<8x1xf32> to vector<8x8xf32>
    %68 = arith.mulf %63, %67 : vector<8x8xf32>
    %cst_29 = arith.constant dense<0.000000e+00> : vector<8x8xf32>
    %69 = tpu.matmul %68, %55, %cst_29 {dimension_numbers = #tpu.dot_dimension_numbers<[1], [0], [0], [1], [0, 0, 1, 1], [], []>} : vector<8x8xf32>, vector<8x8xf32>, vector<8x8xf32> -> vector<8x8xf32>
    %70 = vector.extract_strided_slice %9 {offsets = [0, 24], sizes = [8, 8], strides = [1, 1]} : vector<8x32xf32> to vector<8x8xf32>
    %cst_30 = arith.constant 0.353553385 : f32
    %71 = vector.broadcast %cst_30 : f32 to vector<8x8xf32>
    %72 = arith.mulf %70, %71 : vector<8x8xf32>
    %c0_31 = arith.constant 0 : index
    %c24 = arith.constant 24 : index
    %73 = vector.load %arg23[%c0_31, %c24] : memref<8x64xf32, #tpu.memory_space<vmem>>, vector<8x8xf32>
    %c0_32 = arith.constant 0 : index
    %c56 = arith.constant 56 : index
    %74 = vector.load %arg23[%c0_32, %c56] : memref<8x64xf32, #tpu.memory_space<vmem>>, vector<8x8xf32>
    %cst_33 = arith.constant dense<0.000000e+00> : vector<8x8xf32>
    %75 = tpu.matmul %72, %73, %cst_33 {dimension_numbers = #tpu.dot_dimension_numbers<[1], [1], [0], [0], [0, 0, 1, 0], [], []>} : vector<8x8xf32>, vector<8x8xf32>, vector<8x8xf32> -> vector<8x8xf32>
    %cst_34 = arith.constant -1.000000e+09 : f32
    %76 = vector.broadcast %cst_34 : f32 to vector<8x8xf32>
    %77 = arith.select %12, %76, %75 : vector<8x8xi1>, vector<8x8xf32>
    %cst_35 = arith.constant dense<0xFF800000> : vector<8xf32>
    %78 = vector.multi_reduction <maximumf>, %77, %cst_35 [1] : vector<8x8xf32> to vector<8xf32>
    %79 = vector.shape_cast %78 : vector<8xf32> to vector<8x1xf32>
    %80 = vector.broadcast %79 : vector<8x1xf32> to vector<8x8xf32>
    %81 = arith.subf %77, %80 : vector<8x8xf32>
    %82 = math.exp %81 : vector<8x8xf32>
    %cst_36 = arith.constant dense<0.000000e+00> : vector<8xf32>
    %83 = vector.multi_reduction <add>, %82, %cst_36 [1] : vector<8x8xf32> to vector<8xf32>
    %84 = vector.shape_cast %83 : vector<8xf32> to vector<8x1xf32>
    %85 = tpu.reciprocal %84 : vector<8x1xf32> -> vector<8x1xf32>
    %86 = vector.broadcast %85 : vector<8x1xf32> to vector<8x8xf32>
    %87 = arith.mulf %82, %86 : vector<8x8xf32>
    %cst_37 = arith.constant dense<0.000000e+00> : vector<8x8xf32>
    %88 = tpu.matmul %87, %74, %cst_37 {dimension_numbers = #tpu.dot_dimension_numbers<[1], [0], [0], [1], [0, 0, 1, 1], [], []>} : vector<8x8xf32>, vector<8x8xf32>, vector<8x8xf32> -> vector<8x8xf32>
    %89 = tpu.concatenate %31, %50, %69, %88 in 1 : vector<8x8xf32>, vector<8x8xf32>, vector<8x8xf32>, vector<8x8xf32> -> vector<8x32xf32>
    %c0_38 = arith.constant 0 : index
    %c0_39 = arith.constant 0 : index
    %90 = vector.load %arg8[%c0_38, %c0_39] : memref<32x32xf32, #tpu.memory_space<vmem>>, vector<32x32xf32>
    %cst_40 = arith.constant dense<0.000000e+00> : vector<8x32xf32>
    %91 = tpu.matmul %89, %90, %cst_40 {dimension_numbers = #tpu.dot_dimension_numbers<[1], [0], [0], [1], [0, 0, 1, 1], [], []>} : vector<8x32xf32>, vector<32x32xf32>, vector<8x32xf32> -> vector<8x32xf32>
    %c0_41 = arith.constant 0 : index
    %c0_42 = arith.constant 0 : index
    %92 = vector.load %arg9[%c0_41, %c0_42] : memref<1x32xf32, #tpu.memory_space<vmem>>, vector<1x32xf32>
    %93 = vector.broadcast %92 : vector<1x32xf32> to vector<8x32xf32>
    %94 = arith.addf %91, %93 : vector<8x32xf32>
    %95 = arith.addf %7, %94 : vector<8x32xf32>
    %c1 = arith.constant 1 : index
    %c0_43 = arith.constant 0 : index
    %96 = memref.load %arg20[%c1, %c0_43] : memref<3x2xf32, #tpu.memory_space<smem>>
    %c1_44 = arith.constant 1 : index
    %c1_45 = arith.constant 1 : index
    %97 = memref.load %arg20[%c1_44, %c1_45] : memref<3x2xf32, #tpu.memory_space<smem>>
    %cst_46 = arith.constant dense<0.000000e+00> : vector<8xf32>
    %98 = vector.multi_reduction <add>, %95, %cst_46 [1] : vector<8x32xf32> to vector<8xf32>
    %99 = vector.shape_cast %98 : vector<8xf32> to vector<8x1xf32>
    %cst_47 = arith.constant 3.200000e+01 : f32
    %100 = vector.broadcast %cst_47 : f32 to vector<8x1xf32>
    %101 = arith.divf %99, %100 : vector<8x1xf32>
    %102 = vector.broadcast %101 : vector<8x1xf32> to vector<8x32xf32>
    %103 = arith.subf %95, %102 : vector<8x32xf32>
    %104 = arith.mulf %103, %103 : vector<8x32xf32>
    %cst_48 = arith.constant dense<0.000000e+00> : vector<8xf32>
    %105 = vector.multi_reduction <add>, %104, %cst_48 [1] : vector<8x32xf32> to vector<8xf32>
    %106 = vector.shape_cast %105 : vector<8xf32> to vector<8x1xf32>
    %cst_49 = arith.constant 0.0322580636 : f32
    %107 = vector.broadcast %cst_49 : f32 to vector<8x1xf32>
    %108 = arith.mulf %106, %107 : vector<8x1xf32>
    %109 = math.sqrt %108 : vector<8x1xf32>
    %cst_50 = arith.constant 9.99999997E-7 : f32
    %110 = vector.broadcast %cst_50 : f32 to vector<8x1xf32>
    %111 = arith.addf %109, %110 : vector<8x1xf32>
    %112 = tpu.reciprocal %111 : vector<8x1xf32> -> vector<8x1xf32>
    %113 = vector.broadcast %101 : vector<8x1xf32> to vector<8x32xf32>
    %114 = arith.subf %95, %113 : vector<8x32xf32>
    %115 = vector.broadcast %96 : f32 to vector<8x32xf32>
    %116 = arith.mulf %115, %114 : vector<8x32xf32>
    %117 = vector.broadcast %112 : vector<8x1xf32> to vector<8x32xf32>
    %118 = arith.mulf %116, %117 : vector<8x32xf32>
    %119 = vector.broadcast %97 : f32 to vector<8x32xf32>
    %120 = arith.addf %118, %119 : vector<8x32xf32>
    %c0_51 = arith.constant 0 : index
    %c0_52 = arith.constant 0 : index
    %121 = vector.load %arg10[%c0_51, %c0_52] : memref<32x32xf32, #tpu.memory_space<vmem>>, vector<32x32xf32>
    %cst_53 = arith.constant dense<0.000000e+00> : vector<8x32xf32>
    %122 = tpu.matmul %120, %121, %cst_53 {dimension_numbers = #tpu.dot_dimension_numbers<[1], [0], [0], [1], [0, 0, 1, 1], [], []>} : vector<8x32xf32>, vector<32x32xf32>, vector<8x32xf32> -> vector<8x32xf32>
    %c0_54 = arith.constant 0 : index
    %c0_55 = arith.constant 0 : index
    %123 = vector.load %arg11[%c0_54, %c0_55] : memref<1x32xf32, #tpu.memory_space<vmem>>, vector<1x32xf32>
    %124 = vector.broadcast %123 : vector<1x32xf32> to vector<8x32xf32>
    %125 = arith.addf %122, %124 : vector<8x32xf32>
    %c0_56 = arith.constant 0 : index
    %c0_57 = arith.constant 0 : index
    %126 = vector.load %arg5[%c0_56, %c0_57] : memref<8x16xf32, #tpu.memory_space<vmem>>, vector<8x16xf32>
    %cst_58 = arith.constant 0.000000e+00 : f32
    %127 = vector.broadcast %cst_58 : f32 to vector<8x16xf32>
    %128 = arith.cmpf oeq, %126, %127 : vector<8x16xf32>
    %129 = vector.extract_strided_slice %125 {offsets = [0, 0], sizes = [8, 8], strides = [1, 1]} : vector<8x32xf32> to vector<8x8xf32>
    %cst_59 = arith.constant 0.353553385 : f32
    %130 = vector.broadcast %cst_59 : f32 to vector<8x8xf32>
    %131 = arith.mulf %129, %130 : vector<8x8xf32>
    %c0_60 = arith.constant 0 : index
    %c0_61 = arith.constant 0 : index
    %132 = vector.load %arg24[%c0_60, %c0_61] : memref<16x64xf32, #tpu.memory_space<vmem>>, vector<16x8xf32>
    %c0_62 = arith.constant 0 : index
    %c32_63 = arith.constant 32 : index
    %133 = vector.load %arg24[%c0_62, %c32_63] : memref<16x64xf32, #tpu.memory_space<vmem>>, vector<16x8xf32>
    %cst_64 = arith.constant dense<0.000000e+00> : vector<8x16xf32>
    %134 = tpu.matmul %131, %132, %cst_64 {dimension_numbers = #tpu.dot_dimension_numbers<[1], [1], [0], [0], [0, 0, 1, 0], [], []>} : vector<8x8xf32>, vector<16x8xf32>, vector<8x16xf32> -> vector<8x16xf32>
    %cst_65 = arith.constant -1.000000e+09 : f32
    %135 = vector.broadcast %cst_65 : f32 to vector<8x16xf32>
    %136 = arith.select %128, %135, %134 : vector<8x16xi1>, vector<8x16xf32>
    %cst_66 = arith.constant dense<0xFF800000> : vector<8xf32>
    %137 = vector.multi_reduction <maximumf>, %136, %cst_66 [1] : vector<8x16xf32> to vector<8xf32>
    %138 = vector.shape_cast %137 : vector<8xf32> to vector<8x1xf32>
    %139 = vector.broadcast %138 : vector<8x1xf32> to vector<8x16xf32>
    %140 = arith.subf %136, %139 : vector<8x16xf32>
    %141 = math.exp %140 : vector<8x16xf32>
    %cst_67 = arith.constant dense<0.000000e+00> : vector<8xf32>
    %142 = vector.multi_reduction <add>, %141, %cst_67 [1] : vector<8x16xf32> to vector<8xf32>
    %143 = vector.shape_cast %142 : vector<8xf32> to vector<8x1xf32>
    %144 = tpu.reciprocal %143 : vector<8x1xf32> -> vector<8x1xf32>
    %145 = vector.broadcast %144 : vector<8x1xf32> to vector<8x16xf32>
    %146 = arith.mulf %141, %145 : vector<8x16xf32>
    %cst_68 = arith.constant dense<0.000000e+00> : vector<8x8xf32>
    %147 = tpu.matmul %146, %133, %cst_68 {dimension_numbers = #tpu.dot_dimension_numbers<[1], [0], [0], [1], [0, 0, 1, 1], [], []>} : vector<8x16xf32>, vector<16x8xf32>, vector<8x8xf32> -> vector<8x8xf32>
    %148 = vector.extract_strided_slice %125 {offsets = [0, 8], sizes = [8, 8], strides = [1, 1]} : vector<8x32xf32> to vector<8x8xf32>
    %cst_69 = arith.constant 0.353553385 : f32
    %149 = vector.broadcast %cst_69 : f32 to vector<8x8xf32>
    %150 = arith.mulf %148, %149 : vector<8x8xf32>
    %c0_70 = arith.constant 0 : index
    %c8_71 = arith.constant 8 : index
    %151 = vector.load %arg24[%c0_70, %c8_71] : memref<16x64xf32, #tpu.memory_space<vmem>>, vector<16x8xf32>
    %c0_72 = arith.constant 0 : index
    %c40_73 = arith.constant 40 : index
    %152 = vector.load %arg24[%c0_72, %c40_73] : memref<16x64xf32, #tpu.memory_space<vmem>>, vector<16x8xf32>
    %cst_74 = arith.constant dense<0.000000e+00> : vector<8x16xf32>
    %153 = tpu.matmul %150, %151, %cst_74 {dimension_numbers = #tpu.dot_dimension_numbers<[1], [1], [0], [0], [0, 0, 1, 0], [], []>} : vector<8x8xf32>, vector<16x8xf32>, vector<8x16xf32> -> vector<8x16xf32>
    %cst_75 = arith.constant -1.000000e+09 : f32
    %154 = vector.broadcast %cst_75 : f32 to vector<8x16xf32>
    %155 = arith.select %128, %154, %153 : vector<8x16xi1>, vector<8x16xf32>
    %cst_76 = arith.constant dense<0xFF800000> : vector<8xf32>
    %156 = vector.multi_reduction <maximumf>, %155, %cst_76 [1] : vector<8x16xf32> to vector<8xf32>
    %157 = vector.shape_cast %156 : vector<8xf32> to vector<8x1xf32>
    %158 = vector.broadcast %157 : vector<8x1xf32> to vector<8x16xf32>
    %159 = arith.subf %155, %158 : vector<8x16xf32>
    %160 = math.exp %159 : vector<8x16xf32>
    %cst_77 = arith.constant dense<0.000000e+00> : vector<8xf32>
    %161 = vector.multi_reduction <add>, %160, %cst_77 [1] : vector<8x16xf32> to vector<8xf32>
    %162 = vector.shape_cast %161 : vector<8xf32> to vector<8x1xf32>
    %163 = tpu.reciprocal %162 : vector<8x1xf32> -> vector<8x1xf32>
    %164 = vector.broadcast %163 : vector<8x1xf32> to vector<8x16xf32>
    %165 = arith.mulf %160, %164 : vector<8x16xf32>
    %cst_78 = arith.constant dense<0.000000e+00> : vector<8x8xf32>
    %166 = tpu.matmul %165, %152, %cst_78 {dimension_numbers = #tpu.dot_dimension_numbers<[1], [0], [0], [1], [0, 0, 1, 1], [], []>} : vector<8x16xf32>, vector<16x8xf32>, vector<8x8xf32> -> vector<8x8xf32>
    %167 = vector.extract_strided_slice %125 {offsets = [0, 16], sizes = [8, 8], strides = [1, 1]} : vector<8x32xf32> to vector<8x8xf32>
    %cst_79 = arith.constant 0.353553385 : f32
    %168 = vector.broadcast %cst_79 : f32 to vector<8x8xf32>
    %169 = arith.mulf %167, %168 : vector<8x8xf32>
    %c0_80 = arith.constant 0 : index
    %c16_81 = arith.constant 16 : index
    %170 = vector.load %arg24[%c0_80, %c16_81] : memref<16x64xf32, #tpu.memory_space<vmem>>, vector<16x8xf32>
    %c0_82 = arith.constant 0 : index
    %c48_83 = arith.constant 48 : index
    %171 = vector.load %arg24[%c0_82, %c48_83] : memref<16x64xf32, #tpu.memory_space<vmem>>, vector<16x8xf32>
    %cst_84 = arith.constant dense<0.000000e+00> : vector<8x16xf32>
    %172 = tpu.matmul %169, %170, %cst_84 {dimension_numbers = #tpu.dot_dimension_numbers<[1], [1], [0], [0], [0, 0, 1, 0], [], []>} : vector<8x8xf32>, vector<16x8xf32>, vector<8x16xf32> -> vector<8x16xf32>
    %cst_85 = arith.constant -1.000000e+09 : f32
    %173 = vector.broadcast %cst_85 : f32 to vector<8x16xf32>
    %174 = arith.select %128, %173, %172 : vector<8x16xi1>, vector<8x16xf32>
    %cst_86 = arith.constant dense<0xFF800000> : vector<8xf32>
    %175 = vector.multi_reduction <maximumf>, %174, %cst_86 [1] : vector<8x16xf32> to vector<8xf32>
    %176 = vector.shape_cast %175 : vector<8xf32> to vector<8x1xf32>
    %177 = vector.broadcast %176 : vector<8x1xf32> to vector<8x16xf32>
    %178 = arith.subf %174, %177 : vector<8x16xf32>
    %179 = math.exp %178 : vector<8x16xf32>
    %cst_87 = arith.constant dense<0.000000e+00> : vector<8xf32>
    %180 = vector.multi_reduction <add>, %179, %cst_87 [1] : vector<8x16xf32> to vector<8xf32>
    %181 = vector.shape_cast %180 : vector<8xf32> to vector<8x1xf32>
    %182 = tpu.reciprocal %181 : vector<8x1xf32> -> vector<8x1xf32>
    %183 = vector.broadcast %182 : vector<8x1xf32> to vector<8x16xf32>
    %184 = arith.mulf %179, %183 : vector<8x16xf32>
    %cst_88 = arith.constant dense<0.000000e+00> : vector<8x8xf32>
    %185 = tpu.matmul %184, %171, %cst_88 {dimension_numbers = #tpu.dot_dimension_numbers<[1], [0], [0], [1], [0, 0, 1, 1], [], []>} : vector<8x16xf32>, vector<16x8xf32>, vector<8x8xf32> -> vector<8x8xf32>
    %186 = vector.extract_strided_slice %125 {offsets = [0, 24], sizes = [8, 8], strides = [1, 1]} : vector<8x32xf32> to vector<8x8xf32>
    %cst_89 = arith.constant 0.353553385 : f32
    %187 = vector.broadcast %cst_89 : f32 to vector<8x8xf32>
    %188 = arith.mulf %186, %187 : vector<8x8xf32>
    %c0_90 = arith.constant 0 : index
    %c24_91 = arith.constant 24 : index
    %189 = vector.load %arg24[%c0_90, %c24_91] : memref<16x64xf32, #tpu.memory_space<vmem>>, vector<16x8xf32>
    %c0_92 = arith.constant 0 : index
    %c56_93 = arith.constant 56 : index
    %190 = vector.load %arg24[%c0_92, %c56_93] : memref<16x64xf32, #tpu.memory_space<vmem>>, vector<16x8xf32>
    %cst_94 = arith.constant dense<0.000000e+00> : vector<8x16xf32>
    %191 = tpu.matmul %188, %189, %cst_94 {dimension_numbers = #tpu.dot_dimension_numbers<[1], [1], [0], [0], [0, 0, 1, 0], [], []>} : vector<8x8xf32>, vector<16x8xf32>, vector<8x16xf32> -> vector<8x16xf32>
    %cst_95 = arith.constant -1.000000e+09 : f32
    %192 = vector.broadcast %cst_95 : f32 to vector<8x16xf32>
    %193 = arith.select %128, %192, %191 : vector<8x16xi1>, vector<8x16xf32>
    %cst_96 = arith.constant dense<0xFF800000> : vector<8xf32>
    %194 = vector.multi_reduction <maximumf>, %193, %cst_96 [1] : vector<8x16xf32> to vector<8xf32>
    %195 = vector.shape_cast %194 : vector<8xf32> to vector<8x1xf32>
    %196 = vector.broadcast %195 : vector<8x1xf32> to vector<8x16xf32>
    %197 = arith.subf %193, %196 : vector<8x16xf32>
    %198 = math.exp %197 : vector<8x16xf32>
    %cst_97 = arith.constant dense<0.000000e+00> : vector<8xf32>
    %199 = vector.multi_reduction <add>, %198, %cst_97 [1] : vector<8x16xf32> to vector<8xf32>
    %200 = vector.shape_cast %199 : vector<8xf32> to vector<8x1xf32>
    %201 = tpu.reciprocal %200 : vector<8x1xf32> -> vector<8x1xf32>
    %202 = vector.broadcast %201 : vector<8x1xf32> to vector<8x16xf32>
    %203 = arith.mulf %198, %202 : vector<8x16xf32>
    %cst_98 = arith.constant dense<0.000000e+00> : vector<8x8xf32>
    %204 = tpu.matmul %203, %190, %cst_98 {dimension_numbers = #tpu.dot_dimension_numbers<[1], [0], [0], [1], [0, 0, 1, 1], [], []>} : vector<8x16xf32>, vector<16x8xf32>, vector<8x8xf32> -> vector<8x8xf32>
    %205 = tpu.concatenate %147, %166, %185, %204 in 1 : vector<8x8xf32>, vector<8x8xf32>, vector<8x8xf32>, vector<8x8xf32> -> vector<8x32xf32>
    %c0_99 = arith.constant 0 : index
    %c0_100 = arith.constant 0 : index
    %206 = vector.load %arg14[%c0_99, %c0_100] : memref<32x32xf32, #tpu.memory_space<vmem>>, vector<32x32xf32>
    %cst_101 = arith.constant dense<0.000000e+00> : vector<8x32xf32>
    %207 = tpu.matmul %205, %206, %cst_101 {dimension_numbers = #tpu.dot_dimension_numbers<[1], [0], [0], [1], [0, 0, 1, 1], [], []>} : vector<8x32xf32>, vector<32x32xf32>, vector<8x32xf32> -> vector<8x32xf32>
    %c0_102 = arith.constant 0 : index
    %c0_103 = arith.constant 0 : index
    %208 = vector.load %arg15[%c0_102, %c0_103] : memref<1x32xf32, #tpu.memory_space<vmem>>, vector<1x32xf32>
    %209 = vector.broadcast %208 : vector<1x32xf32> to vector<8x32xf32>
    %210 = arith.addf %207, %209 : vector<8x32xf32>
    %211 = arith.addf %95, %210 : vector<8x32xf32>
    %c2 = arith.constant 2 : index
    %c0_104 = arith.constant 0 : index
    %212 = memref.load %arg20[%c2, %c0_104] : memref<3x2xf32, #tpu.memory_space<smem>>
    %c2_105 = arith.constant 2 : index
    %c1_106 = arith.constant 1 : index
    %213 = memref.load %arg20[%c2_105, %c1_106] : memref<3x2xf32, #tpu.memory_space<smem>>
    %cst_107 = arith.constant dense<0.000000e+00> : vector<8xf32>
    %214 = vector.multi_reduction <add>, %211, %cst_107 [1] : vector<8x32xf32> to vector<8xf32>
    %215 = vector.shape_cast %214 : vector<8xf32> to vector<8x1xf32>
    %cst_108 = arith.constant 3.200000e+01 : f32
    %216 = vector.broadcast %cst_108 : f32 to vector<8x1xf32>
    %217 = arith.divf %215, %216 : vector<8x1xf32>
    %218 = vector.broadcast %217 : vector<8x1xf32> to vector<8x32xf32>
    %219 = arith.subf %211, %218 : vector<8x32xf32>
    %220 = arith.mulf %219, %219 : vector<8x32xf32>
    %cst_109 = arith.constant dense<0.000000e+00> : vector<8xf32>
    %221 = vector.multi_reduction <add>, %220, %cst_109 [1] : vector<8x32xf32> to vector<8xf32>
    %222 = vector.shape_cast %221 : vector<8xf32> to vector<8x1xf32>
    %cst_110 = arith.constant 0.0322580636 : f32
    %223 = vector.broadcast %cst_110 : f32 to vector<8x1xf32>
    %224 = arith.mulf %222, %223 : vector<8x1xf32>
    %225 = math.sqrt %224 : vector<8x1xf32>
    %cst_111 = arith.constant 9.99999997E-7 : f32
    %226 = vector.broadcast %cst_111 : f32 to vector<8x1xf32>
    %227 = arith.addf %225, %226 : vector<8x1xf32>
    %228 = tpu.reciprocal %227 : vector<8x1xf32> -> vector<8x1xf32>
    %229 = vector.broadcast %217 : vector<8x1xf32> to vector<8x32xf32>
    %230 = arith.subf %211, %229 : vector<8x32xf32>
    %231 = vector.broadcast %212 : f32 to vector<8x32xf32>
    %232 = arith.mulf %231, %230 : vector<8x32xf32>
    %233 = vector.broadcast %228 : vector<8x1xf32> to vector<8x32xf32>
    %234 = arith.mulf %232, %233 : vector<8x32xf32>
    %235 = vector.broadcast %213 : f32 to vector<8x32xf32>
    %236 = arith.addf %234, %235 : vector<8x32xf32>
    %c0_112 = arith.constant 0 : index
    %c0_113 = arith.constant 0 : index
    %237 = vector.load %arg16[%c0_112, %c0_113] : memref<32x64xf32, #tpu.memory_space<vmem>>, vector<32x64xf32>
    %cst_114 = arith.constant dense<0.000000e+00> : vector<8x64xf32>
    %238 = tpu.matmul %236, %237, %cst_114 {dimension_numbers = #tpu.dot_dimension_numbers<[1], [0], [0], [1], [0, 0, 1, 1], [], []>} : vector<8x32xf32>, vector<32x64xf32>, vector<8x64xf32> -> vector<8x64xf32>
    %c0_115 = arith.constant 0 : index
    %c0_116 = arith.constant 0 : index
    %239 = vector.load %arg17[%c0_115, %c0_116] : memref<1x64xf32, #tpu.memory_space<vmem>>, vector<1x64xf32>
    %240 = vector.broadcast %239 : vector<1x64xf32> to vector<8x64xf32>
    %241 = arith.addf %238, %240 : vector<8x64xf32>
    %cst_117 = arith.constant 0.000000e+00 : f32
    %242 = vector.broadcast %cst_117 : f32 to vector<8x64xf32>
    %243 = arith.maximumf %241, %242 : vector<8x64xf32>
    %c0_118 = arith.constant 0 : index
    %c0_119 = arith.constant 0 : index
    %244 = vector.load %arg18[%c0_118, %c0_119] : memref<64x32xf32, #tpu.memory_space<vmem>>, vector<64x32xf32>
    %cst_120 = arith.constant dense<0.000000e+00> : vector<8x32xf32>
    %245 = tpu.matmul %243, %244, %cst_120 {dimension_numbers = #tpu.dot_dimension_numbers<[1], [0], [0], [1], [0, 0, 1, 1], [], []>} : vector<8x64xf32>, vector<64x32xf32>, vector<8x32xf32> -> vector<8x32xf32>
    %246 = arith.addf %211, %245 : vector<8x32xf32>
    %c0_121 = arith.constant 0 : index
    %c0_122 = arith.constant 0 : index
    %247 = vector.load %arg19[%c0_121, %c0_122] : memref<1x32xf32, #tpu.memory_space<vmem>>, vector<1x32xf32>
    %248 = vector.broadcast %247 : vector<1x32xf32> to vector<8x32xf32>
    %249 = arith.addf %246, %248 : vector<8x32xf32>
    %c0_123 = arith.constant 0 : index
    %c0_124 = arith.constant 0 : index
    %c0_125 = arith.constant 0 : index
    %250 = vector.load %arg21[%c0_123, %c0_124, %c0_125] : memref<1x8x32xf32, #tpu.memory_space<vmem>>, vector<1x8x32xf32>
    %251 = vector.shape_cast %250 : vector<1x8x32xf32> to vector<8x32xf32>
    %252 = vector.shape_cast %249 : vector<8x32xf32> to vector<1x8x32xf32>
    tpu.vector_store %arg21[%c0_123, %c0_124, %c0_125], %252 {strides = array<i32>} : memref<1x8x32xf32, #tpu.memory_space<vmem>>, vector<1x8x32xf32>,
    return
  }
  func.func @transform_0(%arg0: i32, %arg1: i32) -> (i32, i32, i32) {
    %c0_i32 = arith.constant 0 : i32
    %c0_i32_0 = arith.constant 0 : i32
    %c0_i32_1 = arith.constant 0 : i32
    return %arg0, %c0_i32, %c0_i32_0 : i32, i32, i32
  }
  func.func @transform_1(%arg0: i32, %arg1: i32) -> (i32, i32, i32) {
    %c0_i32 = arith.constant 0 : i32
    %c0_i32_0 = arith.constant 0 : i32
    %c0_i32_1 = arith.constant 0 : i32
    return %arg0, %c0_i32, %c0_i32_0 : i32, i32, i32
  }
  func.func @transform_2(%arg0: i32, %arg1: i32) -> (i32, i32) {
    %c0_i32 = arith.constant 0 : i32
    %c0_i32_0 = arith.constant 0 : i32
    return %arg1, %c0_i32 : i32, i32
  }
  func.func @transform_3(%arg0: i32, %arg1: i32) -> (i32, i32) {
    %c0_i32 = arith.constant 0 : i32
    %c0_i32_0 = arith.constant 0 : i32
    return %arg1, %c0_i32 : i32, i32
  }
  func.func @transform_4(%arg0: i32, %arg1: i32) -> (i32, i32) {
    %c0_i32 = arith.constant 0 : i32
    %c0_i32_0 = arith.constant 0 : i32
    %c0_i32_1 = arith.constant 0 : i32
    return %c0_i32, %c0_i32_0 : i32, i32
  }
  func.func @transform_5(%arg0: i32, %arg1: i32) -> (i32, i32) {
    %c0_i32 = arith.constant 0 : i32
    %c0_i32_0 = arith.constant 0 : i32
    %c0_i32_1 = arith.constant 0 : i32
    return %c0_i32, %c0_i32_0 : i32, i32
  }
  func.func @transform_6(%arg0: i32, %arg1: i32) -> (i32, i32) {
    %c0_i32 = arith.constant 0 : i32
    %c0_i32_0 = arith.constant 0 : i32
    %c0_i32_1 = arith.constant 0 : i32
    return %c0_i32, %c0_i32_0 : i32, i32
  }
  func.func @transform_7(%arg0: i32, %arg1: i32) -> (i32, i32) {
    %c0_i32 = arith.constant 0 : i32
    %c0_i32_0 = arith.constant 0 : i32
    %c0_i32_1 = arith.constant 0 : i32
    return %c0_i32, %c0_i32_0 : i32, i32
  }
  func.func @transform_8(%arg0: i32, %arg1: i32) -> (i32, i32) {
    %c0_i32 = arith.constant 0 : i32
    %c0_i32_0 = arith.constant 0 : i32
    %c0_i32_1 = arith.constant 0 : i32
    return %c0_i32, %c0_i32_0 : i32, i32
  }
  func.func @transform_9(%arg0: i32, %arg1: i32) -> (i32, i32) {
    %c0_i32 = arith.constant 0 : i32
    %c0_i32_0 = arith.constant 0 : i32
    %c0_i32_1 = arith.constant 0 : i32
    return %c0_i32, %c0_i32_0 : i32, i32
  }
  func.func @transform_10(%arg0: i32, %arg1: i32) -> (i32, i32) {
    %c0_i32 = arith.constant 0 : i32
    %c0_i32_0 = arith.constant 0 : i32
    %c0_i32_1 = arith.constant 0 : i32
    return %c0_i32, %c0_i32_0 : i32, i32
  }
  func.func @transform_11(%arg0: i32, %arg1: i32) -> (i32, i32) {
    %c0_i32 = arith.constant 0 : i32
    %c0_i32_0 = arith.constant 0 : i32
    %c0_i32_1 = arith.constant 0 : i32
    return %c0_i32, %c0_i32_0 : i32, i32
  }
  func.func @transform_12(%arg0: i32, %arg1: i32) -> (i32, i32) {
    %c0_i32 = arith.constant 0 : i32
    %c0_i32_0 = arith.constant 0 : i32
    %c0_i32_1 = arith.constant 0 : i32
    return %c0_i32, %c0_i32_0 : i32, i32
  }
  func.func @transform_13(%arg0: i32, %arg1: i32) -> (i32, i32) {
    %c0_i32 = arith.constant 0 : i32
    %c0_i32_0 = arith.constant 0 : i32
    %c0_i32_1 = arith.constant 0 : i32
    return %c0_i32, %c0_i32_0 : i32, i32
  }
  func.func @transform_14(%arg0: i32, %arg1: i32) -> (i32, i32) {
    %c0_i32 = arith.constant 0 : i32
    %c0_i32_0 = arith.constant 0 : i32
    %c0_i32_1 = arith.constant 0 : i32
    return %c0_i32, %c0_i32_0 : i32, i32
  }
  func.func @transform_15(%arg0: i32, %arg1: i32) -> (i32, i32) {
    %c0_i32 = arith.constant 0 : i32
    %c0_i32_0 = arith.constant 0 : i32
    %c0_i32_1 = arith.constant 0 : i32
    return %c0_i32, %c0_i32_0 : i32, i32
  }
  func.func @transform_16(%arg0: i32, %arg1: i32) -> (i32, i32) {
    %c0_i32 = arith.constant 0 : i32
    %c0_i32_0 = arith.constant 0 : i32
    %c0_i32_1 = arith.constant 0 : i32
    return %c0_i32, %c0_i32_0 : i32, i32
  }
  func.func @transform_17(%arg0: i32, %arg1: i32) -> (i32, i32) {
    %c0_i32 = arith.constant 0 : i32
    %c0_i32_0 = arith.constant 0 : i32
    %c0_i32_1 = arith.constant 0 : i32
    return %c0_i32, %c0_i32_0 : i32, i32
  }
  func.func @transform_18(%arg0: i32, %arg1: i32) -> (i32, i32) {
    %c0_i32 = arith.constant 0 : i32
    %c0_i32_0 = arith.constant 0 : i32
    %c0_i32_1 = arith.constant 0 : i32
    return %c0_i32, %c0_i32_0 : i32, i32
  }
  func.func @transform_19(%arg0: i32, %arg1: i32) -> (i32, i32, i32) {
    %c0_i32 = arith.constant 0 : i32
    %c0_i32_0 = arith.constant 0 : i32
    return %arg0, %arg1, %c0_i32 : i32, i32, i32
  }
}

</mosaic_0001>

<llo_original>
// kernel: tpu_custom_call.1
$region0: #{tpu_custom_call.1}
  #allocation0 [shape = 'u32[]', space=smem, size = 0x4, offset = 0x4, fixed_abs, tag = 'smem constant byte address 0x4 - core index']
  #allocation1 [shape = 'u32[144,128]{1,0:T(1,128)}', space=vmem, size = 0x12000, scoped, tag = 'internal scratch']
  #allocation2 [shape = 'f32[8,32]{1,0:T(8,128)}', space=vmem, size = 0x1000, scoped, tag = 'scratch operand']
  #allocation3 [shape = 'f32[8,64]{1,0:T(8,128)}', space=vmem, size = 0x1000, scoped, tag = 'scratch operand']
  #allocation4 [shape = 'f32[16,64]{1,0:T(8,128)}', space=vmem, size = 0x2000, scoped, tag = 'scratch operand']
  %s0 = inlined_call_operand.hbm [shape: f32[2,8,32], index: 0, kind: input, shape index: {}]
  %s1 = inlined_call_operand.vmem [shape: f32[2,16,32], index: 1, kind: input, shape index: {}]
  %s2 = inlined_call_operand.vmem [shape: f32[8,8], index: 2, kind: input, shape index: {}]
  %s3 = inlined_call_operand.vmem [shape: f32[8,16], index: 3, kind: input, shape index: {}]
  %s4 = inlined_call_operand.vmem [shape: f32[32,96], index: 4, kind: input, shape index: {}]
  %s5 = inlined_call_operand.vmem [shape: f32[1,96], index: 5, kind: input, shape index: {}]
  %s6 = inlined_call_operand.vmem [shape: f32[32,32], index: 6, kind: input, shape index: {}]
  %s7 = inlined_call_operand.vmem [shape: f32[1,32], index: 7, kind: input, shape index: {}]
  %s8 = inlined_call_operand.hbm [shape: f32[32,32], index: 8, kind: input, shape index: {}]
  %s9 = inlined_call_operand.vmem [shape: f32[1,32], index: 9, kind: input, shape index: {}]
  %s10 = inlined_call_operand.hbm [shape: f32[32,64], index: 10, kind: input, shape index: {}]
  %s11 = inlined_call_operand.vmem [shape: f32[1,64], index: 11, kind: input, shape index: {}]
  %s12 = inlined_call_operand.hbm [shape: f32[32,32], index: 12, kind: input, shape index: {}]
  %s13 = inlined_call_operand.vmem [shape: f32[1,32], index: 13, kind: input, shape index: {}]
  %s14 = inlined_call_operand.hbm [shape: f32[32,64], index: 14, kind: input, shape index: {}]
  %s15 = inlined_call_operand.vmem [shape: f32[1,64], index: 15, kind: input, shape index: {}]
  %s16 = inlined_call_operand.vmem [shape: f32[64,32], index: 16, kind: input, shape index: {}]
  %s17 = inlined_call_operand.vmem [shape: f32[1,32], index: 17, kind: input, shape index: {}]
  %s18 = inlined_call_operand.vmem [shape: f32[3,2], index: 18, kind: input, shape index: {}]
  %s19 = inlined_call_operand.hbm [shape: f32[2,8,32], index: 19, kind: output, shape index: {}]
  %s20 = sld [smem:[#allocation0]]
  $region137: #{tpu_custom_call.1} parent=0
    _
  %s22 = ssub.s32 1, %s20
  %s23 = scalar_select 0, %s22, %s20
  $region1: #{tpu_custom_call.1} parent=0
    #allocation5 [shape = 'u8[8192]{0}', space=vmem, size = 0x2000, scoped, tag = 'input window, operand 0']
    #allocation6 [shape = 's32[2]{0}', space=sflag, size = 0x8, scoped, tag = 'scoped memory for tpu_custom_call.1']
    #allocation7 [shape = 's32[2]{0}', space=sflag, size = 0x8, scoped, tag = 'scoped memory for tpu_custom_call.1']
    #allocation8 [shape = 's32[2]{0}', space=sflag, size = 0x8, scoped, tag = 'scoped memory for tpu_custom_call.1']
    #allocation9 [shape = 'u8[16384]{0}', space=vmem, size = 0x4000, scoped, tag = 'input window, operand 8, single buffered']
    #allocation10 [shape = 's32[1]{0}', space=sflag, size = 0x4, scoped, tag = 'scoped memory for tpu_custom_call.1']
    #allocation11 [shape = 'u8[16384]{0}', space=vmem, size = 0x4000, scoped, tag = 'input window, operand 10, single buffered']
    #allocation12 [shape = 'u8[16384]{0}', space=vmem, size = 0x4000, scoped, tag = 'input window, operand 12, single buffered']
    #allocation13 [shape = 's32[1]{0}', space=sflag, size = 0x4, scoped, tag = 'scoped memory for tpu_custom_call.1']
    #allocation14 [shape = 'u8[16384]{0}', space=vmem, size = 0x4000, scoped, tag = 'input window, operand 14, single buffered']
    #allocation15 [shape = 'u8[2048]{0}', space=smem, size = 0x800, scoped, tag = 'input window, operand 18, single buffered']
    #allocation16 [shape = 'u8[8192]{0}', space=vmem, size = 0x2000, scoped, tag = 'output window, operand 0']
    %24 = vsyncpa [#allocation6], 0
    %s25 = scalar_lea.sflag [#allocation6], 1
    %26 = vsyncpa %s25, 0
    %27 = vsyncpa [#allocation10], 0
    %28 = vsyncpa [#allocation13], 0
    %29 = vsyncpa [#allocation8], 0
    %30 = vsyncpa [#allocation7], 0
    %s31 = scalar_lea.sflag [#allocation7], 1
    %32 = vsyncpa %s31, 0
    loop: start=0, step=1, limit=4
    $region2: #{tpu_custom_call.1} parent=1 // loop_pre_header
      _
    $region3: #{tpu_custom_call.1} parent=1 // loop_header
      %s34 = sphi 0, %s38
      %p35 = scmp.ge.s32.totalorder %s34, 4
      %s41 = sphi 0, %s53
      %s42 = sphi 0, %s49
      %s43 = sphi 0, %s41
      %s44 = sphi 0, %s42
      %s45 = sphi 0, %s43
      %s46 = sphi 0, %s44
      %s56 = sphi 0, %s58
      %s59 = sphi 0, %s56
      %s60 = sphi 0, %s59
      %s76 = sphi 0, %s60
      %s82 = sphi 0, %s84
      %s85 = sphi 0, %s82
      %s86 = sphi 0, %s85
      %s102 = sphi 0, %s86
      %s108 = sphi 0, %s110
      %s111 = sphi 0, %s108
      %s112 = sphi 0, %s111
      %s128 = sphi 0, %s112
      %s134 = sphi 0, %s136
      %s137 = sphi 0, %s134
      %s138 = sphi 0, %s137
      %s154 = sphi 0, %s138
      %s158 = sphi 0, %s158
      %s160 = sphi 0, %s158
      %s161 = sphi 0, %s160
      %s175 = sphi 0, %s161
      %s179 = sphi 0, %s179
      %s181 = sphi 0, %s179
      %s182 = sphi 0, %s181
      %s196 = sphi 0, %s182
      %s200 = sphi 0, %s200
      %s202 = sphi 0, %s200
      %s203 = sphi 0, %s202
      %s217 = sphi 0, %s203
      %s221 = sphi 0, %s221
      %s223 = sphi 0, %s221
      %s224 = sphi 0, %s223
      %s238 = sphi 0, %s224
      %s242 = sphi 0, %s242
      %s244 = sphi 0, %s242
      %s245 = sphi 0, %s244
      %s259 = sphi 0, %s245
      %s263 = sphi 0, %s263
      %s265 = sphi 0, %s263
      %s266 = sphi 0, %s265
      %s280 = sphi 0, %s266
      %s284 = sphi 0, %s284
      %s286 = sphi 0, %s284
      %s287 = sphi 0, %s286
      %s301 = sphi 0, %s287
      %s305 = sphi 0, %s305
      %s307 = sphi 0, %s305
      %s308 = sphi 0, %s307
      %s322 = sphi 0, %s308
      %s326 = sphi 0, %s326
      %s328 = sphi 0, %s326
      %s329 = sphi 0, %s328
      %s343 = sphi 0, %s329
      %s347 = sphi 0, %s347
      %s349 = sphi 0, %s347
      %s350 = sphi 0, %s349
      %s364 = sphi 0, %s350
      %s368 = sphi 0, %s368
      %s370 = sphi 0, %s368
      %s371 = sphi 0, %s370
      %s385 = sphi 0, %s371
      %s389 = sphi 0, %s389
      %s391 = sphi 0, %s389
      %s392 = sphi 0, %s391
      %s406 = sphi 0, %s392
      %s410 = sphi 0, %s410
      %s412 = sphi 0, %s410
      %s413 = sphi 0, %s412
      %s427 = sphi 0, %s413
      %s431 = sphi 0, %s431
      %s433 = sphi 0, %s431
      %s434 = sphi 0, %s433
      %s448 = sphi 0, %s434
      %s452 = sphi 0, %s452
      %s454 = sphi 0, %s452
      %s455 = sphi 0, %s454
      %s469 = sphi 0, %s455
      %s477 = sphi 0, %s479
      %s480 = sphi 0, %s477
      %s481 = sphi 0, %s480
      %s497 = sphi 0, %s481
    $region4: #{tpu_custom_call.1} parent=1 // loop_header_branch
      %37 = sbr.rel (%p35) target = $region8
    $region5: #{tpu_custom_call.1} parent=1 // loop_body
      %s39 = ssub.s32 %s34, 1
      %s40 = ssub.s32 %s34, 2
      %s47 = sadd.s32 1, %s42
      %p48 = scmp.ge.s32.totalorder %s47, 1
      %s49 = scalar_select %p48, 0, %s47
      %s50 = sadd.s32 1, %s41
      %s51 = scalar_select %p48, %s50, %s41
      %p52 = scmp.ge.s32.totalorder %s51, 2
      %s53 = scalar_select %p52, 0, %s51
      %s54 = ssub.s32 %s41, %s53
      %p55 = scmp.eq.s32.totalorder %s54, 0
      %s57 = sadd.s32 %s56, 1
      %s58 = scalar_select %p55, %s56, %s57
      %p61 = pneg %p55
      %p62 = scmp.eq.s32.totalorder %s34, 1
      %p63 = por %p61, %p62
      %p64 = scmp.ne.s32.totalorder %s56, %s59
      %p65 = scmp.eq.s32.totalorder %s34, 0
      %p66 = por %p64, %p65
      %p67 = scmp.ne.s32.totalorder %s56, %s59
      %p68 = scmp.eq.s32.totalorder %s39, 1
      %p69 = por %p67, %p68
      %p70 = scmp.ne.s32.totalorder %s59, %s60
      %p71 = scmp.eq.s32.totalorder %s39, 0
      %p72 = por %p70, %p71
      %p73 = scmp.ne.s32.totalorder %s59, %s60
      %p74 = scmp.eq.s32.totalorder %s40, 1
      %p75 = por %p73, %p74
      %p77 = scmp.ne.s32.totalorder %s60, %s76
      %p78 = scmp.eq.s32.totalorder %s40, 0
      %p79 = por %p77, %p78
      %s80 = ssub.s32 %s41, %s53
      %p81 = scmp.eq.s32.totalorder %s80, 0
      %s83 = sadd.s32 %s82, 1
      %s84 = scalar_select %p81, %s82, %s83
      %p87 = pneg %p81
      %p88 = scmp.eq.s32.totalorder %s34, 1
      %p89 = por %p87, %p88
      %p90 = scmp.ne.s32.totalorder %s82, %s85
      %p91 = scmp.eq.s32.totalorder %s34, 0
      %p92 = por %p90, %p91
      %p93 = scmp.ne.s32.totalorder %s82, %s85
      %p94 = scmp.eq.s32.totalorder %s39, 1
      %p95 = por %p93, %p94
      %p96 = scmp.ne.s32.totalorder %s85, %s86
      %p97 = scmp.eq.s32.totalorder %s39, 0
      %p98 = por %p96, %p97
      %p99 = scmp.ne.s32.totalorder %s85, %s86
      %p100 = scmp.eq.s32.totalorder %s40, 1
      %p101 = por %p99, %p100
      %p103 = scmp.ne.s32.totalorder %s86, %s102
      %p104 = scmp.eq.s32.totalorder %s40, 0
      %p105 = por %p103, %p104
      %s106 = ssub.s32 %s42, %s49
      %p107 = scmp.eq.s32.totalorder %s106, 0
      %s109 = sadd.s32 %s108, 1
      %s110 = scalar_select %p107, %s108, %s109
      %p113 = pneg %p107
      %p114 = scmp.eq.s32.totalorder %s34, 1
      %p115 = por %p113, %p114
      %p116 = scmp.ne.s32.totalorder %s108, %s111
      %p117 = scmp.eq.s32.totalorder %s34, 0
      %p118 = por %p116, %p117
      %p119 = scmp.ne.s32.totalorder %s108, %s111
      %p120 = scmp.eq.s32.totalorder %s39, 1
      %p121 = por %p119, %p120
      %p122 = scmp.ne.s32.totalorder %s111, %s112
      %p123 = scmp.eq.s32.totalorder %s39, 0
      %p124 = por %p122, %p123
      %p125 = scmp.ne.s32.totalorder %s111, %s112
      %p126 = scmp.eq.s32.totalorder %s40, 1
      %p127 = por %p125, %p126
      %p129 = scmp.ne.s32.totalorder %s112, %s128
      %p130 = scmp.eq.s32.totalorder %s40, 0
      %p131 = por %p129, %p130
      %s132 = ssub.s32 %s42, %s49
      %p133 = scmp.eq.s32.totalorder %s132, 0
      %s135 = sadd.s32 %s134, 1
      %s136 = scalar_select %p133, %s134, %s135
      %p139 = pneg %p133
      %p140 = scmp.eq.s32.totalorder %s34, 1
      %p141 = por %p139, %p140
      %p142 = scmp.ne.s32.totalorder %s134, %s137
      %p143 = scmp.eq.s32.totalorder %s34, 0
      %p144 = por %p142, %p143
      %p145 = scmp.ne.s32.totalorder %s134, %s137
      %p146 = scmp.eq.s32.totalorder %s39, 1
      %p147 = por %p145, %p146
      %p148 = scmp.ne.s32.totalorder %s137, %s138
      %p149 = scmp.eq.s32.totalorder %s39, 0
      %p150 = por %p148, %p149
      %p151 = scmp.ne.s32.totalorder %s137, %s138
      %p152 = scmp.eq.s32.totalorder %s40, 1
      %p153 = por %p151, %p152
      %p155 = scmp.ne.s32.totalorder %s138, %s154
      %p156 = scmp.eq.s32.totalorder %s40, 0
      %p157 = por %p155, %p156
      %s159 = sadd.s32 %s158, 1
      %p162 = scmp.eq.s32.totalorder %s34, 1
      %p163 = scmp.ne.s32.totalorder %s158, %s160
      %p164 = scmp.eq.s32.totalorder %s34, 0
      %p165 = por %p163, %p164
      %p166 = scmp.ne.s32.totalorder %s158, %s160
      %p167 = scmp.eq.s32.totalorder %s39, 1
      %p168 = por %p166, %p167
      %p169 = scmp.ne.s32.totalorder %s160, %s161
      %p170 = scmp.eq.s32.totalorder %s39, 0
      %p171 = por %p169, %p170
      %p172 = scmp.ne.s32.totalorder %s160, %s161
      %p173 = scmp.eq.s32.totalorder %s40, 1
      %p174 = por %p172, %p173
      %p176 = scmp.ne.s32.totalorder %s161, %s175
      %p177 = scmp.eq.s32.totalorder %s40, 0
      %p178 = por %p176, %p177
      %s180 = sadd.s32 %s179, 1
      %p183 = scmp.eq.s32.totalorder %s34, 1
      %p184 = scmp.ne.s32.totalorder %s179, %s181
      %p185 = scmp.eq.s32.totalorder %s34, 0
      %p186 = por %p184, %p185
      %p187 = scmp.ne.s32.totalorder %s179, %s181
      %p188 = scmp.eq.s32.totalorder %s39, 1
      %p189 = por %p187, %p188
      %p190 = scmp.ne.s32.totalorder %s181, %s182
      %p191 = scmp.eq.s32.totalorder %s39, 0
      %p192 = por %p190, %p191
      %p193 = scmp.ne.s32.totalorder %s181, %s182
      %p194 = scmp.eq.s32.totalorder %s40, 1
      %p195 = por %p193, %p194
      %p197 = scmp.ne.s32.totalorder %s182, %s196
      %p198 = scmp.eq.s32.totalorder %s40, 0
      %p199 = por %p197, %p198
      %s201 = sadd.s32 %s200, 1
      %p204 = scmp.eq.s32.totalorder %s34, 1
      %p205 = scmp.ne.s32.totalorder %s200, %s202
      %p206 = scmp.eq.s32.totalorder %s34, 0
      %p207 = por %p205, %p206
      %p208 = scmp.ne.s32.totalorder %s200, %s202
      %p209 = scmp.eq.s32.totalorder %s39, 1
      %p210 = por %p208, %p209
      %p211 = scmp.ne.s32.totalorder %s202, %s203
      %p212 = scmp.eq.s32.totalorder %s39, 0
      %p213 = por %p211, %p212
      %p214 = scmp.ne.s32.totalorder %s202, %s203
      %p215 = scmp.eq.s32.totalorder %s40, 1
      %p216 = por %p214, %p215
      %p218 = scmp.ne.s32.totalorder %s203, %s217
      %p219 = scmp.eq.s32.totalorder %s40, 0
      %p220 = por %p218, %p219
      %s222 = sadd.s32 %s221, 1
      %p225 = scmp.eq.s32.totalorder %s34, 1
      %p226 = scmp.ne.s32.totalorder %s221, %s223
      %p227 = scmp.eq.s32.totalorder %s34, 0
      %p228 = por %p226, %p227
      %p229 = scmp.ne.s32.totalorder %s221, %s223
      %p230 = scmp.eq.s32.totalorder %s39, 1
      %p231 = por %p229, %p230
      %p232 = scmp.ne.s32.totalorder %s223, %s224
      %p233 = scmp.eq.s32.totalorder %s39, 0
      %p234 = por %p232, %p233
      %p235 = scmp.ne.s32.totalorder %s223, %s224
      %p236 = scmp.eq.s32.totalorder %s40, 1
      %p237 = por %p235, %p236
      %p239 = scmp.ne.s32.totalorder %s224, %s238
      %p240 = scmp.eq.s32.totalorder %s40, 0
      %p241 = por %p239, %p240
      %s243 = sadd.s32 %s242, 1
      %p246 = scmp.eq.s32.totalorder %s34, 1
      %p247 = scmp.ne.s32.totalorder %s242, %s244
      %p248 = scmp.eq.s32.totalorder %s34, 0
      %p249 = por %p247, %p248
      %p250 = scmp.ne.s32.totalorder %s242, %s244
      %p251 = scmp.eq.s32.totalorder %s39, 1
      %p252 = por %p250, %p251
      %p253 = scmp.ne.s32.totalorder %s244, %s245
      %p254 = scmp.eq.s32.totalorder %s39, 0
      %p255 = por %p253, %p254
      %p256 = scmp.ne.s32.totalorder %s244, %s245
      %p257 = scmp.eq.s32.totalorder %s40, 1
      %p258 = por %p256, %p257
      %p260 = scmp.ne.s32.totalorder %s245, %s259
      %p261 = scmp.eq.s32.totalorder %s40, 0
      %p262 = por %p260, %p261
      %s264 = sadd.s32 %s263, 1
      %p267 = scmp.eq.s32.totalorder %s34, 1
      %p268 = scmp.ne.s32.totalorder %s263, %s265
      %p269 = scmp.eq.s32.totalorder %s34, 0
      %p270 = por %p268, %p269
      %p271 = scmp.ne.s32.totalorder %s263, %s265
      %p272 = scmp.eq.s32.totalorder %s39, 1
      %p273 = por %p271, %p272
      %p274 = scmp.ne.s32.totalorder %s265, %s266
      %p275 = scmp.eq.s32.totalorder %s39, 0
      %p276 = por %p274, %p275
      %p277 = scmp.ne.s32.totalorder %s265, %s266
      %p278 = scmp.eq.s32.totalorder %s40, 1
      %p279 = por %p277, %p278
      %p281 = scmp.ne.s32.totalorder %s266, %s280
      %p282 = scmp.eq.s32.totalorder %s40, 0
      %p283 = por %p281, %p282
      %s285 = sadd.s32 %s284, 1
      %p288 = scmp.eq.s32.totalorder %s34, 1
      %p289 = scmp.ne.s32.totalorder %s284, %s286
      %p290 = scmp.eq.s32.totalorder %s34, 0
      %p291 = por %p289, %p290
      %p292 = scmp.ne.s32.totalorder %s284, %s286
      %p293 = scmp.eq.s32.totalorder %s39, 1
      %p294 = por %p292, %p293
      %p295 = scmp.ne.s32.totalorder %s286, %s287
      %p296 = scmp.eq.s32.totalorder %s39, 0
      %p297 = por %p295, %p296
      %p298 = scmp.ne.s32.totalorder %s286, %s287
      %p299 = scmp.eq.s32.totalorder %s40, 1
      %p300 = por %p298, %p299
      %p302 = scmp.ne.s32.totalorder %s287, %s301
      %p303 = scmp.eq.s32.totalorder %s40, 0
      %p304 = por %p302, %p303
      %s306 = sadd.s32 %s305, 1
      %p309 = scmp.eq.s32.totalorder %s34, 1
      %p310 = scmp.ne.s32.totalorder %s305, %s307
      %p311 = scmp.eq.s32.totalorder %s34, 0
      %p312 = por %p310, %p311
      %p313 = scmp.ne.s32.totalorder %s305, %s307
      %p314 = scmp.eq.s32.totalorder %s39, 1
      %p315 = por %p313, %p314
      %p316 = scmp.ne.s32.totalorder %s307, %s308
      %p317 = scmp.eq.s32.totalorder %s39, 0
      %p318 = por %p316, %p317
      %p319 = scmp.ne.s32.totalorder %s307, %s308
      %p320 = scmp.eq.s32.totalorder %s40, 1
      %p321 = por %p319, %p320
      %p323 = scmp.ne.s32.totalorder %s308, %s322
      %p324 = scmp.eq.s32.totalorder %s40, 0
      %p325 = por %p323, %p324
      %s327 = sadd.s32 %s326, 1
      %p330 = scmp.eq.s32.totalorder %s34, 1
      %p331 = scmp.ne.s32.totalorder %s326, %s328
      %p332 = scmp.eq.s32.totalorder %s34, 0
      %p333 = por %p331, %p332
      %p334 = scmp.ne.s32.totalorder %s326, %s328
      %p335 = scmp.eq.s32.totalorder %s39, 1
      %p336 = por %p334, %p335
      %p337 = scmp.ne.s32.totalorder %s328, %s329
      %p338 = scmp.eq.s32.totalorder %s39, 0
      %p339 = por %p337, %p338
      %p340 = scmp.ne.s32.totalorder %s328, %s329
      %p341 = scmp.eq.s32.totalorder %s40, 1
      %p342 = por %p340, %p341
      %p344 = scmp.ne.s32.totalorder %s329, %s343
      %p345 = scmp.eq.s32.totalorder %s40, 0
      %p346 = por %p344, %p345
      %s348 = sadd.s32 %s347, 1
      %p351 = scmp.eq.s32.totalorder %s34, 1
      %p352 = scmp.ne.s32.totalorder %s347, %s349
      %p353 = scmp.eq.s32.totalorder %s34, 0
      %p354 = por %p352, %p353
      %p355 = scmp.ne.s32.totalorder %s347, %s349
      %p356 = scmp.eq.s32.totalorder %s39, 1
      %p357 = por %p355, %p356
      %p358 = scmp.ne.s32.totalorder %s349, %s350
      %p359 = scmp.eq.s32.totalorder %s39, 0
      %p360 = por %p358, %p359
      %p361 = scmp.ne.s32.totalorder %s349, %s350
      %p362 = scmp.eq.s32.totalorder %s40, 1
      %p363 = por %p361, %p362
      %p365 = scmp.ne.s32.totalorder %s350, %s364
      %p366 = scmp.eq.s32.totalorder %s40, 0
      %p367 = por %p365, %p366
      %s369 = sadd.s32 %s368, 1
      %p372 = scmp.eq.s32.totalorder %s34, 1
      %p373 = scmp.ne.s32.totalorder %s368, %s370
      %p374 = scmp.eq.s32.totalorder %s34, 0
      %p375 = por %p373, %p374
      %p376 = scmp.ne.s32.totalorder %s368, %s370
      %p377 = scmp.eq.s32.totalorder %s39, 1
      %p378 = por %p376, %p377
      %p379 = scmp.ne.s32.totalorder %s370, %s371
      %p380 = scmp.eq.s32.totalorder %s39, 0
      %p381 = por %p379, %p380
      %p382 = scmp.ne.s32.totalorder %s370, %s371
      %p383 = scmp.eq.s32.totalorder %s40, 1
      %p384 = por %p382, %p383
      %p386 = scmp.ne.s32.totalorder %s371, %s385
      %p387 = scmp.eq.s32.totalorder %s40, 0
      %p388 = por %p386, %p387
      %s390 = sadd.s32 %s389, 1
      %p393 = scmp.eq.s32.totalorder %s34, 1
      %p394 = scmp.ne.s32.totalorder %s389, %s391
      %p395 = scmp.eq.s32.totalorder %s34, 0
      %p396 = por %p394, %p395
      %p397 = scmp.ne.s32.totalorder %s389, %s391
      %p398 = scmp.eq.s32.totalorder %s39, 1
      %p399 = por %p397, %p398
      %p400 = scmp.ne.s32.totalorder %s391, %s392
      %p401 = scmp.eq.s32.totalorder %s39, 0
      %p402 = por %p400, %p401
      %p403 = scmp.ne.s32.totalorder %s391, %s392
      %p404 = scmp.eq.s32.totalorder %s40, 1
      %p405 = por %p403, %p404
      %p407 = scmp.ne.s32.totalorder %s392, %s406
      %p408 = scmp.eq.s32.totalorder %s40, 0
      %p409 = por %p407, %p408
      %s411 = sadd.s32 %s410, 1
      %p414 = scmp.eq.s32.totalorder %s34, 1
      %p415 = scmp.ne.s32.totalorder %s410, %s412
      %p416 = scmp.eq.s32.totalorder %s34, 0
      %p417 = por %p415, %p416
      %p418 = scmp.ne.s32.totalorder %s410, %s412
      %p419 = scmp.eq.s32.totalorder %s39, 1
      %p420 = por %p418, %p419
      %p421 = scmp.ne.s32.totalorder %s412, %s413
      %p422 = scmp.eq.s32.totalorder %s39, 0
      %p423 = por %p421, %p422
      %p424 = scmp.ne.s32.totalorder %s412, %s413
      %p425 = scmp.eq.s32.totalorder %s40, 1
      %p426 = por %p424, %p425
      %p428 = scmp.ne.s32.totalorder %s413, %s427
      %p429 = scmp.eq.s32.totalorder %s40, 0
      %p430 = por %p428, %p429
      %s432 = sadd.s32 %s431, 1
      %p435 = scmp.eq.s32.totalorder %s34, 1
      %p436 = scmp.ne.s32.totalorder %s431, %s433
      %p437 = scmp.eq.s32.totalorder %s34, 0
      %p438 = por %p436, %p437
      %p439 = scmp.ne.s32.totalorder %s431, %s433
      %p440 = scmp.eq.s32.totalorder %s39, 1
      %p441 = por %p439, %p440
      %p442 = scmp.ne.s32.totalorder %s433, %s434
      %p443 = scmp.eq.s32.totalorder %s39, 0
      %p444 = por %p442, %p443
      %p445 = scmp.ne.s32.totalorder %s433, %s434
      %p446 = scmp.eq.s32.totalorder %s40, 1
      %p447 = por %p445, %p446
      %p449 = scmp.ne.s32.totalorder %s434, %s448
      %p450 = scmp.eq.s32.totalorder %s40, 0
      %p451 = por %p449, %p450
      %s453 = sadd.s32 %s452, 1
      %p456 = scmp.eq.s32.totalorder %s34, 1
      %p457 = scmp.ne.s32.totalorder %s452, %s454
      %p458 = scmp.eq.s32.totalorder %s34, 0
      %p459 = por %p457, %p458
      %p460 = scmp.ne.s32.totalorder %s452, %s454
      %p461 = scmp.eq.s32.totalorder %s39, 1
      %p462 = por %p460, %p461
      %p463 = scmp.ne.s32.totalorder %s454, %s455
      %p464 = scmp.eq.s32.totalorder %s39, 0
      %p465 = por %p463, %p464
      %p466 = scmp.ne.s32.totalorder %s454, %s455
      %p467 = scmp.eq.s32.totalorder %s40, 1
      %p468 = por %p466, %p467
      %p470 = scmp.ne.s32.totalorder %s455, %s469
      %p471 = scmp.eq.s32.totalorder %s40, 0
      %p472 = por %p470, %p471
      %s473 = ssub.s32 %s41, %s53
      %s474 = ssub.s32 %s42, %s49
      %s475 = sor.u32 %s473, %s474
      %p476 = scmp.eq.s32.totalorder %s475, 0
      %s478 = sadd.s32 %s477, 1
      %s479 = scalar_select %p476, %s477, %s478
      %p482 = pneg %p476
      %p483 = scmp.eq.s32.totalorder %s34, 1
      %p484 = por %p482, %p483
      %p485 = scmp.ne.s32.totalorder %s477, %s480
      %p486 = scmp.eq.s32.totalorder %s34, 0
      %p487 = por %p485, %p486
      %p488 = scmp.ne.s32.totalorder %s477, %s480
      %p489 = scmp.eq.s32.totalorder %s39, 1
      %p490 = por %p488, %p489
      %p491 = scmp.ne.s32.totalorder %s480, %s481
      %p492 = scmp.eq.s32.totalorder %s39, 0
      %p493 = por %p491, %p492
      %p494 = scmp.ne.s32.totalorder %s480, %s481
      %p495 = scmp.eq.s32.totalorder %s40, 1
      %p496 = por %p494, %p495
      %p498 = scmp.ne.s32.totalorder %s481, %s497
      %p499 = scmp.eq.s32.totalorder %s40, 0
      %p500 = por %p498, %p499
      %p501 = scmp.le.s32.totalorder 1, %s34
      %p502 = scmp.lt.s32.totalorder %s34, 3
      %p503 = pnand %p501, %p502
      %p504 = pneg %p503
      // Predicated region
      $region9: #{tpu_custom_call.1} parent=5 // pred_check
        _
      $region10: #{tpu_custom_call.1} parent=5 // pred_check_branch
        %506 = sbr.rel (%p503) target = $region12
      $region11: #{tpu_custom_call.1} parent=5 // pred_region
        %s507 = ssub.s32 %s34, 1
        // Predicated region
        $region13: #{tpu_custom_call.1} parent=11 // pred_check
          %p508 = pneg %p124
        $region14: #{tpu_custom_call.1} parent=11 // pred_check_branch
          %510 = sbr.rel (%p508) target = $region16
        $region15: #{tpu_custom_call.1} parent=11 // pred_region
          %p511 = scmp.lt.s32.totalorder %s44, 0
          %s512 = scalar_select %p511, %s44, 0
          %s513 = smul.addr %s512, 8
          %s514 = scalar_lea.vmem %s2, %s513
        $region16: #{tpu_custom_call.1} parent=11 // pred_fallthru
          _
        // Predicated region
        $region17: #{tpu_custom_call.1} parent=11 // pred_check
          %p515 = pneg %p150
        $region18: #{tpu_custom_call.1} parent=11 // pred_check_branch
          %517 = sbr.rel (%p515) target = $region20
        $region19: #{tpu_custom_call.1} parent=11 // pred_region
          %p518 = scmp.lt.s32.totalorder %s44, 0
          %s519 = scalar_select %p518, %s44, 0
          %s520 = smul.addr %s519, 8
          %s521 = scalar_lea.vmem %s3, %s520
        $region20: #{tpu_custom_call.1} parent=11 // pred_fallthru
          _
        // Predicated region
        $region21: #{tpu_custom_call.1} parent=11 // pred_check
          %p522 = pneg %p171
        $region22: #{tpu_custom_call.1} parent=11 // pred_check_branch
          %524 = sbr.rel (%p522) target = $region24
        $region23: #{tpu_custom_call.1} parent=11 // pred_region
          _
        $region24: #{tpu_custom_call.1} parent=11 // pred_fallthru
          _
        // Predicated region
        $region25: #{tpu_custom_call.1} parent=11 // pred_check
          %p525 = pneg %p192
        $region26: #{tpu_custom_call.1} parent=11 // pred_check_branch
          %527 = sbr.rel (%p525) target = $region28
        $region27: #{tpu_custom_call.1} parent=11 // pred_region
          _
        $region28: #{tpu_custom_call.1} parent=11 // pred_fallthru
          _
        // Predicated region
        $region29: #{tpu_custom_call.1} parent=11 // pred_check
          %p528 = pneg %p213
        $region30: #{tpu_custom_call.1} parent=11 // pred_check_branch
          %530 = sbr.rel (%p528) target = $region32
        $region31: #{tpu_custom_call.1} parent=11 // pred_region
          _
        $region32: #{tpu_custom_call.1} parent=11 // pred_fallthru
          _
        // Predicated region
        $region33: #{tpu_custom_call.1} parent=11 // pred_check
          %p531 = pneg %p234
        $region34: #{tpu_custom_call.1} parent=11 // pred_check_branch
          %533 = sbr.rel (%p531) target = $region36
        $region35: #{tpu_custom_call.1} parent=11 // pred_region
          _
        $region36: #{tpu_custom_call.1} parent=11 // pred_fallthru
          _
        // Predicated region
        $region37: #{tpu_custom_call.1} parent=11 // pred_check
          %p534 = pneg %p255
        $region38: #{tpu_custom_call.1} parent=11 // pred_check_branch
          %536 = sbr.rel (%p534) target = $region40
        $region39: #{tpu_custom_call.1} parent=11 // pred_region
          %s538 = ssub.s32 512, 512
          %539 = vsyncadd [#allocation10], %s538
          %s540 = sshll.u32 [#allocation9], 4
          %s541 = int_to_ptr.vmem [resolvable:$true] %s540
          %546 = dma.hbm_to_vmem [thread:$0]  %s8, 512, %s541, [#allocation10], 128, 128, 8
        $region40: #{tpu_custom_call.1} parent=11 // pred_fallthru
          _
        // Predicated region
        $region41: #{tpu_custom_call.1} parent=11 // pred_check
          %p547 = pneg %p276
        $region42: #{tpu_custom_call.1} parent=11 // pred_check_branch
          %549 = sbr.rel (%p547) target = $region44
        $region43: #{tpu_custom_call.1} parent=11 // pred_region
          _
        $region44: #{tpu_custom_call.1} parent=11 // pred_fallthru
          _
        // Predicated region
        $region45: #{tpu_custom_call.1} parent=11 // pred_check
          %p550 = pneg %p297
        $region46: #{tpu_custom_call.1} parent=11 // pred_check_branch
          %552 = sbr.rel (%p550) target = $region48
        $region47: #{tpu_custom_call.1} parent=11 // pred_region
          %s554 = ssub.s32 512, 512
          %555 = vsyncadd [#allocation10], %s554
          %s556 = sshll.u32 [#allocation11], 4
          %s557 = int_to_ptr.vmem [resolvable:$true] %s556
          %562 = dma.hbm_to_vmem [thread:$0]  %s10, 512, %s557, [#allocation10], 128, 128, 8
        $region48: #{tpu_custom_call.1} parent=11 // pred_fallthru
          _
        // Predicated region
        $region49: #{tpu_custom_call.1} parent=11 // pred_check
          %p563 = pneg %p318
        $region50: #{tpu_custom_call.1} parent=11 // pred_check_branch
          %565 = sbr.rel (%p563) target = $region52
        $region51: #{tpu_custom_call.1} parent=11 // pred_region
          _
        $region52: #{tpu_custom_call.1} parent=11 // pred_fallthru
          _
        // Predicated region
        $region53: #{tpu_custom_call.1} parent=11 // pred_check
          %p566 = pneg %p339
        $region54: #{tpu_custom_call.1} parent=11 // pred_check_branch
          %568 = sbr.rel (%p566) target = $region56
        $region55: #{tpu_custom_call.1} parent=11 // pred_region
          %s570 = ssub.s32 512, 512
          %571 = vsyncadd [#allocation13], %s570
          %s572 = sshll.u32 [#allocation12], 4
          %s573 = int_to_ptr.vmem [resolvable:$true] %s572
          %578 = dma.hbm_to_vmem [thread:$0]  %s12, 512, %s573, [#allocation13], 128, 128, 8
        $region56: #{tpu_custom_call.1} parent=11 // pred_fallthru
          _
        // Predicated region
        $region57: #{tpu_custom_call.1} parent=11 // pred_check
          %p579 = pneg %p360
        $region58: #{tpu_custom_call.1} parent=11 // pred_check_branch
          %581 = sbr.rel (%p579) target = $region60
        $region59: #{tpu_custom_call.1} parent=11 // pred_region
          _
        $region60: #{tpu_custom_call.1} parent=11 // pred_fallthru
          _
        // Predicated region
        $region61: #{tpu_custom_call.1} parent=11 // pred_check
          %p582 = pneg %p381
        $region62: #{tpu_custom_call.1} parent=11 // pred_check_branch
          %584 = sbr.rel (%p582) target = $region64
        $region63: #{tpu_custom_call.1} parent=11 // pred_region
          %s586 = ssub.s32 512, 512
          %587 = vsyncadd [#allocation13], %s586
          %s588 = sshll.u32 [#allocation14], 4
          %s589 = int_to_ptr.vmem [resolvable:$true] %s588
          %594 = dma.hbm_to_vmem [thread:$0]  %s14, 512, %s589, [#allocation13], 128, 128, 8
        $region64: #{tpu_custom_call.1} parent=11 // pred_fallthru
          _
        // Predicated region
        $region65: #{tpu_custom_call.1} parent=11 // pred_check
          %p595 = pneg %p402
        $region66: #{tpu_custom_call.1} parent=11 // pred_check_branch
          %597 = sbr.rel (%p595) target = $region68
        $region67: #{tpu_custom_call.1} parent=11 // pred_region
          _
        $region68: #{tpu_custom_call.1} parent=11 // pred_fallthru
          _
        // Predicated region
        $region69: #{tpu_custom_call.1} parent=11 // pred_check
          %p598 = pneg %p423
        $region70: #{tpu_custom_call.1} parent=11 // pred_check_branch
          %600 = sbr.rel (%p598) target = $region72
        $region71: #{tpu_custom_call.1} parent=11 // pred_region
          _
        $region72: #{tpu_custom_call.1} parent=11 // pred_fallthru
          _
        // Predicated region
        $region73: #{tpu_custom_call.1} parent=11 // pred_check
          %p601 = pneg %p444
        $region74: #{tpu_custom_call.1} parent=11 // pred_check_branch
          %603 = sbr.rel (%p601) target = $region76
        $region75: #{tpu_custom_call.1} parent=11 // pred_region
          _
        $region76: #{tpu_custom_call.1} parent=11 // pred_fallthru
          _
        // Predicated region
        $region77: #{tpu_custom_call.1} parent=11 // pred_check
          %p604 = pneg %p465
        $region78: #{tpu_custom_call.1} parent=11 // pred_check_branch
          %606 = sbr.rel (%p604) target = $region80
        $region79: #{tpu_custom_call.1} parent=11 // pred_region
          %s608 = ssub.s32 64, 64
          %609 = vsyncadd [#allocation8], %s608
          %s611 = sshll.u32 %s18, 4
          %s612 = int_to_ptr.vmem [resolvable:$true] %s611
          %614 = dma.vmem_to_smem %s612, 64, [#allocation15], [#allocation8]
        $region80: #{tpu_custom_call.1} parent=11 // pred_fallthru
          _
      $region12: #{tpu_custom_call.1} parent=5 // pred_fallthru
        _
      %p615 = scmp.lt.s32.totalorder %s34, 2
      // Predicated region
      $region81: #{tpu_custom_call.1} parent=5 // pred_check
        %p616 = pneg %p615
      $region82: #{tpu_custom_call.1} parent=5 // pred_check_branch
        %618 = sbr.rel (%p616) target = $region84
      $region83: #{tpu_custom_call.1} parent=5 // pred_region
        // Predicated region
        $region85: #{tpu_custom_call.1} parent=83 // pred_check
          %p619 = pneg %p66
        $region86: #{tpu_custom_call.1} parent=83 // pred_check_branch
          %621 = sbr.rel (%p619) target = $region88
        $region87: #{tpu_custom_call.1} parent=83 // pred_region
          %s622 = sand.u32 %s56, 1
          %s623 = scalar_lea.sflag [#allocation6], %s622
          %s624 = sand.u32 %s56, 1
          %s625 = smul.addr %s624, 8
          %s626 = scalar_lea.vmem [#allocation5], %s625
          %s628 = ssub.s32 128, 128
          %629 = vsyncadd %s623, %s628
          %s630 = smul.addr %s41, 128
          %s631 = scalar_lea.hbm %s0, %s630
          %s633 = sshll.u32 %s626, 4
          %s634 = int_to_ptr.vmem [resolvable:$true] %s633
          %636 = dma.hbm_to_vmem [thread:$0]  %s631, 128, %s634, %s623
        $region88: #{tpu_custom_call.1} parent=83 // pred_fallthru
          _
        // Predicated region
        $region89: #{tpu_custom_call.1} parent=83 // pred_check
          %p637 = pneg %p92
        $region90: #{tpu_custom_call.1} parent=83 // pred_check_branch
          %639 = sbr.rel (%p637) target = $region92
        $region91: #{tpu_custom_call.1} parent=83 // pred_region
          %p640 = scmp.lt.s32.totalorder %s41, 1
          %s641 = scalar_select %p640, %s41, 1
          %s642 = smul.addr %s641, 2
          %s643 = smul.addr %s642, 8
          %s644 = scalar_lea.vmem %s1, %s643
        $region92: #{tpu_custom_call.1} parent=83 // pred_fallthru
          _
      $region84: #{tpu_custom_call.1} parent=5 // pred_fallthru
        _
      %p645 = scmp.le.s32.totalorder 1, %s34
      %p646 = scmp.lt.s32.totalorder %s34, 3
      %p647 = pnand %p645, %p646
      %p648 = pneg %p647
      // Predicated region
      $region93: #{tpu_custom_call.1} parent=5 // pred_check
        _
      $region94: #{tpu_custom_call.1} parent=5 // pred_check_branch
        %650 = sbr.rel (%p647) target = $region96
      $region95: #{tpu_custom_call.1} parent=5 // pred_region
        %s651 = ssub.s32 %s34, 1
        %s652 = sand.u32 %s59, 1
        %s653 = scalar_lea.sflag [#allocation6], %s652
        %s654 = sand.u32 %s59, 1
        %s655 = smul.addr %s654, 8
        %s656 = scalar_lea.vmem [#allocation5], %s655
        // Predicated region
        $region97: #{tpu_custom_call.1} parent=95 // pred_check
          %p657 = pneg %p72
        $region98: #{tpu_custom_call.1} parent=95 // pred_check_branch
          %659 = sbr.rel (%p657) target = $region100
        $region99: #{tpu_custom_call.1} parent=95 // pred_region
          %660 = dma.done %s653, 128
        $region100: #{tpu_custom_call.1} parent=95 // pred_fallthru
          _
        // Predicated region
        $region101: #{tpu_custom_call.1} parent=95 // pred_check
          %p661 = pneg %p255
        $region102: #{tpu_custom_call.1} parent=95 // pred_check_branch
          %663 = sbr.rel (%p661) target = $region104
        $region103: #{tpu_custom_call.1} parent=95 // pred_region
          %664 = dma.done [#allocation10], 512
        $region104: #{tpu_custom_call.1} parent=95 // pred_fallthru
          _
        // Predicated region
        $region105: #{tpu_custom_call.1} parent=95 // pred_check
          %p665 = pneg %p297
        $region106: #{tpu_custom_call.1} parent=95 // pred_check_branch
          %667 = sbr.rel (%p665) target = $region108
        $region107: #{tpu_custom_call.1} parent=95 // pred_region
          %668 = dma.done [#allocation10], 512
        $region108: #{tpu_custom_call.1} parent=95 // pred_fallthru
          _
        // Predicated region
        $region109: #{tpu_custom_call.1} parent=95 // pred_check
          %p669 = pneg %p339
        $region110: #{tpu_custom_call.1} parent=95 // pred_check_branch
          %671 = sbr.rel (%p669) target = $region112
        $region111: #{tpu_custom_call.1} parent=95 // pred_region
          %672 = dma.done [#allocation13], 512
        $region112: #{tpu_custom_call.1} parent=95 // pred_fallthru
          _
        // Predicated region
        $region113: #{tpu_custom_call.1} parent=95 // pred_check
          %p673 = pneg %p381
        $region114: #{tpu_custom_call.1} parent=95 // pred_check_branch
          %675 = sbr.rel (%p673) target = $region116
        $region115: #{tpu_custom_call.1} parent=95 // pred_region
          %676 = dma.done [#allocation13], 512
        $region116: #{tpu_custom_call.1} parent=95 // pred_fallthru
          _
        // Predicated region
        $region117: #{tpu_custom_call.1} parent=95 // pred_check
          %p677 = pneg %p465
        $region118: #{tpu_custom_call.1} parent=95 // pred_check_branch
          %679 = sbr.rel (%p677) target = $region120
        $region119: #{tpu_custom_call.1} parent=95 // pred_region
          %680 = dma.done [#allocation8], 64
        $region120: #{tpu_custom_call.1} parent=95 // pred_fallthru
          _
        %681 = sfence
        %s682 = sand.u32 %s59, 1
        %s683 = scalar_lea.sflag [#allocation6], %s682
        %s684 = sand.u32 %s59, 1
        %s685 = smul.addr %s684, 8
        %s686 = scalar_lea.vmem [#allocation5], %s685
        %p687 = pneg %p72
        %p688 = pneg %p69
        %p689 = scmp.lt.s32.totalorder %s43, 1
        %s690 = scalar_select %p689, %s43, 1
        %s691 = smul.addr %s690, 2
        %s692 = smul.addr %s691, 8
        %s693 = scalar_lea.vmem %s1, %s692
        %p694 = pneg %p98
        %p695 = pneg %p95
        %p696 = scmp.lt.s32.totalorder %s44, 0
        %s697 = scalar_select %p696, %s44, 0
        %s698 = smul.addr %s697, 8
        %s699 = scalar_lea.vmem %s2, %s698
        %p700 = pneg %p124
        %p701 = pneg %p121
        %p702 = scmp.lt.s32.totalorder %s44, 0
        %s703 = scalar_select %p702, %s44, 0
        %s704 = smul.addr %s703, 8
        %s705 = scalar_lea.vmem %s3, %s704
        %p706 = pneg %p150
        %p707 = pneg %p147
        %p708 = pneg %p171
        %p709 = pneg %p168
        %p710 = pneg %p192
        %p711 = pneg %p189
        %p712 = pneg %p213
        %p713 = pneg %p210
        %p714 = pneg %p234
        %p715 = pneg %p231
        %p716 = pneg %p255
        %p717 = pneg %p252
        %p718 = pneg %p276
        %p719 = pneg %p273
        %p720 = pneg %p297
        %p721 = pneg %p294
        %p722 = pneg %p318
        %p723 = pneg %p315
        %p724 = pneg %p339
        %p725 = pneg %p336
        %p726 = pneg %p360
        %p727 = pneg %p357
        %p728 = pneg %p381
        %p729 = pneg %p378
        %p730 = pneg %p402
        %p731 = pneg %p399
        %p732 = pneg %p423
        %p733 = pneg %p420
        %p734 = pneg %p444
        %p735 = pneg %p441
        %p736 = pneg %p465
        %p737 = pneg %p462
        %p738 = pneg %p493
        %p739 = pneg %p490
        %s740 = sand.u32 %s480, 1
        %s741 = scalar_lea.sflag [#allocation7], %s740
        %s742 = sand.u32 %s480, 1
        %s743 = smul.addr %s742, 8
        %s744 = scalar_lea.vmem [#allocation16], %s743
        %p745 = scmp.lt.s32.totalorder %s43, 1
        %s746 = scalar_select %p745, %s43, 1
        %s747 = smul.addr %s746, 2
        %s748 = smul.addr %s747, 8
        %s749 = scalar_lea.vmem %s1, %s748
        %p750 = scmp.lt.s32.totalorder %s44, 0
        %s751 = scalar_select %p750, %s44, 0
        %s752 = smul.addr %s751, 8
        %s753 = scalar_lea.vmem %s2, %s752
        %p754 = scmp.lt.s32.totalorder %s44, 0
        %s755 = scalar_select %p754, %s44, 0
        %s756 = smul.addr %s755, 8
        %s757 = scalar_lea.vmem %s3, %s756
        %p758 = scmp.eq.s32.totalorder %s44, 0
        // Predicated region
        $region121: #{tpu_custom_call.1} parent=95 // pred_check
          %p759 = pneg %p758
        $region122: #{tpu_custom_call.1} parent=95 // pred_check_branch
          %761 = sbr.rel (%p759) target = $region124
        $region123: #{tpu_custom_call.1} parent=95 // pred_region
          %v762 = vld [vmem:[%s656] sm:$0xff]
          %s763 = sld [smem:[#allocation15]]
          %s764 = sld [smem:[#allocation15 + $0x1]]
          %vm765 = vcmask 261120
          %v766 = vsel %vm765, %v762, 0.0
          %767 = vadd.xlane.f32.xlu0 %v766
          %v768 = vpop.xlane.xlu0 %767
          %v769 = vrcp.pop 32.0
          %v770 = vmul.f32 %v768, %v769
          %v771 = vsub.f32 %v762, %v770
          %v772 = vmul.f32 %v771, %v771
          %v773 = vsel %vm765, %v772, 0.0
          %774 = vadd.xlane.f32.xlu0 %v773
          %v775 = vpop.xlane.xlu0 %774
          %v776 = vmul.f32 %v775, 0.032258064
          %v777 = vrsqrt.pop %v776
          %v778 = vmul.f32 %v776, %v777
          %vm779 = vcmp.eq.f32.partialorder %v776, inf
          %v780 = vsel %vm779, %v776, %v778
          %vm781 = vcmp.eq.f32.partialorder %v776, 0.0
          %v782 = vand.u32 %v776, 2147483648
          %v783 = vsel %vm781, %v782, %v780
          %v784 = vadd.f32 %v783, 1e-06
          %v785 = vrcp.pop %v784
          %v786 = vstv %s763
          %v787 = vmul.f32 %v786, %v771
          %v788 = vmul.f32 %v787, %v785
          %v789 = vstv %s764
          %v790 = vadd.f32 %v788, %v789
          %v791 = vld [vmem:[%s4] sm:$0xff]
          %v792 = vld [vmem:[%s4 + $0x8] sm:$0xff]
          %v793 = vld [vmem:[%s4 + $0x10] sm:$0xff]
          %v794 = vld [vmem:[%s4 + $0x18] sm:$0xff]
          %v795 = vld [vmem:[%s5] sm:$0x1]
          %v797 = vlaneseq
          %v798 = vshrl.u32 %v797, 7
          %v799 = vsub.s32 0, %v798
          %v800 = vrot.slane %v795, %v799
          %v803 = vsel %vm765, %v790, 0
          %805 = vmatprep.subr.mxu0 0.0
          %806 = vmatpush1.msra.mxu0 %v791
          %807 = vmatprep.subr.mxu0 0.0
          %808 = vmatpush1.msra.mxu0 %v792
          %809 = vmatprep.subr.mxu0 0.0
          %810 = vmatpush1.msra.mxu0 %v793
          %811 = vmatprep.subr.mxu0 0.0
          %812 = vmatpush1.msra.mxu0 %v794
          %813 = vmatprep.subr.mxu0 0.0
          %814 = vmatpush1.msra.mxu0 0.0
          %815 = vmatprep.subr.mxu0 0.0
          %816 = vmatpush1.msra.mxu0 0.0
          %817 = vmatprep.subr.mxu0 0.0
          %818 = vmatpush1.msra.mxu0 0.0
          %819 = vmatprep.subr.mxu0 0.0
          %820 = vmatpush1.msra.mxu0 0.0
          %821 = vmatprep.subr.mxu0 0.0
          %822 = vmatpush1.msra.mxu0 0.0
          %823 = vmatprep.subr.mxu0 0.0
          %824 = vmatpush1.msra.mxu0 0.0
          %825 = vmatprep.subr.mxu0 0.0
          %826 = vmatpush1.msra.mxu0 0.0
          %827 = vmatprep.subr.mxu0 0.0
          %828 = vmatpush1.msra.mxu0 0.0
          %829 = vmatprep.subr.mxu0 0.0
          %830 = vmatpush1.msra.mxu0 0.0
          %831 = vmatprep.subr.mxu0 0.0
          %832 = vmatpush1.msra.mxu0 0.0
          %833 = vmatprep.subr.mxu0 0.0
          %834 = vmatpush1.msra.mxu0 0.0
          %835 = vmatprep.subr.mxu0 0.0
          %836 = vmatpush1.msra.mxu0 0.0
          %837 = vmatprep.subr.mxu0 0.0
          %838 = vmatpush1.msra.mxu0 0.0
          %839 = vmatprep.subr.mxu0 0.0
          %840 = vmatpush1.msra.mxu0 0.0
          %841 = vmatprep.subr.mxu0 0.0
          %842 = vmatpush1.msra.mxu0 0.0
          %843 = vmatprep.subr.mxu0 0.0
          %844 = vmatpush1.msra.mxu0 0.0
          %845 = vmatprep.subr.mxu0 0.0
          %846 = vmatpush1.msra.mxu0 0.0
          %847 = vmatprep.subr.mxu0 0.0
          %848 = vmatpush1.msra.mxu0 0.0
          %849 = vmatprep.subr.mxu0 0.0
          %850 = vmatpush1.msra.mxu0 0.0
          %851 = vmatprep.subr.mxu0 0.0
          %852 = vmatpush1.msra.mxu0 0.0
          %853 = vmatprep.subr.mxu0 0.0
          %854 = vmatpush1.msra.mxu0 0.0
          %855 = vmatprep.subr.mxu0 0.0
          %856 = vmatpush1.msra.mxu0 0.0
          %857 = vmatprep.subr.mxu0 0.0
          %858 = vmatpush1.msra.mxu0 0.0
          %859 = vmatprep.subr.mxu0 0.0
          %860 = vmatpush1.msra.mxu0 0.0
          %861 = vmatprep.subr.mxu0 0.0
          %862 = vmatpush1.msra.mxu0 0.0
          %863 = vmatprep.subr.mxu0 0.0
          %864 = vmatpush1.msra.mxu0 0.0
          %865 = vmatprep.subr.mxu0 0.0
          %866 = vmatpush1.msra.mxu0 0.0
          %867 = vmatprep.subr.mxu0 0.0
          %868 = vmatpush1.msra.mxu0 0.0
          %869 = vmatprep.mubr.f32.mxu0 0.0
          %870 = vmatmul.mubr.f32.gmra.mrb[0].mxu0 %v803
          %v871 = vpop.f32.mrb[0].mxu0
          %v872 = vadd.f32 %v800, %v871
          %v873 = vpop.f32.mrb[0].mxu0
          %874 = vdwg.mxu0
          %875 = vst.msk [vmem:[#allocation2] sm:$0xff] %vm765, %v872
          %877 = vrot.lane.b32.xlu0 %v872, 96
          %v878 = vpop.permute.xlu0 %877
          %vm880 = vcmask 523264
          %881 = vst.msk [vmem:[#allocation3] sm:$0xff] %vm880, %v878
          %v882 = vld [vmem:[%s749] sm:$0xff]
          %v883 = vld [vmem:[%s749 + $0x8] sm:$0xff]
          %v884 = vld [vmem:[#allocation11] sm:$0xff]
          %v885 = vld [vmem:[#allocation11 + $0x8] sm:$0xff]
          %v886 = vld [vmem:[#allocation11 + $0x10] sm:$0xff]
          %v887 = vld [vmem:[#allocation11 + $0x18] sm:$0xff]
          %v888 = vld [vmem:[%s11] sm:$0x1]
          %v890 = vlaneseq
          %v891 = vshrl.u32 %v890, 7
          %v892 = vsub.s32 0, %v891
          %v893 = vrot.slane %v888, %v892
          %v896 = vsel %vm765, %v882, 0
          %v899 = vsel %vm765, %v883, 0
          %901 = vmatprep.subr.mxu0 0.0
          %902 = vmatpush1.msra.mxu0 %v884
          %903 = vmatprep.subr.mxu0 0.0
          %904 = vmatpush1.msra.mxu0 %v885
          %905 = vmatprep.subr.mxu0 0.0
          %906 = vmatpush1.msra.mxu0 %v886
          %907 = vmatprep.subr.mxu0 0.0
          %908 = vmatpush1.msra.mxu0 %v887
          %909 = vmatprep.subr.mxu0 0.0
          %910 = vmatpush1.msra.mxu0 0.0
          %911 = vmatprep.subr.mxu0 0.0
          %912 = vmatpush1.msra.mxu0 0.0
          %913 = vmatprep.subr.mxu0 0.0
          %914 = vmatpush1.msra.mxu0 0.0
          %915 = vmatprep.subr.mxu0 0.0
          %916 = vmatpush1.msra.mxu0 0.0
          %917 = vmatprep.subr.mxu0 0.0
          %918 = vmatpush1.msra.mxu0 0.0
          %919 = vmatprep.subr.mxu0 0.0
          %920 = vmatpush1.msra.mxu0 0.0
          %921 = vmatprep.subr.mxu0 0.0
          %922 = vmatpush1.msra.mxu0 0.0
          %923 = vmatprep.subr.mxu0 0.0
          %924 = vmatpush1.msra.mxu0 0.0
          %925 = vmatprep.subr.mxu0 0.0
          %926 = vmatpush1.msra.mxu0 0.0
          %927 = vmatprep.subr.mxu0 0.0
          %928 = vmatpush1.msra.mxu0 0.0
          %929 = vmatprep.subr.mxu0 0.0
          %930 = vmatpush1.msra.mxu0 0.0
          %931 = vmatprep.subr.mxu0 0.0
          %932 = vmatpush1.msra.mxu0 0.0
          %933 = vmatprep.subr.mxu0 0.0
          %934 = vmatpush1.msra.mxu0 0.0
          %935 = vmatprep.subr.mxu0 0.0
          %936 = vmatpush1.msra.mxu0 0.0
          %937 = vmatprep.subr.mxu0 0.0
          %938 = vmatpush1.msra.mxu0 0.0
          %939 = vmatprep.subr.mxu0 0.0
          %940 = vmatpush1.msra.mxu0 0.0
          %941 = vmatprep.subr.mxu0 0.0
          %942 = vmatpush1.msra.mxu0 0.0
          %943 = vmatprep.subr.mxu0 0.0
          %944 = vmatpush1.msra.mxu0 0.0
          %945 = vmatprep.subr.mxu0 0.0
          %946 = vmatpush1.msra.mxu0 0.0
          %947 = vmatprep.subr.mxu0 0.0
          %948 = vmatpush1.msra.mxu0 0.0
          %949 = vmatprep.subr.mxu0 0.0
          %950 = vmatpush1.msra.mxu0 0.0
          %951 = vmatprep.subr.mxu0 0.0
          %952 = vmatpush1.msra.mxu0 0.0
          %953 = vmatprep.subr.mxu0 0.0
          %954 = vmatpush1.msra.mxu0 0.0
          %955 = vmatprep.subr.mxu0 0.0
          %956 = vmatpush1.msra.mxu0 0.0
          %957 = vmatprep.subr.mxu0 0.0
          %958 = vmatpush1.msra.mxu0 0.0
          %959 = vmatprep.subr.mxu0 0.0
          %960 = vmatpush1.msra.mxu0 0.0
          %961 = vmatprep.subr.mxu0 0.0
          %962 = vmatpush1.msra.mxu0 0.0
          %963 = vmatprep.subr.mxu0 0.0
          %964 = vmatpush1.msra.mxu0 0.0
          %965 = vmatprep.mubr.f32.mxu0 0.0
          %966 = vmatmul.mubr.f32.gmra.mrb[0].mxu0 %v896
          %v967 = vpop.f32.mrb[0].mxu0
          %v968 = vadd.f32 %v893, %v967
          %v969 = vpop.f32.mrb[0].mxu0
          %970 = vmatprep.mubr.f32.mxu0 0.0
          %971 = vmatmul.mubr.f32.gmra.mrb[0].mxu0 %v899
          %v972 = vpop.f32.mrb[0].mxu0
          %v973 = vadd.f32 %v893, %v972
          %v974 = vpop.f32.mrb[0].mxu0
          %975 = vdwg.mxu0
          %976 = vst.msk [vmem:[#allocation4] sm:$0xff] %vm880, %v968
          %977 = vst.msk [vmem:[#allocation4 + $0x8] sm:$0xff] %vm880, %v973
        $region124: #{tpu_custom_call.1} parent=95 // pred_fallthru
          _
        %s978 = smul.u32 %s44, 8
        %s979 = scalar_lea.vmem %s656, %s978 [#allocation5]
        %v980 = vld [vmem:[%s979] sm:$0xff]
        %s981 = scalar_lea.vmem [#allocation2], %s978
        %v982 = vld [vmem:[%s981] sm:$0xff]
        %v983 = vld [vmem:[%s753] sm:$0xff]
        %vm984 = vcmp.eq.f32.partialorder %v983, 0.0
        %v985 = vmul.f32 %v982, 0.35355338
        %v986 = vld [vmem:[#allocation3] sm:$0xff]
        %vm987 = vcmask 64512
        %v989 = vsel %vm987, %v985, 0
        %v992 = vsel %vm987, %v986, 0
        %994 = vmatprep.subr.mxu0 0.0
        %995 = vmatpush1.xpose.msra.mxu0 %v992
        %996 = vmatprep.subr.mxu0 0.0
        %997 = vmatpush1.xpose.msra.mxu0 0.0
        %998 = vmatprep.subr.mxu0 0.0
        %999 = vmatpush1.xpose.msra.mxu0 0.0
        %1000 = vmatprep.subr.mxu0 0.0
        %1001 = vmatpush1.xpose.msra.mxu0 0.0
        %1002 = vmatprep.subr.mxu0 0.0
        %1003 = vmatpush1.xpose.msra.mxu0 0.0
        %1004 = vmatprep.subr.mxu0 0.0
        %1005 = vmatpush1.xpose.msra.mxu0 0.0
        %1006 = vmatprep.subr.mxu0 0.0
        %1007 = vmatpush1.xpose.msra.mxu0 0.0
        %1008 = vmatprep.subr.mxu0 0.0
        %1009 = vmatpush1.xpose.msra.mxu0 0.0
        %1010 = vmatprep.subr.mxu0 0.0
        %1011 = vmatpush1.xpose.msra.mxu0 0.0
        %1012 = vmatprep.subr.mxu0 0.0
        %1013 = vmatpush1.xpose.msra.mxu0 0.0
        %1014 = vmatprep.subr.mxu0 0.0
        %1015 = vmatpush1.xpose.msra.mxu0 0.0
        %1016 = vmatprep.subr.mxu0 0.0
        %1017 = vmatpush1.xpose.msra.mxu0 0.0
        %1018 = vmatprep.subr.mxu0 0.0
        %1019 = vmatpush1.xpose.msra.mxu0 0.0
        %1020 = vmatprep.subr.mxu0 0.0
        %1021 = vmatpush1.xpose.msra.mxu0 0.0
        %1022 = vmatprep.subr.mxu0 0.0
        %1023 = vmatpush1.xpose.msra.mxu0 0.0
        %1024 = vmatprep.subr.mxu0 0.0
        %1025 = vmatpush1.xpose.msra.mxu0 0.0
        %1026 = vmatprep.subr.mxu0 0.0
        %1027 = vmatpush1.xpose.msra.mxu0 0.0
        %1028 = vmatprep.subr.mxu0 0.0
        %1029 = vmatpush1.xpose.msra.mxu0 0.0
        %1030 = vmatprep.subr.mxu0 0.0
        %1031 = vmatpush1.xpose.msra.mxu0 0.0
        %1032 = vmatprep.subr.mxu0 0.0
        %1033 = vmatpush1.xpose.msra.mxu0 0.0
        %1034 = vmatprep.subr.mxu0 0.0
        %1035 = vmatpush1.xpose.msra.mxu0 0.0
        %1036 = vmatprep.subr.mxu0 0.0
        %1037 = vmatpush1.xpose.msra.mxu0 0.0
        %1038 = vmatprep.subr.mxu0 0.0
        %1039 = vmatpush1.xpose.msra.mxu0 0.0
        %1040 = vmatprep.subr.mxu0 0.0
        %1041 = vmatpush1.xpose.msra.mxu0 0.0
        %1042 = vmatprep.subr.mxu0 0.0
        %1043 = vmatpush1.xpose.msra.mxu0 0.0
        %1044 = vmatprep.subr.mxu0 0.0
        %1045 = vmatpush1.xpose.msra.mxu0 0.0
        %1046 = vmatprep.subr.mxu0 0.0
        %1047 = vmatpush1.xpose.msra.mxu0 0.0
        %1048 = vmatprep.subr.mxu0 0.0
        %1049 = vmatpush1.xpose.msra.mxu0 0.0
        %1050 = vmatprep.subr.mxu0 0.0
        %1051 = vmatpush1.xpose.msra.mxu0 0.0
        %1052 = vmatprep.subr.mxu0 0.0
        %1053 = vmatpush1.xpose.msra.mxu0 0.0
        %1054 = vmatprep.subr.mxu0 0.0
        %1055 = vmatpush1.xpose.msra.mxu0 0.0
        %1056 = vmatprep.subr.mxu0 0.0
        %1057 = vmatpush1.xpose.msra.mxu0 0.0
        %1058 = vmatprep.mubr.f32.mxu0 0.0
        %1059 = vmatmul.mubr.f32.gmra.mrb[0].mxu0 %v989
        %v1060 = vpop.f32.mrb[0].mxu0
        %v1061 = vadd.f32 0.0, %v1060
        %v1062 = vpop.f32.mrb[0].mxu0
        %1063 = vdwg.mxu0
        %v1064 = vsel %vm984, -1e+09, %v1061
        %v1065 = vsel %vm987, %v1064, -inf
        %1066 = vmax.xlane.f32.xlu0 %v1065
        %v1067 = vpop.xlane.xlu0 %1066
        %v1068 = vsub.f32 %v1064, %v1067
        %v1069 = vmul.f32 %v1068, 1.442695
        %v1070 = vpow.pop %v1069
        %v1071 = vsel %vm987, %v1070, 0.0
        %1072 = vadd.xlane.f32.xlu0 %v1071
        %v1073 = vpop.xlane.xlu0 %1072
        %v1074 = vrcp.pop %v1073
        %v1075 = vmul.f32 %v1070, %v1074
        %1076 = vrot.lane.b32.xlu0 %v986, 96
        %v1077 = vpop.permute.xlu0 %1076
        %v1080 = vsel %vm987, %v1075, 0
        %1082 = vmatprep.subr.mxu0 0.0
        %1083 = vmatpush1.msra.mxu0 %v1077
        %1084 = vmatprep.subr.mxu0 0.0
        %1085 = vmatpush1.msra.mxu0 0.0
        %1086 = vmatprep.subr.mxu0 0.0
        %1087 = vmatpush1.msra.mxu0 0.0
        %1088 = vmatprep.subr.mxu0 0.0
        %1089 = vmatpush1.msra.mxu0 0.0
        %1090 = vmatprep.subr.mxu0 0.0
        %1091 = vmatpush1.msra.mxu0 0.0
        %1092 = vmatprep.subr.mxu0 0.0
        %1093 = vmatpush1.msra.mxu0 0.0
        %1094 = vmatprep.subr.mxu0 0.0
        %1095 = vmatpush1.msra.mxu0 0.0
        %1096 = vmatprep.subr.mxu0 0.0
        %1097 = vmatpush1.msra.mxu0 0.0
        %1098 = vmatprep.subr.mxu0 0.0
        %1099 = vmatpush1.msra.mxu0 0.0
        %1100 = vmatprep.subr.mxu0 0.0
        %1101 = vmatpush1.msra.mxu0 0.0
        %1102 = vmatprep.subr.mxu0 0.0
        %1103 = vmatpush1.msra.mxu0 0.0
        %1104 = vmatprep.subr.mxu0 0.0
        %1105 = vmatpush1.msra.mxu0 0.0
        %1106 = vmatprep.subr.mxu0 0.0
        %1107 = vmatpush1.msra.mxu0 0.0
        %1108 = vmatprep.subr.mxu0 0.0
        %1109 = vmatpush1.msra.mxu0 0.0
        %1110 = vmatprep.subr.mxu0 0.0
        %1111 = vmatpush1.msra.mxu0 0.0
        %1112 = vmatprep.subr.mxu0 0.0
        %1113 = vmatpush1.msra.mxu0 0.0
        %1114 = vmatprep.subr.mxu0 0.0
        %1115 = vmatpush1.msra.mxu0 0.0
        %1116 = vmatprep.subr.mxu0 0.0
        %1117 = vmatpush1.msra.mxu0 0.0
        %1118 = vmatprep.subr.mxu0 0.0
        %1119 = vmatpush1.msra.mxu0 0.0
        %1120 = vmatprep.subr.mxu0 0.0
        %1121 = vmatpush1.msra.mxu0 0.0
        %1122 = vmatprep.subr.mxu0 0.0
        %1123 = vmatpush1.msra.mxu0 0.0
        %1124 = vmatprep.subr.mxu0 0.0
        %1125 = vmatpush1.msra.mxu0 0.0
        %1126 = vmatprep.subr.mxu0 0.0
        %1127 = vmatpush1.msra.mxu0 0.0
        %1128 = vmatprep.subr.mxu0 0.0
        %1129 = vmatpush1.msra.mxu0 0.0
        %1130 = vmatprep.subr.mxu0 0.0
        %1131 = vmatpush1.msra.mxu0 0.0
        %1132 = vmatprep.subr.mxu0 0.0
        %1133 = vmatpush1.msra.mxu0 0.0
        %1134 = vmatprep.subr.mxu0 0.0
        %1135 = vmatpush1.msra.mxu0 0.0
        %1136 = vmatprep.subr.mxu0 0.0
        %1137 = vmatpush1.msra.mxu0 0.0
        %1138 = vmatprep.subr.mxu0 0.0
        %1139 = vmatpush1.msra.mxu0 0.0
        %1140 = vmatprep.subr.mxu0 0.0
        %1141 = vmatpush1.msra.mxu0 0.0
        %1142 = vmatprep.subr.mxu0 0.0
        %1143 = vmatpush1.msra.mxu0 0.0
        %1144 = vmatprep.subr.mxu0 0.0
        %1145 = vmatpush1.msra.mxu0 0.0
        %1146 = vmatprep.mubr.f32.mxu0 0.0
        %1147 = vmatmul.mubr.f32.gmra.mrb[0].mxu0 %v1080
        %v1148 = vpop.f32.mrb[0].mxu0
        %v1149 = vadd.f32 0.0, %v1148
        %v1150 = vpop.f32.mrb[0].mxu0
        %1151 = vdwg.mxu0
        %1152 = vrot.lane.b32.xlu0 %v985, 120
        %v1153 = vpop.permute.xlu0 %1152
        %1154 = vrot.lane.b32.xlu0 %v986, 120
        %v1155 = vpop.permute.xlu0 %1154
        %v1156 = vsel %vm987, %v1153, 0
        %v1158 = vsel %vm987, %v1155, 0
        %1160 = vmatprep.subr.mxu0 0.0
        %1161 = vmatpush1.xpose.msra.mxu0 %v1158
        %1162 = vmatprep.subr.mxu0 0.0
        %1163 = vmatpush1.xpose.msra.mxu0 0.0
        %1164 = vmatprep.subr.mxu0 0.0
        %1165 = vmatpush1.xpose.msra.mxu0 0.0
        %1166 = vmatprep.subr.mxu0 0.0
        %1167 = vmatpush1.xpose.msra.mxu0 0.0
        %1168 = vmatprep.subr.mxu0 0.0
        %1169 = vmatpush1.xpose.msra.mxu0 0.0
        %1170 = vmatprep.subr.mxu0 0.0
        %1171 = vmatpush1.xpose.msra.mxu0 0.0
        %1172 = vmatprep.subr.mxu0 0.0
        %1173 = vmatpush1.xpose.msra.mxu0 0.0
        %1174 = vmatprep.subr.mxu0 0.0
        %1175 = vmatpush1.xpose.msra.mxu0 0.0
        %1176 = vmatprep.subr.mxu0 0.0
        %1177 = vmatpush1.xpose.msra.mxu0 0.0
        %1178 = vmatprep.subr.mxu0 0.0
        %1179 = vmatpush1.xpose.msra.mxu0 0.0
        %1180 = vmatprep.subr.mxu0 0.0
        %1181 = vmatpush1.xpose.msra.mxu0 0.0
        %1182 = vmatprep.subr.mxu0 0.0
        %1183 = vmatpush1.xpose.msra.mxu0 0.0
        %1184 = vmatprep.subr.mxu0 0.0
        %1185 = vmatpush1.xpose.msra.mxu0 0.0
        %1186 = vmatprep.subr.mxu0 0.0
        %1187 = vmatpush1.xpose.msra.mxu0 0.0
        %1188 = vmatprep.subr.mxu0 0.0
        %1189 = vmatpush1.xpose.msra.mxu0 0.0
        %1190 = vmatprep.subr.mxu0 0.0
        %1191 = vmatpush1.xpose.msra.mxu0 0.0
        %1192 = vmatprep.subr.mxu0 0.0
        %1193 = vmatpush1.xpose.msra.mxu0 0.0
        %1194 = vmatprep.subr.mxu0 0.0
        %1195 = vmatpush1.xpose.msra.mxu0 0.0
        %1196 = vmatprep.subr.mxu0 0.0
        %1197 = vmatpush1.xpose.msra.mxu0 0.0
        %1198 = vmatprep.subr.mxu0 0.0
        %1199 = vmatpush1.xpose.msra.mxu0 0.0
        %1200 = vmatprep.subr.mxu0 0.0
        %1201 = vmatpush1.xpose.msra.mxu0 0.0
        %1202 = vmatprep.subr.mxu0 0.0
        %1203 = vmatpush1.xpose.msra.mxu0 0.0
        %1204 = vmatprep.subr.mxu0 0.0
        %1205 = vmatpush1.xpose.msra.mxu0 0.0
        %1206 = vmatprep.subr.mxu0 0.0
        %1207 = vmatpush1.xpose.msra.mxu0 0.0
        %1208 = vmatprep.subr.mxu0 0.0
        %1209 = vmatpush1.xpose.msra.mxu0 0.0
        %1210 = vmatprep.subr.mxu0 0.0
        %1211 = vmatpush1.xpose.msra.mxu0 0.0
        %1212 = vmatprep.subr.mxu0 0.0
        %1213 = vmatpush1.xpose.msra.mxu0 0.0
        %1214 = vmatprep.subr.mxu0 0.0
        %1215 = vmatpush1.xpose.msra.mxu0 0.0
        %1216 = vmatprep.subr.mxu0 0.0
        %1217 = vmatpush1.xpose.msra.mxu0 0.0
        %1218 = vmatprep.subr.mxu0 0.0
        %1219 = vmatpush1.xpose.msra.mxu0 0.0
        %1220 = vmatprep.subr.mxu0 0.0
        %1221 = vmatpush1.xpose.msra.mxu0 0.0
        %1222 = vmatprep.subr.mxu0 0.0
        %1223 = vmatpush1.xpose.msra.mxu0 0.0
        %1224 = vmatprep.mubr.f32.mxu0 0.0
        %1225 = vmatmul.mubr.f32.gmra.mrb[0].mxu0 %v1156
        %v1226 = vpop.f32.mrb[0].mxu0
        %v1227 = vadd.f32 0.0, %v1226
        %v1228 = vpop.f32.mrb[0].mxu0
        %1229 = vdwg.mxu0
        %v1230 = vsel %vm984, -1e+09, %v1227
        %v1231 = vsel %vm987, %v1230, -inf
        %1232 = vmax.xlane.f32.xlu0 %v1231
        %v1233 = vpop.xlane.xlu0 %1232
        %v1234 = vsub.f32 %v1230, %v1233
        %v1235 = vmul.f32 %v1234, 1.442695
        %v1236 = vpow.pop %v1235
        %v1237 = vsel %vm987, %v1236, 0.0
        %1238 = vadd.xlane.f32.xlu0 %v1237
        %v1239 = vpop.xlane.xlu0 %1238
        %v1240 = vrcp.pop %v1239
        %v1241 = vmul.f32 %v1236, %v1240
        %1242 = vrot.lane.b32.xlu0 %v986, 88
        %v1243 = vpop.permute.xlu0 %1242
        %v1246 = vsel %vm987, %v1241, 0
        %1248 = vmatprep.subr.mxu0 0.0
        %1249 = vmatpush1.msra.mxu0 %v1243
        %1250 = vmatprep.subr.mxu0 0.0
        %1251 = vmatpush1.msra.mxu0 0.0
        %1252 = vmatprep.subr.mxu0 0.0
        %1253 = vmatpush1.msra.mxu0 0.0
        %1254 = vmatprep.subr.mxu0 0.0
        %1255 = vmatpush1.msra.mxu0 0.0
        %1256 = vmatprep.subr.mxu0 0.0
        %1257 = vmatpush1.msra.mxu0 0.0
        %1258 = vmatprep.subr.mxu0 0.0
        %1259 = vmatpush1.msra.mxu0 0.0
        %1260 = vmatprep.subr.mxu0 0.0
        %1261 = vmatpush1.msra.mxu0 0.0
        %1262 = vmatprep.subr.mxu0 0.0
        %1263 = vmatpush1.msra.mxu0 0.0
        %1264 = vmatprep.subr.mxu0 0.0
        %1265 = vmatpush1.msra.mxu0 0.0
        %1266 = vmatprep.subr.mxu0 0.0
        %1267 = vmatpush1.msra.mxu0 0.0
        %1268 = vmatprep.subr.mxu0 0.0
        %1269 = vmatpush1.msra.mxu0 0.0
        %1270 = vmatprep.subr.mxu0 0.0
        %1271 = vmatpush1.msra.mxu0 0.0
        %1272 = vmatprep.subr.mxu0 0.0
        %1273 = vmatpush1.msra.mxu0 0.0
        %1274 = vmatprep.subr.mxu0 0.0
        %1275 = vmatpush1.msra.mxu0 0.0
        %1276 = vmatprep.subr.mxu0 0.0
        %1277 = vmatpush1.msra.mxu0 0.0
        %1278 = vmatprep.subr.mxu0 0.0
        %1279 = vmatpush1.msra.mxu0 0.0
        %1280 = vmatprep.subr.mxu0 0.0
        %1281 = vmatpush1.msra.mxu0 0.0
        %1282 = vmatprep.subr.mxu0 0.0
        %1283 = vmatpush1.msra.mxu0 0.0
        %1284 = vmatprep.subr.mxu0 0.0
        %1285 = vmatpush1.msra.mxu0 0.0
        %1286 = vmatprep.subr.mxu0 0.0
        %1287 = vmatpush1.msra.mxu0 0.0
        %1288 = vmatprep.subr.mxu0 0.0
        %1289 = vmatpush1.msra.mxu0 0.0
        %1290 = vmatprep.subr.mxu0 0.0
        %1291 = vmatpush1.msra.mxu0 0.0
        %1292 = vmatprep.subr.mxu0 0.0
        %1293 = vmatpush1.msra.mxu0 0.0
        %1294 = vmatprep.subr.mxu0 0.0
        %1295 = vmatpush1.msra.mxu0 0.0
        %1296 = vmatprep.subr.mxu0 0.0
        %1297 = vmatpush1.msra.mxu0 0.0
        %1298 = vmatprep.subr.mxu0 0.0
        %1299 = vmatpush1.msra.mxu0 0.0
        %1300 = vmatprep.subr.mxu0 0.0
        %1301 = vmatpush1.msra.mxu0 0.0
        %1302 = vmatprep.subr.mxu0 0.0
        %1303 = vmatpush1.msra.mxu0 0.0
        %1304 = vmatprep.subr.mxu0 0.0
        %1305 = vmatpush1.msra.mxu0 0.0
        %1306 = vmatprep.subr.mxu0 0.0
        %1307 = vmatpush1.msra.mxu0 0.0
        %1308 = vmatprep.subr.mxu0 0.0
        %1309 = vmatpush1.msra.mxu0 0.0
        %1310 = vmatprep.subr.mxu0 0.0
        %1311 = vmatpush1.msra.mxu0 0.0
        %1312 = vmatprep.mubr.f32.mxu0 0.0
        %1313 = vmatmul.mubr.f32.gmra.mrb[0].mxu0 %v1246
        %v1314 = vpop.f32.mrb[0].mxu0
        %v1315 = vadd.f32 0.0, %v1314
        %v1316 = vpop.f32.mrb[0].mxu0
        %1317 = vdwg.mxu0
        %1318 = vrot.lane.b32.xlu0 %v985, 112
        %v1319 = vpop.permute.xlu0 %1318
        %1320 = vrot.lane.b32.xlu0 %v986, 112
        %v1321 = vpop.permute.xlu0 %1320
        %v1322 = vsel %vm987, %v1319, 0
        %v1324 = vsel %vm987, %v1321, 0
        %1326 = vmatprep.subr.mxu0 0.0
        %1327 = vmatpush1.xpose.msra.mxu0 %v1324
        %1328 = vmatprep.subr.mxu0 0.0
        %1329 = vmatpush1.xpose.msra.mxu0 0.0
        %1330 = vmatprep.subr.mxu0 0.0
        %1331 = vmatpush1.xpose.msra.mxu0 0.0
        %1332 = vmatprep.subr.mxu0 0.0
        %1333 = vmatpush1.xpose.msra.mxu0 0.0
        %1334 = vmatprep.subr.mxu0 0.0
        %1335 = vmatpush1.xpose.msra.mxu0 0.0
        %1336 = vmatprep.subr.mxu0 0.0
        %1337 = vmatpush1.xpose.msra.mxu0 0.0
        %1338 = vmatprep.subr.mxu0 0.0
        %1339 = vmatpush1.xpose.msra.mxu0 0.0
        %1340 = vmatprep.subr.mxu0 0.0
        %1341 = vmatpush1.xpose.msra.mxu0 0.0
        %1342 = vmatprep.subr.mxu0 0.0
        %1343 = vmatpush1.xpose.msra.mxu0 0.0
        %1344 = vmatprep.subr.mxu0 0.0
        %1345 = vmatpush1.xpose.msra.mxu0 0.0
        %1346 = vmatprep.subr.mxu0 0.0
        %1347 = vmatpush1.xpose.msra.mxu0 0.0
        %1348 = vmatprep.subr.mxu0 0.0
        %1349 = vmatpush1.xpose.msra.mxu0 0.0
        %1350 = vmatprep.subr.mxu0 0.0
        %1351 = vmatpush1.xpose.msra.mxu0 0.0
        %1352 = vmatprep.subr.mxu0 0.0
        %1353 = vmatpush1.xpose.msra.mxu0 0.0
        %1354 = vmatprep.subr.mxu0 0.0
        %1355 = vmatpush1.xpose.msra.mxu0 0.0
        %1356 = vmatprep.subr.mxu0 0.0
        %1357 = vmatpush1.xpose.msra.mxu0 0.0
        %1358 = vmatprep.subr.mxu0 0.0
        %1359 = vmatpush1.xpose.msra.mxu0 0.0
        %1360 = vmatprep.subr.mxu0 0.0
        %1361 = vmatpush1.xpose.msra.mxu0 0.0
        %1362 = vmatprep.subr.mxu0 0.0
        %1363 = vmatpush1.xpose.msra.mxu0 0.0
        %1364 = vmatprep.subr.mxu0 0.0
        %1365 = vmatpush1.xpose.msra.mxu0 0.0
        %1366 = vmatprep.subr.mxu0 0.0
        %1367 = vmatpush1.xpose.msra.mxu0 0.0
        %1368 = vmatprep.subr.mxu0 0.0
        %1369 = vmatpush1.xpose.msra.mxu0 0.0
        %1370 = vmatprep.subr.mxu0 0.0
        %1371 = vmatpush1.xpose.msra.mxu0 0.0
        %1372 = vmatprep.subr.mxu0 0.0
        %1373 = vmatpush1.xpose.msra.mxu0 0.0
        %1374 = vmatprep.subr.mxu0 0.0
        %1375 = vmatpush1.xpose.msra.mxu0 0.0
        %1376 = vmatprep.subr.mxu0 0.0
        %1377 = vmatpush1.xpose.msra.mxu0 0.0
        %1378 = vmatprep.subr.mxu0 0.0
        %1379 = vmatpush1.xpose.msra.mxu0 0.0
        %1380 = vmatprep.subr.mxu0 0.0
        %1381 = vmatpush1.xpose.msra.mxu0 0.0
        %1382 = vmatprep.subr.mxu0 0.0
        %1383 = vmatpush1.xpose.msra.mxu0 0.0
        %1384 = vmatprep.subr.mxu0 0.0
        %1385 = vmatpush1.xpose.msra.mxu0 0.0
        %1386 = vmatprep.subr.mxu0 0.0
        %1387 = vmatpush1.xpose.msra.mxu0 0.0
        %1388 = vmatprep.subr.mxu0 0.0
        %1389 = vmatpush1.xpose.msra.mxu0 0.0
        %1390 = vmatprep.mubr.f32.mxu0 0.0
        %1391 = vmatmul.mubr.f32.gmra.mrb[0].mxu0 %v1322
        %v1392 = vpop.f32.mrb[0].mxu0
        %v1393 = vadd.f32 0.0, %v1392
        %v1394 = vpop.f32.mrb[0].mxu0
        %1395 = vdwg.mxu0
        %v1396 = vsel %vm984, -1e+09, %v1393
        %v1397 = vsel %vm987, %v1396, -inf
        %1398 = vmax.xlane.f32.xlu0 %v1397
        %v1399 = vpop.xlane.xlu0 %1398
        %v1400 = vsub.f32 %v1396, %v1399
        %v1401 = vmul.f32 %v1400, 1.442695
        %v1402 = vpow.pop %v1401
        %v1403 = vsel %vm987, %v1402, 0.0
        %1404 = vadd.xlane.f32.xlu0 %v1403
        %v1405 = vpop.xlane.xlu0 %1404
        %v1406 = vrcp.pop %v1405
        %v1407 = vmul.f32 %v1402, %v1406
        %1408 = vrot.lane.b32.xlu0 %v986, 80
        %v1409 = vpop.permute.xlu0 %1408
        %v1412 = vsel %vm987, %v1407, 0
        %1414 = vmatprep.subr.mxu0 0.0
        %1415 = vmatpush1.msra.mxu0 %v1409
        %1416 = vmatprep.subr.mxu0 0.0
        %1417 = vmatpush1.msra.mxu0 0.0
        %1418 = vmatprep.subr.mxu0 0.0
        %1419 = vmatpush1.msra.mxu0 0.0
        %1420 = vmatprep.subr.mxu0 0.0
        %1421 = vmatpush1.msra.mxu0 0.0
        %1422 = vmatprep.subr.mxu0 0.0
        %1423 = vmatpush1.msra.mxu0 0.0
        %1424 = vmatprep.subr.mxu0 0.0
        %1425 = vmatpush1.msra.mxu0 0.0
        %1426 = vmatprep.subr.mxu0 0.0
        %1427 = vmatpush1.msra.mxu0 0.0
        %1428 = vmatprep.subr.mxu0 0.0
        %1429 = vmatpush1.msra.mxu0 0.0
        %1430 = vmatprep.subr.mxu0 0.0
        %1431 = vmatpush1.msra.mxu0 0.0
        %1432 = vmatprep.subr.mxu0 0.0
        %1433 = vmatpush1.msra.mxu0 0.0
        %1434 = vmatprep.subr.mxu0 0.0
        %1435 = vmatpush1.msra.mxu0 0.0
        %1436 = vmatprep.subr.mxu0 0.0
        %1437 = vmatpush1.msra.mxu0 0.0
        %1438 = vmatprep.subr.mxu0 0.0
        %1439 = vmatpush1.msra.mxu0 0.0
        %1440 = vmatprep.subr.mxu0 0.0
        %1441 = vmatpush1.msra.mxu0 0.0
        %1442 = vmatprep.subr.mxu0 0.0
        %1443 = vmatpush1.msra.mxu0 0.0
        %1444 = vmatprep.subr.mxu0 0.0
        %1445 = vmatpush1.msra.mxu0 0.0
        %1446 = vmatprep.subr.mxu0 0.0
        %1447 = vmatpush1.msra.mxu0 0.0
        %1448 = vmatprep.subr.mxu0 0.0
        %1449 = vmatpush1.msra.mxu0 0.0
        %1450 = vmatprep.subr.mxu0 0.0
        %1451 = vmatpush1.msra.mxu0 0.0
        %1452 = vmatprep.subr.mxu0 0.0
        %1453 = vmatpush1.msra.mxu0 0.0
        %1454 = vmatprep.subr.mxu0 0.0
        %1455 = vmatpush1.msra.mxu0 0.0
        %1456 = vmatprep.subr.mxu0 0.0
        %1457 = vmatpush1.msra.mxu0 0.0
        %1458 = vmatprep.subr.mxu0 0.0
        %1459 = vmatpush1.msra.mxu0 0.0
        %1460 = vmatprep.subr.mxu0 0.0
        %1461 = vmatpush1.msra.mxu0 0.0
        %1462 = vmatprep.subr.mxu0 0.0
        %1463 = vmatpush1.msra.mxu0 0.0
        %1464 = vmatprep.subr.mxu0 0.0
        %1465 = vmatpush1.msra.mxu0 0.0
        %1466 = vmatprep.subr.mxu0 0.0
        %1467 = vmatpush1.msra.mxu0 0.0
        %1468 = vmatprep.subr.mxu0 0.0
        %1469 = vmatpush1.msra.mxu0 0.0
        %1470 = vmatprep.subr.mxu0 0.0
        %1471 = vmatpush1.msra.mxu0 0.0
        %1472 = vmatprep.subr.mxu0 0.0
        %1473 = vmatpush1.msra.mxu0 0.0
        %1474 = vmatprep.subr.mxu0 0.0
        %1475 = vmatpush1.msra.mxu0 0.0
        %1476 = vmatprep.subr.mxu0 0.0
        %1477 = vmatpush1.msra.mxu0 0.0
        %1478 = vmatprep.mubr.f32.mxu0 0.0
        %1479 = vmatmul.mubr.f32.gmra.mrb[0].mxu0 %v1412
        %v1480 = vpop.f32.mrb[0].mxu0
        %v1481 = vadd.f32 0.0, %v1480
        %v1482 = vpop.f32.mrb[0].mxu0
        %1483 = vdwg.mxu0
        %1484 = vrot.lane.b32.xlu0 %v985, 104
        %v1485 = vpop.permute.xlu0 %1484
        %1486 = vrot.lane.b32.xlu0 %v986, 104
        %v1487 = vpop.permute.xlu0 %1486
        %v1488 = vsel %vm987, %v1485, 0
        %v1490 = vsel %vm987, %v1487, 0
        %1492 = vmatprep.subr.mxu0 0.0
        %1493 = vmatpush1.xpose.msra.mxu0 %v1490
        %1494 = vmatprep.subr.mxu0 0.0
        %1495 = vmatpush1.xpose.msra.mxu0 0.0
        %1496 = vmatprep.subr.mxu0 0.0
        %1497 = vmatpush1.xpose.msra.mxu0 0.0
        %1498 = vmatprep.subr.mxu0 0.0
        %1499 = vmatpush1.xpose.msra.mxu0 0.0
        %1500 = vmatprep.subr.mxu0 0.0
        %1501 = vmatpush1.xpose.msra.mxu0 0.0
        %1502 = vmatprep.subr.mxu0 0.0
        %1503 = vmatpush1.xpose.msra.mxu0 0.0
        %1504 = vmatprep.subr.mxu0 0.0
        %1505 = vmatpush1.xpose.msra.mxu0 0.0
        %1506 = vmatprep.subr.mxu0 0.0
        %1507 = vmatpush1.xpose.msra.mxu0 0.0
        %1508 = vmatprep.subr.mxu0 0.0
        %1509 = vmatpush1.xpose.msra.mxu0 0.0
        %1510 = vmatprep.subr.mxu0 0.0
        %1511 = vmatpush1.xpose.msra.mxu0 0.0
        %1512 = vmatprep.subr.mxu0 0.0
        %1513 = vmatpush1.xpose.msra.mxu0 0.0
        %1514 = vmatprep.subr.mxu0 0.0
        %1515 = vmatpush1.xpose.msra.mxu0 0.0
        %1516 = vmatprep.subr.mxu0 0.0
        %1517 = vmatpush1.xpose.msra.mxu0 0.0
        %1518 = vmatprep.subr.mxu0 0.0
        %1519 = vmatpush1.xpose.msra.mxu0 0.0
        %1520 = vmatprep.subr.mxu0 0.0
        %1521 = vmatpush1.xpose.msra.mxu0 0.0
        %1522 = vmatprep.subr.mxu0 0.0
        %1523 = vmatpush1.xpose.msra.mxu0 0.0
        %1524 = vmatprep.subr.mxu0 0.0
        %1525 = vmatpush1.xpose.msra.mxu0 0.0
        %1526 = vmatprep.subr.mxu0 0.0
        %1527 = vmatpush1.xpose.msra.mxu0 0.0
        %1528 = vmatprep.subr.mxu0 0.0
        %1529 = vmatpush1.xpose.msra.mxu0 0.0
        %1530 = vmatprep.subr.mxu0 0.0
        %1531 = vmatpush1.xpose.msra.mxu0 0.0
        %1532 = vmatprep.subr.mxu0 0.0
        %1533 = vmatpush1.xpose.msra.mxu0 0.0
        %1534 = vmatprep.subr.mxu0 0.0
        %1535 = vmatpush1.xpose.msra.mxu0 0.0
        %1536 = vmatprep.subr.mxu0 0.0
        %1537 = vmatpush1.xpose.msra.mxu0 0.0
        %1538 = vmatprep.subr.mxu0 0.0
        %1539 = vmatpush1.xpose.msra.mxu0 0.0
        %1540 = vmatprep.subr.mxu0 0.0
        %1541 = vmatpush1.xpose.msra.mxu0 0.0
        %1542 = vmatprep.subr.mxu0 0.0
        %1543 = vmatpush1.xpose.msra.mxu0 0.0
        %1544 = vmatprep.subr.mxu0 0.0
        %1545 = vmatpush1.xpose.msra.mxu0 0.0
        %1546 = vmatprep.subr.mxu0 0.0
        %1547 = vmatpush1.xpose.msra.mxu0 0.0
        %1548 = vmatprep.subr.mxu0 0.0
        %1549 = vmatpush1.xpose.msra.mxu0 0.0
        %1550 = vmatprep.subr.mxu0 0.0
        %1551 = vmatpush1.xpose.msra.mxu0 0.0
        %1552 = vmatprep.subr.mxu0 0.0
        %1553 = vmatpush1.xpose.msra.mxu0 0.0
        %1554 = vmatprep.subr.mxu0 0.0
        %1555 = vmatpush1.xpose.msra.mxu0 0.0
        %1556 = vmatprep.mubr.f32.mxu0 0.0
        %1557 = vmatmul.mubr.f32.gmra.mrb[0].mxu0 %v1488
        %v1558 = vpop.f32.mrb[0].mxu0
        %v1559 = vadd.f32 0.0, %v1558
        %v1560 = vpop.f32.mrb[0].mxu0
        %1561 = vdwg.mxu0
        %v1562 = vsel %vm984, -1e+09, %v1559
        %v1563 = vsel %vm987, %v1562, -inf
        %1564 = vmax.xlane.f32.xlu0 %v1563
        %v1565 = vpop.xlane.xlu0 %1564
        %v1566 = vsub.f32 %v1562, %v1565
        %v1567 = vmul.f32 %v1566, 1.442695
        %v1568 = vpow.pop %v1567
        %v1569 = vsel %vm987, %v1568, 0.0
        %1570 = vadd.xlane.f32.xlu0 %v1569
        %v1571 = vpop.xlane.xlu0 %1570
        %v1572 = vrcp.pop %v1571
        %v1573 = vmul.f32 %v1568, %v1572
        %1574 = vrot.lane.b32.xlu0 %v986, 72
        %v1575 = vpop.permute.xlu0 %1574
        %v1578 = vsel %vm987, %v1573, 0
        %1580 = vmatprep.subr.mxu0 0.0
        %1581 = vmatpush1.msra.mxu0 %v1575
        %1582 = vmatprep.subr.mxu0 0.0
        %1583 = vmatpush1.msra.mxu0 0.0
        %1584 = vmatprep.subr.mxu0 0.0
        %1585 = vmatpush1.msra.mxu0 0.0
        %1586 = vmatprep.subr.mxu0 0.0
        %1587 = vmatpush1.msra.mxu0 0.0
        %1588 = vmatprep.subr.mxu0 0.0
        %1589 = vmatpush1.msra.mxu0 0.0
        %1590 = vmatprep.subr.mxu0 0.0
        %1591 = vmatpush1.msra.mxu0 0.0
        %1592 = vmatprep.subr.mxu0 0.0
        %1593 = vmatpush1.msra.mxu0 0.0
        %1594 = vmatprep.subr.mxu0 0.0
        %1595 = vmatpush1.msra.mxu0 0.0
        %1596 = vmatprep.subr.mxu0 0.0
        %1597 = vmatpush1.msra.mxu0 0.0
        %1598 = vmatprep.subr.mxu0 0.0
        %1599 = vmatpush1.msra.mxu0 0.0
        %1600 = vmatprep.subr.mxu0 0.0
        %1601 = vmatpush1.msra.mxu0 0.0
        %1602 = vmatprep.subr.mxu0 0.0
        %1603 = vmatpush1.msra.mxu0 0.0
        %1604 = vmatprep.subr.mxu0 0.0
        %1605 = vmatpush1.msra.mxu0 0.0
        %1606 = vmatprep.subr.mxu0 0.0
        %1607 = vmatpush1.msra.mxu0 0.0
        %1608 = vmatprep.subr.mxu0 0.0
        %1609 = vmatpush1.msra.mxu0 0.0
        %1610 = vmatprep.subr.mxu0 0.0
        %1611 = vmatpush1.msra.mxu0 0.0
        %1612 = vmatprep.subr.mxu0 0.0
        %1613 = vmatpush1.msra.mxu0 0.0
        %1614 = vmatprep.subr.mxu0 0.0
        %1615 = vmatpush1.msra.mxu0 0.0
        %1616 = vmatprep.subr.mxu0 0.0
        %1617 = vmatpush1.msra.mxu0 0.0
        %1618 = vmatprep.subr.mxu0 0.0
        %1619 = vmatpush1.msra.mxu0 0.0
        %1620 = vmatprep.subr.mxu0 0.0
        %1621 = vmatpush1.msra.mxu0 0.0
        %1622 = vmatprep.subr.mxu0 0.0
        %1623 = vmatpush1.msra.mxu0 0.0
        %1624 = vmatprep.subr.mxu0 0.0
        %1625 = vmatpush1.msra.mxu0 0.0
        %1626 = vmatprep.subr.mxu0 0.0
        %1627 = vmatpush1.msra.mxu0 0.0
        %1628 = vmatprep.subr.mxu0 0.0
        %1629 = vmatpush1.msra.mxu0 0.0
        %1630 = vmatprep.subr.mxu0 0.0
        %1631 = vmatpush1.msra.mxu0 0.0
        %1632 = vmatprep.subr.mxu0 0.0
        %1633 = vmatpush1.msra.mxu0 0.0
        %1634 = vmatprep.subr.mxu0 0.0
        %1635 = vmatpush1.msra.mxu0 0.0
        %1636 = vmatprep.subr.mxu0 0.0
        %1637 = vmatpush1.msra.mxu0 0.0
        %1638 = vmatprep.subr.mxu0 0.0
        %1639 = vmatpush1.msra.mxu0 0.0
        %1640 = vmatprep.subr.mxu0 0.0
        %1641 = vmatpush1.msra.mxu0 0.0
        %1642 = vmatprep.subr.mxu0 0.0
        %1643 = vmatpush1.msra.mxu0 0.0
        %1644 = vmatprep.mubr.f32.mxu0 0.0
        %1645 = vmatmul.mubr.f32.gmra.mrb[0].mxu0 %v1578
        %v1646 = vpop.f32.mrb[0].mxu0
        %v1647 = vadd.f32 0.0, %v1646
        %v1648 = vpop.f32.mrb[0].mxu0
        %1649 = vdwg.mxu0
        %1651 = vrot.lane.b32.xlu0 %v1315, 8
        %v1652 = vpop.permute.xlu0 %1651
        %1655 = vrot.lane.b32.xlu0 %v1481, 16
        %v1656 = vpop.permute.xlu0 %1655
        %1659 = vrot.lane.b32.xlu0 %v1647, 24
        %v1660 = vpop.permute.xlu0 %1659
        %v1662 = vsel %vm987, %v1149, %v1652
        %vm1663 = vcmask 130048
        %v1664 = vsel %vm1663, %v1662, %v1656
        %vm1665 = vcmask 195584
        %v1666 = vsel %vm1665, %v1664, %v1660
        %v1667 = vld [vmem:[%s6] sm:$0xff]
        %v1668 = vld [vmem:[%s6 + $0x8] sm:$0xff]
        %v1669 = vld [vmem:[%s6 + $0x10] sm:$0xff]
        %v1670 = vld [vmem:[%s6 + $0x18] sm:$0xff]
        %v1671 = vld [vmem:[%s7] sm:$0x1]
        %v1673 = vlaneseq
        %v1674 = vshrl.u32 %v1673, 7
        %v1675 = vsub.s32 0, %v1674
        %v1676 = vrot.slane %v1671, %v1675
        %vm1678 = vcmask 261120
        %v1680 = vsel %vm1678, %v1666, 0
        %1682 = vmatprep.subr.mxu0 0.0
        %1683 = vmatpush1.msra.mxu0 %v1667
        %1684 = vmatprep.subr.mxu0 0.0
        %1685 = vmatpush1.msra.mxu0 %v1668
        %1686 = vmatprep.subr.mxu0 0.0
        %1687 = vmatpush1.msra.mxu0 %v1669
        %1688 = vmatprep.subr.mxu0 0.0
        %1689 = vmatpush1.msra.mxu0 %v1670
        %1690 = vmatprep.subr.mxu0 0.0
        %1691 = vmatpush1.msra.mxu0 0.0
        %1692 = vmatprep.subr.mxu0 0.0
        %1693 = vmatpush1.msra.mxu0 0.0
        %1694 = vmatprep.subr.mxu0 0.0
        %1695 = vmatpush1.msra.mxu0 0.0
        %1696 = vmatprep.subr.mxu0 0.0
        %1697 = vmatpush1.msra.mxu0 0.0
        %1698 = vmatprep.subr.mxu0 0.0
        %1699 = vmatpush1.msra.mxu0 0.0
        %1700 = vmatprep.subr.mxu0 0.0
        %1701 = vmatpush1.msra.mxu0 0.0
        %1702 = vmatprep.subr.mxu0 0.0
        %1703 = vmatpush1.msra.mxu0 0.0
        %1704 = vmatprep.subr.mxu0 0.0
        %1705 = vmatpush1.msra.mxu0 0.0
        %1706 = vmatprep.subr.mxu0 0.0
        %1707 = vmatpush1.msra.mxu0 0.0
        %1708 = vmatprep.subr.mxu0 0.0
        %1709 = vmatpush1.msra.mxu0 0.0
        %1710 = vmatprep.subr.mxu0 0.0
        %1711 = vmatpush1.msra.mxu0 0.0
        %1712 = vmatprep.subr.mxu0 0.0
        %1713 = vmatpush1.msra.mxu0 0.0
        %1714 = vmatprep.subr.mxu0 0.0
        %1715 = vmatpush1.msra.mxu0 0.0
        %1716 = vmatprep.subr.mxu0 0.0
        %1717 = vmatpush1.msra.mxu0 0.0
        %1718 = vmatprep.subr.mxu0 0.0
        %1719 = vmatpush1.msra.mxu0 0.0
        %1720 = vmatprep.subr.mxu0 0.0
        %1721 = vmatpush1.msra.mxu0 0.0
        %1722 = vmatprep.subr.mxu0 0.0
        %1723 = vmatpush1.msra.mxu0 0.0
        %1724 = vmatprep.subr.mxu0 0.0
        %1725 = vmatpush1.msra.mxu0 0.0
        %1726 = vmatprep.subr.mxu0 0.0
        %1727 = vmatpush1.msra.mxu0 0.0
        %1728 = vmatprep.subr.mxu0 0.0
        %1729 = vmatpush1.msra.mxu0 0.0
        %1730 = vmatprep.subr.mxu0 0.0
        %1731 = vmatpush1.msra.mxu0 0.0
        %1732 = vmatprep.subr.mxu0 0.0
        %1733 = vmatpush1.msra.mxu0 0.0
        %1734 = vmatprep.subr.mxu0 0.0
        %1735 = vmatpush1.msra.mxu0 0.0
        %1736 = vmatprep.subr.mxu0 0.0
        %1737 = vmatpush1.msra.mxu0 0.0
        %1738 = vmatprep.subr.mxu0 0.0
        %1739 = vmatpush1.msra.mxu0 0.0
        %1740 = vmatprep.subr.mxu0 0.0
        %1741 = vmatpush1.msra.mxu0 0.0
        %1742 = vmatprep.subr.mxu0 0.0
        %1743 = vmatpush1.msra.mxu0 0.0
        %1744 = vmatprep.subr.mxu0 0.0
        %1745 = vmatpush1.msra.mxu0 0.0
        %1746 = vmatprep.mubr.f32.mxu0 0.0
        %1747 = vmatmul.mubr.f32.gmra.mrb[0].mxu0 %v1680
        %v1748 = vpop.f32.mrb[0].mxu0
        %v1749 = vadd.f32 %v1676, %v1748
        %v1750 = vpop.f32.mrb[0].mxu0
        %1751 = vdwg.mxu0
        %v1752 = vadd.f32 %v980, %v1749
        %s1753 = sld [smem:[#allocation15 + $0x80]]
        %s1754 = sld [smem:[#allocation15 + $0x81]]
        %v1755 = vsel %vm1678, %v1752, 0.0
        %1756 = vadd.xlane.f32.xlu0 %v1755
        %v1757 = vpop.xlane.xlu0 %1756
        %v1758 = vrcp.pop 32.0
        %v1759 = vmul.f32 %v1757, %v1758
        %v1760 = vsub.f32 %v1752, %v1759
        %v1761 = vmul.f32 %v1760, %v1760
        %v1762 = vsel %vm1678, %v1761, 0.0
        %1763 = vadd.xlane.f32.xlu0 %v1762
        %v1764 = vpop.xlane.xlu0 %1763
        %v1765 = vmul.f32 %v1764, 0.032258064
        %v1766 = vrsqrt.pop %v1765
        %v1767 = vmul.f32 %v1765, %v1766
        %vm1768 = vcmp.eq.f32.partialorder %v1765, inf
        %v1769 = vsel %vm1768, %v1765, %v1767
        %vm1770 = vcmp.eq.f32.partialorder %v1765, 0.0
        %v1771 = vand.u32 %v1765, 2147483648
        %v1772 = vsel %vm1770, %v1771, %v1769
        %v1773 = vadd.f32 %v1772, 1e-06
        %v1774 = vrcp.pop %v1773
        %v1775 = vstv %s1753
        %v1776 = vmul.f32 %v1775, %v1760
        %v1777 = vmul.f32 %v1776, %v1774
        %v1778 = vstv %s1754
        %v1779 = vadd.f32 %v1777, %v1778
        %v1780 = vld [vmem:[#allocation9] sm:$0xff]
        %v1781 = vld [vmem:[#allocation9 + $0x8] sm:$0xff]
        %v1782 = vld [vmem:[#allocation9 + $0x10] sm:$0xff]
        %v1783 = vld [vmem:[#allocation9 + $0x18] sm:$0xff]
        %v1784 = vld [vmem:[%s9] sm:$0x1]
        %v1786 = vlaneseq
        %v1787 = vshrl.u32 %v1786, 7
        %v1788 = vsub.s32 0, %v1787
        %v1789 = vrot.slane %v1784, %v1788
        %v1792 = vsel %vm1678, %v1779, 0
        %1794 = vmatprep.subr.mxu0 0.0
        %1795 = vmatpush1.msra.mxu0 %v1780
        %1796 = vmatprep.subr.mxu0 0.0
        %1797 = vmatpush1.msra.mxu0 %v1781
        %1798 = vmatprep.subr.mxu0 0.0
        %1799 = vmatpush1.msra.mxu0 %v1782
        %1800 = vmatprep.subr.mxu0 0.0
        %1801 = vmatpush1.msra.mxu0 %v1783
        %1802 = vmatprep.subr.mxu0 0.0
        %1803 = vmatpush1.msra.mxu0 0.0
        %1804 = vmatprep.subr.mxu0 0.0
        %1805 = vmatpush1.msra.mxu0 0.0
        %1806 = vmatprep.subr.mxu0 0.0
        %1807 = vmatpush1.msra.mxu0 0.0
        %1808 = vmatprep.subr.mxu0 0.0
        %1809 = vmatpush1.msra.mxu0 0.0
        %1810 = vmatprep.subr.mxu0 0.0
        %1811 = vmatpush1.msra.mxu0 0.0
        %1812 = vmatprep.subr.mxu0 0.0
        %1813 = vmatpush1.msra.mxu0 0.0
        %1814 = vmatprep.subr.mxu0 0.0
        %1815 = vmatpush1.msra.mxu0 0.0
        %1816 = vmatprep.subr.mxu0 0.0
        %1817 = vmatpush1.msra.mxu0 0.0
        %1818 = vmatprep.subr.mxu0 0.0
        %1819 = vmatpush1.msra.mxu0 0.0
        %1820 = vmatprep.subr.mxu0 0.0
        %1821 = vmatpush1.msra.mxu0 0.0
        %1822 = vmatprep.subr.mxu0 0.0
        %1823 = vmatpush1.msra.mxu0 0.0
        %1824 = vmatprep.subr.mxu0 0.0
        %1825 = vmatpush1.msra.mxu0 0.0
        %1826 = vmatprep.subr.mxu0 0.0
        %1827 = vmatpush1.msra.mxu0 0.0
        %1828 = vmatprep.subr.mxu0 0.0
        %1829 = vmatpush1.msra.mxu0 0.0
        %1830 = vmatprep.subr.mxu0 0.0
        %1831 = vmatpush1.msra.mxu0 0.0
        %1832 = vmatprep.subr.mxu0 0.0
        %1833 = vmatpush1.msra.mxu0 0.0
        %1834 = vmatprep.subr.mxu0 0.0
        %1835 = vmatpush1.msra.mxu0 0.0
        %1836 = vmatprep.subr.mxu0 0.0
        %1837 = vmatpush1.msra.mxu0 0.0
        %1838 = vmatprep.subr.mxu0 0.0
        %1839 = vmatpush1.msra.mxu0 0.0
        %1840 = vmatprep.subr.mxu0 0.0
        %1841 = vmatpush1.msra.mxu0 0.0
        %1842 = vmatprep.subr.mxu0 0.0
        %1843 = vmatpush1.msra.mxu0 0.0
        %1844 = vmatprep.subr.mxu0 0.0
        %1845 = vmatpush1.msra.mxu0 0.0
        %1846 = vmatprep.subr.mxu0 0.0
        %1847 = vmatpush1.msra.mxu0 0.0
        %1848 = vmatprep.subr.mxu0 0.0
        %1849 = vmatpush1.msra.mxu0 0.0
        %1850 = vmatprep.subr.mxu0 0.0
        %1851 = vmatpush1.msra.mxu0 0.0
        %1852 = vmatprep.subr.mxu0 0.0
        %1853 = vmatpush1.msra.mxu0 0.0
        %1854 = vmatprep.subr.mxu0 0.0
        %1855 = vmatpush1.msra.mxu0 0.0
        %1856 = vmatprep.subr.mxu0 0.0
        %1857 = vmatpush1.msra.mxu0 0.0
        %1858 = vmatprep.mubr.f32.mxu0 0.0
        %1859 = vmatmul.mubr.f32.gmra.mrb[0].mxu0 %v1792
        %v1860 = vpop.f32.mrb[0].mxu0
        %v1861 = vadd.f32 %v1789, %v1860
        %v1862 = vpop.f32.mrb[0].mxu0
        %1863 = vdwg.mxu0
        %v1864 = vld [vmem:[%s757] sm:$0xff]
        %vm1865 = vcmp.eq.f32.partialorder %v1864, 0.0
        %v1866 = vmul.f32 %v1861, 0.35355338
        %v1867 = vld [vmem:[#allocation4] sm:$0xff]
        %v1868 = vld [vmem:[#allocation4 + $0x8] sm:$0xff]
        %v1870 = vsel %vm987, %v1866, 0
        %v1873 = vsel %vm987, %v1867, 0
        %v1876 = vsel %vm987, %v1868, 0
        %1878 = vmatprep.subr.mxu0 0.0
        %1879 = vmatpush1.xpose.msra.mxu0 %v1873
        %1880 = vmatprep.subr.mxu0 0.0
        %1881 = vmatpush1.xpose.msra.mxu0 %v1876
        %1882 = vmatprep.subr.mxu0 0.0
        %1883 = vmatpush1.xpose.msra.mxu0 0.0
        %1884 = vmatprep.subr.mxu0 0.0
        %1885 = vmatpush1.xpose.msra.mxu0 0.0
        %1886 = vmatprep.subr.mxu0 0.0
        %1887 = vmatpush1.xpose.msra.mxu0 0.0
        %1888 = vmatprep.subr.mxu0 0.0
        %1889 = vmatpush1.xpose.msra.mxu0 0.0
        %1890 = vmatprep.subr.mxu0 0.0
        %1891 = vmatpush1.xpose.msra.mxu0 0.0
        %1892 = vmatprep.subr.mxu0 0.0
        %1893 = vmatpush1.xpose.msra.mxu0 0.0
        %1894 = vmatprep.subr.mxu0 0.0
        %1895 = vmatpush1.xpose.msra.mxu0 0.0
        %1896 = vmatprep.subr.mxu0 0.0
        %1897 = vmatpush1.xpose.msra.mxu0 0.0
        %1898 = vmatprep.subr.mxu0 0.0
        %1899 = vmatpush1.xpose.msra.mxu0 0.0
        %1900 = vmatprep.subr.mxu0 0.0
        %1901 = vmatpush1.xpose.msra.mxu0 0.0
        %1902 = vmatprep.subr.mxu0 0.0
        %1903 = vmatpush1.xpose.msra.mxu0 0.0
        %1904 = vmatprep.subr.mxu0 0.0
        %1905 = vmatpush1.xpose.msra.mxu0 0.0
        %1906 = vmatprep.subr.mxu0 0.0
        %1907 = vmatpush1.xpose.msra.mxu0 0.0
        %1908 = vmatprep.subr.mxu0 0.0
        %1909 = vmatpush1.xpose.msra.mxu0 0.0
        %1910 = vmatprep.subr.mxu0 0.0
        %1911 = vmatpush1.xpose.msra.mxu0 0.0
        %1912 = vmatprep.subr.mxu0 0.0
        %1913 = vmatpush1.xpose.msra.mxu0 0.0
        %1914 = vmatprep.subr.mxu0 0.0
        %1915 = vmatpush1.xpose.msra.mxu0 0.0
        %1916 = vmatprep.subr.mxu0 0.0
        %1917 = vmatpush1.xpose.msra.mxu0 0.0
        %1918 = vmatprep.subr.mxu0 0.0
        %1919 = vmatpush1.xpose.msra.mxu0 0.0
        %1920 = vmatprep.subr.mxu0 0.0
        %1921 = vmatpush1.xpose.msra.mxu0 0.0
        %1922 = vmatprep.subr.mxu0 0.0
        %1923 = vmatpush1.xpose.msra.mxu0 0.0
        %1924 = vmatprep.subr.mxu0 0.0
        %1925 = vmatpush1.xpose.msra.mxu0 0.0
        %1926 = vmatprep.subr.mxu0 0.0
        %1927 = vmatpush1.xpose.msra.mxu0 0.0
        %1928 = vmatprep.subr.mxu0 0.0
        %1929 = vmatpush1.xpose.msra.mxu0 0.0
        %1930 = vmatprep.subr.mxu0 0.0
        %1931 = vmatpush1.xpose.msra.mxu0 0.0
        %1932 = vmatprep.subr.mxu0 0.0
        %1933 = vmatpush1.xpose.msra.mxu0 0.0
        %1934 = vmatprep.subr.mxu0 0.0
        %1935 = vmatpush1.xpose.msra.mxu0 0.0
        %1936 = vmatprep.subr.mxu0 0.0
        %1937 = vmatpush1.xpose.msra.mxu0 0.0
        %1938 = vmatprep.subr.mxu0 0.0
        %1939 = vmatpush1.xpose.msra.mxu0 0.0
        %1940 = vmatprep.subr.mxu0 0.0
        %1941 = vmatpush1.xpose.msra.mxu0 0.0
        %1942 = vmatprep.mubr.f32.mxu0 0.0
        %1943 = vmatmul.mubr.f32.gmra.mrb[0].mxu0 %v1870
        %v1944 = vpop.f32.mrb[0].mxu0
        %v1945 = vadd.f32 0.0, %v1944
        %v1946 = vpop.f32.mrb[0].mxu0
        %1947 = vdwg.mxu0
        %v1948 = vsel %vm1865, -1e+09, %v1945
        %v1949 = vsel %vm1663, %v1948, -inf
        %1950 = vmax.xlane.f32.xlu0 %v1949
        %v1951 = vpop.xlane.xlu0 %1950
        %v1952 = vsub.f32 %v1948, %v1951
        %v1953 = vmul.f32 %v1952, 1.442695
        %v1954 = vpow.pop %v1953
        %v1955 = vsel %vm1663, %v1954, 0.0
        %1956 = vadd.xlane.f32.xlu0 %v1955
        %v1957 = vpop.xlane.xlu0 %1956
        %v1958 = vrcp.pop %v1957
        %v1959 = vmul.f32 %v1954, %v1958
        %1960 = vrot.lane.b32.xlu0 %v1867, 96
        %v1961 = vpop.permute.xlu0 %1960
        %1962 = vrot.lane.b32.xlu0 %v1868, 96
        %v1963 = vpop.permute.xlu0 %1962
        %v1967 = vsel %vm1663, %v1959, 0
        %1969 = vmatprep.subr.mxu0 0.0
        %1970 = vmatpush1.msra.mxu0 %v1961
        %1971 = vmatprep.subr.mxu0 0.0
        %1972 = vmatpush1.msra.mxu0 %v1963
        %1973 = vmatprep.subr.mxu0 0.0
        %1974 = vmatpush1.msra.mxu0 0.0
        %1975 = vmatprep.subr.mxu0 0.0
        %1976 = vmatpush1.msra.mxu0 0.0
        %1977 = vmatprep.subr.mxu0 0.0
        %1978 = vmatpush1.msra.mxu0 0.0
        %1979 = vmatprep.subr.mxu0 0.0
        %1980 = vmatpush1.msra.mxu0 0.0
        %1981 = vmatprep.subr.mxu0 0.0
        %1982 = vmatpush1.msra.mxu0 0.0
        %1983 = vmatprep.subr.mxu0 0.0
        %1984 = vmatpush1.msra.mxu0 0.0
        %1985 = vmatprep.subr.mxu0 0.0
        %1986 = vmatpush1.msra.mxu0 0.0
        %1987 = vmatprep.subr.mxu0 0.0
        %1988 = vmatpush1.msra.mxu0 0.0
        %1989 = vmatprep.subr.mxu0 0.0
        %1990 = vmatpush1.msra.mxu0 0.0
        %1991 = vmatprep.subr.mxu0 0.0
        %1992 = vmatpush1.msra.mxu0 0.0
        %1993 = vmatprep.subr.mxu0 0.0
        %1994 = vmatpush1.msra.mxu0 0.0
        %1995 = vmatprep.subr.mxu0 0.0
        %1996 = vmatpush1.msra.mxu0 0.0
        %1997 = vmatprep.subr.mxu0 0.0
        %1998 = vmatpush1.msra.mxu0 0.0
        %1999 = vmatprep.subr.mxu0 0.0
        %2000 = vmatpush1.msra.mxu0 0.0
        %2001 = vmatprep.subr.mxu0 0.0
        %2002 = vmatpush1.msra.mxu0 0.0
        %2003 = vmatprep.subr.mxu0 0.0
        %2004 = vmatpush1.msra.mxu0 0.0
        %2005 = vmatprep.subr.mxu0 0.0
        %2006 = vmatpush1.msra.mxu0 0.0
        %2007 = vmatprep.subr.mxu0 0.0
        %2008 = vmatpush1.msra.mxu0 0.0
        %2009 = vmatprep.subr.mxu0 0.0
        %2010 = vmatpush1.msra.mxu0 0.0
        %2011 = vmatprep.subr.mxu0 0.0
        %2012 = vmatpush1.msra.mxu0 0.0
        %2013 = vmatprep.subr.mxu0 0.0
        %2014 = vmatpush1.msra.mxu0 0.0
        %2015 = vmatprep.subr.mxu0 0.0
        %2016 = vmatpush1.msra.mxu0 0.0
        %2017 = vmatprep.subr.mxu0 0.0
        %2018 = vmatpush1.msra.mxu0 0.0
        %2019 = vmatprep.subr.mxu0 0.0
        %2020 = vmatpush1.msra.mxu0 0.0
        %2021 = vmatprep.subr.mxu0 0.0
        %2022 = vmatpush1.msra.mxu0 0.0
        %2023 = vmatprep.subr.mxu0 0.0
        %2024 = vmatpush1.msra.mxu0 0.0
        %2025 = vmatprep.subr.mxu0 0.0
        %2026 = vmatpush1.msra.mxu0 0.0
        %2027 = vmatprep.subr.mxu0 0.0
        %2028 = vmatpush1.msra.mxu0 0.0
        %2029 = vmatprep.subr.mxu0 0.0
        %2030 = vmatpush1.msra.mxu0 0.0
        %2031 = vmatprep.subr.mxu0 0.0
        %2032 = vmatpush1.msra.mxu0 0.0
        %2033 = vmatprep.mubr.f32.mxu0 0.0
        %2034 = vmatmul.mubr.f32.gmra.mrb[0].mxu0 %v1967
        %v2035 = vpop.f32.mrb[0].mxu0
        %v2036 = vadd.f32 0.0, %v2035
        %v2037 = vpop.f32.mrb[0].mxu0
        %2038 = vdwg.mxu0
        %2039 = vrot.lane.b32.xlu0 %v1866, 120
        %v2040 = vpop.permute.xlu0 %2039
        %2041 = vrot.lane.b32.xlu0 %v1867, 120
        %v2042 = vpop.permute.xlu0 %2041
        %2043 = vrot.lane.b32.xlu0 %v1868, 120
        %v2044 = vpop.permute.xlu0 %2043
        %v2045 = vsel %vm987, %v2040, 0
        %v2047 = vsel %vm987, %v2042, 0
        %v2049 = vsel %vm987, %v2044, 0
        %2051 = vmatprep.subr.mxu0 0.0
        %2052 = vmatpush1.xpose.msra.mxu0 %v2047
        %2053 = vmatprep.subr.mxu0 0.0
        %2054 = vmatpush1.xpose.msra.mxu0 %v2049
        %2055 = vmatprep.subr.mxu0 0.0
        %2056 = vmatpush1.xpose.msra.mxu0 0.0
        %2057 = vmatprep.subr.mxu0 0.0
        %2058 = vmatpush1.xpose.msra.mxu0 0.0
        %2059 = vmatprep.subr.mxu0 0.0
        %2060 = vmatpush1.xpose.msra.mxu0 0.0
        %2061 = vmatprep.subr.mxu0 0.0
        %2062 = vmatpush1.xpose.msra.mxu0 0.0
        %2063 = vmatprep.subr.mxu0 0.0
        %2064 = vmatpush1.xpose.msra.mxu0 0.0
        %2065 = vmatprep.subr.mxu0 0.0
        %2066 = vmatpush1.xpose.msra.mxu0 0.0
        %2067 = vmatprep.subr.mxu0 0.0
        %2068 = vmatpush1.xpose.msra.mxu0 0.0
        %2069 = vmatprep.subr.mxu0 0.0
        %2070 = vmatpush1.xpose.msra.mxu0 0.0
        %2071 = vmatprep.subr.mxu0 0.0
        %2072 = vmatpush1.xpose.msra.mxu0 0.0
        %2073 = vmatprep.subr.mxu0 0.0
        %2074 = vmatpush1.xpose.msra.mxu0 0.0
        %2075 = vmatprep.subr.mxu0 0.0
        %2076 = vmatpush1.xpose.msra.mxu0 0.0
        %2077 = vmatprep.subr.mxu0 0.0
        %2078 = vmatpush1.xpose.msra.mxu0 0.0
        %2079 = vmatprep.subr.mxu0 0.0
        %2080 = vmatpush1.xpose.msra.mxu0 0.0
        %2081 = vmatprep.subr.mxu0 0.0
        %2082 = vmatpush1.xpose.msra.mxu0 0.0
        %2083 = vmatprep.subr.mxu0 0.0
        %2084 = vmatpush1.xpose.msra.mxu0 0.0
        %2085 = vmatprep.subr.mxu0 0.0
        %2086 = vmatpush1.xpose.msra.mxu0 0.0
        %2087 = vmatprep.subr.mxu0 0.0
        %2088 = vmatpush1.xpose.msra.mxu0 0.0
        %2089 = vmatprep.subr.mxu0 0.0
        %2090 = vmatpush1.xpose.msra.mxu0 0.0
        %2091 = vmatprep.subr.mxu0 0.0
        %2092 = vmatpush1.xpose.msra.mxu0 0.0
        %2093 = vmatprep.subr.mxu0 0.0
        %2094 = vmatpush1.xpose.msra.mxu0 0.0
        %2095 = vmatprep.subr.mxu0 0.0
        %2096 = vmatpush1.xpose.msra.mxu0 0.0
        %2097 = vmatprep.subr.mxu0 0.0
        %2098 = vmatpush1.xpose.msra.mxu0 0.0
        %2099 = vmatprep.subr.mxu0 0.0
        %2100 = vmatpush1.xpose.msra.mxu0 0.0
        %2101 = vmatprep.subr.mxu0 0.0
        %2102 = vmatpush1.xpose.msra.mxu0 0.0
        %2103 = vmatprep.subr.mxu0 0.0
        %2104 = vmatpush1.xpose.msra.mxu0 0.0
        %2105 = vmatprep.subr.mxu0 0.0
        %2106 = vmatpush1.xpose.msra.mxu0 0.0
        %2107 = vmatprep.subr.mxu0 0.0
        %2108 = vmatpush1.xpose.msra.mxu0 0.0
        %2109 = vmatprep.subr.mxu0 0.0
        %2110 = vmatpush1.xpose.msra.mxu0 0.0
        %2111 = vmatprep.subr.mxu0 0.0
        %2112 = vmatpush1.xpose.msra.mxu0 0.0
        %2113 = vmatprep.subr.mxu0 0.0
        %2114 = vmatpush1.xpose.msra.mxu0 0.0
        %2115 = vmatprep.mubr.f32.mxu0 0.0
        %2116 = vmatmul.mubr.f32.gmra.mrb[0].mxu0 %v2045
        %v2117 = vpop.f32.mrb[0].mxu0
        %v2118 = vadd.f32 0.0, %v2117
        %v2119 = vpop.f32.mrb[0].mxu0
        %2120 = vdwg.mxu0
        %v2121 = vsel %vm1865, -1e+09, %v2118
        %v2122 = vsel %vm1663, %v2121, -inf
        %2123 = vmax.xlane.f32.xlu0 %v2122
        %v2124 = vpop.xlane.xlu0 %2123
        %v2125 = vsub.f32 %v2121, %v2124
        %v2126 = vmul.f32 %v2125, 1.442695
        %v2127 = vpow.pop %v2126
        %v2128 = vsel %vm1663, %v2127, 0.0
        %2129 = vadd.xlane.f32.xlu0 %v2128
        %v2130 = vpop.xlane.xlu0 %2129
        %v2131 = vrcp.pop %v2130
        %v2132 = vmul.f32 %v2127, %v2131
        %2133 = vrot.lane.b32.xlu0 %v1867, 88
        %v2134 = vpop.permute.xlu0 %2133
        %2135 = vrot.lane.b32.xlu0 %v1868, 88
        %v2136 = vpop.permute.xlu0 %2135
        %v2140 = vsel %vm1663, %v2132, 0
        %2142 = vmatprep.subr.mxu0 0.0
        %2143 = vmatpush1.msra.mxu0 %v2134
        %2144 = vmatprep.subr.mxu0 0.0
        %2145 = vmatpush1.msra.mxu0 %v2136
        %2146 = vmatprep.subr.mxu0 0.0
        %2147 = vmatpush1.msra.mxu0 0.0
        %2148 = vmatprep.subr.mxu0 0.0
        %2149 = vmatpush1.msra.mxu0 0.0
        %2150 = vmatprep.subr.mxu0 0.0
        %2151 = vmatpush1.msra.mxu0 0.0
        %2152 = vmatprep.subr.mxu0 0.0
        %2153 = vmatpush1.msra.mxu0 0.0
        %2154 = vmatprep.subr.mxu0 0.0
        %2155 = vmatpush1.msra.mxu0 0.0
        %2156 = vmatprep.subr.mxu0 0.0
        %2157 = vmatpush1.msra.mxu0 0.0
        %2158 = vmatprep.subr.mxu0 0.0
        %2159 = vmatpush1.msra.mxu0 0.0
        %2160 = vmatprep.subr.mxu0 0.0
        %2161 = vmatpush1.msra.mxu0 0.0
        %2162 = vmatprep.subr.mxu0 0.0
        %2163 = vmatpush1.msra.mxu0 0.0
        %2164 = vmatprep.subr.mxu0 0.0
        %2165 = vmatpush1.msra.mxu0 0.0
        %2166 = vmatprep.subr.mxu0 0.0
        %2167 = vmatpush1.msra.mxu0 0.0
        %2168 = vmatprep.subr.mxu0 0.0
        %2169 = vmatpush1.msra.mxu0 0.0
        %2170 = vmatprep.subr.mxu0 0.0
        %2171 = vmatpush1.msra.mxu0 0.0
        %2172 = vmatprep.subr.mxu0 0.0
        %2173 = vmatpush1.msra.mxu0 0.0
        %2174 = vmatprep.subr.mxu0 0.0
        %2175 = vmatpush1.msra.mxu0 0.0
        %2176 = vmatprep.subr.mxu0 0.0
        %2177 = vmatpush1.msra.mxu0 0.0
        %2178 = vmatprep.subr.mxu0 0.0
        %2179 = vmatpush1.msra.mxu0 0.0
        %2180 = vmatprep.subr.mxu0 0.0
        %2181 = vmatpush1.msra.mxu0 0.0
        %2182 = vmatprep.subr.mxu0 0.0
        %2183 = vmatpush1.msra.mxu0 0.0
        %2184 = vmatprep.subr.mxu0 0.0
        %2185 = vmatpush1.msra.mxu0 0.0
        %2186 = vmatprep.subr.mxu0 0.0
        %2187 = vmatpush1.msra.mxu0 0.0
        %2188 = vmatprep.subr.mxu0 0.0
        %2189 = vmatpush1.msra.mxu0 0.0
        %2190 = vmatprep.subr.mxu0 0.0
        %2191 = vmatpush1.msra.mxu0 0.0
        %2192 = vmatprep.subr.mxu0 0.0
        %2193 = vmatpush1.msra.mxu0 0.0
        %2194 = vmatprep.subr.mxu0 0.0
        %2195 = vmatpush1.msra.mxu0 0.0
        %2196 = vmatprep.subr.mxu0 0.0
        %2197 = vmatpush1.msra.mxu0 0.0
        %2198 = vmatprep.subr.mxu0 0.0
        %2199 = vmatpush1.msra.mxu0 0.0
        %2200 = vmatprep.subr.mxu0 0.0
        %2201 = vmatpush1.msra.mxu0 0.0
        %2202 = vmatprep.subr.mxu0 0.0
        %2203 = vmatpush1.msra.mxu0 0.0
        %2204 = vmatprep.subr.mxu0 0.0
        %2205 = vmatpush1.msra.mxu0 0.0
        %2206 = vmatprep.mubr.f32.mxu0 0.0
        %2207 = vmatmul.mubr.f32.gmra.mrb[0].mxu0 %v2140
        %v2208 = vpop.f32.mrb[0].mxu0
        %v2209 = vadd.f32 0.0, %v2208
        %v2210 = vpop.f32.mrb[0].mxu0
        %2211 = vdwg.mxu0
        %2212 = vrot.lane.b32.xlu0 %v1866, 112
        %v2213 = vpop.permute.xlu0 %2212
        %2214 = vrot.lane.b32.xlu0 %v1867, 112
        %v2215 = vpop.permute.xlu0 %2214
        %2216 = vrot.lane.b32.xlu0 %v1868, 112
        %v2217 = vpop.permute.xlu0 %2216
        %v2218 = vsel %vm987, %v2213, 0
        %v2220 = vsel %vm987, %v2215, 0
        %v2222 = vsel %vm987, %v2217, 0
        %2224 = vmatprep.subr.mxu0 0.0
        %2225 = vmatpush1.xpose.msra.mxu0 %v2220
        %2226 = vmatprep.subr.mxu0 0.0
        %2227 = vmatpush1.xpose.msra.mxu0 %v2222
        %2228 = vmatprep.subr.mxu0 0.0
        %2229 = vmatpush1.xpose.msra.mxu0 0.0
        %2230 = vmatprep.subr.mxu0 0.0
        %2231 = vmatpush1.xpose.msra.mxu0 0.0
        %2232 = vmatprep.subr.mxu0 0.0
        %2233 = vmatpush1.xpose.msra.mxu0 0.0
        %2234 = vmatprep.subr.mxu0 0.0
        %2235 = vmatpush1.xpose.msra.mxu0 0.0
        %2236 = vmatprep.subr.mxu0 0.0
        %2237 = vmatpush1.xpose.msra.mxu0 0.0
        %2238 = vmatprep.subr.mxu0 0.0
        %2239 = vmatpush1.xpose.msra.mxu0 0.0
        %2240 = vmatprep.subr.mxu0 0.0
        %2241 = vmatpush1.xpose.msra.mxu0 0.0
        %2242 = vmatprep.subr.mxu0 0.0
        %2243 = vmatpush1.xpose.msra.mxu0 0.0
        %2244 = vmatprep.subr.mxu0 0.0
        %2245 = vmatpush1.xpose.msra.mxu0 0.0
        %2246 = vmatprep.subr.mxu0 0.0
        %2247 = vmatpush1.xpose.msra.mxu0 0.0
        %2248 = vmatprep.subr.mxu0 0.0
        %2249 = vmatpush1.xpose.msra.mxu0 0.0
        %2250 = vmatprep.subr.mxu0 0.0
        %2251 = vmatpush1.xpose.msra.mxu0 0.0
        %2252 = vmatprep.subr.mxu0 0.0
        %2253 = vmatpush1.xpose.msra.mxu0 0.0
        %2254 = vmatprep.subr.mxu0 0.0
        %2255 = vmatpush1.xpose.msra.mxu0 0.0
        %2256 = vmatprep.subr.mxu0 0.0
        %2257 = vmatpush1.xpose.msra.mxu0 0.0
        %2258 = vmatprep.subr.mxu0 0.0
        %2259 = vmatpush1.xpose.msra.mxu0 0.0
        %2260 = vmatprep.subr.mxu0 0.0
        %2261 = vmatpush1.xpose.msra.mxu0 0.0
        %2262 = vmatprep.subr.mxu0 0.0
        %2263 = vmatpush1.xpose.msra.mxu0 0.0
        %2264 = vmatprep.subr.mxu0 0.0
        %2265 = vmatpush1.xpose.msra.mxu0 0.0
        %2266 = vmatprep.subr.mxu0 0.0
        %2267 = vmatpush1.xpose.msra.mxu0 0.0
        %2268 = vmatprep.subr.mxu0 0.0
        %2269 = vmatpush1.xpose.msra.mxu0 0.0
        %2270 = vmatprep.subr.mxu0 0.0
        %2271 = vmatpush1.xpose.msra.mxu0 0.0
        %2272 = vmatprep.subr.mxu0 0.0
        %2273 = vmatpush1.xpose.msra.mxu0 0.0
        %2274 = vmatprep.subr.mxu0 0.0
        %2275 = vmatpush1.xpose.msra.mxu0 0.0
        %2276 = vmatprep.subr.mxu0 0.0
        %2277 = vmatpush1.xpose.msra.mxu0 0.0
        %2278 = vmatprep.subr.mxu0 0.0
        %2279 = vmatpush1.xpose.msra.mxu0 0.0
        %2280 = vmatprep.subr.mxu0 0.0
        %2281 = vmatpush1.xpose.msra.mxu0 0.0
        %2282 = vmatprep.subr.mxu0 0.0
        %2283 = vmatpush1.xpose.msra.mxu0 0.0
        %2284 = vmatprep.subr.mxu0 0.0
        %2285 = vmatpush1.xpose.msra.mxu0 0.0
        %2286 = vmatprep.subr.mxu0 0.0
        %2287 = vmatpush1.xpose.msra.mxu0 0.0
        %2288 = vmatprep.mubr.f32.mxu0 0.0
        %2289 = vmatmul.mubr.f32.gmra.mrb[0].mxu0 %v2218
        %v2290 = vpop.f32.mrb[0].mxu0
        %v2291 = vadd.f32 0.0, %v2290
        %v2292 = vpop.f32.mrb[0].mxu0
        %2293 = vdwg.mxu0
        %v2294 = vsel %vm1865, -1e+09, %v2291
        %v2295 = vsel %vm1663, %v2294, -inf
        %2296 = vmax.xlane.f32.xlu0 %v2295
        %v2297 = vpop.xlane.xlu0 %2296
        %v2298 = vsub.f32 %v2294, %v2297
        %v2299 = vmul.f32 %v2298, 1.442695
        %v2300 = vpow.pop %v2299
        %v2301 = vsel %vm1663, %v2300, 0.0
        %2302 = vadd.xlane.f32.xlu0 %v2301
        %v2303 = vpop.xlane.xlu0 %2302
        %v2304 = vrcp.pop %v2303
        %v2305 = vmul.f32 %v2300, %v2304
        %2306 = vrot.lane.b32.xlu0 %v1867, 80
        %v2307 = vpop.permute.xlu0 %2306
        %2308 = vrot.lane.b32.xlu0 %v1868, 80
        %v2309 = vpop.permute.xlu0 %2308
        %v2313 = vsel %vm1663, %v2305, 0
        %2315 = vmatprep.subr.mxu0 0.0
        %2316 = vmatpush1.msra.mxu0 %v2307
        %2317 = vmatprep.subr.mxu0 0.0
        %2318 = vmatpush1.msra.mxu0 %v2309
        %2319 = vmatprep.subr.mxu0 0.0
        %2320 = vmatpush1.msra.mxu0 0.0
        %2321 = vmatprep.subr.mxu0 0.0
        %2322 = vmatpush1.msra.mxu0 0.0
        %2323 = vmatprep.subr.mxu0 0.0
        %2324 = vmatpush1.msra.mxu0 0.0
        %2325 = vmatprep.subr.mxu0 0.0
        %2326 = vmatpush1.msra.mxu0 0.0
        %2327 = vmatprep.subr.mxu0 0.0
        %2328 = vmatpush1.msra.mxu0 0.0
        %2329 = vmatprep.subr.mxu0 0.0
        %2330 = vmatpush1.msra.mxu0 0.0
        %2331 = vmatprep.subr.mxu0 0.0
        %2332 = vmatpush1.msra.mxu0 0.0
        %2333 = vmatprep.subr.mxu0 0.0
        %2334 = vmatpush1.msra.mxu0 0.0
        %2335 = vmatprep.subr.mxu0 0.0
        %2336 = vmatpush1.msra.mxu0 0.0
        %2337 = vmatprep.subr.mxu0 0.0
        %2338 = vmatpush1.msra.mxu0 0.0
        %2339 = vmatprep.subr.mxu0 0.0
        %2340 = vmatpush1.msra.mxu0 0.0
        %2341 = vmatprep.subr.mxu0 0.0
        %2342 = vmatpush1.msra.mxu0 0.0
        %2343 = vmatprep.subr.mxu0 0.0
        %2344 = vmatpush1.msra.mxu0 0.0
        %2345 = vmatprep.subr.mxu0 0.0
        %2346 = vmatpush1.msra.mxu0 0.0
        %2347 = vmatprep.subr.mxu0 0.0
        %2348 = vmatpush1.msra.mxu0 0.0
        %2349 = vmatprep.subr.mxu0 0.0
        %2350 = vmatpush1.msra.mxu0 0.0
        %2351 = vmatprep.subr.mxu0 0.0
        %2352 = vmatpush1.msra.mxu0 0.0
        %2353 = vmatprep.subr.mxu0 0.0
        %2354 = vmatpush1.msra.mxu0 0.0
        %2355 = vmatprep.subr.mxu0 0.0
        %2356 = vmatpush1.msra.mxu0 0.0
        %2357 = vmatprep.subr.mxu0 0.0
        %2358 = vmatpush1.msra.mxu0 0.0
        %2359 = vmatprep.subr.mxu0 0.0
        %2360 = vmatpush1.msra.mxu0 0.0
        %2361 = vmatprep.subr.mxu0 0.0
        %2362 = vmatpush1.msra.mxu0 0.0
        %2363 = vmatprep.subr.mxu0 0.0
        %2364 = vmatpush1.msra.mxu0 0.0
        %2365 = vmatprep.subr.mxu0 0.0
        %2366 = vmatpush1.msra.mxu0 0.0
        %2367 = vmatprep.subr.mxu0 0.0
        %2368 = vmatpush1.msra.mxu0 0.0
        %2369 = vmatprep.subr.mxu0 0.0
        %2370 = vmatpush1.msra.mxu0 0.0
        %2371 = vmatprep.subr.mxu0 0.0
        %2372 = vmatpush1.msra.mxu0 0.0
        %2373 = vmatprep.subr.mxu0 0.0
        %2374 = vmatpush1.msra.mxu0 0.0
        %2375 = vmatprep.subr.mxu0 0.0
        %2376 = vmatpush1.msra.mxu0 0.0
        %2377 = vmatprep.subr.mxu0 0.0
        %2378 = vmatpush1.msra.mxu0 0.0
        %2379 = vmatprep.mubr.f32.mxu0 0.0
        %2380 = vmatmul.mubr.f32.gmra.mrb[0].mxu0 %v2313
        %v2381 = vpop.f32.mrb[0].mxu0
        %v2382 = vadd.f32 0.0, %v2381
        %v2383 = vpop.f32.mrb[0].mxu0
        %2384 = vdwg.mxu0
        %2385 = vrot.lane.b32.xlu0 %v1866, 104
        %v2386 = vpop.permute.xlu0 %2385
        %2387 = vrot.lane.b32.xlu0 %v1867, 104
        %v2388 = vpop.permute.xlu0 %2387
        %2389 = vrot.lane.b32.xlu0 %v1868, 104
        %v2390 = vpop.permute.xlu0 %2389
        %v2391 = vsel %vm987, %v2386, 0
        %v2393 = vsel %vm987, %v2388, 0
        %v2395 = vsel %vm987, %v2390, 0
        %2397 = vmatprep.subr.mxu0 0.0
        %2398 = vmatpush1.xpose.msra.mxu0 %v2393
        %2399 = vmatprep.subr.mxu0 0.0
        %2400 = vmatpush1.xpose.msra.mxu0 %v2395
        %2401 = vmatprep.subr.mxu0 0.0
        %2402 = vmatpush1.xpose.msra.mxu0 0.0
        %2403 = vmatprep.subr.mxu0 0.0
        %2404 = vmatpush1.xpose.msra.mxu0 0.0
        %2405 = vmatprep.subr.mxu0 0.0
        %2406 = vmatpush1.xpose.msra.mxu0 0.0
        %2407 = vmatprep.subr.mxu0 0.0
        %2408 = vmatpush1.xpose.msra.mxu0 0.0
        %2409 = vmatprep.subr.mxu0 0.0
        %2410 = vmatpush1.xpose.msra.mxu0 0.0
        %2411 = vmatprep.subr.mxu0 0.0
        %2412 = vmatpush1.xpose.msra.mxu0 0.0
        %2413 = vmatprep.subr.mxu0 0.0
        %2414 = vmatpush1.xpose.msra.mxu0 0.0
        %2415 = vmatprep.subr.mxu0 0.0
        %2416 = vmatpush1.xpose.msra.mxu0 0.0
        %2417 = vmatprep.subr.mxu0 0.0
        %2418 = vmatpush1.xpose.msra.mxu0 0.0
        %2419 = vmatprep.subr.mxu0 0.0
        %2420 = vmatpush1.xpose.msra.mxu0 0.0
        %2421 = vmatprep.subr.mxu0 0.0
        %2422 = vmatpush1.xpose.msra.mxu0 0.0
        %2423 = vmatprep.subr.mxu0 0.0
        %2424 = vmatpush1.xpose.msra.mxu0 0.0
        %2425 = vmatprep.subr.mxu0 0.0
        %2426 = vmatpush1.xpose.msra.mxu0 0.0
        %2427 = vmatprep.subr.mxu0 0.0
        %2428 = vmatpush1.xpose.msra.mxu0 0.0
        %2429 = vmatprep.subr.mxu0 0.0
        %2430 = vmatpush1.xpose.msra.mxu0 0.0
        %2431 = vmatprep.subr.mxu0 0.0
        %2432 = vmatpush1.xpose.msra.mxu0 0.0
        %2433 = vmatprep.subr.mxu0 0.0
        %2434 = vmatpush1.xpose.msra.mxu0 0.0
        %2435 = vmatprep.subr.mxu0 0.0
        %2436 = vmatpush1.xpose.msra.mxu0 0.0
        %2437 = vmatprep.subr.mxu0 0.0
        %2438 = vmatpush1.xpose.msra.mxu0 0.0
        %2439 = vmatprep.subr.mxu0 0.0
        %2440 = vmatpush1.xpose.msra.mxu0 0.0
        %2441 = vmatprep.subr.mxu0 0.0
        %2442 = vmatpush1.xpose.msra.mxu0 0.0
        %2443 = vmatprep.subr.mxu0 0.0
        %2444 = vmatpush1.xpose.msra.mxu0 0.0
        %2445 = vmatprep.subr.mxu0 0.0
        %2446 = vmatpush1.xpose.msra.mxu0 0.0
        %2447 = vmatprep.subr.mxu0 0.0
        %2448 = vmatpush1.xpose.msra.mxu0 0.0
        %2449 = vmatprep.subr.mxu0 0.0
        %2450 = vmatpush1.xpose.msra.mxu0 0.0
        %2451 = vmatprep.subr.mxu0 0.0
        %2452 = vmatpush1.xpose.msra.mxu0 0.0
        %2453 = vmatprep.subr.mxu0 0.0
        %2454 = vmatpush1.xpose.msra.mxu0 0.0
        %2455 = vmatprep.subr.mxu0 0.0
        %2456 = vmatpush1.xpose.msra.mxu0 0.0
        %2457 = vmatprep.subr.mxu0 0.0
        %2458 = vmatpush1.xpose.msra.mxu0 0.0
        %2459 = vmatprep.subr.mxu0 0.0
        %2460 = vmatpush1.xpose.msra.mxu0 0.0
        %2461 = vmatprep.mubr.f32.mxu0 0.0
        %2462 = vmatmul.mubr.f32.gmra.mrb[0].mxu0 %v2391
        %v2463 = vpop.f32.mrb[0].mxu0
        %v2464 = vadd.f32 0.0, %v2463
        %v2465 = vpop.f32.mrb[0].mxu0
        %2466 = vdwg.mxu0
        %v2467 = vsel %vm1865, -1e+09, %v2464
        %v2468 = vsel %vm1663, %v2467, -inf
        %2469 = vmax.xlane.f32.xlu0 %v2468
        %v2470 = vpop.xlane.xlu0 %2469
        %v2471 = vsub.f32 %v2467, %v2470
        %v2472 = vmul.f32 %v2471, 1.442695
        %v2473 = vpow.pop %v2472
        %v2474 = vsel %vm1663, %v2473, 0.0
        %2475 = vadd.xlane.f32.xlu0 %v2474
        %v2476 = vpop.xlane.xlu0 %2475
        %v2477 = vrcp.pop %v2476
        %v2478 = vmul.f32 %v2473, %v2477
        %2479 = vrot.lane.b32.xlu0 %v1867, 72
        %v2480 = vpop.permute.xlu0 %2479
        %2481 = vrot.lane.b32.xlu0 %v1868, 72
        %v2482 = vpop.permute.xlu0 %2481
        %v2486 = vsel %vm1663, %v2478, 0
        %2488 = vmatprep.subr.mxu0 0.0
        %2489 = vmatpush1.msra.mxu0 %v2480
        %2490 = vmatprep.subr.mxu0 0.0
        %2491 = vmatpush1.msra.mxu0 %v2482
        %2492 = vmatprep.subr.mxu0 0.0
        %2493 = vmatpush1.msra.mxu0 0.0
        %2494 = vmatprep.subr.mxu0 0.0
        %2495 = vmatpush1.msra.mxu0 0.0
        %2496 = vmatprep.subr.mxu0 0.0
        %2497 = vmatpush1.msra.mxu0 0.0
        %2498 = vmatprep.subr.mxu0 0.0
        %2499 = vmatpush1.msra.mxu0 0.0
        %2500 = vmatprep.subr.mxu0 0.0
        %2501 = vmatpush1.msra.mxu0 0.0
        %2502 = vmatprep.subr.mxu0 0.0
        %2503 = vmatpush1.msra.mxu0 0.0
        %2504 = vmatprep.subr.mxu0 0.0
        %2505 = vmatpush1.msra.mxu0 0.0
        %2506 = vmatprep.subr.mxu0 0.0
        %2507 = vmatpush1.msra.mxu0 0.0
        %2508 = vmatprep.subr.mxu0 0.0
        %2509 = vmatpush1.msra.mxu0 0.0
        %2510 = vmatprep.subr.mxu0 0.0
        %2511 = vmatpush1.msra.mxu0 0.0
        %2512 = vmatprep.subr.mxu0 0.0
        %2513 = vmatpush1.msra.mxu0 0.0
        %2514 = vmatprep.subr.mxu0 0.0
        %2515 = vmatpush1.msra.mxu0 0.0
        %2516 = vmatprep.subr.mxu0 0.0
        %2517 = vmatpush1.msra.mxu0 0.0
        %2518 = vmatprep.subr.mxu0 0.0
        %2519 = vmatpush1.msra.mxu0 0.0
        %2520 = vmatprep.subr.mxu0 0.0
        %2521 = vmatpush1.msra.mxu0 0.0
        %2522 = vmatprep.subr.mxu0 0.0
        %2523 = vmatpush1.msra.mxu0 0.0
        %2524 = vmatprep.subr.mxu0 0.0
        %2525 = vmatpush1.msra.mxu0 0.0
        %2526 = vmatprep.subr.mxu0 0.0
        %2527 = vmatpush1.msra.mxu0 0.0
        %2528 = vmatprep.subr.mxu0 0.0
        %2529 = vmatpush1.msra.mxu0 0.0
        %2530 = vmatprep.subr.mxu0 0.0
        %2531 = vmatpush1.msra.mxu0 0.0
        %2532 = vmatprep.subr.mxu0 0.0
        %2533 = vmatpush1.msra.mxu0 0.0
        %2534 = vmatprep.subr.mxu0 0.0
        %2535 = vmatpush1.msra.mxu0 0.0
        %2536 = vmatprep.subr.mxu0 0.0
        %2537 = vmatpush1.msra.mxu0 0.0
        %2538 = vmatprep.subr.mxu0 0.0
        %2539 = vmatpush1.msra.mxu0 0.0
        %2540 = vmatprep.subr.mxu0 0.0
        %2541 = vmatpush1.msra.mxu0 0.0
        %2542 = vmatprep.subr.mxu0 0.0
        %2543 = vmatpush1.msra.mxu0 0.0
        %2544 = vmatprep.subr.mxu0 0.0
        %2545 = vmatpush1.msra.mxu0 0.0
        %2546 = vmatprep.subr.mxu0 0.0
        %2547 = vmatpush1.msra.mxu0 0.0
        %2548 = vmatprep.subr.mxu0 0.0
        %2549 = vmatpush1.msra.mxu0 0.0
        %2550 = vmatprep.subr.mxu0 0.0
        %2551 = vmatpush1.msra.mxu0 0.0
        %2552 = vmatprep.mubr.f32.mxu0 0.0
        %2553 = vmatmul.mubr.f32.gmra.mrb[0].mxu0 %v2486
        %v2554 = vpop.f32.mrb[0].mxu0
        %v2555 = vadd.f32 0.0, %v2554
        %v2556 = vpop.f32.mrb[0].mxu0
        %2557 = vdwg.mxu0
        %2559 = vrot.lane.b32.xlu0 %v2209, 8
        %v2560 = vpop.permute.xlu0 %2559
        %2563 = vrot.lane.b32.xlu0 %v2382, 16
        %v2564 = vpop.permute.xlu0 %2563
        %2567 = vrot.lane.b32.xlu0 %v2555, 24
        %v2568 = vpop.permute.xlu0 %2567
        %v2570 = vsel %vm987, %v2036, %v2560
        %v2571 = vsel %vm1663, %v2570, %v2564
        %v2572 = vsel %vm1665, %v2571, %v2568
        %v2573 = vld [vmem:[#allocation12] sm:$0xff]
        %v2574 = vld [vmem:[#allocation12 + $0x8] sm:$0xff]
        %v2575 = vld [vmem:[#allocation12 + $0x10] sm:$0xff]
        %v2576 = vld [vmem:[#allocation12 + $0x18] sm:$0xff]
        %v2577 = vld [vmem:[%s13] sm:$0x1]
        %v2579 = vlaneseq
        %v2580 = vshrl.u32 %v2579, 7
        %v2581 = vsub.s32 0, %v2580
        %v2582 = vrot.slane %v2577, %v2581
        %v2585 = vsel %vm1678, %v2572, 0
        %2587 = vmatprep.subr.mxu0 0.0
        %2588 = vmatpush1.msra.mxu0 %v2573
        %2589 = vmatprep.subr.mxu0 0.0
        %2590 = vmatpush1.msra.mxu0 %v2574
        %2591 = vmatprep.subr.mxu0 0.0
        %2592 = vmatpush1.msra.mxu0 %v2575
        %2593 = vmatprep.subr.mxu0 0.0
        %2594 = vmatpush1.msra.mxu0 %v2576
        %2595 = vmatprep.subr.mxu0 0.0
        %2596 = vmatpush1.msra.mxu0 0.0
        %2597 = vmatprep.subr.mxu0 0.0
        %2598 = vmatpush1.msra.mxu0 0.0
        %2599 = vmatprep.subr.mxu0 0.0
        %2600 = vmatpush1.msra.mxu0 0.0
        %2601 = vmatprep.subr.mxu0 0.0
        %2602 = vmatpush1.msra.mxu0 0.0
        %2603 = vmatprep.subr.mxu0 0.0
        %2604 = vmatpush1.msra.mxu0 0.0
        %2605 = vmatprep.subr.mxu0 0.0
        %2606 = vmatpush1.msra.mxu0 0.0
        %2607 = vmatprep.subr.mxu0 0.0
        %2608 = vmatpush1.msra.mxu0 0.0
        %2609 = vmatprep.subr.mxu0 0.0
        %2610 = vmatpush1.msra.mxu0 0.0
        %2611 = vmatprep.subr.mxu0 0.0
        %2612 = vmatpush1.msra.mxu0 0.0
        %2613 = vmatprep.subr.mxu0 0.0
        %2614 = vmatpush1.msra.mxu0 0.0
        %2615 = vmatprep.subr.mxu0 0.0
        %2616 = vmatpush1.msra.mxu0 0.0
        %2617 = vmatprep.subr.mxu0 0.0
        %2618 = vmatpush1.msra.mxu0 0.0
        %2619 = vmatprep.subr.mxu0 0.0
        %2620 = vmatpush1.msra.mxu0 0.0
        %2621 = vmatprep.subr.mxu0 0.0
        %2622 = vmatpush1.msra.mxu0 0.0
        %2623 = vmatprep.subr.mxu0 0.0
        %2624 = vmatpush1.msra.mxu0 0.0
        %2625 = vmatprep.subr.mxu0 0.0
        %2626 = vmatpush1.msra.mxu0 0.0
        %2627 = vmatprep.subr.mxu0 0.0
        %2628 = vmatpush1.msra.mxu0 0.0
        %2629 = vmatprep.subr.mxu0 0.0
        %2630 = vmatpush1.msra.mxu0 0.0
        %2631 = vmatprep.subr.mxu0 0.0
        %2632 = vmatpush1.msra.mxu0 0.0
        %2633 = vmatprep.subr.mxu0 0.0
        %2634 = vmatpush1.msra.mxu0 0.0
        %2635 = vmatprep.subr.mxu0 0.0
        %2636 = vmatpush1.msra.mxu0 0.0
        %2637 = vmatprep.subr.mxu0 0.0
        %2638 = vmatpush1.msra.mxu0 0.0
        %2639 = vmatprep.subr.mxu0 0.0
        %2640 = vmatpush1.msra.mxu0 0.0
        %2641 = vmatprep.subr.mxu0 0.0
        %2642 = vmatpush1.msra.mxu0 0.0
        %2643 = vmatprep.subr.mxu0 0.0
        %2644 = vmatpush1.msra.mxu0 0.0
        %2645 = vmatprep.subr.mxu0 0.0
        %2646 = vmatpush1.msra.mxu0 0.0
        %2647 = vmatprep.subr.mxu0 0.0
        %2648 = vmatpush1.msra.mxu0 0.0
        %2649 = vmatprep.subr.mxu0 0.0
        %2650 = vmatpush1.msra.mxu0 0.0
        %2651 = vmatprep.mubr.f32.mxu0 0.0
        %2652 = vmatmul.mubr.f32.gmra.mrb[0].mxu0 %v2585
        %v2653 = vpop.f32.mrb[0].mxu0
        %v2654 = vadd.f32 %v2582, %v2653
        %v2655 = vpop.f32.mrb[0].mxu0
        %2656 = vdwg.mxu0
        %v2657 = vadd.f32 %v1752, %v2654
        %s2658 = sld [smem:[#allocation15 + $0x100]]
        %s2659 = sld [smem:[#allocation15 + $0x101]]
        %v2660 = vsel %vm1678, %v2657, 0.0
        %2661 = vadd.xlane.f32.xlu0 %v2660
        %v2662 = vpop.xlane.xlu0 %2661
        %v2663 = vmul.f32 %v2662, %v1758
        %v2664 = vsub.f32 %v2657, %v2663
        %v2665 = vmul.f32 %v2664, %v2664
        %v2666 = vsel %vm1678, %v2665, 0.0
        %2667 = vadd.xlane.f32.xlu0 %v2666
        %v2668 = vpop.xlane.xlu0 %2667
        %v2669 = vmul.f32 %v2668, 0.032258064
        %v2670 = vrsqrt.pop %v2669
        %v2671 = vmul.f32 %v2669, %v2670
        %vm2672 = vcmp.eq.f32.partialorder %v2669, inf
        %v2673 = vsel %vm2672, %v2669, %v2671
        %vm2674 = vcmp.eq.f32.partialorder %v2669, 0.0
        %v2675 = vand.u32 %v2669, 2147483648
        %v2676 = vsel %vm2674, %v2675, %v2673
        %v2677 = vadd.f32 %v2676, 1e-06
        %v2678 = vrcp.pop %v2677
        %v2679 = vstv %s2658
        %v2680 = vmul.f32 %v2679, %v2664
        %v2681 = vmul.f32 %v2680, %v2678
        %v2682 = vstv %s2659
        %v2683 = vadd.f32 %v2681, %v2682
        %v2684 = vld [vmem:[#allocation14] sm:$0xff]
        %v2685 = vld [vmem:[#allocation14 + $0x8] sm:$0xff]
        %v2686 = vld [vmem:[#allocation14 + $0x10] sm:$0xff]
        %v2687 = vld [vmem:[#allocation14 + $0x18] sm:$0xff]
        %v2688 = vld [vmem:[%s15] sm:$0x1]
        %v2690 = vlaneseq
        %v2691 = vshrl.u32 %v2690, 7
        %v2692 = vsub.s32 0, %v2691
        %v2693 = vrot.slane %v2688, %v2692
        %v2696 = vsel %vm1678, %v2683, 0
        %2698 = vmatprep.subr.mxu0 0.0
        %2699 = vmatpush1.msra.mxu0 %v2684
        %2700 = vmatprep.subr.mxu0 0.0
        %2701 = vmatpush1.msra.mxu0 %v2685
        %2702 = vmatprep.subr.mxu0 0.0
        %2703 = vmatpush1.msra.mxu0 %v2686
        %2704 = vmatprep.subr.mxu0 0.0
        %2705 = vmatpush1.msra.mxu0 %v2687
        %2706 = vmatprep.subr.mxu0 0.0
        %2707 = vmatpush1.msra.mxu0 0.0
        %2708 = vmatprep.subr.mxu0 0.0
        %2709 = vmatpush1.msra.mxu0 0.0
        %2710 = vmatprep.subr.mxu0 0.0
        %2711 = vmatpush1.msra.mxu0 0.0
        %2712 = vmatprep.subr.mxu0 0.0
        %2713 = vmatpush1.msra.mxu0 0.0
        %2714 = vmatprep.subr.mxu0 0.0
        %2715 = vmatpush1.msra.mxu0 0.0
        %2716 = vmatprep.subr.mxu0 0.0
        %2717 = vmatpush1.msra.mxu0 0.0
        %2718 = vmatprep.subr.mxu0 0.0
        %2719 = vmatpush1.msra.mxu0 0.0
        %2720 = vmatprep.subr.mxu0 0.0
        %2721 = vmatpush1.msra.mxu0 0.0
        %2722 = vmatprep.subr.mxu0 0.0
        %2723 = vmatpush1.msra.mxu0 0.0
        %2724 = vmatprep.subr.mxu0 0.0
        %2725 = vmatpush1.msra.mxu0 0.0
        %2726 = vmatprep.subr.mxu0 0.0
        %2727 = vmatpush1.msra.mxu0 0.0
        %2728 = vmatprep.subr.mxu0 0.0
        %2729 = vmatpush1.msra.mxu0 0.0
        %2730 = vmatprep.subr.mxu0 0.0
        %2731 = vmatpush1.msra.mxu0 0.0
        %2732 = vmatprep.subr.mxu0 0.0
        %2733 = vmatpush1.msra.mxu0 0.0
        %2734 = vmatprep.subr.mxu0 0.0
        %2735 = vmatpush1.msra.mxu0 0.0
        %2736 = vmatprep.subr.mxu0 0.0
        %2737 = vmatpush1.msra.mxu0 0.0
        %2738 = vmatprep.subr.mxu0 0.0
        %2739 = vmatpush1.msra.mxu0 0.0
        %2740 = vmatprep.subr.mxu0 0.0
        %2741 = vmatpush1.msra.mxu0 0.0
        %2742 = vmatprep.subr.mxu0 0.0
        %2743 = vmatpush1.msra.mxu0 0.0
        %2744 = vmatprep.subr.mxu0 0.0
        %2745 = vmatpush1.msra.mxu0 0.0
        %2746 = vmatprep.subr.mxu0 0.0
        %2747 = vmatpush1.msra.mxu0 0.0
        %2748 = vmatprep.subr.mxu0 0.0
        %2749 = vmatpush1.msra.mxu0 0.0
        %2750 = vmatprep.subr.mxu0 0.0
        %2751 = vmatpush1.msra.mxu0 0.0
        %2752 = vmatprep.subr.mxu0 0.0
        %2753 = vmatpush1.msra.mxu0 0.0
        %2754 = vmatprep.subr.mxu0 0.0
        %2755 = vmatpush1.msra.mxu0 0.0
        %2756 = vmatprep.subr.mxu0 0.0
        %2757 = vmatpush1.msra.mxu0 0.0
        %2758 = vmatprep.subr.mxu0 0.0
        %2759 = vmatpush1.msra.mxu0 0.0
        %2760 = vmatprep.subr.mxu0 0.0
        %2761 = vmatpush1.msra.mxu0 0.0
        %2762 = vmatprep.mubr.f32.mxu0 0.0
        %2763 = vmatmul.mubr.f32.gmra.mrb[0].mxu0 %v2696
        %v2764 = vpop.f32.mrb[0].mxu0
        %v2765 = vadd.f32 %v2693, %v2764
        %v2766 = vpop.f32.mrb[0].mxu0
        %2767 = vdwg.mxu0
        %v2768 = vmax.f32 %v2765, 0.0
        %v2769 = vld [vmem:[%s16] sm:$0xff]
        %v2770 = vld [vmem:[%s16 + $0x8] sm:$0xff]
        %v2771 = vld [vmem:[%s16 + $0x10] sm:$0xff]
        %v2772 = vld [vmem:[%s16 + $0x18] sm:$0xff]
        %v2773 = vld [vmem:[%s16 + $0x20] sm:$0xff]
        %v2774 = vld [vmem:[%s16 + $0x28] sm:$0xff]
        %v2775 = vld [vmem:[%s16 + $0x30] sm:$0xff]
        %v2776 = vld [vmem:[%s16 + $0x38] sm:$0xff]
        %vm2777 = vcmask 523264
        %v2779 = vsel %vm2777, %v2768, 0
        %2781 = vmatprep.subr.mxu0 0.0
        %2782 = vmatpush1.msra.mxu0 %v2769
        %2783 = vmatprep.subr.mxu0 0.0
        %2784 = vmatpush1.msra.mxu0 %v2770
        %2785 = vmatprep.subr.mxu0 0.0
        %2786 = vmatpush1.msra.mxu0 %v2771
        %2787 = vmatprep.subr.mxu0 0.0
        %2788 = vmatpush1.msra.mxu0 %v2772
        %2789 = vmatprep.subr.mxu0 0.0
        %2790 = vmatpush1.msra.mxu0 %v2773
        %2791 = vmatprep.subr.mxu0 0.0
        %2792 = vmatpush1.msra.mxu0 %v2774
        %2793 = vmatprep.subr.mxu0 0.0
        %2794 = vmatpush1.msra.mxu0 %v2775
        %2795 = vmatprep.subr.mxu0 0.0
        %2796 = vmatpush1.msra.mxu0 %v2776
        %2797 = vmatprep.subr.mxu0 0.0
        %2798 = vmatpush1.msra.mxu0 0.0
        %2799 = vmatprep.subr.mxu0 0.0
        %2800 = vmatpush1.msra.mxu0 0.0
        %2801 = vmatprep.subr.mxu0 0.0
        %2802 = vmatpush1.msra.mxu0 0.0
        %2803 = vmatprep.subr.mxu0 0.0
        %2804 = vmatpush1.msra.mxu0 0.0
        %2805 = vmatprep.subr.mxu0 0.0
        %2806 = vmatpush1.msra.mxu0 0.0
        %2807 = vmatprep.subr.mxu0 0.0
        %2808 = vmatpush1.msra.mxu0 0.0
        %2809 = vmatprep.subr.mxu0 0.0
        %2810 = vmatpush1.msra.mxu0 0.0
        %2811 = vmatprep.subr.mxu0 0.0
        %2812 = vmatpush1.msra.mxu0 0.0
        %2813 = vmatprep.subr.mxu0 0.0
        %2814 = vmatpush1.msra.mxu0 0.0
        %2815 = vmatprep.subr.mxu0 0.0
        %2816 = vmatpush1.msra.mxu0 0.0
        %2817 = vmatprep.subr.mxu0 0.0
        %2818 = vmatpush1.msra.mxu0 0.0
        %2819 = vmatprep.subr.mxu0 0.0
        %2820 = vmatpush1.msra.mxu0 0.0
        %2821 = vmatprep.subr.mxu0 0.0
        %2822 = vmatpush1.msra.mxu0 0.0
        %2823 = vmatprep.subr.mxu0 0.0
        %2824 = vmatpush1.msra.mxu0 0.0
        %2825 = vmatprep.subr.mxu0 0.0
        %2826 = vmatpush1.msra.mxu0 0.0
        %2827 = vmatprep.subr.mxu0 0.0
        %2828 = vmatpush1.msra.mxu0 0.0
        %2829 = vmatprep.subr.mxu0 0.0
        %2830 = vmatpush1.msra.mxu0 0.0
        %2831 = vmatprep.subr.mxu0 0.0
        %2832 = vmatpush1.msra.mxu0 0.0
        %2833 = vmatprep.subr.mxu0 0.0
        %2834 = vmatpush1.msra.mxu0 0.0
        %2835 = vmatprep.subr.mxu0 0.0
        %2836 = vmatpush1.msra.mxu0 0.0
        %2837 = vmatprep.subr.mxu0 0.0
        %2838 = vmatpush1.msra.mxu0 0.0
        %2839 = vmatprep.subr.mxu0 0.0
        %2840 = vmatpush1.msra.mxu0 0.0
        %2841 = vmatprep.subr.mxu0 0.0
        %2842 = vmatpush1.msra.mxu0 0.0
        %2843 = vmatprep.subr.mxu0 0.0
        %2844 = vmatpush1.msra.mxu0 0.0
        %2845 = vmatprep.mubr.f32.mxu0 0.0
        %2846 = vmatmul.mubr.f32.gmra.mrb[0].mxu0 %v2779
        %v2847 = vpop.f32.mrb[0].mxu0
        %v2848 = vadd.f32 0.0, %v2847
        %v2849 = vpop.f32.mrb[0].mxu0
        %2850 = vdwg.mxu0
        %v2851 = vadd.f32 %v2657, %v2848
        %v2852 = vld [vmem:[%s17] sm:$0x1]
        %v2854 = vlaneseq
        %v2855 = vshrl.u32 %v2854, 7
        %v2856 = vsub.s32 0, %v2855
        %v2857 = vrot.slane %v2852, %v2856
        %v2859 = vadd.f32 %v2851, %v2857
        %2860 = vst.msk [vmem:[%s744] sm:$0xff] %vm1678, %v2859
        %s2861 = sand.u32 %s480, 1
        %s2862 = scalar_lea.sflag [#allocation7], %s2861
        %s2863 = sand.u32 %s480, 1
        %s2864 = smul.addr %s2863, 8
        %s2865 = scalar_lea.vmem [#allocation16], %s2864
        // Predicated region
        $region125: #{tpu_custom_call.1} parent=95 // pred_check
          %p2866 = pneg %p490
        $region126: #{tpu_custom_call.1} parent=95 // pred_check_branch
          %2868 = sbr.rel (%p2866) target = $region128
        $region127: #{tpu_custom_call.1} parent=95 // pred_region
          %s2870 = ssub.s32 128, 128
          %2871 = vsyncadd %s2862, %s2870
          %s2872 = sadd.s32 %s44, %s43
          %s2873 = smul.addr %s2872, 128
          %s2874 = scalar_lea.hbm %s19, %s2873
          %s2876 = sshll.u32 %s2865, 4
          %s2877 = int_to_ptr.vmem [resolvable:$true] %s2876
          %2879 = dma.vmem_to_hbm [thread:$0]  %s2877, 128, %s2874, %s2862
        $region128: #{tpu_custom_call.1} parent=95 // pred_fallthru
          _
      $region96: #{tpu_custom_call.1} parent=5 // pred_fallthru
        _
      %p2880 = scmp.le.s32.totalorder 2, %s34
      // Predicated region
      $region129: #{tpu_custom_call.1} parent=5 // pred_check
        %p2881 = pneg %p2880
      $region130: #{tpu_custom_call.1} parent=5 // pred_check_branch
        %2883 = sbr.rel (%p2881) target = $region132
      $region131: #{tpu_custom_call.1} parent=5 // pred_region
        %s2884 = ssub.s32 %s34, 2
        // Predicated region
        $region133: #{tpu_custom_call.1} parent=131 // pred_check
          %p2885 = pneg %p496
        $region134: #{tpu_custom_call.1} parent=131 // pred_check_branch
          %2887 = sbr.rel (%p2885) target = $region136
        $region135: #{tpu_custom_call.1} parent=131 // pred_region
          %s2888 = sand.u32 %s481, 1
          %s2889 = scalar_lea.sflag [#allocation7], %s2888
          %s2890 = sand.u32 %s481, 1
          %s2891 = smul.addr %s2890, 8
          %s2892 = scalar_lea.vmem [#allocation16], %s2891
          %2893 = dma.done %s2889, 128
        $region136: #{tpu_custom_call.1} parent=131 // pred_fallthru
          _
      $region132: #{tpu_custom_call.1} parent=5 // pred_fallthru
        _
    $region6: #{tpu_custom_call.1} parent=1 // loop_footer
      %s38 = sadd.s32 1, %s34
    $region7: #{tpu_custom_call.1} parent=1 // loop_footer_branch
      %33 = sbr.rel target = $region3
    $region8: #{tpu_custom_call.1} parent=1 // loop_exit
      _
    %2894 = vsyncpa [#allocation6], 1
    %s2895 = scalar_lea.sflag [#allocation6], 1
    %2896 = vsyncpa %s2895, 1
    %2897 = vsyncpa [#allocation10], 1
    %2898 = vsyncpa [#allocation13], 1
    %2899 = vsyncpa [#allocation7], 1
    %s2900 = scalar_lea.sflag [#allocation7], 1
    %2901 = vsyncpa %s2900, 1
    %2902 = vsyncpa [#allocation8], 1
    %s2903 = scalar_lea.sflag [#allocation8], 1
    %2904 = vsyncpa %s2903, 1

// kernel: tpu_custom_call.1
$region0: #{tpu_custom_call.1}
  #allocation0 [shape = 'u32[]', space=smem, size = 0x4, offset = 0x4, fixed_abs, tag = 'smem constant byte address 0x4 - core index']
  #allocation1 [shape = 'u32[144,128]{1,0:T(1,128)}', space=vmem, size = 0x12000, scoped, tag = 'internal scratch']
  #allocation2 [shape = 'f32[8,32]{1,0:T(8,128)}', space=vmem, size = 0x1000, scoped, tag = 'scratch operand']
  #allocation3 [shape = 'f32[8,64]{1,0:T(8,128)}', space=vmem, size = 0x1000, scoped, tag = 'scratch operand']
  #allocation4 [shape = 'f32[16,64]{1,0:T(8,128)}', space=vmem, size = 0x2000, scoped, tag = 'scratch operand']
  %s0 = inlined_call_operand.hbm [shape: f32[2,8,32], index: 0, kind: input, shape index: {}]
  %s1 = inlined_call_operand.vmem [shape: f32[2,16,32], index: 1, kind: input, shape index: {}]
  %s2 = inlined_call_operand.vmem [shape: f32[8,8], index: 2, kind: input, shape index: {}]
  %s3 = inlined_call_operand.vmem [shape: f32[8,16], index: 3, kind: input, shape index: {}]
  %s4 = inlined_call_operand.vmem [shape: f32[32,96], index: 4, kind: input, shape index: {}]
  %s5 = inlined_call_operand.vmem [shape: f32[1,96], index: 5, kind: input, shape index: {}]
  %s6 = inlined_call_operand.vmem [shape: f32[32,32], index: 6, kind: input, shape index: {}]
  %s7 = inlined_call_operand.vmem [shape: f32[1,32], index: 7, kind: input, shape index: {}]
  %s8 = inlined_call_operand.hbm [shape: f32[32,32], index: 8, kind: input, shape index: {}]
  %s9 = inlined_call_operand.vmem [shape: f32[1,32], index: 9, kind: input, shape index: {}]
  %s10 = inlined_call_operand.hbm [shape: f32[32,64], index: 10, kind: input, shape index: {}]
  %s11 = inlined_call_operand.vmem [shape: f32[1,64], index: 11, kind: input, shape index: {}]
  %s12 = inlined_call_operand.hbm [shape: f32[32,32], index: 12, kind: input, shape index: {}]
  %s13 = inlined_call_operand.vmem [shape: f32[1,32], index: 13, kind: input, shape index: {}]
  %s14 = inlined_call_operand.hbm [shape: f32[32,64], index: 14, kind: input, shape index: {}]
  %s15 = inlined_call_operand.vmem [shape: f32[1,64], index: 15, kind: input, shape index: {}]
  %s16 = inlined_call_operand.vmem [shape: f32[64,32], index: 16, kind: input, shape index: {}]
  %s17 = inlined_call_operand.vmem [shape: f32[1,32], index: 17, kind: input, shape index: {}]
  %s18 = inlined_call_operand.vmem [shape: f32[3,2], index: 18, kind: input, shape index: {}]
  %s19 = inlined_call_operand.hbm [shape: f32[2,8,32], index: 19, kind: output, shape index: {}]
  %s20 = sld [smem:[#allocation0]]
  $region137: #{tpu_custom_call.1} parent=0
    _
  %s22 = ssub.s32 1, %s20
  %s23 = scalar_select 0, %s22, %s20
  $region1: #{tpu_custom_call.1} parent=0
    #allocation5 [shape = 'u8[8192]{0}', space=vmem, size = 0x2000, scoped, tag = 'input window, operand 0']
    #allocation6 [shape = 's32[2]{0}', space=sflag, size = 0x8, scoped, tag = 'scoped memory for tpu_custom_call.1']
    #allocation7 [shape = 's32[2]{0}', space=sflag, size = 0x8, scoped, tag = 'scoped memory for tpu_custom_call.1']
    #allocation8 [shape = 's32[2]{0}', space=sflag, size = 0x8, scoped, tag = 'scoped memory for tpu_custom_call.1']
    #allocation9 [shape = 'u8[16384]{0}', space=vmem, size = 0x4000, scoped, tag = 'input window, operand 8, single buffered']
    #allocation10 [shape = 's32[1]{0}', space=sflag, size = 0x4, scoped, tag = 'scoped memory for tpu_custom_call.1']
    #allocation11 [shape = 'u8[16384]{0}', space=vmem, size = 0x4000, scoped, tag = 'input window, operand 10, single buffered']
    #allocation12 [shape = 'u8[16384]{0}', space=vmem, size = 0x4000, scoped, tag = 'input window, operand 12, single buffered']
    #allocation13 [shape = 's32[1]{0}', space=sflag, size = 0x4, scoped, tag = 'scoped memory for tpu_custom_call.1']
    #allocation14 [shape = 'u8[16384]{0}', space=vmem, size = 0x4000, scoped, tag = 'input window, operand 14, single buffered']
    #allocation15 [shape = 'u8[2048]{0}', space=smem, size = 0x800, scoped, tag = 'input window, operand 18, single buffered']
    #allocation16 [shape = 'u8[8192]{0}', space=vmem, size = 0x2000, scoped, tag = 'output window, operand 0']
    %24 = vsyncpa [#allocation6], 0
    %s25 = scalar_lea.sflag [#allocation6], 1
    %26 = vsyncpa %s25, 0
    %27 = vsyncpa [#allocation10], 0
    %28 = vsyncpa [#allocation13], 0
    %29 = vsyncpa [#allocation8], 0
    %30 = vsyncpa [#allocation7], 0
    %s31 = scalar_lea.sflag [#allocation7], 1
    %32 = vsyncpa %s31, 0
    loop: start=0, step=1, limit=4
    $region2: #{tpu_custom_call.1} parent=1 // loop_pre_header
      _
    $region3: #{tpu_custom_call.1} parent=1 // loop_header
      %s34 = sphi 0, %s38
      %p35 = scmp.ge.s32.totalorder %s34, 4
      %s41 = sphi 0, %s53
      %s42 = sphi 0, %s49
      %s43 = sphi 0, %s41
      %s44 = sphi 0, %s42
      %s45 = sphi 0, %s43
      %s46 = sphi 0, %s44
      %s56 = sphi 0, %s58
      %s59 = sphi 0, %s56
      %s60 = sphi 0, %s59
      %s76 = sphi 0, %s60
      %s82 = sphi 0, %s84
      %s85 = sphi 0, %s82
      %s86 = sphi 0, %s85
      %s102 = sphi 0, %s86
      %s108 = sphi 0, %s110
      %s111 = sphi 0, %s108
      %s112 = sphi 0, %s111
      %s128 = sphi 0, %s112
      %s134 = sphi 0, %s136
      %s137 = sphi 0, %s134
      %s138 = sphi 0, %s137
      %s154 = sphi 0, %s138
      %s158 = sphi 0, %s158
      %s160 = sphi 0, %s158
      %s161 = sphi 0, %s160
      %s175 = sphi 0, %s161
      %s179 = sphi 0, %s179
      %s181 = sphi 0, %s179
      %s182 = sphi 0, %s181
      %s196 = sphi 0, %s182
      %s200 = sphi 0, %s200
      %s202 = sphi 0, %s200
      %s203 = sphi 0, %s202
      %s217 = sphi 0, %s203
      %s221 = sphi 0, %s221
      %s223 = sphi 0, %s221
      %s224 = sphi 0, %s223
      %s238 = sphi 0, %s224
      %s242 = sphi 0, %s242
      %s244 = sphi 0, %s242
      %s245 = sphi 0, %s244
      %s259 = sphi 0, %s245
      %s263 = sphi 0, %s263
      %s265 = sphi 0, %s263
      %s266 = sphi 0, %s265
      %s280 = sphi 0, %s266
      %s284 = sphi 0, %s284
      %s286 = sphi 0, %s284
      %s287 = sphi 0, %s286
      %s301 = sphi 0, %s287
      %s305 = sphi 0, %s305
      %s307 = sphi 0, %s305
      %s308 = sphi 0, %s307
      %s322 = sphi 0, %s308
      %s326 = sphi 0, %s326
      %s328 = sphi 0, %s326
      %s329 = sphi 0, %s328
      %s343 = sphi 0, %s329
      %s347 = sphi 0, %s347
      %s349 = sphi 0, %s347
      %s350 = sphi 0, %s349
      %s364 = sphi 0, %s350
      %s368 = sphi 0, %s368
      %s370 = sphi 0, %s368
      %s371 = sphi 0, %s370
      %s385 = sphi 0, %s371
      %s389 = sphi 0, %s389
      %s391 = sphi 0, %s389
      %s392 = sphi 0, %s391
      %s406 = sphi 0, %s392
      %s410 = sphi 0, %s410
      %s412 = sphi 0, %s410
      %s413 = sphi 0, %s412
      %s427 = sphi 0, %s413
      %s431 = sphi 0, %s431
      %s433 = sphi 0, %s431
      %s434 = sphi 0, %s433
      %s448 = sphi 0, %s434
      %s452 = sphi 0, %s452
      %s454 = sphi 0, %s452
      %s455 = sphi 0, %s454
      %s469 = sphi 0, %s455
      %s477 = sphi 0, %s479
      %s480 = sphi 0, %s477
      %s481 = sphi 0, %s480
      %s497 = sphi 0, %s481
    $region4: #{tpu_custom_call.1} parent=1 // loop_header_branch
      %37 = sbr.rel (%p35) target = $region8
    $region5: #{tpu_custom_call.1} parent=1 // loop_body
      %s39 = ssub.s32 %s34, 1
      %s40 = ssub.s32 %s34, 2
      %s47 = sadd.s32 1, %s42
      %p48 = scmp.ge.s32.totalorder %s47, 1
      %s49 = scalar_select %p48, 0, %s47
      %s50 = sadd.s32 1, %s41
      %s51 = scalar_select %p48, %s50, %s41
      %p52 = scmp.ge.s32.totalorder %s51, 2
      %s53 = scalar_select %p52, 0, %s51
      %s54 = ssub.s32 %s41, %s53
      %p55 = scmp.eq.s32.totalorder %s54, 0
      %s57 = sadd.s32 %s56, 1
      %s58 = scalar_select %p55, %s56, %s57
      %p61 = pneg %p55
      %p62 = scmp.eq.s32.totalorder %s34, 1
      %p63 = por %p61, %p62
      %p64 = scmp.ne.s32.totalorder %s56, %s59
      %p65 = scmp.eq.s32.totalorder %s34, 0
      %p66 = por %p64, %p65
      %p67 = scmp.ne.s32.totalorder %s56, %s59
      %p68 = scmp.eq.s32.totalorder %s39, 1
      %p69 = por %p67, %p68
      %p70 = scmp.ne.s32.totalorder %s59, %s60
      %p71 = scmp.eq.s32.totalorder %s39, 0
      %p72 = por %p70, %p71
      %p73 = scmp.ne.s32.totalorder %s59, %s60
      %p74 = scmp.eq.s32.totalorder %s40, 1
      %p75 = por %p73, %p74
      %p77 = scmp.ne.s32.totalorder %s60, %s76
      %p78 = scmp.eq.s32.totalorder %s40, 0
      %p79 = por %p77, %p78
      %s80 = ssub.s32 %s41, %s53
      %p81 = scmp.eq.s32.totalorder %s80, 0
      %s83 = sadd.s32 %s82, 1
      %s84 = scalar_select %p81, %s82, %s83
      %p87 = pneg %p81
      %p88 = scmp.eq.s32.totalorder %s34, 1
      %p89 = por %p87, %p88
      %p90 = scmp.ne.s32.totalorder %s82, %s85
      %p91 = scmp.eq.s32.totalorder %s34, 0
      %p92 = por %p90, %p91
      %p93 = scmp.ne.s32.totalorder %s82, %s85
      %p94 = scmp.eq.s32.totalorder %s39, 1
      %p95 = por %p93, %p94
      %p96 = scmp.ne.s32.totalorder %s85, %s86
      %p97 = scmp.eq.s32.totalorder %s39, 0
      %p98 = por %p96, %p97
      %p99 = scmp.ne.s32.totalorder %s85, %s86
      %p100 = scmp.eq.s32.totalorder %s40, 1
      %p101 = por %p99, %p100
      %p103 = scmp.ne.s32.totalorder %s86, %s102
      %p104 = scmp.eq.s32.totalorder %s40, 0
      %p105 = por %p103, %p104
      %s106 = ssub.s32 %s42, %s49
      %p107 = scmp.eq.s32.totalorder %s106, 0
      %s109 = sadd.s32 %s108, 1
      %s110 = scalar_select %p107, %s108, %s109
      %p113 = pneg %p107
      %p114 = scmp.eq.s32.totalorder %s34, 1
      %p115 = por %p113, %p114
      %p116 = scmp.ne.s32.totalorder %s108, %s111
      %p117 = scmp.eq.s32.totalorder %s34, 0
      %p118 = por %p116, %p117
      %p119 = scmp.ne.s32.totalorder %s108, %s111
      %p120 = scmp.eq.s32.totalorder %s39, 1
      %p121 = por %p119, %p120
      %p122 = scmp.ne.s32.totalorder %s111, %s112
      %p123 = scmp.eq.s32.totalorder %s39, 0
      %p124 = por %p122, %p123
      %p125 = scmp.ne.s32.totalorder %s111, %s112
      %p126 = scmp.eq.s32.totalorder %s40, 1
      %p127 = por %p125, %p126
      %p129 = scmp.ne.s32.totalorder %s112, %s128
      %p130 = scmp.eq.s32.totalorder %s40, 0
      %p131 = por %p129, %p130
      %s132 = ssub.s32 %s42, %s49
      %p133 = scmp.eq.s32.totalorder %s132, 0
      %s135 = sadd.s32 %s134, 1
      %s136 = scalar_select %p133, %s134, %s135
      %p139 = pneg %p133
      %p140 = scmp.eq.s32.totalorder %s34, 1
      %p141 = por %p139, %p140
      %p142 = scmp.ne.s32.totalorder %s134, %s137
      %p143 = scmp.eq.s32.totalorder %s34, 0
      %p144 = por %p142, %p143
      %p145 = scmp.ne.s32.totalorder %s134, %s137
      %p146 = scmp.eq.s32.totalorder %s39, 1
      %p147 = por %p145, %p146
      %p148 = scmp.ne.s32.totalorder %s137, %s138
      %p149 = scmp.eq.s32.totalorder %s39, 0
      %p150 = por %p148, %p149
      %p151 = scmp.ne.s32.totalorder %s137, %s138
      %p152 = scmp.eq.s32.totalorder %s40, 1
      %p153 = por %p151, %p152
      %p155 = scmp.ne.s32.totalorder %s138, %s154
      %p156 = scmp.eq.s32.totalorder %s40, 0
      %p157 = por %p155, %p156
      %s159 = sadd.s32 %s158, 1
      %p162 = scmp.eq.s32.totalorder %s34, 1
      %p163 = scmp.ne.s32.totalorder %s158, %s160
      %p164 = scmp.eq.s32.totalorder %s34, 0
      %p165 = por %p163, %p164
      %p166 = scmp.ne.s32.totalorder %s158, %s160
      %p167 = scmp.eq.s32.totalorder %s39, 1
      %p168 = por %p166, %p167
      %p169 = scmp.ne.s32.totalorder %s160, %s161
      %p170 = scmp.eq.s32.totalorder %s39, 0
      %p171 = por %p169, %p170
      %p172 = scmp.ne.s32.totalorder %s160, %s161
      %p173 = scmp.eq.s32.totalorder %s40, 1
      %p174 = por %p172, %p173
      %p176 = scmp.ne.s32.totalorder %s161, %s175
      %p177 = scmp.eq.s32.totalorder %s40, 0
      %p178 = por %p176, %p177
      %s180 = sadd.s32 %s179, 1
      %p183 = scmp.eq.s32.totalorder %s34, 1
      %p184 = scmp.ne.s32.totalorder %s179, %s181
      %p185 = scmp.eq.s32.totalorder %s34, 0
      %p186 = por %p184, %p185
      %p187 = scmp.ne.s32.totalorder %s179, %s181
      %p188 = scmp.eq.s32.totalorder %s39, 1
      %p189 = por %p187, %p188
      %p190 = scmp.ne.s32.totalorder %s181, %s182
      %p191 = scmp.eq.s32.totalorder %s39, 0
      %p192 = por %p190, %p191
      %p193 = scmp.ne.s32.totalorder %s181, %s182
      %p194 = scmp.eq.s32.totalorder %s40, 1
      %p195 = por %p193, %p194
      %p197 = scmp.ne.s32.totalorder %s182, %s196
      %p198 = scmp.eq.s32.totalorder %s40, 0
      %p199 = por %p197, %p198
      %s201 = sadd.s32 %s200, 1
      %p204 = scmp.eq.s32.totalorder %s34, 1
      %p205 = scmp.ne.s32.totalorder %s200, %s202
      %p206 = scmp.eq.s32.totalorder %s34, 0
      %p207 = por %p205, %p206
      %p208 = scmp.ne.s32.totalorder %s200, %s202
      %p209 = scmp.eq.s32.totalorder %s39, 1
      %p210 = por %p208, %p209
      %p211 = scmp.ne.s32.totalorder %s202, %s203
      %p212 = scmp.eq.s32.totalorder %s39, 0
      %p213 = por %p211, %p212
      %p214 = scmp.ne.s32.totalorder %s202, %s203
      %p215 = scmp.eq.s32.totalorder %s40, 1
      %p216 = por %p214, %p215
      %p218 = scmp.ne.s32.totalorder %s203, %s217
      %p219 = scmp.eq.s32.totalorder %s40, 0
      %p220 = por %p218, %p219
      %s222 = sadd.s32 %s221, 1
      %p225 = scmp.eq.s32.totalorder %s34, 1
      %p226 = scmp.ne.s32.totalorder %s221, %s223
      %p227 = scmp.eq.s32.totalorder %s34, 0
      %p228 = por %p226, %p227
      %p229 = scmp.ne.s32.totalorder %s221, %s223
      %p230 = scmp.eq.s32.totalorder %s39, 1
      %p231 = por %p229, %p230
      %p232 = scmp.ne.s32.totalorder %s223, %s224
      %p233 = scmp.eq.s32.totalorder %s39, 0
      %p234 = por %p232, %p233
      %p235 = scmp.ne.s32.totalorder %s223, %s224
      %p236 = scmp.eq.s32.totalorder %s40, 1
      %p237 = por %p235, %p236
      %p239 = scmp.ne.s32.totalorder %s224, %s238
      %p240 = scmp.eq.s32.totalorder %s40, 0
      %p241 = por %p239, %p240
      %s243 = sadd.s32 %s242, 1
      %p246 = scmp.eq.s32.totalorder %s34, 1
      %p247 = scmp.ne.s32.totalorder %s242, %s244
      %p248 = scmp.eq.s32.totalorder %s34, 0
      %p249 = por %p247, %p248
      %p250 = scmp.ne.s32.totalorder %s242, %s244
      %p251 = scmp.eq.s32.totalorder %s39, 1
      %p252 = por %p250, %p251
      %p253 = scmp.ne.s32.totalorder %s244, %s245
      %p254 = scmp.eq.s32.totalorder %s39, 0
      %p255 = por %p253, %p254
      %p256 = scmp.ne.s32.totalorder %s244, %s245
      %p257 = scmp.eq.s32.totalorder %s40, 1
      %p258 = por %p256, %p257
      %p260 = scmp.ne.s32.totalorder %s245, %s259
      %p261 = scmp.eq.s32.totalorder %s40, 0
      %p262 = por %p260, %p261
      %s264 = sadd.s32 %s263, 1
      %p267 = scmp.eq.s32.totalorder %s34, 1
      %p268 = scmp.ne.s32.totalorder %s263, %s265
      %p269 = scmp.eq.s32.totalorder %s34, 0
      %p270 = por %p268, %p269
      %p271 = scmp.ne.s32.totalorder %s263, %s265
      %p272 = scmp.eq.s32.totalorder %s39, 1
      %p273 = por %p271, %p272
      %p274 = scmp.ne.s32.totalorder %s265, %s266
      %p275 = scmp.eq.s32.totalorder %s39, 0
      %p276 = por %p274, %p275
      %p277 = scmp.ne.s32.totalorder %s265, %s266
      %p278 = scmp.eq.s32.totalorder %s40, 1
      %p279 = por %p277, %p278
      %p281 = scmp.ne.s32.totalorder %s266, %s280
      %p282 = scmp.eq.s32.totalorder %s40, 0
      %p283 = por %p281, %p282
      %s285 = sadd.s32 %s284, 1
      %p288 = scmp.eq.s32.totalorder %s34, 1
      %p289 = scmp.ne.s32.totalorder %s284, %s286
      %p290 = scmp.eq.s32.totalorder %s34, 0
      %p291 = por %p289, %p290
      %p292 = scmp.ne.s32.totalorder %s284, %s286
      %p293 = scmp.eq.s32.totalorder %s39, 1
      %p294 = por %p292, %p293
      %p295 = scmp.ne.s32.totalorder %s286, %s287
      %p296 = scmp.eq.s32.totalorder %s39, 0
      %p297 = por %p295, %p296
      %p298 = scmp.ne.s32.totalorder %s286, %s287
      %p299 = scmp.eq.s32.totalorder %s40, 1
      %p300 = por %p298, %p299
      %p302 = scmp.ne.s32.totalorder %s287, %s301
      %p303 = scmp.eq.s32.totalorder %s40, 0
      %p304 = por %p302, %p303
      %s306 = sadd.s32 %s305, 1
      %p309 = scmp.eq.s32.totalorder %s34, 1
      %p310 = scmp.ne.s32.totalorder %s305, %s307
      %p311 = scmp.eq.s32.totalorder %s34, 0
      %p312 = por %p310, %p311
      %p313 = scmp.ne.s32.totalorder %s305, %s307
      %p314 = scmp.eq.s32.totalorder %s39, 1
      %p315 = por %p313, %p314
      %p316 = scmp.ne.s32.totalorder %s307, %s308
      %p317 = scmp.eq.s32.totalorder %s39, 0
      %p318 = por %p316, %p317
      %p319 = scmp.ne.s32.totalorder %s307, %s308
      %p320 = scmp.eq.s32.totalorder %s40, 1
      %p321 = por %p319, %p320
      %p323 = scmp.ne.s32.totalorder %s308, %s322
      %p324 = scmp.eq.s32.totalorder %s40, 0
      %p325 = por %p323, %p324
      %s327 = sadd.s32 %s326, 1
      %p330 = scmp.eq.s32.totalorder %s34, 1
      %p331 = scmp.ne.s32.totalorder %s326, %s328
      %p332 = scmp.eq.s32.totalorder %s34, 0
      %p333 = por %p331, %p332
      %p334 = scmp.ne.s32.totalorder %s326, %s328
      %p335 = scmp.eq.s32.totalorder %s39, 1
      %p336 = por %p334, %p335
      %p337 = scmp.ne.s32.totalorder %s328, %s329
      %p338 = scmp.eq.s32.totalorder %s39, 0
      %p339 = por %p337, %p338
      %p340 = scmp.ne.s32.totalorder %s328, %s329
      %p341 = scmp.eq.s32.totalorder %s40, 1
      %p342 = por %p340, %p341
      %p344 = scmp.ne.s32.totalorder %s329, %s343
      %p345 = scmp.eq.s32.totalorder %s40, 0
      %p346 = por %p344, %p345
      %s348 = sadd.s32 %s347, 1
      %p351 = scmp.eq.s32.totalorder %s34, 1
      %p352 = scmp.ne.s32.totalorder %s347, %s349
      %p353 = scmp.eq.s32.totalorder %s34, 0
      %p354 = por %p352, %p353
      %p355 = scmp.ne.s32.totalorder %s347, %s349
      %p356 = scmp.eq.s32.totalorder %s39, 1
      %p357 = por %p355, %p356
      %p358 = scmp.ne.s32.totalorder %s349, %s350
      %p359 = scmp.eq.s32.totalorder %s39, 0
      %p360 = por %p358, %p359
      %p361 = scmp.ne.s32.totalorder %s349, %s350
      %p362 = scmp.eq.s32.totalorder %s40, 1
      %p363 = por %p361, %p362
      %p365 = scmp.ne.s32.totalorder %s350, %s364
      %p366 = scmp.eq.s32.totalorder %s40, 0
      %p367 = por %p365, %p366
      %s369 = sadd.s32 %s368, 1
      %p372 = scmp.eq.s32.totalorder %s34, 1
      %p373 = scmp.ne.s32.totalorder %s368, %s370
      %p374 = scmp.eq.s32.totalorder %s34, 0
      %p375 = por %p373, %p374
      %p376 = scmp.ne.s32.totalorder %s368, %s370
      %p377 = scmp.eq.s32.totalorder %s39, 1
      %p378 = por %p376, %p377
      %p379 = scmp.ne.s32.totalorder %s370, %s371
      %p380 = scmp.eq.s32.totalorder %s39, 0
      %p381 = por %p379, %p380
      %p382 = scmp.ne.s32.totalorder %s370, %s371
      %p383 = scmp.eq.s32.totalorder %s40, 1
      %p384 = por %p382, %p383
      %p386 = scmp.ne.s32.totalorder %s371, %s385
      %p387 = scmp.eq.s32.totalorder %s40, 0
      %p388 = por %p386, %p387
      %s390 = sadd.s32 %s389, 1
      %p393 = scmp.eq.s32.totalorder %s34, 1
      %p394 = scmp.ne.s32.totalorder %s389, %s391
      %p395 = scmp.eq.s32.totalorder %s34, 0
      %p396 = por %p394, %p395
      %p397 = scmp.ne.s32.totalorder %s389, %s391
      %p398 = scmp.eq.s32.totalorder %s39, 1
      %p399 = por %p397, %p398
      %p400 = scmp.ne.s32.totalorder %s391, %s392
      %p401 = scmp.eq.s32.totalorder %s39, 0
      %p402 = por %p400, %p401
      %p403 = scmp.ne.s32.totalorder %s391, %s392
      %p404 = scmp.eq.s32.totalorder %s40, 1
      %p405 = por %p403, %p404
      %p407 = scmp.ne.s32.totalorder %s392, %s406
      %p408 = scmp.eq.s32.totalorder %s40, 0
      %p409 = por %p407, %p408
      %s411 = sadd.s32 %s410, 1
      %p414 = scmp.eq.s32.totalorder %s34, 1
      %p415 = scmp.ne.s32.totalorder %s410, %s412
      %p416 = scmp.eq.s32.totalorder %s34, 0
      %p417 = por %p415, %p416
      %p418 = scmp.ne.s32.totalorder %s410, %s412
      %p419 = scmp.eq.s32.totalorder %s39, 1
      %p420 = por %p418, %p419
      %p421 = scmp.ne.s32.totalorder %s412, %s413
      %p422 = scmp.eq.s32.totalorder %s39, 0
      %p423 = por %p421, %p422
      %p424 = scmp.ne.s32.totalorder %s412, %s413
      %p425 = scmp.eq.s32.totalorder %s40, 1
      %p426 = por %p424, %p425
      %p428 = scmp.ne.s32.totalorder %s413, %s427
      %p429 = scmp.eq.s32.totalorder %s40, 0
      %p430 = por %p428, %p429
      %s432 = sadd.s32 %s431, 1
      %p435 = scmp.eq.s32.totalorder %s34, 1
      %p436 = scmp.ne.s32.totalorder %s431, %s433
      %p437 = scmp.eq.s32.totalorder %s34, 0
      %p438 = por %p436, %p437
      %p439 = scmp.ne.s32.totalorder %s431, %s433
      %p440 = scmp.eq.s32.totalorder %s39, 1
      %p441 = por %p439, %p440
      %p442 = scmp.ne.s32.totalorder %s433, %s434
      %p443 = scmp.eq.s32.totalorder %s39, 0
      %p444 = por %p442, %p443
      %p445 = scmp.ne.s32.totalorder %s433, %s434
      %p446 = scmp.eq.s32.totalorder %s40, 1
      %p447 = por %p445, %p446
      %p449 = scmp.ne.s32.totalorder %s434, %s448
      %p450 = scmp.eq.s32.totalorder %s40, 0
      %p451 = por %p449, %p450
      %s453 = sadd.s32 %s452, 1
      %p456 = scmp.eq.s32.totalorder %s34, 1
      %p457 = scmp.ne.s32.totalorder %s452, %s454
      %p458 = scmp.eq.s32.totalorder %s34, 0
      %p459 = por %p457, %p458
      %p460 = scmp.ne.s32.totalorder %s452, %s454
      %p461 = scmp.eq.s32.totalorder %s39, 1
      %p462 = por %p460, %p461
      %p463 = scmp.ne.s32.totalorder %s454, %s455
      %p464 = scmp.eq.s32.totalorder %s39, 0
      %p465 = por %p463, %p464
      %p466 = scmp.ne.s32.totalorder %s454, %s455
      %p467 = scmp.eq.s32.totalorder %s40, 1
      %p468 = por %p466, %p467
      %p470 = scmp.ne.s32.totalorder %s455, %s469
      %p471 = scmp.eq.s32.totalorder %s40, 0
      %p472 = por %p470, %p471
      %s473 = ssub.s32 %s41, %s53
      %s474 = ssub.s32 %s42, %s49
      %s475 = sor.u32 %s473, %s474
      %p476 = scmp.eq.s32.totalorder %s475, 0
      %s478 = sadd.s32 %s477, 1
      %s479 = scalar_select %p476, %s477, %s478
      %p482 = pneg %p476
      %p483 = scmp.eq.s32.totalorder %s34, 1
      %p484 = por %p482, %p483
      %p485 = scmp.ne.s32.totalorder %s477, %s480
      %p486 = scmp.eq.s32.totalorder %s34, 0
      %p487 = por %p485, %p486
      %p488 = scmp.ne.s32.totalorder %s477, %s480
      %p489 = scmp.eq.s32.totalorder %s39, 1
      %p490 = por %p488, %p489
      %p491 = scmp.ne.s32.totalorder %s480, %s481
      %p492 = scmp.eq.s32.totalorder %s39, 0
      %p493 = por %p491, %p492
      %p494 = scmp.ne.s32.totalorder %s480, %s481
      %p495 = scmp.eq.s32.totalorder %s40, 1
      %p496 = por %p494, %p495
      %p498 = scmp.ne.s32.totalorder %s481, %s497
      %p499 = scmp.eq.s32.totalorder %s40, 0
      %p500 = por %p498, %p499
      %p501 = scmp.le.s32.totalorder 1, %s34
      %p502 = scmp.lt.s32.totalorder %s34, 3
      %p503 = pnand %p501, %p502
      %p504 = pneg %p503
      // Predicated region
      $region9: #{tpu_custom_call.1} parent=5 // pred_check
        _
      $region10: #{tpu_custom_call.1} parent=5 // pred_check_branch
        %506 = sbr.rel (%p503) target = $region12
      $region11: #{tpu_custom_call.1} parent=5 // pred_region
        %s507 = ssub.s32 %s34, 1
        // Predicated region
        $region13: #{tpu_custom_call.1} parent=11 // pred_check
          %p508 = pneg %p124
        $region14: #{tpu_custom_call.1} parent=11 // pred_check_branch
          %510 = sbr.rel (%p508) target = $region16
        $region15: #{tpu_custom_call.1} parent=11 // pred_region
          %p511 = scmp.lt.s32.totalorder %s44, 0
          %s512 = scalar_select %p511, %s44, 0
          %s513 = smul.addr %s512, 8
          %s514 = scalar_lea.vmem %s2, %s513
        $region16: #{tpu_custom_call.1} parent=11 // pred_fallthru
          _
        // Predicated region
        $region17: #{tpu_custom_call.1} parent=11 // pred_check
          %p515 = pneg %p150
        $region18: #{tpu_custom_call.1} parent=11 // pred_check_branch
          %517 = sbr.rel (%p515) target = $region20
        $region19: #{tpu_custom_call.1} parent=11 // pred_region
          %p518 = scmp.lt.s32.totalorder %s44, 0
          %s519 = scalar_select %p518, %s44, 0
          %s520 = smul.addr %s519, 8
          %s521 = scalar_lea.vmem %s3, %s520
        $region20: #{tpu_custom_call.1} parent=11 // pred_fallthru
          _
        // Predicated region
        $region21: #{tpu_custom_call.1} parent=11 // pred_check
          %p522 = pneg %p171
        $region22: #{tpu_custom_call.1} parent=11 // pred_check_branch
          %524 = sbr.rel (%p522) target = $region24
        $region23: #{tpu_custom_call.1} parent=11 // pred_region
          _
        $region24: #{tpu_custom_call.1} parent=11 // pred_fallthru
          _
        // Predicated region
        $region25: #{tpu_custom_call.1} parent=11 // pred_check
          %p525 = pneg %p192
        $region26: #{tpu_custom_call.1} parent=11 // pred_check_branch
          %527 = sbr.rel (%p525) target = $region28
        $region27: #{tpu_custom_call.1} parent=11 // pred_region
          _
        $region28: #{tpu_custom_call.1} parent=11 // pred_fallthru
          _
        // Predicated region
        $region29: #{tpu_custom_call.1} parent=11 // pred_check
          %p528 = pneg %p213
        $region30: #{tpu_custom_call.1} parent=11 // pred_check_branch
          %530 = sbr.rel (%p528) target = $region32
        $region31: #{tpu_custom_call.1} parent=11 // pred_region
          _
        $region32: #{tpu_custom_call.1} parent=11 // pred_fallthru
          _
        // Predicated region
        $region33: #{tpu_custom_call.1} parent=11 // pred_check
          %p531 = pneg %p234
        $region34: #{tpu_custom_call.1} parent=11 // pred_check_branch
          %533 = sbr.rel (%p531) target = $region36
        $region35: #{tpu_custom_call.1} parent=11 // pred_region
          _
        $region36: #{tpu_custom_call.1} parent=11 // pred_fallthru
          _
        // Predicated region
        $region37: #{tpu_custom_call.1} parent=11 // pred_check
          %p534 = pneg %p255
        $region38: #{tpu_custom_call.1} parent=11 // pred_check_branch
          %536 = sbr.rel (%p534) target = $region40
        $region39: #{tpu_custom_call.1} parent=11 // pred_region
          %s538 = ssub.s32 512, 512
          %539 = vsyncadd [#allocation10], %s538
          %s540 = sshll.u32 [#allocation9], 4
          %s541 = int_to_ptr.vmem [resolvable:$true] %s540
          %546 = dma.hbm_to_vmem [thread:$0]  %s8, 512, %s541, [#allocation10], 128, 128, 8
        $region40: #{tpu_custom_call.1} parent=11 // pred_fallthru
          _
        // Predicated region
        $region41: #{tpu_custom_call.1} parent=11 // pred_check
          %p547 = pneg %p276
        $region42: #{tpu_custom_call.1} parent=11 // pred_check_branch
          %549 = sbr.rel (%p547) target = $region44
        $region43: #{tpu_custom_call.1} parent=11 // pred_region
          _
        $region44: #{tpu_custom_call.1} parent=11 // pred_fallthru
          _
        // Predicated region
        $region45: #{tpu_custom_call.1} parent=11 // pred_check
          %p550 = pneg %p297
        $region46: #{tpu_custom_call.1} parent=11 // pred_check_branch
          %552 = sbr.rel (%p550) target = $region48
        $region47: #{tpu_custom_call.1} parent=11 // pred_region
          %s554 = ssub.s32 512, 512
          %555 = vsyncadd [#allocation10], %s554
          %s556 = sshll.u32 [#allocation11], 4
          %s557 = int_to_ptr.vmem [resolvable:$true] %s556
          %562 = dma.hbm_to_vmem [thread:$0]  %s10, 512, %s557, [#allocation10], 128, 128, 8
        $region48: #{tpu_custom_call.1} parent=11 // pred_fallthru
          _
        // Predicated region
        $region49: #{tpu_custom_call.1} parent=11 // pred_check
          %p563 = pneg %p318
        $region50: #{tpu_custom_call.1} parent=11 // pred_check_branch
          %565 = sbr.rel (%p563) target = $region52
        $region51: #{tpu_custom_call.1} parent=11 // pred_region
          _
        $region52: #{tpu_custom_call.1} parent=11 // pred_fallthru
          _
        // Predicated region
        $region53: #{tpu_custom_call.1} parent=11 // pred_check
          %p566 = pneg %p339
        $region54: #{tpu_custom_call.1} parent=11 // pred_check_branch
          %568 = sbr.rel (%p566) target = $region56
        $region55: #{tpu_custom_call.1} parent=11 // pred_region
          %s570 = ssub.s32 512, 512
          %571 = vsyncadd [#allocation13], %s570
          %s572 = sshll.u32 [#allocation12], 4
          %s573 = int_to_ptr.vmem [resolvable:$true] %s572
          %578 = dma.hbm_to_vmem [thread:$0]  %s12, 512, %s573, [#allocation13], 128, 128, 8
        $region56: #{tpu_custom_call.1} parent=11 // pred_fallthru
          _
        // Predicated region
        $region57: #{tpu_custom_call.1} parent=11 // pred_check
          %p579 = pneg %p360
        $region58: #{tpu_custom_call.1} parent=11 // pred_check_branch
          %581 = sbr.rel (%p579) target = $region60
        $region59: #{tpu_custom_call.1} parent=11 // pred_region
          _
        $region60: #{tpu_custom_call.1} parent=11 // pred_fallthru
          _
        // Predicated region
        $region61: #{tpu_custom_call.1} parent=11 // pred_check
          %p582 = pneg %p381
        $region62: #{tpu_custom_call.1} parent=11 // pred_check_branch
          %584 = sbr.rel (%p582) target = $region64
        $region63: #{tpu_custom_call.1} parent=11 // pred_region
          %s586 = ssub.s32 512, 512
          %587 = vsyncadd [#allocation13], %s586
          %s588 = sshll.u32 [#allocation14], 4
          %s589 = int_to_ptr.vmem [resolvable:$true] %s588
          %594 = dma.hbm_to_vmem [thread:$0]  %s14, 512, %s589, [#allocation13], 128, 128, 8
        $region64: #{tpu_custom_call.1} parent=11 // pred_fallthru
          _
        // Predicated region
        $region65: #{tpu_custom_call.1} parent=11 // pred_check
          %p595 = pneg %p402
        $region66: #{tpu_custom_call.1} parent=11 // pred_check_branch
          %597 = sbr.rel (%p595) target = $region68
        $region67: #{tpu_custom_call.1} parent=11 // pred_region
          _
        $region68: #{tpu_custom_call.1} parent=11 // pred_fallthru
          _
        // Predicated region
        $region69: #{tpu_custom_call.1} parent=11 // pred_check
          %p598 = pneg %p423
        $region70: #{tpu_custom_call.1} parent=11 // pred_check_branch
          %600 = sbr.rel (%p598) target = $region72
        $region71: #{tpu_custom_call.1} parent=11 // pred_region
          _
        $region72: #{tpu_custom_call.1} parent=11 // pred_fallthru
          _
        // Predicated region
        $region73: #{tpu_custom_call.1} parent=11 // pred_check
          %p601 = pneg %p444
        $region74: #{tpu_custom_call.1} parent=11 // pred_check_branch
          %603 = sbr.rel (%p601) target = $region76
        $region75: #{tpu_custom_call.1} parent=11 // pred_region
          _
        $region76: #{tpu_custom_call.1} parent=11 // pred_fallthru
          _
        // Predicated region
        $region77: #{tpu_custom_call.1} parent=11 // pred_check
          %p604 = pneg %p465
        $region78: #{tpu_custom_call.1} parent=11 // pred_check_branch
          %606 = sbr.rel (%p604) target = $region80
        $region79: #{tpu_custom_call.1} parent=11 // pred_region
          %s608 = ssub.s32 64, 64
          %609 = vsyncadd [#allocation8], %s608
          %s611 = sshll.u32 %s18, 4
          %s612 = int_to_ptr.vmem [resolvable:$true] %s611
          %614 = dma.vmem_to_smem %s612, 64, [#allocation15], [#allocation8]
        $region80: #{tpu_custom_call.1} parent=11 // pred_fallthru
          _
      $region12: #{tpu_custom_call.1} parent=5 // pred_fallthru
        _
      %p615 = scmp.lt.s32.totalorder %s34, 2
      // Predicated region
      $region81: #{tpu_custom_call.1} parent=5 // pred_check
        %p616 = pneg %p615
      $region82: #{tpu_custom_call.1} parent=5 // pred_check_branch
        %618 = sbr.rel (%p616) target = $region84
      $region83: #{tpu_custom_call.1} parent=5 // pred_region
        // Predicated region
        $region85: #{tpu_custom_call.1} parent=83 // pred_check
          %p619 = pneg %p66
        $region86: #{tpu_custom_call.1} parent=83 // pred_check_branch
          %621 = sbr.rel (%p619) target = $region88
        $region87: #{tpu_custom_call.1} parent=83 // pred_region
          %s622 = sand.u32 %s56, 1
          %s623 = scalar_lea.sflag [#allocation6], %s622
          %s624 = sand.u32 %s56, 1
          %s625 = smul.addr %s624, 8
          %s626 = scalar_lea.vmem [#allocation5], %s625
          %s628 = ssub.s32 128, 128
          %629 = vsyncadd %s623, %s628
          %s630 = smul.addr %s41, 128
          %s631 = scalar_lea.hbm %s0, %s630
          %s633 = sshll.u32 %s626, 4
          %s634 = int_to_ptr.vmem [resolvable:$true] %s633
          %636 = dma.hbm_to_vmem [thread:$0]  %s631, 128, %s634, %s623
        $region88: #{tpu_custom_call.1} parent=83 // pred_fallthru
          _
        // Predicated region
        $region89: #{tpu_custom_call.1} parent=83 // pred_check
          %p637 = pneg %p92
        $region90: #{tpu_custom_call.1} parent=83 // pred_check_branch
          %639 = sbr.rel (%p637) target = $region92
        $region91: #{tpu_custom_call.1} parent=83 // pred_region
          %p640 = scmp.lt.s32.totalorder %s41, 1
          %s641 = scalar_select %p640, %s41, 1
          %s642 = smul.addr %s641, 2
          %s643 = smul.addr %s642, 8
          %s644 = scalar_lea.vmem %s1, %s643
        $region92: #{tpu_custom_call.1} parent=83 // pred_fallthru
          _
      $region84: #{tpu_custom_call.1} parent=5 // pred_fallthru
        _
      %p645 = scmp.le.s32.totalorder 1, %s34
      %p646 = scmp.lt.s32.totalorder %s34, 3
      %p647 = pnand %p645, %p646
      %p648 = pneg %p647
      // Predicated region
      $region93: #{tpu_custom_call.1} parent=5 // pred_check
        _
      $region94: #{tpu_custom_call.1} parent=5 // pred_check_branch
        %650 = sbr.rel (%p647) target = $region96
      $region95: #{tpu_custom_call.1} parent=5 // pred_region
        %s651 = ssub.s32 %s34, 1
        %s652 = sand.u32 %s59, 1
        %s653 = scalar_lea.sflag [#allocation6], %s652
        %s654 = sand.u32 %s59, 1
        %s655 = smul.addr %s654, 8
        %s656 = scalar_lea.vmem [#allocation5], %s655
        // Predicated region
        $region97: #{tpu_custom_call.1} parent=95 // pred_check
          %p657 = pneg %p72
        $region98: #{tpu_custom_call.1} parent=95 // pred_check_branch
          %659 = sbr.rel (%p657) target = $region100
        $region99: #{tpu_custom_call.1} parent=95 // pred_region
          %660 = dma.done %s653, 128
        $region100: #{tpu_custom_call.1} parent=95 // pred_fallthru
          _
        // Predicated region
        $region101: #{tpu_custom_call.1} parent=95 // pred_check
          %p661 = pneg %p255
        $region102: #{tpu_custom_call.1} parent=95 // pred_check_branch
          %663 = sbr.rel (%p661) target = $region104
        $region103: #{tpu_custom_call.1} parent=95 // pred_region
          %664 = dma.done [#allocation10], 512
        $region104: #{tpu_custom_call.1} parent=95 // pred_fallthru
          _
        // Predicated region
        $region105: #{tpu_custom_call.1} parent=95 // pred_check
          %p665 = pneg %p297
        $region106: #{tpu_custom_call.1} parent=95 // pred_check_branch
          %667 = sbr.rel (%p665) target = $region108
        $region107: #{tpu_custom_call.1} parent=95 // pred_region
          %668 = dma.done [#allocation10], 512
        $region108: #{tpu_custom_call.1} parent=95 // pred_fallthru
          _
        // Predicated region
        $region109: #{tpu_custom_call.1} parent=95 // pred_check
          %p669 = pneg %p339
        $region110: #{tpu_custom_call.1} parent=95 // pred_check_branch
          %671 = sbr.rel (%p669) target = $region112
        $region111: #{tpu_custom_call.1} parent=95 // pred_region
          %672 = dma.done [#allocation13], 512
        $region112: #{tpu_custom_call.1} parent=95 // pred_fallthru
          _
        // Predicated region
        $region113: #{tpu_custom_call.1} parent=95 // pred_check
          %p673 = pneg %p381
        $region114: #{tpu_custom_call.1} parent=95 // pred_check_branch
          %675 = sbr.rel (%p673) target = $region116
        $region115: #{tpu_custom_call.1} parent=95 // pred_region
          %676 = dma.done [#allocation13], 512
        $region116: #{tpu_custom_call.1} parent=95 // pred_fallthru
          _
        // Predicated region
        $region117: #{tpu_custom_call.1} parent=95 // pred_check
          %p677 = pneg %p465
        $region118: #{tpu_custom_call.1} parent=95 // pred_check_branch
          %679 = sbr.rel (%p677) target = $region120
        $region119: #{tpu_custom_call.1} parent=95 // pred_region
          %680 = dma.done [#allocation8], 64
        $region120: #{tpu_custom_call.1} parent=95 // pred_fallthru
          _
        %681 = sfence
        %s682 = sand.u32 %s59, 1
        %s683 = scalar_lea.sflag [#allocation6], %s682
        %s684 = sand.u32 %s59, 1
        %s685 = smul.addr %s684, 8
        %s686 = scalar_lea.vmem [#allocation5], %s685
        %p687 = pneg %p72
        %p688 = pneg %p69
        %p689 = scmp.lt.s32.totalorder %s43, 1
        %s690 = scalar_select %p689, %s43, 1
        %s691 = smul.addr %s690, 2
        %s692 = smul.addr %s691, 8
        %s693 = scalar_lea.vmem %s1, %s692
        %p694 = pneg %p98
        %p695 = pneg %p95
        %p696 = scmp.lt.s32.totalorder %s44, 0
        %s697 = scalar_select %p696, %s44, 0
        %s698 = smul.addr %s697, 8
        %s699 = scalar_lea.vmem %s2, %s698
        %p700 = pneg %p124
        %p701 = pneg %p121
        %p702 = scmp.lt.s32.totalorder %s44, 0
        %s703 = scalar_select %p702, %s44, 0
        %s704 = smul.addr %s703, 8
        %s705 = scalar_lea.vmem %s3, %s704
        %p706 = pneg %p150
        %p707 = pneg %p147
        %p708 = pneg %p171
        %p709 = pneg %p168
        %p710 = pneg %p192
        %p711 = pneg %p189
        %p712 = pneg %p213
        %p713 = pneg %p210
        %p714 = pneg %p234
        %p715 = pneg %p231
        %p716 = pneg %p255
        %p717 = pneg %p252
        %p718 = pneg %p276
        %p719 = pneg %p273
        %p720 = pneg %p297
        %p721 = pneg %p294
        %p722 = pneg %p318
        %p723 = pneg %p315
        %p724 = pneg %p339
        %p725 = pneg %p336
        %p726 = pneg %p360
        %p727 = pneg %p357
        %p728 = pneg %p381
        %p729 = pneg %p378
        %p730 = pneg %p402
        %p731 = pneg %p399
        %p732 = pneg %p423
        %p733 = pneg %p420
        %p734 = pneg %p444
        %p735 = pneg %p441
        %p736 = pneg %p465
        %p737 = pneg %p462
        %p738 = pneg %p493
        %p739 = pneg %p490
        %s740 = sand.u32 %s480, 1
        %s741 = scalar_lea.sflag [#allocation7], %s740
        %s742 = sand.u32 %s480, 1
        %s743 = smul.addr %s742, 8
        %s744 = scalar_lea.vmem [#allocation16], %s743
        %p745 = scmp.lt.s32.totalorder %s43, 1
        %s746 = scalar_select %p745, %s43, 1
        %s747 = smul.addr %s746, 2
        %s748 = smul.addr %s747, 8
        %s749 = scalar_lea.vmem %s1, %s748
        %p750 = scmp.lt.s32.totalorder %s44, 0
        %s751 = scalar_select %p750, %s44, 0
        %s752 = smul.addr %s751, 8
        %s753 = scalar_lea.vmem %s2, %s752
        %p754 = scmp.lt.s32.totalorder %s44, 0
        %s755 = scalar_select %p754, %s44, 0
        %s756 = smul.addr %s755, 8
        %s757 = scalar_lea.vmem %s3, %s756
        %p758 = scmp.eq.s32.totalorder %s44, 0
        // Predicated region
        $region121: #{tpu_custom_call.1} parent=95 // pred_check
          %p759 = pneg %p758
        $region122: #{tpu_custom_call.1} parent=95 // pred_check_branch
          %761 = sbr.rel (%p759) target = $region124
        $region123: #{tpu_custom_call.1} parent=95 // pred_region
          %v762 = vld [vmem:[%s656] sm:$0xff]
          %s763 = sld [smem:[#allocation15]]
          %s764 = sld [smem:[#allocation15 + $0x1]]
          %vm765 = vcmask 261120
          %v766 = vsel %vm765, %v762, 0.0
          %767 = vadd.xlane.f32.xlu0 %v766
          %v768 = vpop.xlane.xlu0 %767
          %v769 = vrcp.pop 32.0
          %v770 = vmul.f32 %v768, %v769
          %v771 = vsub.f32 %v762, %v770
          %v772 = vmul.f32 %v771, %v771
          %v773 = vsel %vm765, %v772, 0.0
          %774 = vadd.xlane.f32.xlu0 %v773
          %v775 = vpop.xlane.xlu0 %774
          %v776 = vmul.f32 %v775, 0.032258064
          %v777 = vrsqrt.pop %v776
          %v778 = vmul.f32 %v776, %v777
          %vm779 = vcmp.eq.f32.partialorder %v776, inf
          %v780 = vsel %vm779, %v776, %v778
          %vm781 = vcmp.eq.f32.partialorder %v776, 0.0
          %v782 = vand.u32 %v776, 2147483648
          %v783 = vsel %vm781, %v782, %v780
          %v784 = vadd.f32 %v783, 1e-06
          %v785 = vrcp.pop %v784
          %v786 = vstv %s763
          %v787 = vmul.f32 %v786, %v771
          %v788 = vmul.f32 %v787, %v785
          %v789 = vstv %s764
          %v790 = vadd.f32 %v788, %v789
          %v791 = vld [vmem:[%s4] sm:$0xff]
          %v792 = vld [vmem:[%s4 + $0x8] sm:$0xff]
          %v793 = vld [vmem:[%s4 + $0x10] sm:$0xff]
          %v794 = vld [vmem:[%s4 + $0x18] sm:$0xff]
          %v795 = vld [vmem:[%s5] sm:$0x1]
          %v797 = vlaneseq
          %v798 = vshrl.u32 %v797, 7
          %v799 = vsub.s32 0, %v798
          %v800 = vrot.slane %v795, %v799
          %v803 = vsel %vm765, %v790, 0
          %805 = vmatprep.subr.mxu0 0.0
          %806 = vmatpush1.msra.mxu0 %v791
          %807 = vmatprep.subr.mxu0 0.0
          %808 = vmatpush1.msra.mxu0 %v792
          %809 = vmatprep.subr.mxu0 0.0
          %810 = vmatpush1.msra.mxu0 %v793
          %811 = vmatprep.subr.mxu0 0.0
          %812 = vmatpush1.msra.mxu0 %v794
          %813 = vmatprep.subr.mxu0 0.0
          %814 = vmatpush1.msra.mxu0 0.0
          %815 = vmatprep.subr.mxu0 0.0
          %816 = vmatpush1.msra.mxu0 0.0
          %817 = vmatprep.subr.mxu0 0.0
          %818 = vmatpush1.msra.mxu0 0.0
          %819 = vmatprep.subr.mxu0 0.0
          %820 = vmatpush1.msra.mxu0 0.0
          %821 = vmatprep.subr.mxu0 0.0
          %822 = vmatpush1.msra.mxu0 0.0
          %823 = vmatprep.subr.mxu0 0.0
          %824 = vmatpush1.msra.mxu0 0.0
          %825 = vmatprep.subr.mxu0 0.0
          %826 = vmatpush1.msra.mxu0 0.0
          %827 = vmatprep.subr.mxu0 0.0
          %828 = vmatpush1.msra.mxu0 0.0
          %829 = vmatprep.subr.mxu0 0.0
          %830 = vmatpush1.msra.mxu0 0.0
          %831 = vmatprep.subr.mxu0 0.0
          %832 = vmatpush1.msra.mxu0 0.0
          %833 = vmatprep.subr.mxu0 0.0
          %834 = vmatpush1.msra.mxu0 0.0
          %835 = vmatprep.subr.mxu0 0.0
          %836 = vmatpush1.msra.mxu0 0.0
          %837 = vmatprep.subr.mxu0 0.0
          %838 = vmatpush1.msra.mxu0 0.0
          %839 = vmatprep.subr.mxu0 0.0
          %840 = vmatpush1.msra.mxu0 0.0
          %841 = vmatprep.subr.mxu0 0.0
          %842 = vmatpush1.msra.mxu0 0.0
          %843 = vmatprep.subr.mxu0 0.0
          %844 = vmatpush1.msra.mxu0 0.0
          %845 = vmatprep.subr.mxu0 0.0
          %846 = vmatpush1.msra.mxu0 0.0
          %847 = vmatprep.subr.mxu0 0.0
          %848 = vmatpush1.msra.mxu0 0.0
          %849 = vmatprep.subr.mxu0 0.0
          %850 = vmatpush1.msra.mxu0 0.0
          %851 = vmatprep.subr.mxu0 0.0
          %852 = vmatpush1.msra.mxu0 0.0
          %853 = vmatprep.subr.mxu0 0.0
          %854 = vmatpush1.msra.mxu0 0.0
          %855 = vmatprep.subr.mxu0 0.0
          %856 = vmatpush1.msra.mxu0 0.0
          %857 = vmatprep.subr.mxu0 0.0
          %858 = vmatpush1.msra.mxu0 0.0
          %859 = vmatprep.subr.mxu0 0.0
          %860 = vmatpush1.msra.mxu0 0.0
          %861 = vmatprep.subr.mxu0 0.0
          %862 = vmatpush1.msra.mxu0 0.0
          %863 = vmatprep.subr.mxu0 0.0
          %864 = vmatpush1.msra.mxu0 0.0
          %865 = vmatprep.subr.mxu0 0.0
          %866 = vmatpush1.msra.mxu0 0.0
          %867 = vmatprep.subr.mxu0 0.0
          %868 = vmatpush1.msra.mxu0 0.0
          %869 = vmatprep.mubr.f32.mxu0 0.0
          %870 = vmatmul.mubr.f32.gmra.mrb[0].mxu0 %v803
          %v871 = vpop.f32.mrb[0].mxu0
          %v872 = vadd.f32 %v800, %v871
          %v873 = vpop.f32.mrb[0].mxu0
          %874 = vdwg.mxu0
          %875 = vst.msk [vmem:[#allocation2] sm:$0xff] %vm765, %v872
          %877 = vrot.lane.b32.xlu0 %v872, 96
          %v878 = vpop.permute.xlu0 %877
          %vm880 = vcmask 523264
          %881 = vst.msk [vmem:[#allocation3] sm:$0xff] %vm880, %v878
          %v882 = vld [vmem:[%s749] sm:$0xff]
          %v883 = vld [vmem:[%s749 + $0x8] sm:$0xff]
          %v884 = vld [vmem:[#allocation11] sm:$0xff]
          %v885 = vld [vmem:[#allocation11 + $0x8] sm:$0xff]
          %v886 = vld [vmem:[#allocation11 + $0x10] sm:$0xff]
          %v887 = vld [vmem:[#allocation11 + $0x18] sm:$0xff]
          %v888 = vld [vmem:[%s11] sm:$0x1]
          %v890 = vlaneseq
          %v891 = vshrl.u32 %v890, 7
          %v892 = vsub.s32 0, %v891
          %v893 = vrot.slane %v888, %v892
          %v896 = vsel %vm765, %v882, 0
          %v899 = vsel %vm765, %v883, 0
          %901 = vmatprep.subr.mxu0 0.0
          %902 = vmatpush1.msra.mxu0 %v884
          %903 = vmatprep.subr.mxu0 0.0
          %904 = vmatpush1.msra.mxu0 %v885
          %905 = vmatprep.subr.mxu0 0.0
          %906 = vmatpush1.msra.mxu0 %v886
          %907 = vmatprep.subr.mxu0 0.0
          %908 = vmatpush1.msra.mxu0 %v887
          %909 = vmatprep.subr.mxu0 0.0
          %910 = vmatpush1.msra.mxu0 0.0
          %911 = vmatprep.subr.mxu0 0.0
          %912 = vmatpush1.msra.mxu0 0.0
          %913 = vmatprep.subr.mxu0 0.0
          %914 = vmatpush1.msra.mxu0 0.0
          %915 = vmatprep.subr.mxu0 0.0
          %916 = vmatpush1.msra.mxu0 0.0
          %917 = vmatprep.subr.mxu0 0.0
          %918 = vmatpush1.msra.mxu0 0.0
          %919 = vmatprep.subr.mxu0 0.0
          %920 = vmatpush1.msra.mxu0 0.0
          %921 = vmatprep.subr.mxu0 0.0
          %922 = vmatpush1.msra.mxu0 0.0
          %923 = vmatprep.subr.mxu0 0.0
          %924 = vmatpush1.msra.mxu0 0.0
          %925 = vmatprep.subr.mxu0 0.0
          %926 = vmatpush1.msra.mxu0 0.0
          %927 = vmatprep.subr.mxu0 0.0
          %928 = vmatpush1.msra.mxu0 0.0
          %929 = vmatprep.subr.mxu0 0.0
          %930 = vmatpush1.msra.mxu0 0.0
          %931 = vmatprep.subr.mxu0 0.0
          %932 = vmatpush1.msra.mxu0 0.0
          %933 = vmatprep.subr.mxu0 0.0
          %934 = vmatpush1.msra.mxu0 0.0
          %935 = vmatprep.subr.mxu0 0.0
          %936 = vmatpush1.msra.mxu0 0.0
          %937 = vmatprep.subr.mxu0 0.0
          %938 = vmatpush1.msra.mxu0 0.0
          %939 = vmatprep.subr.mxu0 0.0
          %940 = vmatpush1.msra.mxu0 0.0
          %941 = vmatprep.subr.mxu0 0.0
          %942 = vmatpush1.msra.mxu0 0.0
          %943 = vmatprep.subr.mxu0 0.0
          %944 = vmatpush1.msra.mxu0 0.0
          %945 = vmatprep.subr.mxu0 0.0
          %946 = vmatpush1.msra.mxu0 0.0
          %947 = vmatprep.subr.mxu0 0.0
          %948 = vmatpush1.msra.mxu0 0.0
          %949 = vmatprep.subr.mxu0 0.0
          %950 = vmatpush1.msra.mxu0 0.0
          %951 = vmatprep.subr.mxu0 0.0
          %952 = vmatpush1.msra.mxu0 0.0
          %953 = vmatprep.subr.mxu0 0.0
          %954 = vmatpush1.msra.mxu0 0.0
          %955 = vmatprep.subr.mxu0 0.0
          %956 = vmatpush1.msra.mxu0 0.0
          %957 = vmatprep.subr.mxu0 0.0
          %958 = vmatpush1.msra.mxu0 0.0
          %959 = vmatprep.subr.mxu0 0.0
          %960 = vmatpush1.msra.mxu0 0.0
          %961 = vmatprep.subr.mxu0 0.0
          %962 = vmatpush1.msra.mxu0 0.0
          %963 = vmatprep.subr.mxu0 0.0
          %964 = vmatpush1.msra.mxu0 0.0
          %965 = vmatprep.mubr.f32.mxu0 0.0
          %966 = vmatmul.mubr.f32.gmra.mrb[0].mxu0 %v896
          %v967 = vpop.f32.mrb[0].mxu0
          %v968 = vadd.f32 %v893, %v967
          %v969 = vpop.f32.mrb[0].mxu0
          %970 = vmatprep.mubr.f32.mxu0 0.0
          %971 = vmatmul.mubr.f32.gmra.mrb[0].mxu0 %v899
          %v972 = vpop.f32.mrb[0].mxu0
          %v973 = vadd.f32 %v893, %v972
          %v974 = vpop.f32.mrb[0].mxu0
          %975 = vdwg.mxu0
          %976 = vst.msk [vmem:[#allocation4] sm:$0xff] %vm880, %v968
          %977 = vst.msk [vmem:[#allocation4 + $0x8] sm:$0xff] %vm880, %v973
        $region124: #{tpu_custom_call.1} parent=95 // pred_fallthru
          _
        %s978 = smul.u32 %s44, 8
        %s979 = scalar_lea.vmem %s656, %s978 [#allocation5]
        %v980 = vld [vmem:[%s979] sm:$0xff]
        %s981 = scalar_lea.vmem [#allocation2], %s978
        %v982 = vld [vmem:[%s981] sm:$0xff]
        %v983 = vld [vmem:[%s753] sm:$0xff]
        %vm984 = vcmp.eq.f32.partialorder %v983, 0.0
        %v985 = vmul.f32 %v982, 0.35355338
        %v986 = vld [vmem:[#allocation3] sm:$0xff]
        %vm987 = vcmask 64512
        %v989 = vsel %vm987, %v985, 0
        %v992 = vsel %vm987, %v986, 0
        %994 = vmatprep.subr.mxu0 0.0
        %995 = vmatpush1.xpose.msra.mxu0 %v992
        %996 = vmatprep.subr.mxu0 0.0
        %997 = vmatpush1.xpose.msra.mxu0 0.0
        %998 = vmatprep.subr.mxu0 0.0
        %999 = vmatpush1.xpose.msra.mxu0 0.0
        %1000 = vmatprep.subr.mxu0 0.0
        %1001 = vmatpush1.xpose.msra.mxu0 0.0
        %1002 = vmatprep.subr.mxu0 0.0
        %1003 = vmatpush1.xpose.msra.mxu0 0.0
        %1004 = vmatprep.subr.mxu0 0.0
        %1005 = vmatpush1.xpose.msra.mxu0 0.0
        %1006 = vmatprep.subr.mxu0 0.0
        %1007 = vmatpush1.xpose.msra.mxu0 0.0
        %1008 = vmatprep.subr.mxu0 0.0
        %1009 = vmatpush1.xpose.msra.mxu0 0.0
        %1010 = vmatprep.subr.mxu0 0.0
        %1011 = vmatpush1.xpose.msra.mxu0 0.0
        %1012 = vmatprep.subr.mxu0 0.0
        %1013 = vmatpush1.xpose.msra.mxu0 0.0
        %1014 = vmatprep.subr.mxu0 0.0
        %1015 = vmatpush1.xpose.msra.mxu0 0.0
        %1016 = vmatprep.subr.mxu0 0.0
        %1017 = vmatpush1.xpose.msra.mxu0 0.0
        %1018 = vmatprep.subr.mxu0 0.0
        %1019 = vmatpush1.xpose.msra.mxu0 0.0
        %1020 = vmatprep.subr.mxu0 0.0
        %1021 = vmatpush1.xpose.msra.mxu0 0.0
        %1022 = vmatprep.subr.mxu0 0.0
        %1023 = vmatpush1.xpose.msra.mxu0 0.0
        %1024 = vmatprep.subr.mxu0 0.0
        %1025 = vmatpush1.xpose.msra.mxu0 0.0
        %1026 = vmatprep.subr.mxu0 0.0
        %1027 = vmatpush1.xpose.msra.mxu0 0.0
        %1028 = vmatprep.subr.mxu0 0.0
        %1029 = vmatpush1.xpose.msra.mxu0 0.0
        %1030 = vmatprep.subr.mxu0 0.0
        %1031 = vmatpush1.xpose.msra.mxu0 0.0
        %1032 = vmatprep.subr.mxu0 0.0
        %1033 = vmatpush1.xpose.msra.mxu0 0.0
        %1034 = vmatprep.subr.mxu0 0.0
        %1035 = vmatpush1.xpose.msra.mxu0 0.0
        %1036 = vmatprep.subr.mxu0 0.0
        %1037 = vmatpush1.xpose.msra.mxu0 0.0
        %1038 = vmatprep.subr.mxu0 0.0
        %1039 = vmatpush1.xpose.msra.mxu0 0.0
        %1040 = vmatprep.subr.mxu0 0.0
        %1041 = vmatpush1.xpose.msra.mxu0 0.0
        %1042 = vmatprep.subr.mxu0 0.0
        %1043 = vmatpush1.xpose.msra.mxu0 0.0
        %1044 = vmatprep.subr.mxu0 0.0
        %1045 = vmatpush1.xpose.msra.mxu0 0.0
        %1046 = vmatprep.subr.mxu0 0.0
        %1047 = vmatpush1.xpose.msra.mxu0 0.0
        %1048 = vmatprep.subr.mxu0 0.0
        %1049 = vmatpush1.xpose.msra.mxu0 0.0
        %1050 = vmatprep.subr.mxu0 0.0
        %1051 = vmatpush1.xpose.msra.mxu0 0.0
        %1052 = vmatprep.subr.mxu0 0.0
        %1053 = vmatpush1.xpose.msra.mxu0 0.0
        %1054 = vmatprep.subr.mxu0 0.0
        %1055 = vmatpush1.xpose.msra.mxu0 0.0
        %1056 = vmatprep.subr.mxu0 0.0
        %1057 = vmatpush1.xpose.msra.mxu0 0.0
        %1058 = vmatprep.mubr.f32.mxu0 0.0
        %1059 = vmatmul.mubr.f32.gmra.mrb[0].mxu0 %v989
        %v1060 = vpop.f32.mrb[0].mxu0
        %v1061 = vadd.f32 0.0, %v1060
        %v1062 = vpop.f32.mrb[0].mxu0
        %1063 = vdwg.mxu0
        %v1064 = vsel %vm984, -1e+09, %v1061
        %v1065 = vsel %vm987, %v1064, -inf
        %1066 = vmax.xlane.f32.xlu0 %v1065
        %v1067 = vpop.xlane.xlu0 %1066
        %v1068 = vsub.f32 %v1064, %v1067
        %v1069 = vmul.f32 %v1068, 1.442695
        %v1070 = vpow.pop %v1069
        %v1071 = vsel %vm987, %v1070, 0.0
        %1072 = vadd.xlane.f32.xlu0 %v1071
        %v1073 = vpop.xlane.xlu0 %1072
        %v1074 = vrcp.pop %v1073
        %v1075 = vmul.f32 %v1070, %v1074
        %1076 = vrot.lane.b32.xlu0 %v986, 96
        %v1077 = vpop.permute.xlu0 %1076
        %v1080 = vsel %vm987, %v1075, 0
        %1082 = vmatprep.subr.mxu0 0.0
        %1083 = vmatpush1.msra.mxu0 %v1077
        %1084 = vmatprep.subr.mxu0 0.0
        %1085 = vmatpush1.msra.mxu0 0.0
        %1086 = vmatprep.subr.mxu0 0.0
        %1087 = vmatpush1.msra.mxu0 0.0
        %1088 = vmatprep.subr.mxu0 0.0
        %1089 = vmatpush1.msra.mxu0 0.0
        %1090 = vmatprep.subr.mxu0 0.0
        %1091 = vmatpush1.msra.mxu0 0.0
        %1092 = vmatprep.subr.mxu0 0.0
        %1093 = vmatpush1.msra.mxu0 0.0
        %1094 = vmatprep.subr.mxu0 0.0
        %1095 = vmatpush1.msra.mxu0 0.0
        %1096 = vmatprep.subr.mxu0 0.0
        %1097 = vmatpush1.msra.mxu0 0.0
        %1098 = vmatprep.subr.mxu0 0.0
        %1099 = vmatpush1.msra.mxu0 0.0
        %1100 = vmatprep.subr.mxu0 0.0
        %1101 = vmatpush1.msra.mxu0 0.0
        %1102 = vmatprep.subr.mxu0 0.0
        %1103 = vmatpush1.msra.mxu0 0.0
        %1104 = vmatprep.subr.mxu0 0.0
        %1105 = vmatpush1.msra.mxu0 0.0
        %1106 = vmatprep.subr.mxu0 0.0
        %1107 = vmatpush1.msra.mxu0 0.0
        %1108 = vmatprep.subr.mxu0 0.0
        %1109 = vmatpush1.msra.mxu0 0.0
        %1110 = vmatprep.subr.mxu0 0.0
        %1111 = vmatpush1.msra.mxu0 0.0
        %1112 = vmatprep.subr.mxu0 0.0
        %1113 = vmatpush1.msra.mxu0 0.0
        %1114 = vmatprep.subr.mxu0 0.0
        %1115 = vmatpush1.msra.mxu0 0.0
        %1116 = vmatprep.subr.mxu0 0.0
        %1117 = vmatpush1.msra.mxu0 0.0
        %1118 = vmatprep.subr.mxu0 0.0
        %1119 = vmatpush1.msra.mxu0 0.0
        %1120 = vmatprep.subr.mxu0 0.0
        %1121 = vmatpush1.msra.mxu0 0.0
        %1122 = vmatprep.subr.mxu0 0.0
        %1123 = vmatpush1.msra.mxu0 0.0
        %1124 = vmatprep.subr.mxu0 0.0
        %1125 = vmatpush1.msra.mxu0 0.0
        %1126 = vmatprep.subr.mxu0 0.0
        %1127 = vmatpush1.msra.mxu0 0.0
        %1128 = vmatprep.subr.mxu0 0.0
        %1129 = vmatpush1.msra.mxu0 0.0
        %1130 = vmatprep.subr.mxu0 0.0
        %1131 = vmatpush1.msra.mxu0 0.0
        %1132 = vmatprep.subr.mxu0 0.0
        %1133 = vmatpush1.msra.mxu0 0.0
        %1134 = vmatprep.subr.mxu0 0.0
        %1135 = vmatpush1.msra.mxu0 0.0
        %1136 = vmatprep.subr.mxu0 0.0
        %1137 = vmatpush1.msra.mxu0 0.0
        %1138 = vmatprep.subr.mxu0 0.0
        %1139 = vmatpush1.msra.mxu0 0.0
        %1140 = vmatprep.subr.mxu0 0.0
        %1141 = vmatpush1.msra.mxu0 0.0
        %1142 = vmatprep.subr.mxu0 0.0
        %1143 = vmatpush1.msra.mxu0 0.0
        %1144 = vmatprep.subr.mxu0 0.0
        %1145 = vmatpush1.msra.mxu0 0.0
        %1146 = vmatprep.mubr.f32.mxu0 0.0
        %1147 = vmatmul.mubr.f32.gmra.mrb[0].mxu0 %v1080
        %v1148 = vpop.f32.mrb[0].mxu0
        %v1149 = vadd.f32 0.0, %v1148
        %v1150 = vpop.f32.mrb[0].mxu0
        %1151 = vdwg.mxu0
        %1152 = vrot.lane.b32.xlu0 %v985, 120
        %v1153 = vpop.permute.xlu0 %1152
        %1154 = vrot.lane.b32.xlu0 %v986, 120
        %v1155 = vpop.permute.xlu0 %1154
        %v1156 = vsel %vm987, %v1153, 0
        %v1158 = vsel %vm987, %v1155, 0
        %1160 = vmatprep.subr.mxu0 0.0
        %1161 = vmatpush1.xpose.msra.mxu0 %v1158
        %1162 = vmatprep.subr.mxu0 0.0
        %1163 = vmatpush1.xpose.msra.mxu0 0.0
        %1164 = vmatprep.subr.mxu0 0.0
        %1165 = vmatpush1.xpose.msra.mxu0 0.0
        %1166 = vmatprep.subr.mxu0 0.0
        %1167 = vmatpush1.xpose.msra.mxu0 0.0
        %1168 = vmatprep.subr.mxu0 0.0
        %1169 = vmatpush1.xpose.msra.mxu0 0.0
        %1170 = vmatprep.subr.mxu0 0.0
        %1171 = vmatpush1.xpose.msra.mxu0 0.0
        %1172 = vmatprep.subr.mxu0 0.0
        %1173 = vmatpush1.xpose.msra.mxu0 0.0
        %1174 = vmatprep.subr.mxu0 0.0
        %1175 = vmatpush1.xpose.msra.mxu0 0.0
        %1176 = vmatprep.subr.mxu0 0.0
        %1177 = vmatpush1.xpose.msra.mxu0 0.0
        %1178 = vmatprep.subr.mxu0 0.0
        %1179 = vmatpush1.xpose.msra.mxu0 0.0
        %1180 = vmatprep.subr.mxu0 0.0
        %1181 = vmatpush1.xpose.msra.mxu0 0.0
        %1182 = vmatprep.subr.mxu0 0.0
        %1183 = vmatpush1.xpose.msra.mxu0 0.0
        %1184 = vmatprep.subr.mxu0 0.0
        %1185 = vmatpush1.xpose.msra.mxu0 0.0
        %1186 = vmatprep.subr.mxu0 0.0
        %1187 = vmatpush1.xpose.msra.mxu0 0.0
        %1188 = vmatprep.subr.mxu0 0.0
        %1189 = vmatpush1.xpose.msra.mxu0 0.0
        %1190 = vmatprep.subr.mxu0 0.0
        %1191 = vmatpush1.xpose.msra.mxu0 0.0
        %1192 = vmatprep.subr.mxu0 0.0
        %1193 = vmatpush1.xpose.msra.mxu0 0.0
        %1194 = vmatprep.subr.mxu0 0.0
        %1195 = vmatpush1.xpose.msra.mxu0 0.0
        %1196 = vmatprep.subr.mxu0 0.0
        %1197 = vmatpush1.xpose.msra.mxu0 0.0
        %1198 = vmatprep.subr.mxu0 0.0
        %1199 = vmatpush1.xpose.msra.mxu0 0.0
        %1200 = vmatprep.subr.mxu0 0.0
        %1201 = vmatpush1.xpose.msra.mxu0 0.0
        %1202 = vmatprep.subr.mxu0 0.0
        %1203 = vmatpush1.xpose.msra.mxu0 0.0
        %1204 = vmatprep.subr.mxu0 0.0
        %1205 = vmatpush1.xpose.msra.mxu0 0.0
        %1206 = vmatprep.subr.mxu0 0.0
        %1207 = vmatpush1.xpose.msra.mxu0 0.0
        %1208 = vmatprep.subr.mxu0 0.0
        %1209 = vmatpush1.xpose.msra.mxu0 0.0
        %1210 = vmatprep.subr.mxu0 0.0
        %1211 = vmatpush1.xpose.msra.mxu0 0.0
        %1212 = vmatprep.subr.mxu0 0.0
        %1213 = vmatpush1.xpose.msra.mxu0 0.0
        %1214 = vmatprep.subr.mxu0 0.0
        %1215 = vmatpush1.xpose.msra.mxu0 0.0
        %1216 = vmatprep.subr.mxu0 0.0
        %1217 = vmatpush1.xpose.msra.mxu0 0.0
        %1218 = vmatprep.subr.mxu0 0.0
        %1219 = vmatpush1.xpose.msra.mxu0 0.0
        %1220 = vmatprep.subr.mxu0 0.0
        %1221 = vmatpush1.xpose.msra.mxu0 0.0
        %1222 = vmatprep.subr.mxu0 0.0
        %1223 = vmatpush1.xpose.msra.mxu0 0.0
        %1224 = vmatprep.mubr.f32.mxu0 0.0
        %1225 = vmatmul.mubr.f32.gmra.mrb[0].mxu0 %v1156
        %v1226 = vpop.f32.mrb[0].mxu0
        %v1227 = vadd.f32 0.0, %v1226
        %v1228 = vpop.f32.mrb[0].mxu0
        %1229 = vdwg.mxu0
        %v1230 = vsel %vm984, -1e+09, %v1227
        %v1231 = vsel %vm987, %v1230, -inf
        %1232 = vmax.xlane.f32.xlu0 %v1231
        %v1233 = vpop.xlane.xlu0 %1232
        %v1234 = vsub.f32 %v1230, %v1233
        %v1235 = vmul.f32 %v1234, 1.442695
        %v1236 = vpow.pop %v1235
        %v1237 = vsel %vm987, %v1236, 0.0
        %1238 = vadd.xlane.f32.xlu0 %v1237
        %v1239 = vpop.xlane.xlu0 %1238
        %v1240 = vrcp.pop %v1239
        %v1241 = vmul.f32 %v1236, %v1240
        %1242 = vrot.lane.b32.xlu0 %v986, 88
        %v1243 = vpop.permute.xlu0 %1242
        %v1246 = vsel %vm987, %v1241, 0
        %1248 = vmatprep.subr.mxu0 0.0
        %1249 = vmatpush1.msra.mxu0 %v1243
        %1250 = vmatprep.subr.mxu0 0.0
        %1251 = vmatpush1.msra.mxu0 0.0
        %1252 = vmatprep.subr.mxu0 0.0
        %1253 = vmatpush1.msra.mxu0 0.0
        %1254 = vmatprep.subr.mxu0 0.0
        %1255 = vmatpush1.msra.mxu0 0.0
        %1256 = vmatprep.subr.mxu0 0.0
        %1257 = vmatpush1.msra.mxu0 0.0
        %1258 = vmatprep.subr.mxu0 0.0
        %1259 = vmatpush1.msra.mxu0 0.0
        %1260 = vmatprep.subr.mxu0 0.0
        %1261 = vmatpush1.msra.mxu0 0.0
        %1262 = vmatprep.subr.mxu0 0.0
        %1263 = vmatpush1.msra.mxu0 0.0
        %1264 = vmatprep.subr.mxu0 0.0
        %1265 = vmatpush1.msra.mxu0 0.0
        %1266 = vmatprep.subr.mxu0 0.0
        %1267 = vmatpush1.msra.mxu0 0.0
        %1268 = vmatprep.subr.mxu0 0.0
        %1269 = vmatpush1.msra.mxu0 0.0
        %1270 = vmatprep.subr.mxu0 0.0
        %1271 = vmatpush1.msra.mxu0 0.0
        %1272 = vmatprep.subr.mxu0 0.0
        %1273 = vmatpush1.msra.mxu0 0.0
        %1274 = vmatprep.subr.mxu0 0.0
        %1275 = vmatpush1.msra.mxu0 0.0
        %1276 = vmatprep.subr.mxu0 0.0
        %1277 = vmatpush1.msra.mxu0 0.0
        %1278 = vmatprep.subr.mxu0 0.0
        %1279 = vmatpush1.msra.mxu0 0.0
        %1280 = vmatprep.subr.mxu0 0.0
        %1281 = vmatpush1.msra.mxu0 0.0
        %1282 = vmatprep.subr.mxu0 0.0
        %1283 = vmatpush1.msra.mxu0 0.0
        %1284 = vmatprep.subr.mxu0 0.0
        %1285 = vmatpush1.msra.mxu0 0.0
        %1286 = vmatprep.subr.mxu0 0.0
        %1287 = vmatpush1.msra.mxu0 0.0
        %1288 = vmatprep.subr.mxu0 0.0
        %1289 = vmatpush1.msra.mxu0 0.0
        %1290 = vmatprep.subr.mxu0 0.0
        %1291 = vmatpush1.msra.mxu0 0.0
        %1292 = vmatprep.subr.mxu0 0.0
        %1293 = vmatpush1.msra.mxu0 0.0
        %1294 = vmatprep.subr.mxu0 0.0
        %1295 = vmatpush1.msra.mxu0 0.0
        %1296 = vmatprep.subr.mxu0 0.0
        %1297 = vmatpush1.msra.mxu0 0.0
        %1298 = vmatprep.subr.mxu0 0.0
        %1299 = vmatpush1.msra.mxu0 0.0
        %1300 = vmatprep.subr.mxu0 0.0
        %1301 = vmatpush1.msra.mxu0 0.0
        %1302 = vmatprep.subr.mxu0 0.0
        %1303 = vmatpush1.msra.mxu0 0.0
        %1304 = vmatprep.subr.mxu0 0.0
        %1305 = vmatpush1.msra.mxu0 0.0
        %1306 = vmatprep.subr.mxu0 0.0
        %1307 = vmatpush1.msra.mxu0 0.0
        %1308 = vmatprep.subr.mxu0 0.0
        %1309 = vmatpush1.msra.mxu0 0.0
        %1310 = vmatprep.subr.mxu0 0.0
        %1311 = vmatpush1.msra.mxu0 0.0
        %1312 = vmatprep.mubr.f32.mxu0 0.0
        %1313 = vmatmul.mubr.f32.gmra.mrb[0].mxu0 %v1246
        %v1314 = vpop.f32.mrb[0].mxu0
        %v1315 = vadd.f32 0.0, %v1314
        %v1316 = vpop.f32.mrb[0].mxu0
        %1317 = vdwg.mxu0
        %1318 = vrot.lane.b32.xlu0 %v985, 112
        %v1319 = vpop.permute.xlu0 %1318
        %1320 = vrot.lane.b32.xlu0 %v986, 112
        %v1321 = vpop.permute.xlu0 %1320
        %v1322 = vsel %vm987, %v1319, 0
        %v1324 = vsel %vm987, %v1321, 0
        %1326 = vmatprep.subr.mxu0 0.0
        %1327 = vmatpush1.xpose.msra.mxu0 %v1324
        %1328 = vmatprep.subr.mxu0 0.0
        %1329 = vmatpush1.xpose.msra.mxu0 0.0
        %1330 = vmatprep.subr.mxu0 0.0
        %1331 = vmatpush1.xpose.msra.mxu0 0.0
        %1332 = vmatprep.subr.mxu0 0.0
        %1333 = vmatpush1.xpose.msra.mxu0 0.0
        %1334 = vmatprep.subr.mxu0 0.0
        %1335 = vmatpush1.xpose.msra.mxu0 0.0
        %1336 = vmatprep.subr.mxu0 0.0
        %1337 = vmatpush1.xpose.msra.mxu0 0.0
        %1338 = vmatprep.subr.mxu0 0.0
        %1339 = vmatpush1.xpose.msra.mxu0 0.0
        %1340 = vmatprep.subr.mxu0 0.0
        %1341 = vmatpush1.xpose.msra.mxu0 0.0
        %1342 = vmatprep.subr.mxu0 0.0
        %1343 = vmatpush1.xpose.msra.mxu0 0.0
        %1344 = vmatprep.subr.mxu0 0.0
        %1345 = vmatpush1.xpose.msra.mxu0 0.0
        %1346 = vmatprep.subr.mxu0 0.0
        %1347 = vmatpush1.xpose.msra.mxu0 0.0
        %1348 = vmatprep.subr.mxu0 0.0
        %1349 = vmatpush1.xpose.msra.mxu0 0.0
        %1350 = vmatprep.subr.mxu0 0.0
        %1351 = vmatpush1.xpose.msra.mxu0 0.0
        %1352 = vmatprep.subr.mxu0 0.0
        %1353 = vmatpush1.xpose.msra.mxu0 0.0
        %1354 = vmatprep.subr.mxu0 0.0
        %1355 = vmatpush1.xpose.msra.mxu0 0.0
        %1356 = vmatprep.subr.mxu0 0.0
        %1357 = vmatpush1.xpose.msra.mxu0 0.0
        %1358 = vmatprep.subr.mxu0 0.0
        %1359 = vmatpush1.xpose.msra.mxu0 0.0
        %1360 = vmatprep.subr.mxu0 0.0
        %1361 = vmatpush1.xpose.msra.mxu0 0.0
        %1362 = vmatprep.subr.mxu0 0.0
        %1363 = vmatpush1.xpose.msra.mxu0 0.0
        %1364 = vmatprep.subr.mxu0 0.0
        %1365 = vmatpush1.xpose.msra.mxu0 0.0
        %1366 = vmatprep.subr.mxu0 0.0
        %1367 = vmatpush1.xpose.msra.mxu0 0.0
        %1368 = vmatprep.subr.mxu0 0.0
        %1369 = vmatpush1.xpose.msra.mxu0 0.0
        %1370 = vmatprep.subr.mxu0 0.0
        %1371 = vmatpush1.xpose.msra.mxu0 0.0
        %1372 = vmatprep.subr.mxu0 0.0
        %1373 = vmatpush1.xpose.msra.mxu0 0.0
        %1374 = vmatprep.subr.mxu0 0.0
        %1375 = vmatpush1.xpose.msra.mxu0 0.0
        %1376 = vmatprep.subr.mxu0 0.0
        %1377 = vmatpush1.xpose.msra.mxu0 0.0
        %1378 = vmatprep.subr.mxu0 0.0
        %1379 = vmatpush1.xpose.msra.mxu0 0.0
        %1380 = vmatprep.subr.mxu0 0.0
        %1381 = vmatpush1.xpose.msra.mxu0 0.0
        %1382 = vmatprep.subr.mxu0 0.0
        %1383 = vmatpush1.xpose.msra.mxu0 0.0
        %1384 = vmatprep.subr.mxu0 0.0
        %1385 = vmatpush1.xpose.msra.mxu0 0.0
        %1386 = vmatprep.subr.mxu0 0.0
        %1387 = vmatpush1.xpose.msra.mxu0 0.0
        %1388 = vmatprep.subr.mxu0 0.0
        %1389 = vmatpush1.xpose.msra.mxu0 0.0
        %1390 = vmatprep.mubr.f32.mxu0 0.0
        %1391 = vmatmul.mubr.f32.gmra.mrb[0].mxu0 %v1322
        %v1392 = vpop.f32.mrb[0].mxu0
        %v1393 = vadd.f32 0.0, %v1392
        %v1394 = vpop.f32.mrb[0].mxu0
        %1395 = vdwg.mxu0
        %v1396 = vsel %vm984, -1e+09, %v1393
        %v1397 = vsel %vm987, %v1396, -inf
        %1398 = vmax.xlane.f32.xlu0 %v1397
        %v1399 = vpop.xlane.xlu0 %1398
        %v1400 = vsub.f32 %v1396, %v1399
        %v1401 = vmul.f32 %v1400, 1.442695
        %v1402 = vpow.pop %v1401
        %v1403 = vsel %vm987, %v1402, 0.0
        %1404 = vadd.xlane.f32.xlu0 %v1403
        %v1405 = vpop.xlane.xlu0 %1404
        %v1406 = vrcp.pop %v1405
        %v1407 = vmul.f32 %v1402, %v1406
        %1408 = vrot.lane.b32.xlu0 %v986, 80
        %v1409 = vpop.permute.xlu0 %1408
        %v1412 = vsel %vm987, %v1407, 0
        %1414 = vmatprep.subr.mxu0 0.0
        %1415 = vmatpush1.msra.mxu0 %v1409
        %1416 = vmatprep.subr.mxu0 0.0
        %1417 = vmatpush1.msra.mxu0 0.0
        %1418 = vmatprep.subr.mxu0 0.0
        %1419 = vmatpush1.msra.mxu0 0.0
        %1420 = vmatprep.subr.mxu0 0.0
        %1421 = vmatpush1.msra.mxu0 0.0
        %1422 = vmatprep.subr.mxu0 0.0
        %1423 = vmatpush1.msra.mxu0 0.0
        %1424 = vmatprep.subr.mxu0 0.0
        %1425 = vmatpush1.msra.mxu0 0.0
        %1426 = vmatprep.subr.mxu0 0.0
        %1427 = vmatpush1.msra.mxu0 0.0
        %1428 = vmatprep.subr.mxu0 0.0
        %1429 = vmatpush1.msra.mxu0 0.0
        %1430 = vmatprep.subr.mxu0 0.0
        %1431 = vmatpush1.msra.mxu0 0.0
        %1432 = vmatprep.subr.mxu0 0.0
        %1433 = vmatpush1.msra.mxu0 0.0
        %1434 = vmatprep.subr.mxu0 0.0
        %1435 = vmatpush1.msra.mxu0 0.0
        %1436 = vmatprep.subr.mxu0 0.0
        %1437 = vmatpush1.msra.mxu0 0.0
        %1438 = vmatprep.subr.mxu0 0.0
        %1439 = vmatpush1.msra.mxu0 0.0
        %1440 = vmatprep.subr.mxu0 0.0
        %1441 = vmatpush1.msra.mxu0 0.0
        %1442 = vmatprep.subr.mxu0 0.0
        %1443 = vmatpush1.msra.mxu0 0.0
        %1444 = vmatprep.subr.mxu0 0.0
        %1445 = vmatpush1.msra.mxu0 0.0
        %1446 = vmatprep.subr.mxu0 0.0
        %1447 = vmatpush1.msra.mxu0 0.0
        %1448 = vmatprep.subr.mxu0 0.0
        %1449 = vmatpush1.msra.mxu0 0.0
        %1450 = vmatprep.subr.mxu0 0.0
        %1451 = vmatpush1.msra.mxu0 0.0
        %1452 = vmatprep.subr.mxu0 0.0
        %1453 = vmatpush1.msra.mxu0 0.0
        %1454 = vmatprep.subr.mxu0 0.0
        %1455 = vmatpush1.msra.mxu0 0.0
        %1456 = vmatprep.subr.mxu0 0.0
        %1457 = vmatpush1.msra.mxu0 0.0
        %1458 = vmatprep.subr.mxu0 0.0
        %1459 = vmatpush1.msra.mxu0 0.0
        %1460 = vmatprep.subr.mxu0 0.0
        %1461 = vmatpush1.msra.mxu0 0.0
        %1462 = vmatprep.subr.mxu0 0.0
        %1463 = vmatpush1.msra.mxu0 0.0
        %1464 = vmatprep.subr.mxu0 0.0
        %1465 = vmatpush1.msra.mxu0 0.0
        %1466 = vmatprep.subr.mxu0 0.0
        %1467 = vmatpush1.msra.mxu0 0.0
        %1468 = vmatprep.subr.mxu0 0.0
        %1469 = vmatpush1.msra.mxu0 0.0
        %1470 = vmatprep.subr.mxu0 0.0
        %1471 = vmatpush1.msra.mxu0 0.0
        %1472 = vmatprep.subr.mxu0 0.0
        %1473 = vmatpush1.msra.mxu0 0.0
        %1474 = vmatprep.subr.mxu0 0.0
        %1475 = vmatpush1.msra.mxu0 0.0
        %1476 = vmatprep.subr.mxu0 0.0
        %1477 = vmatpush1.msra.mxu0 0.0
        %1478 = vmatprep.mubr.f32.mxu0 0.0
        %1479 = vmatmul.mubr.f32.gmra.mrb[0].mxu0 %v1412
        %v1480 = vpop.f32.mrb[0].mxu0
        %v1481 = vadd.f32 0.0, %v1480
        %v1482 = vpop.f32.mrb[0].mxu0
        %1483 = vdwg.mxu0
        %1484 = vrot.lane.b32.xlu0 %v985, 104
        %v1485 = vpop.permute.xlu0 %1484
        %1486 = vrot.lane.b32.xlu0 %v986, 104
        %v1487 = vpop.permute.xlu0 %1486
        %v1488 = vsel %vm987, %v1485, 0
        %v1490 = vsel %vm987, %v1487, 0
        %1492 = vmatprep.subr.mxu0 0.0
        %1493 = vmatpush1.xpose.msra.mxu0 %v1490
        %1494 = vmatprep.subr.mxu0 0.0
        %1495 = vmatpush1.xpose.msra.mxu0 0.0
        %1496 = vmatprep.subr.mxu0 0.0
        %1497 = vmatpush1.xpose.msra.mxu0 0.0
        %1498 = vmatprep.subr.mxu0 0.0
        %1499 = vmatpush1.xpose.msra.mxu0 0.0
        %1500 = vmatprep.subr.mxu0 0.0
        %1501 = vmatpush1.xpose.msra.mxu0 0.0
        %1502 = vmatprep.subr.mxu0 0.0
        %1503 = vmatpush1.xpose.msra.mxu0 0.0
        %1504 = vmatprep.subr.mxu0 0.0
        %1505 = vmatpush1.xpose.msra.mxu0 0.0
        %1506 = vmatprep.subr.mxu0 0.0
        %1507 = vmatpush1.xpose.msra.mxu0 0.0
        %1508 = vmatprep.subr.mxu0 0.0
        %1509 = vmatpush1.xpose.msra.mxu0 0.0
        %1510 = vmatprep.subr.mxu0 0.0
        %1511 = vmatpush1.xpose.msra.mxu0 0.0
        %1512 = vmatprep.subr.mxu0 0.0
        %1513 = vmatpush1.xpose.msra.mxu0 0.0
        %1514 = vmatprep.subr.mxu0 0.0
        %1515 = vmatpush1.xpose.msra.mxu0 0.0
        %1516 = vmatprep.subr.mxu0 0.0
        %1517 = vmatpush1.xpose.msra.mxu0 0.0
        %1518 = vmatprep.subr.mxu0 0.0
        %1519 = vmatpush1.xpose.msra.mxu0 0.0
        %1520 = vmatprep.subr.mxu0 0.0
        %1521 = vmatpush1.xpose.msra.mxu0 0.0
        %1522 = vmatprep.subr.mxu0 0.0
        %1523 = vmatpush1.xpose.msra.mxu0 0.0
        %1524 = vmatprep.subr.mxu0 0.0
        %1525 = vmatpush1.xpose.msra.mxu0 0.0
        %1526 = vmatprep.subr.mxu0 0.0
        %1527 = vmatpush1.xpose.msra.mxu0 0.0
        %1528 = vmatprep.subr.mxu0 0.0
        %1529 = vmatpush1.xpose.msra.mxu0 0.0
        %1530 = vmatprep.subr.mxu0 0.0
        %1531 = vmatpush1.xpose.msra.mxu0 0.0
        %1532 = vmatprep.subr.mxu0 0.0
        %1533 = vmatpush1.xpose.msra.mxu0 0.0
        %1534 = vmatprep.subr.mxu0 0.0
        %1535 = vmatpush1.xpose.msra.mxu0 0.0
        %1536 = vmatprep.subr.mxu0 0.0
        %1537 = vmatpush1.xpose.msra.mxu0 0.0
        %1538 = vmatprep.subr.mxu0 0.0
        %1539 = vmatpush1.xpose.msra.mxu0 0.0
        %1540 = vmatprep.subr.mxu0 0.0
        %1541 = vmatpush1.xpose.msra.mxu0 0.0
        %1542 = vmatprep.subr.mxu0 0.0
        %1543 = vmatpush1.xpose.msra.mxu0 0.0
        %1544 = vmatprep.subr.mxu0 0.0
        %1545 = vmatpush1.xpose.msra.mxu0 0.0
        %1546 = vmatprep.subr.mxu0 0.0
        %1547 = vmatpush1.xpose.msra.mxu0 0.0
        %1548 = vmatprep.subr.mxu0 0.0
        %1549 = vmatpush1.xpose.msra.mxu0 0.0
        %1550 = vmatprep.subr.mxu0 0.0
        %1551 = vmatpush1.xpose.msra.mxu0 0.0
        %1552 = vmatprep.subr.mxu0 0.0
        %1553 = vmatpush1.xpose.msra.mxu0 0.0
        %1554 = vmatprep.subr.mxu0 0.0
        %1555 = vmatpush1.xpose.msra.mxu0 0.0
        %1556 = vmatprep.mubr.f32.mxu0 0.0
        %1557 = vmatmul.mubr.f32.gmra.mrb[0].mxu0 %v1488
        %v1558 = vpop.f32.mrb[0].mxu0
        %v1559 = vadd.f32 0.0, %v1558
        %v1560 = vpop.f32.mrb[0].mxu0
        %1561 = vdwg.mxu0
        %v1562 = vsel %vm984, -1e+09, %v1559
        %v1563 = vsel %vm987, %v1562, -inf
        %1564 = vmax.xlane.f32.xlu0 %v1563
        %v1565 = vpop.xlane.xlu0 %1564
        %v1566 = vsub.f32 %v1562, %v1565
        %v1567 = vmul.f32 %v1566, 1.442695
        %v1568 = vpow.pop %v1567
        %v1569 = vsel %vm987, %v1568, 0.0
        %1570 = vadd.xlane.f32.xlu0 %v1569
        %v1571 = vpop.xlane.xlu0 %1570
        %v1572 = vrcp.pop %v1571
        %v1573 = vmul.f32 %v1568, %v1572
        %1574 = vrot.lane.b32.xlu0 %v986, 72
        %v1575 = vpop.permute.xlu0 %1574
        %v1578 = vsel %vm987, %v1573, 0
        %1580 = vmatprep.subr.mxu0 0.0
        %1581 = vmatpush1.msra.mxu0 %v1575
        %1582 = vmatprep.subr.mxu0 0.0
        %1583 = vmatpush1.msra.mxu0 0.0
        %1584 = vmatprep.subr.mxu0 0.0
        %1585 = vmatpush1.msra.mxu0 0.0
        %1586 = vmatprep.subr.mxu0 0.0
        %1587 = vmatpush1.msra.mxu0 0.0
        %1588 = vmatprep.subr.mxu0 0.0
        %1589 = vmatpush1.msra.mxu0 0.0
        %1590 = vmatprep.subr.mxu0 0.0
        %1591 = vmatpush1.msra.mxu0 0.0
        %1592 = vmatprep.subr.mxu0 0.0
        %1593 = vmatpush1.msra.mxu0 0.0
        %1594 = vmatprep.subr.mxu0 0.0
        %1595 = vmatpush1.msra.mxu0 0.0
        %1596 = vmatprep.subr.mxu0 0.0
        %1597 = vmatpush1.msra.mxu0 0.0
        %1598 = vmatprep.subr.mxu0 0.0
        %1599 = vmatpush1.msra.mxu0 0.0
        %1600 = vmatprep.subr.mxu0 0.0
        %1601 = vmatpush1.msra.mxu0 0.0
        %1602 = vmatprep.subr.mxu0 0.0
        %1603 = vmatpush1.msra.mxu0 0.0
        %1604 = vmatprep.subr.mxu0 0.0
        %1605 = vmatpush1.msra.mxu0 0.0
        %1606 = vmatprep.subr.mxu0 0.0
        %1607 = vmatpush1.msra.mxu0 0.0
        %1608 = vmatprep.subr.mxu0 0.0
        %1609 = vmatpush1.msra.mxu0 0.0
        %1610 = vmatprep.subr.mxu0 0.0
        %1611 = vmatpush1.msra.mxu0 0.0
        %1612 = vmatprep.subr.mxu0 0.0
        %1613 = vmatpush1.msra.mxu0 0.0
        %1614 = vmatprep.subr.mxu0 0.0
        %1615 = vmatpush1.msra.mxu0 0.0
        %1616 = vmatprep.subr.mxu0 0.0
        %1617 = vmatpush1.msra.mxu0 0.0
        %1618 = vmatprep.subr.mxu0 0.0
        %1619 = vmatpush1.msra.mxu0 0.0
        %1620 = vmatprep.subr.mxu0 0.0
        %1621 = vmatpush1.msra.mxu0 0.0
        %1622 = vmatprep.subr.mxu0 0.0
        %1623 = vmatpush1.msra.mxu0 0.0
        %1624 = vmatprep.subr.mxu0 0.0
        %1625 = vmatpush1.msra.mxu0 0.0
        %1626 = vmatprep.subr.mxu0 0.0
        %1627 = vmatpush1.msra.mxu0 0.0
        %1628 = vmatprep.subr.mxu0 0.0
        %1629 = vmatpush1.msra.mxu0 0.0
        %1630 = vmatprep.subr.mxu0 0.0
        %1631 = vmatpush1.msra.mxu0 0.0
        %1632 = vmatprep.subr.mxu0 0.0
        %1633 = vmatpush1.msra.mxu0 0.0
        %1634 = vmatprep.subr.mxu0 0.0
        %1635 = vmatpush1.msra.mxu0 0.0
        %1636 = vmatprep.subr.mxu0 0.0
        %1637 = vmatpush1.msra.mxu0 0.0
        %1638 = vmatprep.subr.mxu0 0.0
        %1639 = vmatpush1.msra.mxu0 0.0
        %1640 = vmatprep.subr.mxu0 0.0
        %1641 = vmatpush1.msra.mxu0 0.0
        %1642 = vmatprep.subr.mxu0 0.0
        %1643 = vmatpush1.msra.mxu0 0.0
        %1644 = vmatprep.mubr.f32.mxu0 0.0
        %1645 = vmatmul.mubr.f32.gmra.mrb[0].mxu0 %v1578
        %v1646 = vpop.f32.mrb[0].mxu0
        %v1647 = vadd.f32 0.0, %v1646
        %v1648 = vpop.f32.mrb[0].mxu0
        %1649 = vdwg.mxu0
        %1651 = vrot.lane.b32.xlu0 %v1315, 8
        %v1652 = vpop.permute.xlu0 %1651
        %1655 = vrot.lane.b32.xlu0 %v1481, 16
        %v1656 = vpop.permute.xlu0 %1655
        %1659 = vrot.lane.b32.xlu0 %v1647, 24
        %v1660 = vpop.permute.xlu0 %1659
        %v1662 = vsel %vm987, %v1149, %v1652
        %vm1663 = vcmask 130048
        %v1664 = vsel %vm1663, %v1662, %v1656
        %vm1665 = vcmask 195584
        %v1666 = vsel %vm1665, %v1664, %v1660
        %v1667 = vld [vmem:[%s6] sm:$0xff]
        %v1668 = vld [vmem:[%s6 + $0x8] sm:$0xff]
        %v1669 = vld [vmem:[%s6 + $0x10] sm:$0xff]
        %v1670 = vld [vmem:[%s6 + $0x18] sm:$0xff]
        %v1671 = vld [vmem:[%s7] sm:$0x1]
        %v1673 = vlaneseq
        %v1674 = vshrl.u32 %v1673, 7
        %v1675 = vsub.s32 0, %v1674
        %v1676 = vrot.slane %v1671, %v1675
        %vm1678 = vcmask 261120
        %v1680 = vsel %vm1678, %v1666, 0
        %1682 = vmatprep.subr.mxu0 0.0
        %1683 = vmatpush1.msra.mxu0 %v1667
        %1684 = vmatprep.subr.mxu0 0.0
        %1685 = vmatpush1.msra.mxu0 %v1668
        %1686 = vmatprep.subr.mxu0 0.0
        %1687 = vmatpush1.msra.mxu0 %v1669
        %1688 = vmatprep.subr.mxu0 0.0
        %1689 = vmatpush1.msra.mxu0 %v1670
        %1690 = vmatprep.subr.mxu0 0.0
        %1691 = vmatpush1.msra.mxu0 0.0
        %1692 = vmatprep.subr.mxu0 0.0
        %1693 = vmatpush1.msra.mxu0 0.0
        %1694 = vmatprep.subr.mxu0 0.0
        %1695 = vmatpush1.msra.mxu0 0.0
        %1696 = vmatprep.subr.mxu0 0.0
        %1697 = vmatpush1.msra.mxu0 0.0
        %1698 = vmatprep.subr.mxu0 0.0
        %1699 = vmatpush1.msra.mxu0 0.0
        %1700 = vmatprep.subr.mxu0 0.0
        %1701 = vmatpush1.msra.mxu0 0.0
        %1702 = vmatprep.subr.mxu0 0.0
        %1703 = vmatpush1.msra.mxu0 0.0
        %1704 = vmatprep.subr.mxu0 0.0
        %1705 = vmatpush1.msra.mxu0 0.0
        %1706 = vmatprep.subr.mxu0 0.0
        %1707 = vmatpush1.msra.mxu0 0.0
        %1708 = vmatprep.subr.mxu0 0.0
        %1709 = vmatpush1.msra.mxu0 0.0
        %1710 = vmatprep.subr.mxu0 0.0
        %1711 = vmatpush1.msra.mxu0 0.0
        %1712 = vmatprep.subr.mxu0 0.0
        %1713 = vmatpush1.msra.mxu0 0.0
        %1714 = vmatprep.subr.mxu0 0.0
        %1715 = vmatpush1.msra.mxu0 0.0
        %1716 = vmatprep.subr.mxu0 0.0
        %1717 = vmatpush1.msra.mxu0 0.0
        %1718 = vmatprep.subr.mxu0 0.0
        %1719 = vmatpush1.msra.mxu0 0.0
        %1720 = vmatprep.subr.mxu0 0.0
        %1721 = vmatpush1.msra.mxu0 0.0
        %1722 = vmatprep.subr.mxu0 0.0
        %1723 = vmatpush1.msra.mxu0 0.0
        %1724 = vmatprep.subr.mxu0 0.0
        %1725 = vmatpush1.msra.mxu0 0.0
        %1726 = vmatprep.subr.mxu0 0.0
        %1727 = vmatpush1.msra.mxu0 0.0
        %1728 = vmatprep.subr.mxu0 0.0
        %1729 = vmatpush1.msra.mxu0 0.0
        %1730 = vmatprep.subr.mxu0 0.0
        %1731 = vmatpush1.msra.mxu0 0.0
        %1732 = vmatprep.subr.mxu0 0.0
        %1733 = vmatpush1.msra.mxu0 0.0
        %1734 = vmatprep.subr.mxu0 0.0
        %1735 = vmatpush1.msra.mxu0 0.0
        %1736 = vmatprep.subr.mxu0 0.0
        %1737 = vmatpush1.msra.mxu0 0.0
        %1738 = vmatprep.subr.mxu0 0.0
        %1739 = vmatpush1.msra.mxu0 0.0
        %1740 = vmatprep.subr.mxu0 0.0
        %1741 = vmatpush1.msra.mxu0 0.0
        %1742 = vmatprep.subr.mxu0 0.0
        %1743 = vmatpush1.msra.mxu0 0.0
        %1744 = vmatprep.subr.mxu0 0.0
        %1745 = vmatpush1.msra.mxu0 0.0
        %1746 = vmatprep.mubr.f32.mxu0 0.0
        %1747 = vmatmul.mubr.f32.gmra.mrb[0].mxu0 %v1680
        %v1748 = vpop.f32.mrb[0].mxu0
        %v1749 = vadd.f32 %v1676, %v1748
        %v1750 = vpop.f32.mrb[0].mxu0
        %1751 = vdwg.mxu0
        %v1752 = vadd.f32 %v980, %v1749
        %s1753 = sld [smem:[#allocation15 + $0x80]]
        %s1754 = sld [smem:[#allocation15 + $0x81]]
        %v1755 = vsel %vm1678, %v1752, 0.0
        %1756 = vadd.xlane.f32.xlu0 %v1755
        %v1757 = vpop.xlane.xlu0 %1756
        %v1758 = vrcp.pop 32.0
        %v1759 = vmul.f32 %v1757, %v1758
        %v1760 = vsub.f32 %v1752, %v1759
        %v1761 = vmul.f32 %v1760, %v1760
        %v1762 = vsel %vm1678, %v1761, 0.0
        %1763 = vadd.xlane.f32.xlu0 %v1762
        %v1764 = vpop.xlane.xlu0 %1763
        %v1765 = vmul.f32 %v1764, 0.032258064
        %v1766 = vrsqrt.pop %v1765
        %v1767 = vmul.f32 %v1765, %v1766
        %vm1768 = vcmp.eq.f32.partialorder %v1765, inf
        %v1769 = vsel %vm1768, %v1765, %v1767
        %vm1770 = vcmp.eq.f32.partialorder %v1765, 0.0
        %v1771 = vand.u32 %v1765, 2147483648
        %v1772 = vsel %vm1770, %v1771, %v1769
        %v1773 = vadd.f32 %v1772, 1e-06
        %v1774 = vrcp.pop %v1773
        %v1775 = vstv %s1753
        %v1776 = vmul.f32 %v1775, %v1760
        %v1777 = vmul.f32 %v1776, %v1774
        %v1778 = vstv %s1754
        %v1779 = vadd.f32 %v1777, %v1778
        %v1780 = vld [vmem:[#allocation9] sm:$0xff]
        %v1781 = vld [vmem:[#allocation9 + $0x8] sm:$0xff]
        %v1782 = vld [vmem:[#allocation9 + $0x10] sm:$0xff]
        %v1783 = vld [vmem:[#allocation9 + $0x18] sm:$0xff]
        %v1784 = vld [vmem:[%s9] sm:$0x1]
        %v1786 = vlaneseq
        %v1787 = vshrl.u32 %v1786, 7
        %v1788 = vsub.s32 0, %v1787
        %v1789 = vrot.slane %v1784, %v1788
        %v1792 = vsel %vm1678, %v1779, 0
        %1794 = vmatprep.subr.mxu0 0.0
        %1795 = vmatpush1.msra.mxu0 %v1780
        %1796 = vmatprep.subr.mxu0 0.0
        %1797 = vmatpush1.msra.mxu0 %v1781
        %1798 = vmatprep.subr.mxu0 0.0
        %1799 = vmatpush1.msra.mxu0 %v1782
        %1800 = vmatprep.subr.mxu0 0.0
        %1801 = vmatpush1.msra.mxu0 %v1783
        %1802 = vmatprep.subr.mxu0 0.0
        %1803 = vmatpush1.msra.mxu0 0.0
        %1804 = vmatprep.subr.mxu0 0.0
        %1805 = vmatpush1.msra.mxu0 0.0
        %1806 = vmatprep.subr.mxu0 0.0
        %1807 = vmatpush1.msra.mxu0 0.0
        %1808 = vmatprep.subr.mxu0 0.0
        %1809 = vmatpush1.msra.mxu0 0.0
        %1810 = vmatprep.subr.mxu0 0.0
        %1811 = vmatpush1.msra.mxu0 0.0
        %1812 = vmatprep.subr.mxu0 0.0
        %1813 = vmatpush1.msra.mxu0 0.0
        %1814 = vmatprep.subr.mxu0 0.0
        %1815 = vmatpush1.msra.mxu0 0.0
        %1816 = vmatprep.subr.mxu0 0.0
        %1817 = vmatpush1.msra.mxu0 0.0
        %1818 = vmatprep.subr.mxu0 0.0
        %1819 = vmatpush1.msra.mxu0 0.0
        %1820 = vmatprep.subr.mxu0 0.0
        %1821 = vmatpush1.msra.mxu0 0.0
        %1822 = vmatprep.subr.mxu0 0.0
        %1823 = vmatpush1.msra.mxu0 0.0
        %1824 = vmatprep.subr.mxu0 0.0
        %1825 = vmatpush1.msra.mxu0 0.0
        %1826 = vmatprep.subr.mxu0 0.0
        %1827 = vmatpush1.msra.mxu0 0.0
        %1828 = vmatprep.subr.mxu0 0.0
        %1829 = vmatpush1.msra.mxu0 0.0
        %1830 = vmatprep.subr.mxu0 0.0
        %1831 = vmatpush1.msra.mxu0 0.0
        %1832 = vmatprep.subr.mxu0 0.0
        %1833 = vmatpush1.msra.mxu0 0.0
        %1834 = vmatprep.subr.mxu0 0.0
        %1835 = vmatpush1.msra.mxu0 0.0
        %1836 = vmatprep.subr.mxu0 0.0
        %1837 = vmatpush1.msra.mxu0 0.0
        %1838 = vmatprep.subr.mxu0 0.0
        %1839 = vmatpush1.msra.mxu0 0.0
        %1840 = vmatprep.subr.mxu0 0.0
        %1841 = vmatpush1.msra.mxu0 0.0
        %1842 = vmatprep.subr.mxu0 0.0
        %1843 = vmatpush1.msra.mxu0 0.0
        %1844 = vmatprep.subr.mxu0 0.0
        %1845 = vmatpush1.msra.mxu0 0.0
        %1846 = vmatprep.subr.mxu0 0.0
        %1847 = vmatpush1.msra.mxu0 0.0
        %1848 = vmatprep.subr.mxu0 0.0
        %1849 = vmatpush1.msra.mxu0 0.0
        %1850 = vmatprep.subr.mxu0 0.0
        %1851 = vmatpush1.msra.mxu0 0.0
        %1852 = vmatprep.subr.mxu0 0.0
        %1853 = vmatpush1.msra.mxu0 0.0
        %1854 = vmatprep.subr.mxu0 0.0
        %1855 = vmatpush1.msra.mxu0 0.0
        %1856 = vmatprep.subr.mxu0 0.0
        %1857 = vmatpush1.msra.mxu0 0.0
        %1858 = vmatprep.mubr.f32.mxu0 0.0
        %1859 = vmatmul.mubr.f32.gmra.mrb[0].mxu0 %v1792
        %v1860 = vpop.f32.mrb[0].mxu0
        %v1861 = vadd.f32 %v1789, %v1860
        %v1862 = vpop.f32.mrb[0].mxu0
        %1863 = vdwg.mxu0
        %v1864 = vld [vmem:[%s757] sm:$0xff]
        %vm1865 = vcmp.eq.f32.partialorder %v1864, 0.0
        %v1866 = vmul.f32 %v1861, 0.35355338
        %v1867 = vld [vmem:[#allocation4] sm:$0xff]
        %v1868 = vld [vmem:[#allocation4 + $0x8] sm:$0xff]
        %v1870 = vsel %vm987, %v1866, 0
        %v1873 = vsel %vm987, %v1867, 0
        %v1876 = vsel %vm987, %v1868, 0
        %1878 = vmatprep.subr.mxu0 0.0
        %1879 = vmatpush1.xpose.msra.mxu0 %v1873
        %1880 = vmatprep.subr.mxu0 0.0
        %1881 = vmatpush1.xpose.msra.mxu0 %v1876
        %1882 = vmatprep.subr.mxu0 0.0
        %1883 = vmatpush1.xpose.msra.mxu0 0.0
        %1884 = vmatprep.subr.mxu0 0.0
        %1885 = vmatpush1.xpose.msra.mxu0 0.0
        %1886 = vmatprep.subr.mxu0 0.0
        %1887 = vmatpush1.xpose.msra.mxu0 0.0
        %1888 = vmatprep.subr.mxu0 0.0
        %1889 = vmatpush1.xpose.msra.mxu0 0.0
        %1890 = vmatprep.subr.mxu0 0.0
        %1891 = vmatpush1.xpose.msra.mxu0 0.0
        %1892 = vmatprep.subr.mxu0 0.0
        %1893 = vmatpush1.xpose.msra.mxu0 0.0
        %1894 = vmatprep.subr.mxu0 0.0
        %1895 = vmatpush1.xpose.msra.mxu0 0.0
        %1896 = vmatprep.subr.mxu0 0.0
        %1897 = vmatpush1.xpose.msra.mxu0 0.0
        %1898 = vmatprep.subr.mxu0 0.0
        %1899 = vmatpush1.xpose.msra.mxu0 0.0
        %1900 = vmatprep.subr.mxu0 0.0
        %1901 = vmatpush1.xpose.msra.mxu0 0.0
        %1902 = vmatprep.subr.mxu0 0.0
        %1903 = vmatpush1.xpose.msra.mxu0 0.0
        %1904 = vmatprep.subr.mxu0 0.0
        %1905 = vmatpush1.xpose.msra.mxu0 0.0
        %1906 = vmatprep.subr.mxu0 0.0
        %1907 = vmatpush1.xpose.msra.mxu0 0.0
        %1908 = vmatprep.subr.mxu0 0.0
        %1909 = vmatpush1.xpose.msra.mxu0 0.0
        %1910 = vmatprep.subr.mxu0 0.0
        %1911 = vmatpush1.xpose.msra.mxu0 0.0
        %1912 = vmatprep.subr.mxu0 0.0
        %1913 = vmatpush1.xpose.msra.mxu0 0.0
        %1914 = vmatprep.subr.mxu0 0.0
        %1915 = vmatpush1.xpose.msra.mxu0 0.0
        %1916 = vmatprep.subr.mxu0 0.0
        %1917 = vmatpush1.xpose.msra.mxu0 0.0
        %1918 = vmatprep.subr.mxu0 0.0
        %1919 = vmatpush1.xpose.msra.mxu0 0.0
        %1920 = vmatprep.subr.mxu0 0.0
        %1921 = vmatpush1.xpose.msra.mxu0 0.0
        %1922 = vmatprep.subr.mxu0 0.0
        %1923 = vmatpush1.xpose.msra.mxu0 0.0
        %1924 = vmatprep.subr.mxu0 0.0
        %1925 = vmatpush1.xpose.msra.mxu0 0.0
        %1926 = vmatprep.subr.mxu0 0.0
        %1927 = vmatpush1.xpose.msra.mxu0 0.0
        %1928 = vmatprep.subr.mxu0 0.0
        %1929 = vmatpush1.xpose.msra.mxu0 0.0
        %1930 = vmatprep.subr.mxu0 0.0
        %1931 = vmatpush1.xpose.msra.mxu0 0.0
        %1932 = vmatprep.subr.mxu0 0.0
        %1933 = vmatpush1.xpose.msra.mxu0 0.0
        %1934 = vmatprep.subr.mxu0 0.0
        %1935 = vmatpush1.xpose.msra.mxu0 0.0
        %1936 = vmatprep.subr.mxu0 0.0
        %1937 = vmatpush1.xpose.msra.mxu0 0.0
        %1938 = vmatprep.subr.mxu0 0.0
        %1939 = vmatpush1.xpose.msra.mxu0 0.0
        %1940 = vmatprep.subr.mxu0 0.0
        %1941 = vmatpush1.xpose.msra.mxu0 0.0
        %1942 = vmatprep.mubr.f32.mxu0 0.0
        %1943 = vmatmul.mubr.f32.gmra.mrb[0].mxu0 %v1870
        %v1944 = vpop.f32.mrb[0].mxu0
        %v1945 = vadd.f32 0.0, %v1944
        %v1946 = vpop.f32.mrb[0].mxu0
        %1947 = vdwg.mxu0
        %v1948 = vsel %vm1865, -1e+09, %v1945
        %v1949 = vsel %vm1663, %v1948, -inf
        %1950 = vmax.xlane.f32.xlu0 %v1949
        %v1951 = vpop.xlane.xlu0 %1950
        %v1952 = vsub.f32 %v1948, %v1951
        %v1953 = vmul.f32 %v1952, 1.442695
        %v1954 = vpow.pop %v1953
        %v1955 = vsel %vm1663, %v1954, 0.0
        %1956 = vadd.xlane.f32.xlu0 %v1955
        %v1957 = vpop.xlane.xlu0 %1956
        %v1958 = vrcp.pop %v1957
        %v1959 = vmul.f32 %v1954, %v1958
        %1960 = vrot.lane.b32.xlu0 %v1867, 96
        %v1961 = vpop.permute.xlu0 %1960
        %1962 = vrot.lane.b32.xlu0 %v1868, 96
        %v1963 = vpop.permute.xlu0 %1962
        %v1967 = vsel %vm1663, %v1959, 0
        %1969 = vmatprep.subr.mxu0 0.0
        %1970 = vmatpush1.msra.mxu0 %v1961
        %1971 = vmatprep.subr.mxu0 0.0
        %1972 = vmatpush1.msra.mxu0 %v1963
        %1973 = vmatprep.subr.mxu0 0.0
        %1974 = vmatpush1.msra.mxu0 0.0
        %1975 = vmatprep.subr.mxu0 0.0
        %1976 = vmatpush1.msra.mxu0 0.0
        %1977 = vmatprep.subr.mxu0 0.0
        %1978 = vmatpush1.msra.mxu0 0.0
        %1979 = vmatprep.subr.mxu0 0.0
        %1980 = vmatpush1.msra.mxu0 0.0
        %1981 = vmatprep.subr.mxu0 0.0
        %1982 = vmatpush1.msra.mxu0 0.0
        %1983 = vmatprep.subr.mxu0 0.0
        %1984 = vmatpush1.msra.mxu0 0.0
        %1985 = vmatprep.subr.mxu0 0.0
        %1986 = vmatpush1.msra.mxu0 0.0
        %1987 = vmatprep.subr.mxu0 0.0
        %1988 = vmatpush1.msra.mxu0 0.0
        %1989 = vmatprep.subr.mxu0 0.0
        %1990 = vmatpush1.msra.mxu0 0.0
        %1991 = vmatprep.subr.mxu0 0.0
        %1992 = vmatpush1.msra.mxu0 0.0
        %1993 = vmatprep.subr.mxu0 0.0
        %1994 = vmatpush1.msra.mxu0 0.0
        %1995 = vmatprep.subr.mxu0 0.0
        %1996 = vmatpush1.msra.mxu0 0.0
        %1997 = vmatprep.subr.mxu0 0.0
        %1998 = vmatpush1.msra.mxu0 0.0
        %1999 = vmatprep.subr.mxu0 0.0
        %2000 = vmatpush1.msra.mxu0 0.0
        %2001 = vmatprep.subr.mxu0 0.0
        %2002 = vmatpush1.msra.mxu0 0.0
        %2003 = vmatprep.subr.mxu0 0.0
        %2004 = vmatpush1.msra.mxu0 0.0
        %2005 = vmatprep.subr.mxu0 0.0
        %2006 = vmatpush1.msra.mxu0 0.0
        %2007 = vmatprep.subr.mxu0 0.0
        %2008 = vmatpush1.msra.mxu0 0.0
        %2009 = vmatprep.subr.mxu0 0.0
        %2010 = vmatpush1.msra.mxu0 0.0
        %2011 = vmatprep.subr.mxu0 0.0
        %2012 = vmatpush1.msra.mxu0 0.0
        %2013 = vmatprep.subr.mxu0 0.0
        %2014 = vmatpush1.msra.mxu0 0.0
        %2015 = vmatprep.subr.mxu0 0.0
        %2016 = vmatpush1.msra.mxu0 0.0
        %2017 = vmatprep.subr.mxu0 0.0
        %2018 = vmatpush1.msra.mxu0 0.0
        %2019 = vmatprep.subr.mxu0 0.0
        %2020 = vmatpush1.msra.mxu0 0.0
        %2021 = vmatprep.subr.mxu0 0.0
        %2022 = vmatpush1.msra.mxu0 0.0
        %2023 = vmatprep.subr.mxu0 0.0
        %2024 = vmatpush1.msra.mxu0 0.0
        %2025 = vmatprep.subr.mxu0 0.0
        %2026 = vmatpush1.msra.mxu0 0.0
        %2027 = vmatprep.subr.mxu0 0.0
        %2028 = vmatpush1.msra.mxu0 0.0
        %2029 = vmatprep.subr.mxu0 0.0
        %2030 = vmatpush1.msra.mxu0 0.0
        %2031 = vmatprep.subr.mxu0 0.0
        %2032 = vmatpush1.msra.mxu0 0.0
        %2033 = vmatprep.mubr.f32.mxu0 0.0
        %2034 = vmatmul.mubr.f32.gmra.mrb[0].mxu0 %v1967
        %v2035 = vpop.f32.mrb[0].mxu0
        %v2036 = vadd.f32 0.0, %v2035
        %v2037 = vpop.f32.mrb[0].mxu0
        %2038 = vdwg.mxu0
        %2039 = vrot.lane.b32.xlu0 %v1866, 120
        %v2040 = vpop.permute.xlu0 %2039
        %2041 = vrot.lane.b32.xlu0 %v1867, 120
        %v2042 = vpop.permute.xlu0 %2041
        %2043 = vrot.lane.b32.xlu0 %v1868, 120
        %v2044 = vpop.permute.xlu0 %2043
        %v2045 = vsel %vm987, %v2040, 0
        %v2047 = vsel %vm987, %v2042, 0
        %v2049 = vsel %vm987, %v2044, 0
        %2051 = vmatprep.subr.mxu0 0.0
        %2052 = vmatpush1.xpose.msra.mxu0 %v2047
        %2053 = vmatprep.subr.mxu0 0.0
        %2054 = vmatpush1.xpose.msra.mxu0 %v2049
        %2055 = vmatprep.subr.mxu0 0.0
        %2056 = vmatpush1.xpose.msra.mxu0 0.0
        %2057 = vmatprep.subr.mxu0 0.0
        %2058 = vmatpush1.xpose.msra.mxu0 0.0
        %2059 = vmatprep.subr.mxu0 0.0
        %2060 = vmatpush1.xpose.msra.mxu0 0.0
        %2061 = vmatprep.subr.mxu0 0.0
        %2062 = vmatpush1.xpose.msra.mxu0 0.0
        %2063 = vmatprep.subr.mxu0 0.0
        %2064 = vmatpush1.xpose.msra.mxu0 0.0
        %2065 = vmatprep.subr.mxu0 0.0
        %2066 = vmatpush1.xpose.msra.mxu0 0.0
        %2067 = vmatprep.subr.mxu0 0.0
        %2068 = vmatpush1.xpose.msra.mxu0 0.0
        %2069 = vmatprep.subr.mxu0 0.0
        %2070 = vmatpush1.xpose.msra.mxu0 0.0
        %2071 = vmatprep.subr.mxu0 0.0
        %2072 = vmatpush1.xpose.msra.mxu0 0.0
        %2073 = vmatprep.subr.mxu0 0.0
        %2074 = vmatpush1.xpose.msra.mxu0 0.0
        %2075 = vmatprep.subr.mxu0 0.0
        %2076 = vmatpush1.xpose.msra.mxu0 0.0
        %2077 = vmatprep.subr.mxu0 0.0
        %2078 = vmatpush1.xpose.msra.mxu0 0.0
        %2079 = vmatprep.subr.mxu0 0.0
        %2080 = vmatpush1.xpose.msra.mxu0 0.0
        %2081 = vmatprep.subr.mxu0 0.0
        %2082 = vmatpush1.xpose.msra.mxu0 0.0
        %2083 = vmatprep.subr.mxu0 0.0
        %2084 = vmatpush1.xpose.msra.mxu0 0.0
        %2085 = vmatprep.subr.mxu0 0.0
        %2086 = vmatpush1.xpose.msra.mxu0 0.0
        %2087 = vmatprep.subr.mxu0 0.0
        %2088 = vmatpush1.xpose.msra.mxu0 0.0
        %2089 = vmatprep.subr.mxu0 0.0
        %2090 = vmatpush1.xpose.msra.mxu0 0.0
        %2091 = vmatprep.subr.mxu0 0.0
        %2092 = vmatpush1.xpose.msra.mxu0 0.0
        %2093 = vmatprep.subr.mxu0 0.0
        %2094 = vmatpush1.xpose.msra.mxu0 0.0
        %2095 = vmatprep.subr.mxu0 0.0
        %2096 = vmatpush1.xpose.msra.mxu0 0.0
        %2097 = vmatprep.subr.mxu0 0.0
        %2098 = vmatpush1.xpose.msra.mxu0 0.0
        %2099 = vmatprep.subr.mxu0 0.0
        %2100 = vmatpush1.xpose.msra.mxu0 0.0
        %2101 = vmatprep.subr.mxu0 0.0
        %2102 = vmatpush1.xpose.msra.mxu0 0.0
        %2103 = vmatprep.subr.mxu0 0.0
        %2104 = vmatpush1.xpose.msra.mxu0 0.0
        %2105 = vmatprep.subr.mxu0 0.0
        %2106 = vmatpush1.xpose.msra.mxu0 0.0
        %2107 = vmatprep.subr.mxu0 0.0
        %2108 = vmatpush1.xpose.msra.mxu0 0.0
        %2109 = vmatprep.subr.mxu0 0.0
        %2110 = vmatpush1.xpose.msra.mxu0 0.0
        %2111 = vmatprep.subr.mxu0 0.0
        %2112 = vmatpush1.xpose.msra.mxu0 0.0
        %2113 = vmatprep.subr.mxu0 0.0
        %2114 = vmatpush1.xpose.msra.mxu0 0.0
        %2115 = vmatprep.mubr.f32.mxu0 0.0
        %2116 = vmatmul.mubr.f32.gmra.mrb[0].mxu0 %v2045
        %v2117 = vpop.f32.mrb[0].mxu0
        %v2118 = vadd.f32 0.0, %v2117
        %v2119 = vpop.f32.mrb[0].mxu0
        %2120 = vdwg.mxu0
        %v2121 = vsel %vm1865, -1e+09, %v2118
        %v2122 = vsel %vm1663, %v2121, -inf
        %2123 = vmax.xlane.f32.xlu0 %v2122
        %v2124 = vpop.xlane.xlu0 %2123
        %v2125 = vsub.f32 %v2121, %v2124
        %v2126 = vmul.f32 %v2125, 1.442695
        %v2127 = vpow.pop %v2126
        %v2128 = vsel %vm1663, %v2127, 0.0
        %2129 = vadd.xlane.f32.xlu0 %v2128
        %v2130 = vpop.xlane.xlu0 %2129
        %v2131 = vrcp.pop %v2130
        %v2132 = vmul.f32 %v2127, %v2131
        %2133 = vrot.lane.b32.xlu0 %v1867, 88
        %v2134 = vpop.permute.xlu0 %2133
        %2135 = vrot.lane.b32.xlu0 %v1868, 88
        %v2136 = vpop.permute.xlu0 %2135
        %v2140 = vsel %vm1663, %v2132, 0
        %2142 = vmatprep.subr.mxu0 0.0
        %2143 = vmatpush1.msra.mxu0 %v2134
        %2144 = vmatprep.subr.mxu0 0.0
        %2145 = vmatpush1.msra.mxu0 %v2136
        %2146 = vmatprep.subr.mxu0 0.0
        %2147 = vmatpush1.msra.mxu0 0.0
        %2148 = vmatprep.subr.mxu0 0.0
        %2149 = vmatpush1.msra.mxu0 0.0
        %2150 = vmatprep.subr.mxu0 0.0
        %2151 = vmatpush1.msra.mxu0 0.0
        %2152 = vmatprep.subr.mxu0 0.0
        %2153 = vmatpush1.msra.mxu0 0.0
        %2154 = vmatprep.subr.mxu0 0.0
        %2155 = vmatpush1.msra.mxu0 0.0
        %2156 = vmatprep.subr.mxu0 0.0
        %2157 = vmatpush1.msra.mxu0 0.0
        %2158 = vmatprep.subr.mxu0 0.0
        %2159 = vmatpush1.msra.mxu0 0.0
        %2160 = vmatprep.subr.mxu0 0.0
        %2161 = vmatpush1.msra.mxu0 0.0
        %2162 = vmatprep.subr.mxu0 0.0
        %2163 = vmatpush1.msra.mxu0 0.0
        %2164 = vmatprep.subr.mxu0 0.0
        %2165 = vmatpush1.msra.mxu0 0.0
        %2166 = vmatprep.subr.mxu0 0.0
        %2167 = vmatpush1.msra.mxu0 0.0
        %2168 = vmatprep.subr.mxu0 0.0
        %2169 = vmatpush1.msra.mxu0 0.0
        %2170 = vmatprep.subr.mxu0 0.0
        %2171 = vmatpush1.msra.mxu0 0.0
        %2172 = vmatprep.subr.mxu0 0.0
        %2173 = vmatpush1.msra.mxu0 0.0
        %2174 = vmatprep.subr.mxu0 0.0
        %2175 = vmatpush1.msra.mxu0 0.0
        %2176 = vmatprep.subr.mxu0 0.0
        %2177 = vmatpush1.msra.mxu0 0.0
        %2178 = vmatprep.subr.mxu0 0.0
        %2179 = vmatpush1.msra.mxu0 0.0
        %2180 = vmatprep.subr.mxu0 0.0
        %2181 = vmatpush1.msra.mxu0 0.0
        %2182 = vmatprep.subr.mxu0 0.0
        %2183 = vmatpush1.msra.mxu0 0.0
        %2184 = vmatprep.subr.mxu0 0.0
        %2185 = vmatpush1.msra.mxu0 0.0
        %2186 = vmatprep.subr.mxu0 0.0
        %2187 = vmatpush1.msra.mxu0 0.0
        %2188 = vmatprep.subr.mxu0 0.0
        %2189 = vmatpush1.msra.mxu0 0.0
        %2190 = vmatprep.subr.mxu0 0.0
        %2191 = vmatpush1.msra.mxu0 0.0
        %2192 = vmatprep.subr.mxu0 0.0
        %2193 = vmatpush1.msra.mxu0 0.0
        %2194 = vmatprep.subr.mxu0 0.0
        %2195 = vmatpush1.msra.mxu0 0.0
        %2196 = vmatprep.subr.mxu0 0.0
        %2197 = vmatpush1.msra.mxu0 0.0
        %2198 = vmatprep.subr.mxu0 0.0
        %2199 = vmatpush1.msra.mxu0 0.0
        %2200 = vmatprep.subr.mxu0 0.0
        %2201 = vmatpush1.msra.mxu0 0.0
        %2202 = vmatprep.subr.mxu0 0.0
        %2203 = vmatpush1.msra.mxu0 0.0
        %2204 = vmatprep.subr.mxu0 0.0
        %2205 = vmatpush1.msra.mxu0 0.0
        %2206 = vmatprep.mubr.f32.mxu0 0.0
        %2207 = vmatmul.mubr.f32.gmra.mrb[0].mxu0 %v2140
        %v2208 = vpop.f32.mrb[0].mxu0
        %v2209 = vadd.f32 0.0, %v2208
        %v2210 = vpop.f32.mrb[0].mxu0
        %2211 = vdwg.mxu0
        %2212 = vrot.lane.b32.xlu0 %v1866, 112
        %v2213 = vpop.permute.xlu0 %2212
        %2214 = vrot.lane.b32.xlu0 %v1867, 112
        %v2215 = vpop.permute.xlu0 %2214
        %2216 = vrot.lane.b32.xlu0 %v1868, 112
        %v2217 = vpop.permute.xlu0 %2216
        %v2218 = vsel %vm987, %v2213, 0
        %v2220 = vsel %vm987, %v2215, 0
        %v2222 = vsel %vm987, %v2217, 0
        %2224 = vmatprep.subr.mxu0 0.0
        %2225 = vmatpush1.xpose.msra.mxu0 %v2220
        %2226 = vmatprep.subr.mxu0 0.0
        %2227 = vmatpush1.xpose.msra.mxu0 %v2222
        %2228 = vmatprep.subr.mxu0 0.0
        %2229 = vmatpush1.xpose.msra.mxu0 0.0
        %2230 = vmatprep.subr.mxu0 0.0
        %2231 = vmatpush1.xpose.msra.mxu0 0.0
        %2232 = vmatprep.subr.mxu0 0.0
        %2233 = vmatpush1.xpose.msra.mxu0 0.0
        %2234 = vmatprep.subr.mxu0 0.0
        %2235 = vmatpush1.xpose.msra.mxu0 0.0
        %2236 = vmatprep.subr.mxu0 0.0
        %2237 = vmatpush1.xpose.msra.mxu0 0.0
        %2238 = vmatprep.subr.mxu0 0.0
        %2239 = vmatpush1.xpose.msra.mxu0 0.0
        %2240 = vmatprep.subr.mxu0 0.0
        %2241 = vmatpush1.xpose.msra.mxu0 0.0
        %2242 = vmatprep.subr.mxu0 0.0
        %2243 = vmatpush1.xpose.msra.mxu0 0.0
        %2244 = vmatprep.subr.mxu0 0.0
        %2245 = vmatpush1.xpose.msra.mxu0 0.0
        %2246 = vmatprep.subr.mxu0 0.0
        %2247 = vmatpush1.xpose.msra.mxu0 0.0
        %2248 = vmatprep.subr.mxu0 0.0
        %2249 = vmatpush1.xpose.msra.mxu0 0.0
        %2250 = vmatprep.subr.mxu0 0.0
        %2251 = vmatpush1.xpose.msra.mxu0 0.0
        %2252 = vmatprep.subr.mxu0 0.0
        %2253 = vmatpush1.xpose.msra.mxu0 0.0
        %2254 = vmatprep.subr.mxu0 0.0
        %2255 = vmatpush1.xpose.msra.mxu0 0.0
        %2256 = vmatprep.subr.mxu0 0.0
        %2257 = vmatpush1.xpose.msra.mxu0 0.0
        %2258 = vmatprep.subr.mxu0 0.0
        %2259 = vmatpush1.xpose.msra.mxu0 0.0
        %2260 = vmatprep.subr.mxu0 0.0
        %2261 = vmatpush1.xpose.msra.mxu0 0.0
        %2262 = vmatprep.subr.mxu0 0.0
        %2263 = vmatpush1.xpose.msra.mxu0 0.0
        %2264 = vmatprep.subr.mxu0 0.0
        %2265 = vmatpush1.xpose.msra.mxu0 0.0
        %2266 = vmatprep.subr.mxu0 0.0
        %2267 = vmatpush1.xpose.msra.mxu0 0.0
        %2268 = vmatprep.subr.mxu0 0.0
        %2269 = vmatpush1.xpose.msra.mxu0 0.0
        %2270 = vmatprep.subr.mxu0 0.0
        %2271 = vmatpush1.xpose.msra.mxu0 0.0
        %2272 = vmatprep.subr.mxu0 0.0
        %2273 = vmatpush1.xpose.msra.mxu0 0.0
        %2274 = vmatprep.subr.mxu0 0.0
        %2275 = vmatpush1.xpose.msra.mxu0 0.0
        %2276 = vmatprep.subr.mxu0 0.0
        %2277 = vmatpush1.xpose.msra.mxu0 0.0
        %2278 = vmatprep.subr.mxu0 0.0
        %2279 = vmatpush1.xpose.msra.mxu0 0.0
        %2280 = vmatprep.subr.mxu0 0.0
        %2281 = vmatpush1.xpose.msra.mxu0 0.0
        %2282 = vmatprep.subr.mxu0 0.0
        %2283 = vmatpush1.xpose.msra.mxu0 0.0
        %2284 = vmatprep.subr.mxu0 0.0
        %2285 = vmatpush1.xpose.msra.mxu0 0.0
        %2286 = vmatprep.subr.mxu0 0.0
        %2287 = vmatpush1.xpose.msra.mxu0 0.0
        %2288 = vmatprep.mubr.f32.mxu0 0.0
        %2289 = vmatmul.mubr.f32.gmra.mrb[0].mxu0 %v2218
        %v2290 = vpop.f32.mrb[0].mxu0
        %v2291 = vadd.f32 0.0, %v2290
        %v2292 = vpop.f32.mrb[0].mxu0
        %2293 = vdwg.mxu0
        %v2294 = vsel %vm1865, -1e+09, %v2291
        %v2295 = vsel %vm1663, %v2294, -inf
        %2296 = vmax.xlane.f32.xlu0 %v2295
        %v2297 = vpop.xlane.xlu0 %2296
        %v2298 = vsub.f32 %v2294, %v2297
        %v2299 = vmul.f32 %v2298, 1.442695
        %v2300 = vpow.pop %v2299
        %v2301 = vsel %vm1663, %v2300, 0.0
        %2302 = vadd.xlane.f32.xlu0 %v2301
        %v2303 = vpop.xlane.xlu0 %2302
        %v2304 = vrcp.pop %v2303
        %v2305 = vmul.f32 %v2300, %v2304
        %2306 = vrot.lane.b32.xlu0 %v1867, 80
        %v2307 = vpop.permute.xlu0 %2306
        %2308 = vrot.lane.b32.xlu0 %v1868, 80
        %v2309 = vpop.permute.xlu0 %2308
        %v2313 = vsel %vm1663, %v2305, 0
        %2315 = vmatprep.subr.mxu0 0.0
        %2316 = vmatpush1.msra.mxu0 %v2307
        %2317 = vmatprep.subr.mxu0 0.0
        %2318 = vmatpush1.msra.mxu0 %v2309
        %2319 = vmatprep.subr.mxu0 0.0
        %2320 = vmatpush1.msra.mxu0 0.0
        %2321 = vmatprep.subr.mxu0 0.0
        %2322 = vmatpush1.msra.mxu0 0.0
        %2323 = vmatprep.subr.mxu0 0.0
        %2324 = vmatpush1.msra.mxu0 0.0
        %2325 = vmatprep.subr.mxu0 0.0
        %2326 = vmatpush1.msra.mxu0 0.0
        %2327 = vmatprep.subr.mxu0 0.0
        %2328 = vmatpush1.msra.mxu0 0.0
        %2329 = vmatprep.subr.mxu0 0.0
        %2330 = vmatpush1.msra.mxu0 0.0
        %2331 = vmatprep.subr.mxu0 0.0
        %2332 = vmatpush1.msra.mxu0 0.0
        %2333 = vmatprep.subr.mxu0 0.0
        %2334 = vmatpush1.msra.mxu0 0.0
        %2335 = vmatprep.subr.mxu0 0.0
        %2336 = vmatpush1.msra.mxu0 0.0
        %2337 = vmatprep.subr.mxu0 0.0
        %2338 = vmatpush1.msra.mxu0 0.0
        %2339 = vmatprep.subr.mxu0 0.0
        %2340 = vmatpush1.msra.mxu0 0.0
        %2341 = vmatprep.subr.mxu0 0.0
        %2342 = vmatpush1.msra.mxu0 0.0
        %2343 = vmatprep.subr.mxu0 0.0
        %2344 = vmatpush1.msra.mxu0 0.0
        %2345 = vmatprep.subr.mxu0 0.0
        %2346 = vmatpush1.msra.mxu0 0.0
        %2347 = vmatprep.subr.mxu0 0.0
        %2348 = vmatpush1.msra.mxu0 0.0
        %2349 = vmatprep.subr.mxu0 0.0
        %2350 = vmatpush1.msra.mxu0 0.0
        %2351 = vmatprep.subr.mxu0 0.0
        %2352 = vmatpush1.msra.mxu0 0.0
        %2353 = vmatprep.subr.mxu0 0.0
        %2354 = vmatpush1.msra.mxu0 0.0
        %2355 = vmatprep.subr.mxu0 0.0
        %2356 = vmatpush1.msra.mxu0 0.0
        %2357 = vmatprep.subr.mxu0 0.0
        %2358 = vmatpush1.msra.mxu0 0.0
        %2359 = vmatprep.subr.mxu0 0.0
        %2360 = vmatpush1.msra.mxu0 0.0
        %2361 = vmatprep.subr.mxu0 0.0
        %2362 = vmatpush1.msra.mxu0 0.0
        %2363 = vmatprep.subr.mxu0 0.0
        %2364 = vmatpush1.msra.mxu0 0.0
        %2365 = vmatprep.subr.mxu0 0.0
        %2366 = vmatpush1.msra.mxu0 0.0
        %2367 = vmatprep.subr.mxu0 0.0
        %2368 = vmatpush1.msra.mxu0 0.0
        %2369 = vmatprep.subr.mxu0 0.0
        %2370 = vmatpush1.msra.mxu0 0.0
        %2371 = vmatprep.subr.mxu0 0.0
        %2372 = vmatpush1.msra.mxu0 0.0
        %2373 = vmatprep.subr.mxu0 0.0
        %2374 = vmatpush1.msra.mxu0 0.0
        %2375 = vmatprep.subr.mxu0 0.0
        %2376 = vmatpush1.msra.mxu0 0.0
        %2377 = vmatprep.subr.mxu0 0.0
        %2378 = vmatpush1.msra.mxu0 0.0
        %2379 = vmatprep.mubr.f32.mxu0 0.0
        %2380 = vmatmul.mubr.f32.gmra.mrb[0].mxu0 %v2313
        %v2381 = vpop.f32.mrb[0].mxu0
        %v2382 = vadd.f32 0.0, %v2381
        %v2383 = vpop.f32.mrb[0].mxu0
        %2384 = vdwg.mxu0
        %2385 = vrot.lane.b32.xlu0 %v1866, 104
        %v2386 = vpop.permute.xlu0 %2385
        %2387 = vrot.lane.b32.xlu0 %v1867, 104
        %v2388 = vpop.permute.xlu0 %2387
        %2389 = vrot.lane.b32.xlu0 %v1868, 104
        %v2390 = vpop.permute.xlu0 %2389
        %v2391 = vsel %vm987, %v2386, 0
        %v2393 = vsel %vm987, %v2388, 0
        %v2395 = vsel %vm987, %v2390, 0
        %2397 = vmatprep.subr.mxu0 0.0
        %2398 = vmatpush1.xpose.msra.mxu0 %v2393
        %2399 = vmatprep.subr.mxu0 0.0
        %2400 = vmatpush1.xpose.msra.mxu0 %v2395
        %2401 = vmatprep.subr.mxu0 0.0
        %2402 = vmatpush1.xpose.msra.mxu0 0.0
        %2403 = vmatprep.subr.mxu0 0.0
        %2404 = vmatpush1.xpose.msra.mxu0 0.0
        %2405 = vmatprep.subr.mxu0 0.0
        %2406 = vmatpush1.xpose.msra.mxu0 0.0
        %2407 = vmatprep.subr.mxu0 0.0
        %2408 = vmatpush1.xpose.msra.mxu0 0.0
        %2409 = vmatprep.subr.mxu0 0.0
        %2410 = vmatpush1.xpose.msra.mxu0 0.0
        %2411 = vmatprep.subr.mxu0 0.0
        %2412 = vmatpush1.xpose.msra.mxu0 0.0
        %2413 = vmatprep.subr.mxu0 0.0
        %2414 = vmatpush1.xpose.msra.mxu0 0.0
        %2415 = vmatprep.subr.mxu0 0.0
        %2416 = vmatpush1.xpose.msra.mxu0 0.0
        %2417 = vmatprep.subr.mxu0 0.0
        %2418 = vmatpush1.xpose.msra.mxu0 0.0
        %2419 = vmatprep.subr.mxu0 0.0
        %2420 = vmatpush1.xpose.msra.mxu0 0.0
        %2421 = vmatprep.subr.mxu0 0.0
        %2422 = vmatpush1.xpose.msra.mxu0 0.0
        %2423 = vmatprep.subr.mxu0 0.0
        %2424 = vmatpush1.xpose.msra.mxu0 0.0
        %2425 = vmatprep.subr.mxu0 0.0
        %2426 = vmatpush1.xpose.msra.mxu0 0.0
        %2427 = vmatprep.subr.mxu0 0.0
        %2428 = vmatpush1.xpose.msra.mxu0 0.0
        %2429 = vmatprep.subr.mxu0 0.0
        %2430 = vmatpush1.xpose.msra.mxu0 0.0
        %2431 = vmatprep.subr.mxu0 0.0
        %2432 = vmatpush1.xpose.msra.mxu0 0.0
        %2433 = vmatprep.subr.mxu0 0.0
        %2434 = vmatpush1.xpose.msra.mxu0 0.0
        %2435 = vmatprep.subr.mxu0 0.0
        %2436 = vmatpush1.xpose.msra.mxu0 0.0
        %2437 = vmatprep.subr.mxu0 0.0
        %2438 = vmatpush1.xpose.msra.mxu0 0.0
        %2439 = vmatprep.subr.mxu0 0.0
        %2440 = vmatpush1.xpose.msra.mxu0 0.0
        %2441 = vmatprep.subr.mxu0 0.0
        %2442 = vmatpush1.xpose.msra.mxu0 0.0
        %2443 = vmatprep.subr.mxu0 0.0
        %2444 = vmatpush1.xpose.msra.mxu0 0.0
        %2445 = vmatprep.subr.mxu0 0.0
        %2446 = vmatpush1.xpose.msra.mxu0 0.0
        %2447 = vmatprep.subr.mxu0 0.0
        %2448 = vmatpush1.xpose.msra.mxu0 0.0
        %2449 = vmatprep.subr.mxu0 0.0
        %2450 = vmatpush1.xpose.msra.mxu0 0.0
        %2451 = vmatprep.subr.mxu0 0.0
        %2452 = vmatpush1.xpose.msra.mxu0 0.0
        %2453 = vmatprep.subr.mxu0 0.0
        %2454 = vmatpush1.xpose.msra.mxu0 0.0
        %2455 = vmatprep.subr.mxu0 0.0
        %2456 = vmatpush1.xpose.msra.mxu0 0.0
        %2457 = vmatprep.subr.mxu0 0.0
        %2458 = vmatpush1.xpose.msra.mxu0 0.0
        %2459 = vmatprep.subr.mxu0 0.0
        %2460 = vmatpush1.xpose.msra.mxu0 0.0
        %2461 = vmatprep.mubr.f32.mxu0 0.0
        %2462 = vmatmul.mubr.f32.gmra.mrb[0].mxu0 %v2391
        %v2463 = vpop.f32.mrb[0].mxu0
        %v2464 = vadd.f32 0.0, %v2463
        %v2465 = vpop.f32.mrb[0].mxu0
        %2466 = vdwg.mxu0
        %v2467 = vsel %vm1865, -1e+09, %v2464
        %v2468 = vsel %vm1663, %v2467, -inf
        %2469 = vmax.xlane.f32.xlu0 %v2468
        %v2470 = vpop.xlane.xlu0 %2469
        %v2471 = vsub.f32 %v2467, %v2470
        %v2472 = vmul.f32 %v2471, 1.442695
        %v2473 = vpow.pop %v2472
        %v2474 = vsel %vm1663, %v2473, 0.0
        %2475 = vadd.xlane.f32.xlu0 %v2474
        %v2476 = vpop.xlane.xlu0 %2475
        %v2477 = vrcp.pop %v2476
        %v2478 = vmul.f32 %v2473, %v2477
        %2479 = vrot.lane.b32.xlu0 %v1867, 72
        %v2480 = vpop.permute.xlu0 %2479
        %2481 = vrot.lane.b32.xlu0 %v1868, 72
        %v2482 = vpop.permute.xlu0 %2481
        %v2486 = vsel %vm1663, %v2478, 0
        %2488 = vmatprep.subr.mxu0 0.0
        %2489 = vmatpush1.msra.mxu0 %v2480
        %2490 = vmatprep.subr.mxu0 0.0
        %2491 = vmatpush1.msra.mxu0 %v2482
        %2492 = vmatprep.subr.mxu0 0.0
        %2493 = vmatpush1.msra.mxu0 0.0
        %2494 = vmatprep.subr.mxu0 0.0
        %2495 = vmatpush1.msra.mxu0 0.0
        %2496 = vmatprep.subr.mxu0 0.0
        %2497 = vmatpush1.msra.mxu0 0.0
        %2498 = vmatprep.subr.mxu0 0.0
        %2499 = vmatpush1.msra.mxu0 0.0
        %2500 = vmatprep.subr.mxu0 0.0
        %2501 = vmatpush1.msra.mxu0 0.0
        %2502 = vmatprep.subr.mxu0 0.0
        %2503 = vmatpush1.msra.mxu0 0.0
        %2504 = vmatprep.subr.mxu0 0.0
        %2505 = vmatpush1.msra.mxu0 0.0
        %2506 = vmatprep.subr.mxu0 0.0
        %2507 = vmatpush1.msra.mxu0 0.0
        %2508 = vmatprep.subr.mxu0 0.0
        %2509 = vmatpush1.msra.mxu0 0.0
        %2510 = vmatprep.subr.mxu0 0.0
        %2511 = vmatpush1.msra.mxu0 0.0
        %2512 = vmatprep.subr.mxu0 0.0
        %2513 = vmatpush1.msra.mxu0 0.0
        %2514 = vmatprep.subr.mxu0 0.0
        %2515 = vmatpush1.msra.mxu0 0.0
        %2516 = vmatprep.subr.mxu0 0.0
        %2517 = vmatpush1.msra.mxu0 0.0
        %2518 = vmatprep.subr.mxu0 0.0
        %2519 = vmatpush1.msra.mxu0 0.0
        %2520 = vmatprep.subr.mxu0 0.0
        %2521 = vmatpush1.msra.mxu0 0.0
        %2522 = vmatprep.subr.mxu0 0.0
        %2523 = vmatpush1.msra.mxu0 0.0
        %2524 = vmatprep.subr.mxu0 0.0
        %2525 = vmatpush1.msra.mxu0 0.0
        %2526 = vmatprep.subr.mxu0 0.0
        %2527 = vmatpush1.msra.mxu0 0.0
        %2528 = vmatprep.subr.mxu0 0.0
        %2529 = vmatpush1.msra.mxu0 0.0
        %2530 = vmatprep.subr.mxu0 0.0
        %2531 = vmatpush1.msra.mxu0 0.0
        %2532 = vmatprep.subr.mxu0 0.0
        %2533 = vmatpush1.msra.mxu0 0.0
        %2534 = vmatprep.subr.mxu0 0.0
        %2535 = vmatpush1.msra.mxu0 0.0
        %2536 = vmatprep.subr.mxu0 0.0
        %2537 = vmatpush1.msra.mxu0 0.0
        %2538 = vmatprep.subr.mxu0 0.0
        %2539 = vmatpush1.msra.mxu0 0.0
        %2540 = vmatprep.subr.mxu0 0.0
        %2541 = vmatpush1.msra.mxu0 0.0
        %2542 = vmatprep.subr.mxu0 0.0
        %2543 = vmatpush1.msra.mxu0 0.0
        %2544 = vmatprep.subr.mxu0 0.0
        %2545 = vmatpush1.msra.mxu0 0.0
        %2546 = vmatprep.subr.mxu0 0.0
        %2547 = vmatpush1.msra.mxu0 0.0
        %2548 = vmatprep.subr.mxu0 0.0
        %2549 = vmatpush1.msra.mxu0 0.0
        %2550 = vmatprep.subr.mxu0 0.0
        %2551 = vmatpush1.msra.mxu0 0.0
        %2552 = vmatprep.mubr.f32.mxu0 0.0
        %2553 = vmatmul.mubr.f32.gmra.mrb[0].mxu0 %v2486
        %v2554 = vpop.f32.mrb[0].mxu0
        %v2555 = vadd.f32 0.0, %v2554
        %v2556 = vpop.f32.mrb[0].mxu0
        %2557 = vdwg.mxu0
        %2559 = vrot.lane.b32.xlu0 %v2209, 8
        %v2560 = vpop.permute.xlu0 %2559
        %2563 = vrot.lane.b32.xlu0 %v2382, 16
        %v2564 = vpop.permute.xlu0 %2563
        %2567 = vrot.lane.b32.xlu0 %v2555, 24
        %v2568 = vpop.permute.xlu0 %2567
        %v2570 = vsel %vm987, %v2036, %v2560
        %v2571 = vsel %vm1663, %v2570, %v2564
        %v2572 = vsel %vm1665, %v2571, %v2568
        %v2573 = vld [vmem:[#allocation12] sm:$0xff]
        %v2574 = vld [vmem:[#allocation12 + $0x8] sm:$0xff]
        %v2575 = vld [vmem:[#allocation12 + $0x10] sm:$0xff]
        %v2576 = vld [vmem:[#allocation12 + $0x18] sm:$0xff]
        %v2577 = vld [vmem:[%s13] sm:$0x1]
        %v2579 = vlaneseq
        %v2580 = vshrl.u32 %v2579, 7
        %v2581 = vsub.s32 0, %v2580
        %v2582 = vrot.slane %v2577, %v2581
        %v2585 = vsel %vm1678, %v2572, 0
        %2587 = vmatprep.subr.mxu0 0.0
        %2588 = vmatpush1.msra.mxu0 %v2573
        %2589 = vmatprep.subr.mxu0 0.0
        %2590 = vmatpush1.msra.mxu0 %v2574
        %2591 = vmatprep.subr.mxu0 0.0
        %2592 = vmatpush1.msra.mxu0 %v2575
        %2593 = vmatprep.subr.mxu0 0.0
        %2594 = vmatpush1.msra.mxu0 %v2576
        %2595 = vmatprep.subr.mxu0 0.0
        %2596 = vmatpush1.msra.mxu0 0.0
        %2597 = vmatprep.subr.mxu0 0.0
        %2598 = vmatpush1.msra.mxu0 0.0
        %2599 = vmatprep.subr.mxu0 0.0
        %2600 = vmatpush1.msra.mxu0 0.0
        %2601 = vmatprep.subr.mxu0 0.0
        %2602 = vmatpush1.msra.mxu0 0.0
        %2603 = vmatprep.subr.mxu0 0.0
        %2604 = vmatpush1.msra.mxu0 0.0
        %2605 = vmatprep.subr.mxu0 0.0
        %2606 = vmatpush1.msra.mxu0 0.0
        %2607 = vmatprep.subr.mxu0 0.0
        %2608 = vmatpush1.msra.mxu0 0.0
        %2609 = vmatprep.subr.mxu0 0.0
        %2610 = vmatpush1.msra.mxu0 0.0
        %2611 = vmatprep.subr.mxu0 0.0
        %2612 = vmatpush1.msra.mxu0 0.0
        %2613 = vmatprep.subr.mxu0 0.0
        %2614 = vmatpush1.msra.mxu0 0.0
        %2615 = vmatprep.subr.mxu0 0.0
        %2616 = vmatpush1.msra.mxu0 0.0
        %2617 = vmatprep.subr.mxu0 0.0
        %2618 = vmatpush1.msra.mxu0 0.0
        %2619 = vmatprep.subr.mxu0 0.0
        %2620 = vmatpush1.msra.mxu0 0.0
        %2621 = vmatprep.subr.mxu0 0.0
        %2622 = vmatpush1.msra.mxu0 0.0
        %2623 = vmatprep.subr.mxu0 0.0
        %2624 = vmatpush1.msra.mxu0 0.0
        %2625 = vmatprep.subr.mxu0 0.0
        %2626 = vmatpush1.msra.mxu0 0.0
        %2627 = vmatprep.subr.mxu0 0.0
        %2628 = vmatpush1.msra.mxu0 0.0
        %2629 = vmatprep.subr.mxu0 0.0
        %2630 = vmatpush1.msra.mxu0 0.0
        %2631 = vmatprep.subr.mxu0 0.0
        %2632 = vmatpush1.msra.mxu0 0.0
        %2633 = vmatprep.subr.mxu0 0.0
        %2634 = vmatpush1.msra.mxu0 0.0
        %2635 = vmatprep.subr.mxu0 0.0
        %2636 = vmatpush1.msra.mxu0 0.0
        %2637 = vmatprep.subr.mxu0 0.0
        %2638 = vmatpush1.msra.mxu0 0.0
        %2639 = vmatprep.subr.mxu0 0.0
        %2640 = vmatpush1.msra.mxu0 0.0
        %2641 = vmatprep.subr.mxu0 0.0
        %2642 = vmatpush1.msra.mxu0 0.0
        %2643 = vmatprep.subr.mxu0 0.0
        %2644 = vmatpush1.msra.mxu0 0.0
        %2645 = vmatprep.subr.mxu0 0.0
        %2646 = vmatpush1.msra.mxu0 0.0
        %2647 = vmatprep.subr.mxu0 0.0
        %2648 = vmatpush1.msra.mxu0 0.0
        %2649 = vmatprep.subr.mxu0 0.0
        %2650 = vmatpush1.msra.mxu0 0.0
        %2651 = vmatprep.mubr.f32.mxu0 0.0
        %2652 = vmatmul.mubr.f32.gmra.mrb[0].mxu0 %v2585
        %v2653 = vpop.f32.mrb[0].mxu0
        %v2654 = vadd.f32 %v2582, %v2653
        %v2655 = vpop.f32.mrb[0].mxu0
        %2656 = vdwg.mxu0
        %v2657 = vadd.f32 %v1752, %v2654
        %s2658 = sld [smem:[#allocation15 + $0x100]]
        %s2659 = sld [smem:[#allocation15 + $0x101]]
        %v2660 = vsel %vm1678, %v2657, 0.0
        %2661 = vadd.xlane.f32.xlu0 %v2660
        %v2662 = vpop.xlane.xlu0 %2661
        %v2663 = vmul.f32 %v2662, %v1758
        %v2664 = vsub.f32 %v2657, %v2663
        %v2665 = vmul.f32 %v2664, %v2664
        %v2666 = vsel %vm1678, %v2665, 0.0
        %2667 = vadd.xlane.f32.xlu0 %v2666
        %v2668 = vpop.xlane.xlu0 %2667
        %v2669 = vmul.f32 %v2668, 0.032258064
        %v2670 = vrsqrt.pop %v2669
        %v2671 = vmul.f32 %v2669, %v2670
        %vm2672 = vcmp.eq.f32.partialorder %v2669, inf
        %v2673 = vsel %vm2672, %v2669, %v2671
        %vm2674 = vcmp.eq.f32.partialorder %v2669, 0.0
        %v2675 = vand.u32 %v2669, 2147483648
        %v2676 = vsel %vm2674, %v2675, %v2673
        %v2677 = vadd.f32 %v2676, 1e-06
        %v2678 = vrcp.pop %v2677
        %v2679 = vstv %s2658
        %v2680 = vmul.f32 %v2679, %v2664
        %v2681 = vmul.f32 %v2680, %v2678
        %v2682 = vstv %s2659
        %v2683 = vadd.f32 %v2681, %v2682
        %v2684 = vld [vmem:[#allocation14] sm:$0xff]
        %v2685 = vld [vmem:[#allocation14 + $0x8] sm:$0xff]
        %v2686 = vld [vmem:[#allocation14 + $0x10] sm:$0xff]
        %v2687 = vld [vmem:[#allocation14 + $0x18] sm:$0xff]
        %v2688 = vld [vmem:[%s15] sm:$0x1]
        %v2690 = vlaneseq
        %v2691 = vshrl.u32 %v2690, 7
        %v2692 = vsub.s32 0, %v2691
        %v2693 = vrot.slane %v2688, %v2692
        %v2696 = vsel %vm1678, %v2683, 0
        %2698 = vmatprep.subr.mxu0 0.0
        %2699 = vmatpush1.msra.mxu0 %v2684
        %2700 = vmatprep.subr.mxu0 0.0
        %2701 = vmatpush1.msra.mxu0 %v2685
        %2702 = vmatprep.subr.mxu0 0.0
        %2703 = vmatpush1.msra.mxu0 %v2686
        %2704 = vmatprep.subr.mxu0 0.0
        %2705 = vmatpush1.msra.mxu0 %v2687
        %2706 = vmatprep.subr.mxu0 0.0
        %2707 = vmatpush1.msra.mxu0 0.0
        %2708 = vmatprep.subr.mxu0 0.0
        %2709 = vmatpush1.msra.mxu0 0.0
        %2710 = vmatprep.subr.mxu0 0.0
        %2711 = vmatpush1.msra.mxu0 0.0
        %2712 = vmatprep.subr.mxu0 0.0
        %2713 = vmatpush1.msra.mxu0 0.0
        %2714 = vmatprep.subr.mxu0 0.0
        %2715 = vmatpush1.msra.mxu0 0.0
        %2716 = vmatprep.subr.mxu0 0.0
        %2717 = vmatpush1.msra.mxu0 0.0
        %2718 = vmatprep.subr.mxu0 0.0
        %2719 = vmatpush1.msra.mxu0 0.0
        %2720 = vmatprep.subr.mxu0 0.0
        %2721 = vmatpush1.msra.mxu0 0.0
        %2722 = vmatprep.subr.mxu0 0.0
        %2723 = vmatpush1.msra.mxu0 0.0
        %2724 = vmatprep.subr.mxu0 0.0
        %2725 = vmatpush1.msra.mxu0 0.0
        %2726 = vmatprep.subr.mxu0 0.0
        %2727 = vmatpush1.msra.mxu0 0.0
        %2728 = vmatprep.subr.mxu0 0.0
        %2729 = vmatpush1.msra.mxu0 0.0
        %2730 = vmatprep.subr.mxu0 0.0
        %2731 = vmatpush1.msra.mxu0 0.0
        %2732 = vmatprep.subr.mxu0 0.0
        %2733 = vmatpush1.msra.mxu0 0.0
        %2734 = vmatprep.subr.mxu0 0.0
        %2735 = vmatpush1.msra.mxu0 0.0
        %2736 = vmatprep.subr.mxu0 0.0
        %2737 = vmatpush1.msra.mxu0 0.0
        %2738 = vmatprep.subr.mxu0 0.0
        %2739 = vmatpush1.msra.mxu0 0.0
        %2740 = vmatprep.subr.mxu0 0.0
        %2741 = vmatpush1.msra.mxu0 0.0
        %2742 = vmatprep.subr.mxu0 0.0
        %2743 = vmatpush1.msra.mxu0 0.0
        %2744 = vmatprep.subr.mxu0 0.0
        %2745 = vmatpush1.msra.mxu0 0.0
        %2746 = vmatprep.subr.mxu0 0.0
        %2747 = vmatpush1.msra.mxu0 0.0
        %2748 = vmatprep.subr.mxu0 0.0
        %2749 = vmatpush1.msra.mxu0 0.0
        %2750 = vmatprep.subr.mxu0 0.0
        %2751 = vmatpush1.msra.mxu0 0.0
        %2752 = vmatprep.subr.mxu0 0.0
        %2753 = vmatpush1.msra.mxu0 0.0
        %2754 = vmatprep.subr.mxu0 0.0
        %2755 = vmatpush1.msra.mxu0 0.0
        %2756 = vmatprep.subr.mxu0 0.0
        %2757 = vmatpush1.msra.mxu0 0.0
        %2758 = vmatprep.subr.mxu0 0.0
        %2759 = vmatpush1.msra.mxu0 0.0
        %2760 = vmatprep.subr.mxu0 0.0
        %2761 = vmatpush1.msra.mxu0 0.0
        %2762 = vmatprep.mubr.f32.mxu0 0.0
        %2763 = vmatmul.mubr.f32.gmra.mrb[0].mxu0 %v2696
        %v2764 = vpop.f32.mrb[0].mxu0
        %v2765 = vadd.f32 %v2693, %v2764
        %v2766 = vpop.f32.mrb[0].mxu0
        %2767 = vdwg.mxu0
        %v2768 = vmax.f32 %v2765, 0.0
        %v2769 = vld [vmem:[%s16] sm:$0xff]
        %v2770 = vld [vmem:[%s16 + $0x8] sm:$0xff]
        %v2771 = vld [vmem:[%s16 + $0x10] sm:$0xff]
        %v2772 = vld [vmem:[%s16 + $0x18] sm:$0xff]
        %v2773 = vld [vmem:[%s16 + $0x20] sm:$0xff]
        %v2774 = vld [vmem:[%s16 + $0x28] sm:$0xff]
        %v2775 = vld [vmem:[%s16 + $0x30] sm:$0xff]
        %v2776 = vld [vmem:[%s16 + $0x38] sm:$0xff]
        %vm2777 = vcmask 523264
        %v2779 = vsel %vm2777, %v2768, 0
        %2781 = vmatprep.subr.mxu0 0.0
        %2782 = vmatpush1.msra.mxu0 %v2769
        %2783 = vmatprep.subr.mxu0 0.0
        %2784 = vmatpush1.msra.mxu0 %v2770
        %2785 = vmatprep.subr.mxu0 0.0
        %2786 = vmatpush1.msra.mxu0 %v2771
        %2787 = vmatprep.subr.mxu0 0.0
        %2788 = vmatpush1.msra.mxu0 %v2772
        %2789 = vmatprep.subr.mxu0 0.0
        %2790 = vmatpush1.msra.mxu0 %v2773
        %2791 = vmatprep.subr.mxu0 0.0
        %2792 = vmatpush1.msra.mxu0 %v2774
        %2793 = vmatprep.subr.mxu0 0.0
        %2794 = vmatpush1.msra.mxu0 %v2775
        %2795 = vmatprep.subr.mxu0 0.0
        %2796 = vmatpush1.msra.mxu0 %v2776
        %2797 = vmatprep.subr.mxu0 0.0
        %2798 = vmatpush1.msra.mxu0 0.0
        %2799 = vmatprep.subr.mxu0 0.0
        %2800 = vmatpush1.msra.mxu0 0.0
        %2801 = vmatprep.subr.mxu0 0.0
        %2802 = vmatpush1.msra.mxu0 0.0
        %2803 = vmatprep.subr.mxu0 0.0
        %2804 = vmatpush1.msra.mxu0 0.0
        %2805 = vmatprep.subr.mxu0 0.0
        %2806 = vmatpush1.msra.mxu0 0.0
        %2807 = vmatprep.subr.mxu0 0.0
        %2808 = vmatpush1.msra.mxu0 0.0
        %2809 = vmatprep.subr.mxu0 0.0
        %2810 = vmatpush1.msra.mxu0 0.0
        %2811 = vmatprep.subr.mxu0 0.0
        %2812 = vmatpush1.msra.mxu0 0.0
        %2813 = vmatprep.subr.mxu0 0.0
        %2814 = vmatpush1.msra.mxu0 0.0
        %2815 = vmatprep.subr.mxu0 0.0
        %2816 = vmatpush1.msra.mxu0 0.0
        %2817 = vmatprep.subr.mxu0 0.0
        %2818 = vmatpush1.msra.mxu0 0.0
        %2819 = vmatprep.subr.mxu0 0.0
        %2820 = vmatpush1.msra.mxu0 0.0
        %2821 = vmatprep.subr.mxu0 0.0
        %2822 = vmatpush1.msra.mxu0 0.0
        %2823 = vmatprep.subr.mxu0 0.0
        %2824 = vmatpush1.msra.mxu0 0.0
        %2825 = vmatprep.subr.mxu0 0.0
        %2826 = vmatpush1.msra.mxu0 0.0
        %2827 = vmatprep.subr.mxu0 0.0
        %2828 = vmatpush1.msra.mxu0 0.0
        %2829 = vmatprep.subr.mxu0 0.0
        %2830 = vmatpush1.msra.mxu0 0.0
        %2831 = vmatprep.subr.mxu0 0.0
        %2832 = vmatpush1.msra.mxu0 0.0
        %2833 = vmatprep.subr.mxu0 0.0
        %2834 = vmatpush1.msra.mxu0 0.0
        %2835 = vmatprep.subr.mxu0 0.0
        %2836 = vmatpush1.msra.mxu0 0.0
        %2837 = vmatprep.subr.mxu0 0.0
        %2838 = vmatpush1.msra.mxu0 0.0
        %2839 = vmatprep.subr.mxu0 0.0
        %2840 = vmatpush1.msra.mxu0 0.0
        %2841 = vmatprep.subr.mxu0 0.0
        %2842 = vmatpush1.msra.mxu0 0.0
        %2843 = vmatprep.subr.mxu0 0.0
        %2844 = vmatpush1.msra.mxu0 0.0
        %2845 = vmatprep.mubr.f32.mxu0 0.0
        %2846 = vmatmul.mubr.f32.gmra.mrb[0].mxu0 %v2779
        %v2847 = vpop.f32.mrb[0].mxu0
        %v2848 = vadd.f32 0.0, %v2847
        %v2849 = vpop.f32.mrb[0].mxu0
        %2850 = vdwg.mxu0
        %v2851 = vadd.f32 %v2657, %v2848
        %v2852 = vld [vmem:[%s17] sm:$0x1]
        %v2854 = vlaneseq
        %v2855 = vshrl.u32 %v2854, 7
        %v2856 = vsub.s32 0, %v2855
        %v2857 = vrot.slane %v2852, %v2856
        %v2859 = vadd.f32 %v2851, %v2857
        %2860 = vst.msk [vmem:[%s744] sm:$0xff] %vm1678, %v2859
        %s2861 = sand.u32 %s480, 1
        %s2862 = scalar_lea.sflag [#allocation7], %s2861
        %s2863 = sand.u32 %s480, 1
        %s2864 = smul.addr %s2863, 8
        %s2865 = scalar_lea.vmem [#allocation16], %s2864
        // Predicated region
        $region125: #{tpu_custom_call.1} parent=95 // pred_check
          %p2866 = pneg %p490
        $region126: #{tpu_custom_call.1} parent=95 // pred_check_branch
          %2868 = sbr.rel (%p2866) target = $region128
        $region127: #{tpu_custom_call.1} parent=95 // pred_region
          %s2870 = ssub.s32 128, 128
          %2871 = vsyncadd %s2862, %s2870
          %s2872 = sadd.s32 %s44, %s43
          %s2873 = smul.addr %s2872, 128
          %s2874 = scalar_lea.hbm %s19, %s2873
          %s2876 = sshll.u32 %s2865, 4
          %s2877 = int_to_ptr.vmem [resolvable:$true] %s2876
          %2879 = dma.vmem_to_hbm [thread:$0]  %s2877, 128, %s2874, %s2862
        $region128: #{tpu_custom_call.1} parent=95 // pred_fallthru
          _
      $region96: #{tpu_custom_call.1} parent=5 // pred_fallthru
        _
      %p2880 = scmp.le.s32.totalorder 2, %s34
      // Predicated region
      $region129: #{tpu_custom_call.1} parent=5 // pred_check
        %p2881 = pneg %p2880
      $region130: #{tpu_custom_call.1} parent=5 // pred_check_branch
        %2883 = sbr.rel (%p2881) target = $region132
      $region131: #{tpu_custom_call.1} parent=5 // pred_region
        %s2884 = ssub.s32 %s34, 2
        // Predicated region
        $region133: #{tpu_custom_call.1} parent=131 // pred_check
          %p2885 = pneg %p496
        $region134: #{tpu_custom_call.1} parent=131 // pred_check_branch
          %2887 = sbr.rel (%p2885) target = $region136
        $region135: #{tpu_custom_call.1} parent=131 // pred_region
          %s2888 = sand.u32 %s481, 1
          %s2889 = scalar_lea.sflag [#allocation7], %s2888
          %s2890 = sand.u32 %s481, 1
          %s2891 = smul.addr %s2890, 8
          %s2892 = scalar_lea.vmem [#allocation16], %s2891
          %2893 = dma.done %s2889, 128
        $region136: #{tpu_custom_call.1} parent=131 // pred_fallthru
          _
      $region132: #{tpu_custom_call.1} parent=5 // pred_fallthru
        _
    $region6: #{tpu_custom_call.1} parent=1 // loop_footer
      %s38 = sadd.s32 1, %s34
    $region7: #{tpu_custom_call.1} parent=1 // loop_footer_branch
      %33 = sbr.rel target = $region3
    $region8: #{tpu_custom_call.1} parent=1 // loop_exit
      _
    %2894 = vsyncpa [#allocation6], 1
    %s2895 = scalar_lea.sflag [#allocation6], 1
    %2896 = vsyncpa %s2895, 1
    %2897 = vsyncpa [#allocation10], 1
    %2898 = vsyncpa [#allocation13], 1
    %2899 = vsyncpa [#allocation7], 1
    %s2900 = scalar_lea.sflag [#allocation7], 1
    %2901 = vsyncpa %s2900, 1
    %2902 = vsyncpa [#allocation8], 1
    %s2903 = scalar_lea.sflag [#allocation8], 1
    %2904 = vsyncpa %s2903, 1

</llo_original>
